<compile_context>
chip_gen: v7x
topology: tpu7x:2x2x1
jax: 0.10.0
libtpu: 0.0.40
codegen_flags: <defaults>
</compile_context>

<pallas_src>
import functools

import numpy as np
import jax
import jax.numpy as jnp
from jax.experimental import pallas as pl
from jax.experimental.pallas import tpu as pltpu


# ----------------------------------------------------------------------------
# small helpers
# ----------------------------------------------------------------------------
def _width_stencil_matrix(w):
    """(W, 2W) matrix folding bilinear 2x width-upsample + [1,2,1]/4 smooth
    (replication padded) into one matmul; exact composition incl. edges."""
    s = np.zeros((w, 2 * w), np.float32)
    for j in range(2 * w):
        k = j // 2
        if j % 2 == 0:
            taps = ((k - 1, 0.3125), (k, 0.625), (k + 1, 0.0625))
        else:
            taps = ((k - 1, 0.0625), (k, 0.625), (k + 1, 0.3125))
        for src, wt in taps:
            s[min(max(src, 0), w - 1), j] += wt
    return s


def _erf(z):
    # Abramowitz & Stegun 7.1.26 (|err| ~ 1.5e-7); exp rides the EUP slot.
    a1, a2, a3, a4, a5 = (0.254829592, -0.284496736, 1.421413741,
                          -1.453152027, 1.061405429)
    p = 0.3275911
    sgn = jnp.where(z < 0.0, -1.0, 1.0)
    za = jnp.abs(z)
    t = 1.0 / (1.0 + p * za)
    poly = ((((a5 * t + a4) * t + a3) * t + a2) * t + a1) * t
    return sgn * (1.0 - poly * jnp.exp(-za * za))


def _pick_hb(h, w, c_in, c_out, batch, budget_bytes):
    """Largest row-block that divides H, keeps the output tile lane-aligned
    (2*hb*2W % 128 == 0 unless hb == H) and fits the VMEM working-set budget."""
    c_mid = 4 * c_out
    ok = []
    for d in range(1, h + 1):
        if h % d:
            continue
        if (4 * d * w) % 128 and d != h:
            continue
        if 2 * d + 2 > 64:                       # cap unrolled stencil rows
            continue
        n = 4 * d * w                            # merged spatial extent of tile
        words = ((d + 4) * c_in * w * 4          # raw rows + height planes
                 + (2 * d + 2) * 2 * w * c_in * 5  # merged/shifted smoothed rows
                 + n * (3 * c_out + 2 * c_mid)     # conv acc + MLP hidden
                 + 2 * n * c_out                   # result + output buffer
                 + 9 * c_out * c_in + 2 * c_mid * c_out)
        if 4 * words > budget_bytes:
            continue
        ok.append(d)
    if not ok:
        return h
    hb = max(ok)
    if batch == 1 and hb == h:
        smaller = [d for d in ok if 2 * d <= h]
        if smaller:                              # >= 2 row blocks for 2nd TC (v7x)
            hb = max(smaller)
    return hb


# ----------------------------------------------------------------------------
# single fused kernel: upsample + smooth + conv3x3 + MLP + residual
# ----------------------------------------------------------------------------
def _fused_kernel(x_ref, p2_ref, p1_ref, n1_ref, n2_ref, sw_ref, wt_ref,
                  bc_ref, w1_ref, b1_ref, w2_ref, b2_ref, o_ref,
                  *, hb, w, c_in, c_out):
    f32 = jnp.float32
    i = pl.program_id(1)
    nb = pl.num_programs(1)
    w_up = 2 * w
    n_rows = 2 * hb + 2                 # smoothed rows: 2*hb outputs + conv halo
    span = 2 * hb * w_up                # merged spatial extent of the output tile

    # ---- gather hb+4 input rows (clamped halos == replication padding) ------
    v = jnp.concatenate(
        [p2_ref[0, :, :, :], p1_ref[0, :, :, :], x_ref[0, :, :, :],
         n1_ref[0, :, :, :], n2_ref[0, :, :, :]], axis=0).astype(f32)
    # v: (hb+4, C_in, W); local row l == image row i*hb - 2 + l (clamped).

    # ---- fused bilinear-up + [1,2,1]/4 smooth along H (exact 3-tap) ---------
    even_pl = 0.3125 * v[1:hb + 2] + 0.625 * v[2:hb + 3] + 0.0625 * v[3:hb + 4]
    odd_pl = 0.0625 * v[0:hb + 1] + 0.625 * v[1:hb + 2] + 0.3125 * v[2:hb + 3]

    # ---- fused up + smooth along W via the (W, 2W) stencil matrix (MXU); ----
    # ---- rows are emitted lane-merged: sm is (C_in, n_rows * 2W) ------------
    sw = sw_ref[...]
    mmt = sw.dtype
    top = jnp.where(i == 0, 0.0, 1.0)           # conv zero-pad at image top
    bot = jnp.where(i == nb - 1, 0.0, 1.0)      # ... and bottom
    pieces = []
    for m in range(n_rows):                     # row m == output row r0-1+m
        row = even_pl[(m - 1) // 2] if m % 2 else odd_pl[m // 2]   # (C_in, W)
        if m == 0:
            row = row * top
        if m == n_rows - 1:
            row = row * bot
        pieces.append(jnp.dot(row.astype(mmt), sw, preferred_element_type=f32))
    sm = jnp.concatenate(pieces, axis=1)        # (C_in, n_rows*2W) f32

    # ---- zero-padded +/-1 lane shifts for the conv's dx taps ----------------
    total = n_rows * w_up
    lane = jax.lax.broadcasted_iota(jnp.int32, (c_in, total), 1) % w_up
    zcol = jnp.zeros((c_in, 1), f32)
    sm_m = jnp.where(lane == 0, 0.0,
                     jnp.concatenate([zcol, sm[:, :total - 1]], axis=1))
    sm_p = jnp.where(lane == w_up - 1, 0.0,
                     jnp.concatenate([sm[:, 1:], zcol], axis=1))

    # ---- 3x3 conv: 9 accumulating (C_out, C_in) @ (C_in, 2*hb*2W) matmuls ---
    wt = wt_ref[...]                            # (9, C_out, C_in)
    conv = None
    for dy in range(3):
        off = dy * w_up
        for dx, var in enumerate((sm_m, sm, sm_p)):
            act = var[:, off:off + span].astype(mmt)
            part = jnp.dot(wt[3 * dy + dx], act, preferred_element_type=f32)
            conv = part if conv is None else conv + part
    conv = conv + bc_ref[...].astype(f32)       # (C_out, 2*hb*2W)

    # ---- 1x1 MLP, exact-erf GELU with 1/sqrt(2) folded into the weights -----
    z = jnp.dot(w1_ref[...], conv.astype(mmt),
                preferred_element_type=f32) + b1_ref[...].astype(f32)
    act = z * (1.0 + _erf(z))                   # == sqrt(2)*gelu(hid)/|w2 fold|
    mlp = jnp.dot(w2_ref[...], act.astype(mmt),
                  preferred_element_type=f32) + b2_ref[...].astype(f32)

    o_ref[0, :, :] = (mlp + conv).astype(o_ref.dtype)


# ----------------------------------------------------------------------------
# full module forward
# ----------------------------------------------------------------------------
@jax.jit
def upsample_forward(x, conv_w, conv_b, mlp_w1, mlp_b1, mlp_w2, mlp_b2):
    """Upsample.forward: x (B, C_in, H, W) -> (B, C_out, 2H, 2W), dtype kept."""
    b, c_in, h, w = x.shape
    c_out = conv_w.shape[0]
    c_mid = mlp_w1.shape[0]
    mmt = jnp.bfloat16 if x.dtype == jnp.bfloat16 else jnp.float32
    inv_sqrt2 = 0.7071067811865476

    # Channel-inner input layout: a single small pass over the 1x-sized input.
    # TODO(synk): fetch halos from plain-NCHW neighbour blocks to drop this too.
    xt = jnp.transpose(x, (0, 2, 1, 3))                      # (B, H, C_in, W)

    sw = jnp.asarray(_width_stencil_matrix(w)).astype(mmt)   # (W, 2W)
    wt = jnp.transpose(conv_w, (2, 3, 0, 1)).reshape(9, c_out, c_in).astype(mmt)
    bc = conv_b.reshape(c_out, 1).astype(jnp.float32)
    w1 = (mlp_w1.reshape(c_mid, c_out) * inv_sqrt2).astype(mmt)
    b1 = (mlp_b1.reshape(c_mid, 1) * inv_sqrt2).astype(jnp.float32)
    w2 = (mlp_w2.reshape(c_out, c_mid) * inv_sqrt2).astype(mmt)
    b2 = mlp_b2.reshape(c_out, 1).astype(jnp.float32)

    vmem_cap = 64 * 1024 * 1024                  # v7x-safe default
    try:                                         # generation-aware budgeting
        vmem_cap = int(pltpu.get_tpu_info().vmem_capacity_bytes)
    except Exception:
        pass
    vmem_limit = int(min(vmem_cap * 0.6, 96 * 1024 * 1024))
    hb = _pick_hb(h, w, c_in, c_out, b, vmem_limit // 2)
    nb = h // hb
    span = 4 * hb * w                            # lanes of one (2*hb, 2W) tile

    kernel = functools.partial(_fused_kernel, hb=hb, w=w, c_in=c_in, c_out=c_out)

    out_flat = pl.pallas_call(
        kernel,
        out_shape=jax.ShapeDtypeStruct((b, c_out, 4 * h * w), x.dtype),
        grid_spec=pltpu.PrefetchScalarGridSpec(
            num_scalar_prefetch=0,
            grid=(b, nb),
            in_specs=[
                pl.BlockSpec((1, hb, c_in, w), lambda bb, i: (bb, i, 0, 0)),
                pl.BlockSpec((1, 1, c_in, w),
                             lambda bb, i: (bb, jnp.maximum(i * hb - 2, 0), 0, 0)),
                pl.BlockSpec((1, 1, c_in, w),
                             lambda bb, i: (bb, jnp.maximum(i * hb - 1, 0), 0, 0)),
                pl.BlockSpec((1, 1, c_in, w),
                             lambda bb, i: (bb, jnp.minimum((i + 1) * hb, h - 1), 0, 0)),
                pl.BlockSpec((1, 1, c_in, w),
                             lambda bb, i: (bb, jnp.minimum((i + 1) * hb + 1, h - 1), 0, 0)),
                pl.BlockSpec((w, 2 * w), lambda bb, i: (0, 0)),
                pl.BlockSpec((9, c_out, c_in), lambda bb, i: (0, 0, 0)),
                pl.BlockSpec((c_out, 1), lambda bb, i: (0, 0)),
                pl.BlockSpec((c_mid, c_out), lambda bb, i: (0, 0)),
                pl.BlockSpec((c_mid, 1), lambda bb, i: (0, 0)),
                pl.BlockSpec((c_out, c_mid), lambda bb, i: (0, 0)),
                pl.BlockSpec((c_out, 1), lambda bb, i: (0, 0)),
            ],
            out_specs=pl.BlockSpec((1, c_out, span), lambda bb, i: (bb, 0, i)),
        ),
        compiler_params=pltpu.CompilerParams(
            dimension_semantics=("parallel", "parallel"),
            vmem_limit_bytes=vmem_limit),
    )(xt, xt, xt, xt, xt, sw, wt, bc, w1, b1, w2, b2)

    # (B, C_out, 2H*2W) -> (B, C_out, 2H, 2W): free row-major view, no transpose.
    return out_flat.reshape(b, c_out, 2 * h, 2 * w)


# ----------------------------------------------------------------------------
# pure-JAX reference (matches the PyTorch module op-for-op)
# ----------------------------------------------------------------------------
def _reference_forward(x, conv_w, conv_b, mlp_w1, mlp_b1, mlp_w2, mlp_b2):
    b, c, h, w = x.shape
    xf = x.astype(jnp.float32)

    def src_idx(n):
        s = (jnp.arange(2 * n, dtype=jnp.float32) + 0.5) * 0.5 - 0.5
        s = jnp.maximum(s, 0.0)                   # PyTorch align_corners=False clamp
        i0 = jnp.floor(s).astype(jnp.int32)
        fr = s - i0.astype(jnp.float32)
        i1 = jnp.minimum(i0 + 1, n - 1)
        return i0, i1, fr

    i0, i1, fr = src_idx(h)
    up_h = (xf[:, :, i0, :] * (1.0 - fr)[None, None, :, None]
            + xf[:, :, i1, :] * fr[None, None, :, None])
    j0, j1, fc = src_idx(w)
    up = up_h[:, :, :, j0] * (1.0 - fc) + up_h[:, :, :, j1] * fc

    pad = jnp.pad(up, ((0, 0), (0, 0), (1, 1), (1, 1)), mode="edge")
    kern = jnp.array([[1., 2., 1.], [2., 4., 2.], [1., 2., 1.]], jnp.float32) / 16.0
    sm = jnp.zeros_like(up)
    for di in range(3):
        for dj in range(3):
            sm = sm + kern[di, dj] * pad[:, :, di:di + 2 * h, dj:dj + 2 * w]

    conv = jax.lax.conv_general_dilated(
        sm, conv_w.astype(jnp.float32), window_strides=(1, 1),
        padding=((1, 1), (1, 1)),
        dimension_numbers=("NCHW", "OIHW", "NCHW")) + conv_b[None, :, None, None]

    w1 = mlp_w1.reshape(mlp_w1.shape[0], mlp_w1.shape[1]).astype(jnp.float32)
    w2 = mlp_w2.reshape(mlp_w2.shape[0], mlp_w2.shape[1]).astype(jnp.float32)
    hid = jnp.einsum('dc,bchw->bdhw', w1, conv) + mlp_b1[None, :, None, None]
    act = jax.nn.gelu(hid, approximate=False)
    mlp = jnp.einsum('cd,bdhw->bchw', w2, act) + mlp_b2[None, :, None, None]
    return (mlp + conv).astype(x.dtype)


if __name__ == "__main__":
    key = jax.random.PRNGKey(0)
    ks = jax.random.split(key, 7)
    B, INC, OUTC, H, W = 2, 4, 8, 16, 16

    x = jax.random.normal(ks[0], (B, INC, H, W), jnp.float32)
    conv_w = jax.random.normal(ks[1], (OUTC, INC, 3, 3), jnp.float32) * 0.1
    conv_b = jax.random.normal(ks[2], (OUTC,), jnp.float32) * 0.1
    mlp_w1 = jax.random.normal(ks[3], (4 * OUTC, OUTC, 1, 1), jnp.float32) * 0.1
    mlp_b1 = jax.random.normal(ks[4], (4 * OUTC,), jnp.float32) * 0.1
    mlp_w2 = jax.random.normal(ks[5], (OUTC, 4 * OUTC, 1, 1), jnp.float32) * 0.1
    mlp_b2 = jax.random.normal(ks[6], (OUTC,), jnp.float32) * 0.1

    y = upsample_forward(x, conv_w, conv_b, mlp_w1, mlp_b1, mlp_w2, mlp_b2)
    jax.block_until_ready(y)

    y_ref = _reference_forward(x, conv_w, conv_b, mlp_w1, mlp_b1, mlp_w2, mlp_b2)
    assert y.shape == (B, OUTC, 2 * H, 2 * W) and y.dtype == x.dtype
    max_err = float(jnp.max(jnp.abs(y - y_ref)))
    assert max_err < 1e-4, f"mismatch vs reference: {max_err}"

    print("KERNEL_OK")
</pallas_src>

<mosaic_0001>
module attributes {stable_mosaic.version = 11 : i64} {
  func.func @_fused_kernel(%arg0: i32, %arg1: i32, %arg2: memref<1x16x4x16xf32, #tpu.memory_space<vmem>>, %arg3: memref<1x1x4x16xf32, #tpu.memory_space<vmem>>, %arg4: memref<1x1x4x16xf32, #tpu.memory_space<vmem>>, %arg5: memref<1x1x4x16xf32, #tpu.memory_space<vmem>>, %arg6: memref<1x1x4x16xf32, #tpu.memory_space<vmem>>, %arg7: memref<16x32xf32, #tpu.memory_space<vmem>>, %arg8: memref<9x8x4xf32, #tpu.memory_space<vmem>>, %arg9: memref<8x1xf32, #tpu.memory_space<vmem>>, %arg10: memref<32x8xf32, #tpu.memory_space<vmem>>, %arg11: memref<32x1xf32, #tpu.memory_space<vmem>>, %arg12: memref<8x32xf32, #tpu.memory_space<vmem>>, %arg13: memref<8x1xf32, #tpu.memory_space<vmem>>, %arg14: memref<1x8x1024xf32, #tpu.memory_space<vmem>>) attributes {dimension_semantics = [#tpu.dimension_semantics<parallel>, #tpu.dimension_semantics<parallel>], iteration_bounds = array<i64: 2, 1>, scalar_prefetch = 0 : i64, scratch_operands = 0 : i64, tpu.core_type = #tpu.core_type<tc>, window_params = [{transform_indices = @transform_0, window_bounds = array<i64: 1, 16, 4, 16>}, {transform_indices = @transform_1, window_bounds = array<i64: 1, 1, 4, 16>}, {transform_indices = @transform_2, window_bounds = array<i64: 1, 1, 4, 16>}, {transform_indices = @transform_3, window_bounds = array<i64: 1, 1, 4, 16>}, {transform_indices = @transform_4, window_bounds = array<i64: 1, 1, 4, 16>}, {pipeline_mode = #tpu.pipeline_mode<synchronous>, transform_indices = @transform_5, window_bounds = array<i64: 16, 32>}, {pipeline_mode = #tpu.pipeline_mode<synchronous>, transform_indices = @transform_6, window_bounds = array<i64: 9, 8, 4>}, {pipeline_mode = #tpu.pipeline_mode<synchronous>, transform_indices = @transform_7, window_bounds = array<i64: 8, 1>}, {pipeline_mode = #tpu.pipeline_mode<synchronous>, transform_indices = @transform_8, window_bounds = array<i64: 32, 8>}, {pipeline_mode = #tpu.pipeline_mode<synchronous>, transform_indices = @transform_9, window_bounds = array<i64: 32, 1>}, {pipeline_mode = #tpu.pipeline_mode<synchronous>, transform_indices = @transform_10, window_bounds = array<i64: 8, 32>}, {pipeline_mode = #tpu.pipeline_mode<synchronous>, transform_indices = @transform_11, window_bounds = array<i64: 8, 1>}, {transform_indices = @transform_12, window_bounds = array<i64: 1, 8, 1024>}]} {
    %c0 = arith.constant 0 : index
    %c0_0 = arith.constant 0 : index
    %c0_1 = arith.constant 0 : index
    %c0_2 = arith.constant 0 : index
    %0 = vector.load %arg3[%c0, %c0_0, %c0_1, %c0_2] : memref<1x1x4x16xf32, #tpu.memory_space<vmem>>, vector<1x1x4x16xf32>
    %1 = vector.shape_cast %0 : vector<1x1x4x16xf32> to vector<1x4x16xf32>
    %c0_3 = arith.constant 0 : index
    %c0_4 = arith.constant 0 : index
    %c0_5 = arith.constant 0 : index
    %c0_6 = arith.constant 0 : index
    %2 = vector.load %arg4[%c0_3, %c0_4, %c0_5, %c0_6] : memref<1x1x4x16xf32, #tpu.memory_space<vmem>>, vector<1x1x4x16xf32>
    %3 = vector.shape_cast %2 : vector<1x1x4x16xf32> to vector<1x4x16xf32>
    %c0_7 = arith.constant 0 : index
    %c0_8 = arith.constant 0 : index
    %c0_9 = arith.constant 0 : index
    %c0_10 = arith.constant 0 : index
    %4 = vector.load %arg2[%c0_7, %c0_8, %c0_9, %c0_10] : memref<1x16x4x16xf32, #tpu.memory_space<vmem>>, vector<1x16x4x16xf32>
    %5 = vector.shape_cast %4 : vector<1x16x4x16xf32> to vector<16x4x16xf32>
    %c0_11 = arith.constant 0 : index
    %c0_12 = arith.constant 0 : index
    %c0_13 = arith.constant 0 : index
    %c0_14 = arith.constant 0 : index
    %6 = vector.load %arg5[%c0_11, %c0_12, %c0_13, %c0_14] : memref<1x1x4x16xf32, #tpu.memory_space<vmem>>, vector<1x1x4x16xf32>
    %7 = vector.shape_cast %6 : vector<1x1x4x16xf32> to vector<1x4x16xf32>
    %c0_15 = arith.constant 0 : index
    %c0_16 = arith.constant 0 : index
    %c0_17 = arith.constant 0 : index
    %c0_18 = arith.constant 0 : index
    %8 = vector.load %arg6[%c0_15, %c0_16, %c0_17, %c0_18] : memref<1x1x4x16xf32, #tpu.memory_space<vmem>>, vector<1x1x4x16xf32>
    %9 = vector.shape_cast %8 : vector<1x1x4x16xf32> to vector<1x4x16xf32>
    %10 = tpu.concatenate %1, %3, %5, %7, %9 in 0 : vector<1x4x16xf32>, vector<1x4x16xf32>, vector<16x4x16xf32>, vector<1x4x16xf32>, vector<1x4x16xf32> -> vector<20x4x16xf32>
    %11 = vector.extract_strided_slice %10 {offsets = [1, 0, 0], sizes = [17, 4, 16], strides = [1, 1, 1]} : vector<20x4x16xf32> to vector<17x4x16xf32>
    %cst = arith.constant 3.125000e-01 : f32
    %12 = vector.broadcast %cst : f32 to vector<17x4x16xf32>
    %13 = arith.mulf %12, %11 : vector<17x4x16xf32>
    %14 = vector.extract_strided_slice %10 {offsets = [2, 0, 0], sizes = [17, 4, 16], strides = [1, 1, 1]} : vector<20x4x16xf32> to vector<17x4x16xf32>
    %cst_19 = arith.constant 6.250000e-01 : f32
    %15 = vector.broadcast %cst_19 : f32 to vector<17x4x16xf32>
    %16 = arith.mulf %15, %14 : vector<17x4x16xf32>
    %17 = arith.addf %13, %16 : vector<17x4x16xf32>
    %18 = vector.extract_strided_slice %10 {offsets = [3, 0, 0], sizes = [17, 4, 16], strides = [1, 1, 1]} : vector<20x4x16xf32> to vector<17x4x16xf32>
    %cst_20 = arith.constant 6.250000e-02 : f32
    %19 = vector.broadcast %cst_20 : f32 to vector<17x4x16xf32>
    %20 = arith.mulf %19, %18 : vector<17x4x16xf32>
    %21 = arith.addf %17, %20 : vector<17x4x16xf32>
    %22 = vector.extract_strided_slice %10 {offsets = [0, 0, 0], sizes = [17, 4, 16], strides = [1, 1, 1]} : vector<20x4x16xf32> to vector<17x4x16xf32>
    %cst_21 = arith.constant 6.250000e-02 : f32
    %23 = vector.broadcast %cst_21 : f32 to vector<17x4x16xf32>
    %24 = arith.mulf %23, %22 : vector<17x4x16xf32>
    %25 = vector.extract_strided_slice %10 {offsets = [1, 0, 0], sizes = [17, 4, 16], strides = [1, 1, 1]} : vector<20x4x16xf32> to vector<17x4x16xf32>
    %cst_22 = arith.constant 6.250000e-01 : f32
    %26 = vector.broadcast %cst_22 : f32 to vector<17x4x16xf32>
    %27 = arith.mulf %26, %25 : vector<17x4x16xf32>
    %28 = arith.addf %24, %27 : vector<17x4x16xf32>
    %29 = vector.extract_strided_slice %10 {offsets = [2, 0, 0], sizes = [17, 4, 16], strides = [1, 1, 1]} : vector<20x4x16xf32> to vector<17x4x16xf32>
    %cst_23 = arith.constant 3.125000e-01 : f32
    %30 = vector.broadcast %cst_23 : f32 to vector<17x4x16xf32>
    %31 = arith.mulf %30, %29 : vector<17x4x16xf32>
    %32 = arith.addf %28, %31 : vector<17x4x16xf32>
    %c0_24 = arith.constant 0 : index
    %c0_25 = arith.constant 0 : index
    %33 = vector.load %arg7[%c0_24, %c0_25] : memref<16x32xf32, #tpu.memory_space<vmem>>, vector<16x32xf32>
    %c0_i32 = arith.constant 0 : i32
    %34 = arith.cmpi eq, %arg1, %c0_i32 : i32
    %cst_26 = arith.constant 0.000000e+00 : f32
    %cst_27 = arith.constant 1.000000e+00 : f32
    %35 = arith.select %34, %cst_26, %cst_27 : f32
    %c0_i32_28 = arith.constant 0 : i32
    %36 = arith.cmpi eq, %arg1, %c0_i32_28 : i32
    %cst_29 = arith.constant 0.000000e+00 : f32
    %cst_30 = arith.constant 1.000000e+00 : f32
    %37 = arith.select %36, %cst_29, %cst_30 : f32
    %38 = vector.extract_strided_slice %32 {offsets = [0, 0, 0], sizes = [1, 4, 16], strides = [1, 1, 1]} : vector<17x4x16xf32> to vector<1x4x16xf32>
    %39 = vector.shape_cast %38 : vector<1x4x16xf32> to vector<4x16xf32>
    %40 = vector.broadcast %35 : f32 to vector<4x16xf32>
    %41 = arith.mulf %39, %40 : vector<4x16xf32>
    %cst_31 = arith.constant dense<0.000000e+00> : vector<4x32xf32>
    %42 = tpu.matmul %41, %33, %cst_31 {dimension_numbers = #tpu.dot_dimension_numbers<[1], [0], [0], [1], [0, 0, 1, 1], [], []>} : vector<4x16xf32>, vector<16x32xf32>, vector<4x32xf32> -> vector<4x32xf32>
    %43 = vector.extract_strided_slice %21 {offsets = [0, 0, 0], sizes = [1, 4, 16], strides = [1, 1, 1]} : vector<17x4x16xf32> to vector<1x4x16xf32>
    %44 = vector.shape_cast %43 : vector<1x4x16xf32> to vector<4x16xf32>
    %cst_32 = arith.constant dense<0.000000e+00> : vector<4x32xf32>
    %45 = tpu.matmul %44, %33, %cst_32 {dimension_numbers = #tpu.dot_dimension_numbers<[1], [0], [0], [1], [0, 0, 1, 1], [], []>} : vector<4x16xf32>, vector<16x32xf32>, vector<4x32xf32> -> vector<4x32xf32>
    %46 = vector.extract_strided_slice %32 {offsets = [1, 0, 0], sizes = [1, 4, 16], strides = [1, 1, 1]} : vector<17x4x16xf32> to vector<1x4x16xf32>
    %47 = vector.shape_cast %46 : vector<1x4x16xf32> to vector<4x16xf32>
    %cst_33 = arith.constant dense<0.000000e+00> : vector<4x32xf32>
    %48 = tpu.matmul %47, %33, %cst_33 {dimension_numbers = #tpu.dot_dimension_numbers<[1], [0], [0], [1], [0, 0, 1, 1], [], []>} : vector<4x16xf32>, vector<16x32xf32>, vector<4x32xf32> -> vector<4x32xf32>
    %49 = vector.extract_strided_slice %21 {offsets = [1, 0, 0], sizes = [1, 4, 16], strides = [1, 1, 1]} : vector<17x4x16xf32> to vector<1x4x16xf32>
    %50 = vector.shape_cast %49 : vector<1x4x16xf32> to vector<4x16xf32>
    %cst_34 = arith.constant dense<0.000000e+00> : vector<4x32xf32>
    %51 = tpu.matmul %50, %33, %cst_34 {dimension_numbers = #tpu.dot_dimension_numbers<[1], [0], [0], [1], [0, 0, 1, 1], [], []>} : vector<4x16xf32>, vector<16x32xf32>, vector<4x32xf32> -> vector<4x32xf32>
    %52 = vector.extract_strided_slice %32 {offsets = [2, 0, 0], sizes = [1, 4, 16], strides = [1, 1, 1]} : vector<17x4x16xf32> to vector<1x4x16xf32>
    %53 = vector.shape_cast %52 : vector<1x4x16xf32> to vector<4x16xf32>
    %cst_35 = arith.constant dense<0.000000e+00> : vector<4x32xf32>
    %54 = tpu.matmul %53, %33, %cst_35 {dimension_numbers = #tpu.dot_dimension_numbers<[1], [0], [0], [1], [0, 0, 1, 1], [], []>} : vector<4x16xf32>, vector<16x32xf32>, vector<4x32xf32> -> vector<4x32xf32>
    %55 = vector.extract_strided_slice %21 {offsets = [2, 0, 0], sizes = [1, 4, 16], strides = [1, 1, 1]} : vector<17x4x16xf32> to vector<1x4x16xf32>
    %56 = vector.shape_cast %55 : vector<1x4x16xf32> to vector<4x16xf32>
    %cst_36 = arith.constant dense<0.000000e+00> : vector<4x32xf32>
    %57 = tpu.matmul %56, %33, %cst_36 {dimension_numbers = #tpu.dot_dimension_numbers<[1], [0], [0], [1], [0, 0, 1, 1], [], []>} : vector<4x16xf32>, vector<16x32xf32>, vector<4x32xf32> -> vector<4x32xf32>
    %58 = vector.extract_strided_slice %32 {offsets = [3, 0, 0], sizes = [1, 4, 16], strides = [1, 1, 1]} : vector<17x4x16xf32> to vector<1x4x16xf32>
    %59 = vector.shape_cast %58 : vector<1x4x16xf32> to vector<4x16xf32>
    %cst_37 = arith.constant dense<0.000000e+00> : vector<4x32xf32>
    %60 = tpu.matmul %59, %33, %cst_37 {dimension_numbers = #tpu.dot_dimension_numbers<[1], [0], [0], [1], [0, 0, 1, 1], [], []>} : vector<4x16xf32>, vector<16x32xf32>, vector<4x32xf32> -> vector<4x32xf32>
    %61 = vector.extract_strided_slice %21 {offsets = [3, 0, 0], sizes = [1, 4, 16], strides = [1, 1, 1]} : vector<17x4x16xf32> to vector<1x4x16xf32>
    %62 = vector.shape_cast %61 : vector<1x4x16xf32> to vector<4x16xf32>
    %cst_38 = arith.constant dense<0.000000e+00> : vector<4x32xf32>
    %63 = tpu.matmul %62, %33, %cst_38 {dimension_numbers = #tpu.dot_dimension_numbers<[1], [0], [0], [1], [0, 0, 1, 1], [], []>} : vector<4x16xf32>, vector<16x32xf32>, vector<4x32xf32> -> vector<4x32xf32>
    %64 = vector.extract_strided_slice %32 {offsets = [4, 0, 0], sizes = [1, 4, 16], strides = [1, 1, 1]} : vector<17x4x16xf32> to vector<1x4x16xf32>
    %65 = vector.shape_cast %64 : vector<1x4x16xf32> to vector<4x16xf32>
    %cst_39 = arith.constant dense<0.000000e+00> : vector<4x32xf32>
    %66 = tpu.matmul %65, %33, %cst_39 {dimension_numbers = #tpu.dot_dimension_numbers<[1], [0], [0], [1], [0, 0, 1, 1], [], []>} : vector<4x16xf32>, vector<16x32xf32>, vector<4x32xf32> -> vector<4x32xf32>
    %67 = vector.extract_strided_slice %21 {offsets = [4, 0, 0], sizes = [1, 4, 16], strides = [1, 1, 1]} : vector<17x4x16xf32> to vector<1x4x16xf32>
    %68 = vector.shape_cast %67 : vector<1x4x16xf32> to vector<4x16xf32>
    %cst_40 = arith.constant dense<0.000000e+00> : vector<4x32xf32>
    %69 = tpu.matmul %68, %33, %cst_40 {dimension_numbers = #tpu.dot_dimension_numbers<[1], [0], [0], [1], [0, 0, 1, 1], [], []>} : vector<4x16xf32>, vector<16x32xf32>, vector<4x32xf32> -> vector<4x32xf32>
    %70 = vector.extract_strided_slice %32 {offsets = [5, 0, 0], sizes = [1, 4, 16], strides = [1, 1, 1]} : vector<17x4x16xf32> to vector<1x4x16xf32>
    %71 = vector.shape_cast %70 : vector<1x4x16xf32> to vector<4x16xf32>
    %cst_41 = arith.constant dense<0.000000e+00> : vector<4x32xf32>
    %72 = tpu.matmul %71, %33, %cst_41 {dimension_numbers = #tpu.dot_dimension_numbers<[1], [0], [0], [1], [0, 0, 1, 1], [], []>} : vector<4x16xf32>, vector<16x32xf32>, vector<4x32xf32> -> vector<4x32xf32>
    %73 = vector.extract_strided_slice %21 {offsets = [5, 0, 0], sizes = [1, 4, 16], strides = [1, 1, 1]} : vector<17x4x16xf32> to vector<1x4x16xf32>
    %74 = vector.shape_cast %73 : vector<1x4x16xf32> to vector<4x16xf32>
    %cst_42 = arith.constant dense<0.000000e+00> : vector<4x32xf32>
    %75 = tpu.matmul %74, %33, %cst_42 {dimension_numbers = #tpu.dot_dimension_numbers<[1], [0], [0], [1], [0, 0, 1, 1], [], []>} : vector<4x16xf32>, vector<16x32xf32>, vector<4x32xf32> -> vector<4x32xf32>
    %76 = vector.extract_strided_slice %32 {offsets = [6, 0, 0], sizes = [1, 4, 16], strides = [1, 1, 1]} : vector<17x4x16xf32> to vector<1x4x16xf32>
    %77 = vector.shape_cast %76 : vector<1x4x16xf32> to vector<4x16xf32>
    %cst_43 = arith.constant dense<0.000000e+00> : vector<4x32xf32>
    %78 = tpu.matmul %77, %33, %cst_43 {dimension_numbers = #tpu.dot_dimension_numbers<[1], [0], [0], [1], [0, 0, 1, 1], [], []>} : vector<4x16xf32>, vector<16x32xf32>, vector<4x32xf32> -> vector<4x32xf32>
    %79 = vector.extract_strided_slice %21 {offsets = [6, 0, 0], sizes = [1, 4, 16], strides = [1, 1, 1]} : vector<17x4x16xf32> to vector<1x4x16xf32>
    %80 = vector.shape_cast %79 : vector<1x4x16xf32> to vector<4x16xf32>
    %cst_44 = arith.constant dense<0.000000e+00> : vector<4x32xf32>
    %81 = tpu.matmul %80, %33, %cst_44 {dimension_numbers = #tpu.dot_dimension_numbers<[1], [0], [0], [1], [0, 0, 1, 1], [], []>} : vector<4x16xf32>, vector<16x32xf32>, vector<4x32xf32> -> vector<4x32xf32>
    %82 = vector.extract_strided_slice %32 {offsets = [7, 0, 0], sizes = [1, 4, 16], strides = [1, 1, 1]} : vector<17x4x16xf32> to vector<1x4x16xf32>
    %83 = vector.shape_cast %82 : vector<1x4x16xf32> to vector<4x16xf32>
    %cst_45 = arith.constant dense<0.000000e+00> : vector<4x32xf32>
    %84 = tpu.matmul %83, %33, %cst_45 {dimension_numbers = #tpu.dot_dimension_numbers<[1], [0], [0], [1], [0, 0, 1, 1], [], []>} : vector<4x16xf32>, vector<16x32xf32>, vector<4x32xf32> -> vector<4x32xf32>
    %85 = vector.extract_strided_slice %21 {offsets = [7, 0, 0], sizes = [1, 4, 16], strides = [1, 1, 1]} : vector<17x4x16xf32> to vector<1x4x16xf32>
    %86 = vector.shape_cast %85 : vector<1x4x16xf32> to vector<4x16xf32>
    %cst_46 = arith.constant dense<0.000000e+00> : vector<4x32xf32>
    %87 = tpu.matmul %86, %33, %cst_46 {dimension_numbers = #tpu.dot_dimension_numbers<[1], [0], [0], [1], [0, 0, 1, 1], [], []>} : vector<4x16xf32>, vector<16x32xf32>, vector<4x32xf32> -> vector<4x32xf32>
    %88 = vector.extract_strided_slice %32 {offsets = [8, 0, 0], sizes = [1, 4, 16], strides = [1, 1, 1]} : vector<17x4x16xf32> to vector<1x4x16xf32>
    %89 = vector.shape_cast %88 : vector<1x4x16xf32> to vector<4x16xf32>
    %cst_47 = arith.constant dense<0.000000e+00> : vector<4x32xf32>
    %90 = tpu.matmul %89, %33, %cst_47 {dimension_numbers = #tpu.dot_dimension_numbers<[1], [0], [0], [1], [0, 0, 1, 1], [], []>} : vector<4x16xf32>, vector<16x32xf32>, vector<4x32xf32> -> vector<4x32xf32>
    %91 = vector.extract_strided_slice %21 {offsets = [8, 0, 0], sizes = [1, 4, 16], strides = [1, 1, 1]} : vector<17x4x16xf32> to vector<1x4x16xf32>
    %92 = vector.shape_cast %91 : vector<1x4x16xf32> to vector<4x16xf32>
    %cst_48 = arith.constant dense<0.000000e+00> : vector<4x32xf32>
    %93 = tpu.matmul %92, %33, %cst_48 {dimension_numbers = #tpu.dot_dimension_numbers<[1], [0], [0], [1], [0, 0, 1, 1], [], []>} : vector<4x16xf32>, vector<16x32xf32>, vector<4x32xf32> -> vector<4x32xf32>
    %94 = vector.extract_strided_slice %32 {offsets = [9, 0, 0], sizes = [1, 4, 16], strides = [1, 1, 1]} : vector<17x4x16xf32> to vector<1x4x16xf32>
    %95 = vector.shape_cast %94 : vector<1x4x16xf32> to vector<4x16xf32>
    %cst_49 = arith.constant dense<0.000000e+00> : vector<4x32xf32>
    %96 = tpu.matmul %95, %33, %cst_49 {dimension_numbers = #tpu.dot_dimension_numbers<[1], [0], [0], [1], [0, 0, 1, 1], [], []>} : vector<4x16xf32>, vector<16x32xf32>, vector<4x32xf32> -> vector<4x32xf32>
    %97 = vector.extract_strided_slice %21 {offsets = [9, 0, 0], sizes = [1, 4, 16], strides = [1, 1, 1]} : vector<17x4x16xf32> to vector<1x4x16xf32>
    %98 = vector.shape_cast %97 : vector<1x4x16xf32> to vector<4x16xf32>
    %cst_50 = arith.constant dense<0.000000e+00> : vector<4x32xf32>
    %99 = tpu.matmul %98, %33, %cst_50 {dimension_numbers = #tpu.dot_dimension_numbers<[1], [0], [0], [1], [0, 0, 1, 1], [], []>} : vector<4x16xf32>, vector<16x32xf32>, vector<4x32xf32> -> vector<4x32xf32>
    %100 = vector.extract_strided_slice %32 {offsets = [10, 0, 0], sizes = [1, 4, 16], strides = [1, 1, 1]} : vector<17x4x16xf32> to vector<1x4x16xf32>
    %101 = vector.shape_cast %100 : vector<1x4x16xf32> to vector<4x16xf32>
    %cst_51 = arith.constant dense<0.000000e+00> : vector<4x32xf32>
    %102 = tpu.matmul %101, %33, %cst_51 {dimension_numbers = #tpu.dot_dimension_numbers<[1], [0], [0], [1], [0, 0, 1, 1], [], []>} : vector<4x16xf32>, vector<16x32xf32>, vector<4x32xf32> -> vector<4x32xf32>
    %103 = vector.extract_strided_slice %21 {offsets = [10, 0, 0], sizes = [1, 4, 16], strides = [1, 1, 1]} : vector<17x4x16xf32> to vector<1x4x16xf32>
    %104 = vector.shape_cast %103 : vector<1x4x16xf32> to vector<4x16xf32>
    %cst_52 = arith.constant dense<0.000000e+00> : vector<4x32xf32>
    %105 = tpu.matmul %104, %33, %cst_52 {dimension_numbers = #tpu.dot_dimension_numbers<[1], [0], [0], [1], [0, 0, 1, 1], [], []>} : vector<4x16xf32>, vector<16x32xf32>, vector<4x32xf32> -> vector<4x32xf32>
    %106 = vector.extract_strided_slice %32 {offsets = [11, 0, 0], sizes = [1, 4, 16], strides = [1, 1, 1]} : vector<17x4x16xf32> to vector<1x4x16xf32>
    %107 = vector.shape_cast %106 : vector<1x4x16xf32> to vector<4x16xf32>
    %cst_53 = arith.constant dense<0.000000e+00> : vector<4x32xf32>
    %108 = tpu.matmul %107, %33, %cst_53 {dimension_numbers = #tpu.dot_dimension_numbers<[1], [0], [0], [1], [0, 0, 1, 1], [], []>} : vector<4x16xf32>, vector<16x32xf32>, vector<4x32xf32> -> vector<4x32xf32>
    %109 = vector.extract_strided_slice %21 {offsets = [11, 0, 0], sizes = [1, 4, 16], strides = [1, 1, 1]} : vector<17x4x16xf32> to vector<1x4x16xf32>
    %110 = vector.shape_cast %109 : vector<1x4x16xf32> to vector<4x16xf32>
    %cst_54 = arith.constant dense<0.000000e+00> : vector<4x32xf32>
    %111 = tpu.matmul %110, %33, %cst_54 {dimension_numbers = #tpu.dot_dimension_numbers<[1], [0], [0], [1], [0, 0, 1, 1], [], []>} : vector<4x16xf32>, vector<16x32xf32>, vector<4x32xf32> -> vector<4x32xf32>
    %112 = vector.extract_strided_slice %32 {offsets = [12, 0, 0], sizes = [1, 4, 16], strides = [1, 1, 1]} : vector<17x4x16xf32> to vector<1x4x16xf32>
    %113 = vector.shape_cast %112 : vector<1x4x16xf32> to vector<4x16xf32>
    %cst_55 = arith.constant dense<0.000000e+00> : vector<4x32xf32>
    %114 = tpu.matmul %113, %33, %cst_55 {dimension_numbers = #tpu.dot_dimension_numbers<[1], [0], [0], [1], [0, 0, 1, 1], [], []>} : vector<4x16xf32>, vector<16x32xf32>, vector<4x32xf32> -> vector<4x32xf32>
    %115 = vector.extract_strided_slice %21 {offsets = [12, 0, 0], sizes = [1, 4, 16], strides = [1, 1, 1]} : vector<17x4x16xf32> to vector<1x4x16xf32>
    %116 = vector.shape_cast %115 : vector<1x4x16xf32> to vector<4x16xf32>
    %cst_56 = arith.constant dense<0.000000e+00> : vector<4x32xf32>
    %117 = tpu.matmul %116, %33, %cst_56 {dimension_numbers = #tpu.dot_dimension_numbers<[1], [0], [0], [1], [0, 0, 1, 1], [], []>} : vector<4x16xf32>, vector<16x32xf32>, vector<4x32xf32> -> vector<4x32xf32>
    %118 = vector.extract_strided_slice %32 {offsets = [13, 0, 0], sizes = [1, 4, 16], strides = [1, 1, 1]} : vector<17x4x16xf32> to vector<1x4x16xf32>
    %119 = vector.shape_cast %118 : vector<1x4x16xf32> to vector<4x16xf32>
    %cst_57 = arith.constant dense<0.000000e+00> : vector<4x32xf32>
    %120 = tpu.matmul %119, %33, %cst_57 {dimension_numbers = #tpu.dot_dimension_numbers<[1], [0], [0], [1], [0, 0, 1, 1], [], []>} : vector<4x16xf32>, vector<16x32xf32>, vector<4x32xf32> -> vector<4x32xf32>
    %121 = vector.extract_strided_slice %21 {offsets = [13, 0, 0], sizes = [1, 4, 16], strides = [1, 1, 1]} : vector<17x4x16xf32> to vector<1x4x16xf32>
    %122 = vector.shape_cast %121 : vector<1x4x16xf32> to vector<4x16xf32>
    %cst_58 = arith.constant dense<0.000000e+00> : vector<4x32xf32>
    %123 = tpu.matmul %122, %33, %cst_58 {dimension_numbers = #tpu.dot_dimension_numbers<[1], [0], [0], [1], [0, 0, 1, 1], [], []>} : vector<4x16xf32>, vector<16x32xf32>, vector<4x32xf32> -> vector<4x32xf32>
    %124 = vector.extract_strided_slice %32 {offsets = [14, 0, 0], sizes = [1, 4, 16], strides = [1, 1, 1]} : vector<17x4x16xf32> to vector<1x4x16xf32>
    %125 = vector.shape_cast %124 : vector<1x4x16xf32> to vector<4x16xf32>
    %cst_59 = arith.constant dense<0.000000e+00> : vector<4x32xf32>
    %126 = tpu.matmul %125, %33, %cst_59 {dimension_numbers = #tpu.dot_dimension_numbers<[1], [0], [0], [1], [0, 0, 1, 1], [], []>} : vector<4x16xf32>, vector<16x32xf32>, vector<4x32xf32> -> vector<4x32xf32>
    %127 = vector.extract_strided_slice %21 {offsets = [14, 0, 0], sizes = [1, 4, 16], strides = [1, 1, 1]} : vector<17x4x16xf32> to vector<1x4x16xf32>
    %128 = vector.shape_cast %127 : vector<1x4x16xf32> to vector<4x16xf32>
    %cst_60 = arith.constant dense<0.000000e+00> : vector<4x32xf32>
    %129 = tpu.matmul %128, %33, %cst_60 {dimension_numbers = #tpu.dot_dimension_numbers<[1], [0], [0], [1], [0, 0, 1, 1], [], []>} : vector<4x16xf32>, vector<16x32xf32>, vector<4x32xf32> -> vector<4x32xf32>
    %130 = vector.extract_strided_slice %32 {offsets = [15, 0, 0], sizes = [1, 4, 16], strides = [1, 1, 1]} : vector<17x4x16xf32> to vector<1x4x16xf32>
    %131 = vector.shape_cast %130 : vector<1x4x16xf32> to vector<4x16xf32>
    %cst_61 = arith.constant dense<0.000000e+00> : vector<4x32xf32>
    %132 = tpu.matmul %131, %33, %cst_61 {dimension_numbers = #tpu.dot_dimension_numbers<[1], [0], [0], [1], [0, 0, 1, 1], [], []>} : vector<4x16xf32>, vector<16x32xf32>, vector<4x32xf32> -> vector<4x32xf32>
    %133 = vector.extract_strided_slice %21 {offsets = [15, 0, 0], sizes = [1, 4, 16], strides = [1, 1, 1]} : vector<17x4x16xf32> to vector<1x4x16xf32>
    %134 = vector.shape_cast %133 : vector<1x4x16xf32> to vector<4x16xf32>
    %cst_62 = arith.constant dense<0.000000e+00> : vector<4x32xf32>
    %135 = tpu.matmul %134, %33, %cst_62 {dimension_numbers = #tpu.dot_dimension_numbers<[1], [0], [0], [1], [0, 0, 1, 1], [], []>} : vector<4x16xf32>, vector<16x32xf32>, vector<4x32xf32> -> vector<4x32xf32>
    %136 = vector.extract_strided_slice %32 {offsets = [16, 0, 0], sizes = [1, 4, 16], strides = [1, 1, 1]} : vector<17x4x16xf32> to vector<1x4x16xf32>
    %137 = vector.shape_cast %136 : vector<1x4x16xf32> to vector<4x16xf32>
    %cst_63 = arith.constant dense<0.000000e+00> : vector<4x32xf32>
    %138 = tpu.matmul %137, %33, %cst_63 {dimension_numbers = #tpu.dot_dimension_numbers<[1], [0], [0], [1], [0, 0, 1, 1], [], []>} : vector<4x16xf32>, vector<16x32xf32>, vector<4x32xf32> -> vector<4x32xf32>
    %139 = vector.extract_strided_slice %21 {offsets = [16, 0, 0], sizes = [1, 4, 16], strides = [1, 1, 1]} : vector<17x4x16xf32> to vector<1x4x16xf32>
    %140 = vector.shape_cast %139 : vector<1x4x16xf32> to vector<4x16xf32>
    %141 = vector.broadcast %37 : f32 to vector<4x16xf32>
    %142 = arith.mulf %140, %141 : vector<4x16xf32>
    %cst_64 = arith.constant dense<0.000000e+00> : vector<4x32xf32>
    %143 = tpu.matmul %142, %33, %cst_64 {dimension_numbers = #tpu.dot_dimension_numbers<[1], [0], [0], [1], [0, 0, 1, 1], [], []>} : vector<4x16xf32>, vector<16x32xf32>, vector<4x32xf32> -> vector<4x32xf32>
    %144 = tpu.concatenate %42, %45, %48, %51, %54, %57, %60, %63, %66, %69, %72, %75, %78, %81, %84, %87 in 1 : vector<4x32xf32>, vector<4x32xf32>, vector<4x32xf32>, vector<4x32xf32>, vector<4x32xf32>, vector<4x32xf32>, vector<4x32xf32>, vector<4x32xf32>, vector<4x32xf32>, vector<4x32xf32>, vector<4x32xf32>, vector<4x32xf32>, vector<4x32xf32>, vector<4x32xf32>, vector<4x32xf32>, vector<4x32xf32> -> vector<4x512xf32>
    %145 = tpu.concatenate %90, %93, %96, %99, %102, %105, %108, %111, %114, %117, %120, %123, %126, %129, %132, %135 in 1 : vector<4x32xf32>, vector<4x32xf32>, vector<4x32xf32>, vector<4x32xf32>, vector<4x32xf32>, vector<4x32xf32>, vector<4x32xf32>, vector<4x32xf32>, vector<4x32xf32>, vector<4x32xf32>, vector<4x32xf32>, vector<4x32xf32>, vector<4x32xf32>, vector<4x32xf32>, vector<4x32xf32>, vector<4x32xf32> -> vector<4x512xf32>
    %146 = tpu.concatenate %138, %143 in 1 : vector<4x32xf32>, vector<4x32xf32> -> vector<4x64xf32>
    %147 = tpu.concatenate %144, %145, %146 in 1 : vector<4x512xf32>, vector<4x512xf32>, vector<4x64xf32> -> vector<4x1088xf32>
    %148 = tpu.iota {dimensions = array<i32: 1>} : vector<4x1088xi32>
    %c32_i32 = arith.constant 32 : i32
    %c0_i32_65 = arith.constant 0 : i32
    %149 = arith.cmpi eq, %c32_i32, %c0_i32_65 : i32
    %c1_i32 = arith.constant 1 : i32
    %150 = arith.select %149, %c1_i32, %c32_i32 : i32
    %151 = vector.broadcast %150 : i32 to vector<4x1088xi32>
    %152 = arith.remsi %148, %151 : vector<4x1088xi32>
    %c0_i32_66 = arith.constant 0 : i32
    %153 = vector.broadcast %c0_i32_66 : i32 to vector<4x1088xi32>
    %154 = arith.cmpi ne, %152, %153 : vector<4x1088xi32>
    %c0_i32_67 = arith.constant 0 : i32
    %155 = vector.broadcast %c0_i32_67 : i32 to vector<4x1088xi32>
    %156 = arith.cmpi slt, %152, %155 : vector<4x1088xi32>
    %c0_i32_68 = arith.constant 0 : i32
    %157 = arith.cmpi slt, %150, %c0_i32_68 : i32
    %158 = vector.broadcast %157 : i1 to vector<4x1088xi1>
    %159 = vector.broadcast %158 : vector<4x1088xi1> to vector<4x1088xi1>
    %160 = arith.xori %156, %159 : vector<4x1088xi1>
    %161 = arith.andi %160, %154 : vector<4x1088xi1>
    %162 = vector.broadcast %150 : i32 to vector<4x1088xi32>
    %163 = arith.addi %152, %162 : vector<4x1088xi32>
    %164 = arith.select %161, %163, %152 : vector<4x1088xi1>, vector<4x1088xi32>
    %cst_69 = arith.constant 0.000000e+00 : f32
    %165 = vector.broadcast %cst_69 : f32 to vector<4x1xf32>
    %c0_i32_70 = arith.constant 0 : i32
    %166 = vector.broadcast %c0_i32_70 : i32 to vector<4x1088xi32>
    %167 = arith.cmpi eq, %164, %166 : vector<4x1088xi32>
    %168 = vector.extract_strided_slice %147 {offsets = [0, 0], sizes = [4, 1087], strides = [1, 1]} : vector<4x1088xf32> to vector<4x1087xf32>
    %169 = tpu.concatenate %165, %168 in 1 : vector<4x1xf32>, vector<4x1087xf32> -> vector<4x1088xf32>
    %cst_71 = arith.constant 0.000000e+00 : f32
    %170 = vector.broadcast %cst_71 : f32 to vector<4x1088xf32>
    %171 = arith.select %167, %170, %169 : vector<4x1088xi1>, vector<4x1088xf32>
    %c31_i32 = arith.constant 31 : i32
    %172 = vector.broadcast %c31_i32 : i32 to vector<4x1088xi32>
    %173 = arith.cmpi eq, %164, %172 : vector<4x1088xi32>
    %174 = vector.extract_strided_slice %147 {offsets = [0, 1], sizes = [4, 1087], strides = [1, 1]} : vector<4x1088xf32> to vector<4x1087xf32>
    %175 = tpu.concatenate %174, %165 in 1 : vector<4x1087xf32>, vector<4x1xf32> -> vector<4x1088xf32>
    %cst_72 = arith.constant 0.000000e+00 : f32
    %176 = vector.broadcast %cst_72 : f32 to vector<4x1088xf32>
    %177 = arith.select %173, %176, %175 : vector<4x1088xi1>, vector<4x1088xf32>
    %c0_73 = arith.constant 0 : index
    %c0_74 = arith.constant 0 : index
    %c0_75 = arith.constant 0 : index
    %178 = vector.load %arg8[%c0_73, %c0_74, %c0_75] : memref<9x8x4xf32, #tpu.memory_space<vmem>>, vector<9x8x4xf32>
    %179 = vector.extract_strided_slice %171 {offsets = [0, 0], sizes = [4, 1024], strides = [1, 1]} : vector<4x1088xf32> to vector<4x1024xf32>
    %180 = vector.extract_strided_slice %178 {offsets = [0, 0, 0], sizes = [1, 8, 4], strides = [1, 1, 1]} : vector<9x8x4xf32> to vector<1x8x4xf32>
    %181 = vector.shape_cast %180 : vector<1x8x4xf32> to vector<8x4xf32>
    %cst_76 = arith.constant dense<0.000000e+00> : vector<8x1024xf32>
    %182 = tpu.matmul %181, %179, %cst_76 {dimension_numbers = #tpu.dot_dimension_numbers<[1], [0], [0], [1], [0, 0, 1, 1], [], []>} : vector<8x4xf32>, vector<4x1024xf32>, vector<8x1024xf32> -> vector<8x1024xf32>
    %183 = vector.extract_strided_slice %147 {offsets = [0, 0], sizes = [4, 1024], strides = [1, 1]} : vector<4x1088xf32> to vector<4x1024xf32>
    %184 = vector.extract_strided_slice %178 {offsets = [1, 0, 0], sizes = [1, 8, 4], strides = [1, 1, 1]} : vector<9x8x4xf32> to vector<1x8x4xf32>
    %185 = vector.shape_cast %184 : vector<1x8x4xf32> to vector<8x4xf32>
    %cst_77 = arith.constant dense<0.000000e+00> : vector<8x1024xf32>
    %186 = tpu.matmul %185, %183, %cst_77 {dimension_numbers = #tpu.dot_dimension_numbers<[1], [0], [0], [1], [0, 0, 1, 1], [], []>} : vector<8x4xf32>, vector<4x1024xf32>, vector<8x1024xf32> -> vector<8x1024xf32>
    %187 = arith.addf %182, %186 : vector<8x1024xf32>
    %188 = vector.extract_strided_slice %177 {offsets = [0, 0], sizes = [4, 1024], strides = [1, 1]} : vector<4x1088xf32> to vector<4x1024xf32>
    %189 = vector.extract_strided_slice %178 {offsets = [2, 0, 0], sizes = [1, 8, 4], strides = [1, 1, 1]} : vector<9x8x4xf32> to vector<1x8x4xf32>
    %190 = vector.shape_cast %189 : vector<1x8x4xf32> to vector<8x4xf32>
    %cst_78 = arith.constant dense<0.000000e+00> : vector<8x1024xf32>
    %191 = tpu.matmul %190, %188, %cst_78 {dimension_numbers = #tpu.dot_dimension_numbers<[1], [0], [0], [1], [0, 0, 1, 1], [], []>} : vector<8x4xf32>, vector<4x1024xf32>, vector<8x1024xf32> -> vector<8x1024xf32>
    %192 = arith.addf %187, %191 : vector<8x1024xf32>
    %193 = vector.extract_strided_slice %171 {offsets = [0, 32], sizes = [4, 1024], strides = [1, 1]} : vector<4x1088xf32> to vector<4x1024xf32>
    %194 = vector.extract_strided_slice %178 {offsets = [3, 0, 0], sizes = [1, 8, 4], strides = [1, 1, 1]} : vector<9x8x4xf32> to vector<1x8x4xf32>
    %195 = vector.shape_cast %194 : vector<1x8x4xf32> to vector<8x4xf32>
    %cst_79 = arith.constant dense<0.000000e+00> : vector<8x1024xf32>
    %196 = tpu.matmul %195, %193, %cst_79 {dimension_numbers = #tpu.dot_dimension_numbers<[1], [0], [0], [1], [0, 0, 1, 1], [], []>} : vector<8x4xf32>, vector<4x1024xf32>, vector<8x1024xf32> -> vector<8x1024xf32>
    %197 = arith.addf %192, %196 : vector<8x1024xf32>
    %198 = vector.extract_strided_slice %147 {offsets = [0, 32], sizes = [4, 1024], strides = [1, 1]} : vector<4x1088xf32> to vector<4x1024xf32>
    %199 = vector.extract_strided_slice %178 {offsets = [4, 0, 0], sizes = [1, 8, 4], strides = [1, 1, 1]} : vector<9x8x4xf32> to vector<1x8x4xf32>
    %200 = vector.shape_cast %199 : vector<1x8x4xf32> to vector<8x4xf32>
    %cst_80 = arith.constant dense<0.000000e+00> : vector<8x1024xf32>
    %201 = tpu.matmul %200, %198, %cst_80 {dimension_numbers = #tpu.dot_dimension_numbers<[1], [0], [0], [1], [0, 0, 1, 1], [], []>} : vector<8x4xf32>, vector<4x1024xf32>, vector<8x1024xf32> -> vector<8x1024xf32>
    %202 = arith.addf %197, %201 : vector<8x1024xf32>
    %203 = vector.extract_strided_slice %177 {offsets = [0, 32], sizes = [4, 1024], strides = [1, 1]} : vector<4x1088xf32> to vector<4x1024xf32>
    %204 = vector.extract_strided_slice %178 {offsets = [5, 0, 0], sizes = [1, 8, 4], strides = [1, 1, 1]} : vector<9x8x4xf32> to vector<1x8x4xf32>
    %205 = vector.shape_cast %204 : vector<1x8x4xf32> to vector<8x4xf32>
    %cst_81 = arith.constant dense<0.000000e+00> : vector<8x1024xf32>
    %206 = tpu.matmul %205, %203, %cst_81 {dimension_numbers = #tpu.dot_dimension_numbers<[1], [0], [0], [1], [0, 0, 1, 1], [], []>} : vector<8x4xf32>, vector<4x1024xf32>, vector<8x1024xf32> -> vector<8x1024xf32>
    %207 = arith.addf %202, %206 : vector<8x1024xf32>
    %208 = vector.extract_strided_slice %171 {offsets = [0, 64], sizes = [4, 1024], strides = [1, 1]} : vector<4x1088xf32> to vector<4x1024xf32>
    %209 = vector.extract_strided_slice %178 {offsets = [6, 0, 0], sizes = [1, 8, 4], strides = [1, 1, 1]} : vector<9x8x4xf32> to vector<1x8x4xf32>
    %210 = vector.shape_cast %209 : vector<1x8x4xf32> to vector<8x4xf32>
    %cst_82 = arith.constant dense<0.000000e+00> : vector<8x1024xf32>
    %211 = tpu.matmul %210, %208, %cst_82 {dimension_numbers = #tpu.dot_dimension_numbers<[1], [0], [0], [1], [0, 0, 1, 1], [], []>} : vector<8x4xf32>, vector<4x1024xf32>, vector<8x1024xf32> -> vector<8x1024xf32>
    %212 = arith.addf %207, %211 : vector<8x1024xf32>
    %213 = vector.extract_strided_slice %147 {offsets = [0, 64], sizes = [4, 1024], strides = [1, 1]} : vector<4x1088xf32> to vector<4x1024xf32>
    %214 = vector.extract_strided_slice %178 {offsets = [7, 0, 0], sizes = [1, 8, 4], strides = [1, 1, 1]} : vector<9x8x4xf32> to vector<1x8x4xf32>
    %215 = vector.shape_cast %214 : vector<1x8x4xf32> to vector<8x4xf32>
    %cst_83 = arith.constant dense<0.000000e+00> : vector<8x1024xf32>
    %216 = tpu.matmul %215, %213, %cst_83 {dimension_numbers = #tpu.dot_dimension_numbers<[1], [0], [0], [1], [0, 0, 1, 1], [], []>} : vector<8x4xf32>, vector<4x1024xf32>, vector<8x1024xf32> -> vector<8x1024xf32>
    %217 = arith.addf %212, %216 : vector<8x1024xf32>
    %218 = vector.extract_strided_slice %177 {offsets = [0, 64], sizes = [4, 1024], strides = [1, 1]} : vector<4x1088xf32> to vector<4x1024xf32>
    %219 = vector.extract_strided_slice %178 {offsets = [8, 0, 0], sizes = [1, 8, 4], strides = [1, 1, 1]} : vector<9x8x4xf32> to vector<1x8x4xf32>
    %220 = vector.shape_cast %219 : vector<1x8x4xf32> to vector<8x4xf32>
    %cst_84 = arith.constant dense<0.000000e+00> : vector<8x1024xf32>
    %221 = tpu.matmul %220, %218, %cst_84 {dimension_numbers = #tpu.dot_dimension_numbers<[1], [0], [0], [1], [0, 0, 1, 1], [], []>} : vector<8x4xf32>, vector<4x1024xf32>, vector<8x1024xf32> -> vector<8x1024xf32>
    %222 = arith.addf %217, %221 : vector<8x1024xf32>
    %c0_85 = arith.constant 0 : index
    %c0_86 = arith.constant 0 : index
    %223 = vector.load %arg9[%c0_85, %c0_86] : memref<8x1xf32, #tpu.memory_space<vmem>>, vector<8x1xf32>
    %224 = vector.broadcast %223 : vector<8x1xf32> to vector<8x1024xf32>
    %225 = arith.addf %222, %224 : vector<8x1024xf32>
    %c0_87 = arith.constant 0 : index
    %c0_88 = arith.constant 0 : index
    %226 = vector.load %arg10[%c0_87, %c0_88] : memref<32x8xf32, #tpu.memory_space<vmem>>, vector<32x8xf32>
    %cst_89 = arith.constant dense<0.000000e+00> : vector<32x1024xf32>
    %227 = tpu.matmul %226, %225, %cst_89 {dimension_numbers = #tpu.dot_dimension_numbers<[1], [0], [0], [1], [0, 0, 1, 1], [], []>} : vector<32x8xf32>, vector<8x1024xf32>, vector<32x1024xf32> -> vector<32x1024xf32>
    %c0_90 = arith.constant 0 : index
    %c0_91 = arith.constant 0 : index
    %228 = vector.load %arg11[%c0_90, %c0_91] : memref<32x1xf32, #tpu.memory_space<vmem>>, vector<32x1xf32>
    %229 = vector.broadcast %228 : vector<32x1xf32> to vector<32x1024xf32>
    %230 = arith.addf %227, %229 : vector<32x1024xf32>
    %cst_92 = arith.constant 0.000000e+00 : f32
    %231 = vector.broadcast %cst_92 : f32 to vector<32x1024xf32>
    %232 = arith.cmpf olt, %230, %231 : vector<32x1024xf32>
    %cst_93 = arith.constant -1.000000e+00 : f32
    %cst_94 = arith.constant 1.000000e+00 : f32
    %233 = vector.broadcast %cst_93 : f32 to vector<32x1024xf32>
    %234 = vector.broadcast %cst_94 : f32 to vector<32x1024xf32>
    %235 = arith.select %232, %233, %234 : vector<32x1024xi1>, vector<32x1024xf32>
    %236 = math.absf %230 : vector<32x1024xf32>
    %cst_95 = arith.constant 0.327591091 : f32
    %237 = vector.broadcast %cst_95 : f32 to vector<32x1024xf32>
    %238 = arith.mulf %237, %236 : vector<32x1024xf32>
    %cst_96 = arith.constant 1.000000e+00 : f32
    %239 = vector.broadcast %cst_96 : f32 to vector<32x1024xf32>
    %240 = arith.addf %239, %238 : vector<32x1024xf32>
    %cst_97 = arith.constant 1.000000e+00 : f32
    %241 = vector.broadcast %cst_97 : f32 to vector<32x1024xf32>
    %242 = arith.divf %241, %240 : vector<32x1024xf32>
    %cst_98 = arith.constant 1.06140542 : f32
    %243 = vector.broadcast %cst_98 : f32 to vector<32x1024xf32>
    %244 = arith.mulf %243, %242 : vector<32x1024xf32>
    %cst_99 = arith.constant -1.45315206 : f32
    %245 = vector.broadcast %cst_99 : f32 to vector<32x1024xf32>
    %246 = arith.addf %244, %245 : vector<32x1024xf32>
    %247 = arith.mulf %246, %242 : vector<32x1024xf32>
    %cst_100 = arith.constant 1.42141378 : f32
    %248 = vector.broadcast %cst_100 : f32 to vector<32x1024xf32>
    %249 = arith.addf %247, %248 : vector<32x1024xf32>
    %250 = arith.mulf %249, %242 : vector<32x1024xf32>
    %cst_101 = arith.constant -0.284496725 : f32
    %251 = vector.broadcast %cst_101 : f32 to vector<32x1024xf32>
    %252 = arith.addf %250, %251 : vector<32x1024xf32>
    %253 = arith.mulf %252, %242 : vector<32x1024xf32>
    %cst_102 = arith.constant 0.254829586 : f32
    %254 = vector.broadcast %cst_102 : f32 to vector<32x1024xf32>
    %255 = arith.addf %253, %254 : vector<32x1024xf32>
    %256 = arith.mulf %255, %242 : vector<32x1024xf32>
    %cst_103 = arith.constant 0.000000e+00 : f32
    %257 = vector.broadcast %cst_103 : f32 to vector<32x1024xf32>
    %258 = arith.subf %257, %236 : vector<32x1024xf32>
    %259 = arith.mulf %258, %236 : vector<32x1024xf32>
    %260 = math.exp %259 : vector<32x1024xf32>
    %261 = arith.mulf %256, %260 : vector<32x1024xf32>
    %cst_104 = arith.constant 1.000000e+00 : f32
    %262 = vector.broadcast %cst_104 : f32 to vector<32x1024xf32>
    %263 = arith.subf %262, %261 : vector<32x1024xf32>
    %264 = arith.mulf %235, %263 : vector<32x1024xf32>
    %cst_105 = arith.constant 1.000000e+00 : f32
    %265 = vector.broadcast %cst_105 : f32 to vector<32x1024xf32>
    %266 = arith.addf %265, %264 : vector<32x1024xf32>
    %267 = arith.mulf %230, %266 : vector<32x1024xf32>
    %c0_106 = arith.constant 0 : index
    %c0_107 = arith.constant 0 : index
    %268 = vector.load %arg12[%c0_106, %c0_107] : memref<8x32xf32, #tpu.memory_space<vmem>>, vector<8x32xf32>
    %cst_108 = arith.constant dense<0.000000e+00> : vector<8x1024xf32>
    %269 = tpu.matmul %268, %267, %cst_108 {dimension_numbers = #tpu.dot_dimension_numbers<[1], [0], [0], [1], [0, 0, 1, 1], [], []>} : vector<8x32xf32>, vector<32x1024xf32>, vector<8x1024xf32> -> vector<8x1024xf32>
    %c0_109 = arith.constant 0 : index
    %c0_110 = arith.constant 0 : index
    %270 = vector.load %arg13[%c0_109, %c0_110] : memref<8x1xf32, #tpu.memory_space<vmem>>, vector<8x1xf32>
    %271 = vector.broadcast %270 : vector<8x1xf32> to vector<8x1024xf32>
    %272 = arith.addf %269, %271 : vector<8x1024xf32>
    %273 = arith.addf %272, %225 : vector<8x1024xf32>
    %c0_111 = arith.constant 0 : index
    %c0_112 = arith.constant 0 : index
    %c0_113 = arith.constant 0 : index
    %274 = vector.load %arg14[%c0_111, %c0_112, %c0_113] : memref<1x8x1024xf32, #tpu.memory_space<vmem>>, vector<1x8x1024xf32>
    %275 = vector.shape_cast %274 : vector<1x8x1024xf32> to vector<8x1024xf32>
    %276 = vector.shape_cast %273 : vector<8x1024xf32> to vector<1x8x1024xf32>
    tpu.vector_store %arg14[%c0_111, %c0_112, %c0_113], %276 {strides = array<i32>} : memref<1x8x1024xf32, #tpu.memory_space<vmem>>, vector<1x8x1024xf32>,
    return
  }
  func.func @transform_0(%arg0: i32, %arg1: i32) -> (i32, i32, i32, i32) {
    %c0_i32 = arith.constant 0 : i32
    %c0_i32_0 = arith.constant 0 : i32
    %c0_i32_1 = arith.constant 0 : i32
    return %arg0, %arg1, %c0_i32, %c0_i32_0 : i32, i32, i32, i32
  }
  func.func @transform_1(%arg0: i32, %arg1: i32) -> (i32, i32, i32, i32) {
    %c16_i32 = arith.constant 16 : i32
    %0 = arith.muli %arg1, %c16_i32 : i32
    %c2_i32 = arith.constant 2 : i32
    %1 = arith.subi %0, %c2_i32 : i32
    %c0_i32 = arith.constant 0 : i32
    %2 = arith.maxsi %1, %c0_i32 : i32
    %c0_i32_0 = arith.constant 0 : i32
    %c0_i32_1 = arith.constant 0 : i32
    %c0_i32_2 = arith.constant 0 : i32
    return %arg0, %2, %c0_i32_0, %c0_i32_1 : i32, i32, i32, i32
  }
  func.func @transform_2(%arg0: i32, %arg1: i32) -> (i32, i32, i32, i32) {
    %c16_i32 = arith.constant 16 : i32
    %0 = arith.muli %arg1, %c16_i32 : i32
    %c1_i32 = arith.constant 1 : i32
    %1 = arith.subi %0, %c1_i32 : i32
    %c0_i32 = arith.constant 0 : i32
    %2 = arith.maxsi %1, %c0_i32 : i32
    %c0_i32_0 = arith.constant 0 : i32
    %c0_i32_1 = arith.constant 0 : i32
    %c0_i32_2 = arith.constant 0 : i32
    return %arg0, %2, %c0_i32_0, %c0_i32_1 : i32, i32, i32, i32
  }
  func.func @transform_3(%arg0: i32, %arg1: i32) -> (i32, i32, i32, i32) {
    %c1_i32 = arith.constant 1 : i32
    %0 = arith.addi %arg1, %c1_i32 : i32
    %c16_i32 = arith.constant 16 : i32
    %1 = arith.muli %0, %c16_i32 : i32
    %c15_i32 = arith.constant 15 : i32
    %2 = arith.minsi %1, %c15_i32 : i32
    %c0_i32 = arith.constant 0 : i32
    %c0_i32_0 = arith.constant 0 : i32
    %c0_i32_1 = arith.constant 0 : i32
    return %arg0, %2, %c0_i32, %c0_i32_0 : i32, i32, i32, i32
  }
  func.func @transform_4(%arg0: i32, %arg1: i32) -> (i32, i32, i32, i32) {
    %c1_i32 = arith.constant 1 : i32
    %0 = arith.addi %arg1, %c1_i32 : i32
    %c16_i32 = arith.constant 16 : i32
    %1 = arith.muli %0, %c16_i32 : i32
    %c1_i32_0 = arith.constant 1 : i32
    %2 = arith.addi %1, %c1_i32_0 : i32
    %c15_i32 = arith.constant 15 : i32
    %3 = arith.minsi %2, %c15_i32 : i32
    %c0_i32 = arith.constant 0 : i32
    %c0_i32_1 = arith.constant 0 : i32
    %c0_i32_2 = arith.constant 0 : i32
    return %arg0, %3, %c0_i32, %c0_i32_1 : i32, i32, i32, i32
  }
  func.func @transform_5(%arg0: i32, %arg1: i32) -> (i32, i32) {
    %c0_i32 = arith.constant 0 : i32
    %c0_i32_0 = arith.constant 0 : i32
    %c0_i32_1 = arith.constant 0 : i32
    return %c0_i32, %c0_i32_0 : i32, i32
  }
  func.func @transform_6(%arg0: i32, %arg1: i32) -> (i32, i32, i32) {
    %c0_i32 = arith.constant 0 : i32
    %c0_i32_0 = arith.constant 0 : i32
    %c0_i32_1 = arith.constant 0 : i32
    %c0_i32_2 = arith.constant 0 : i32
    return %c0_i32, %c0_i32_0, %c0_i32_1 : i32, i32, i32
  }
  func.func @transform_7(%arg0: i32, %arg1: i32) -> (i32, i32) {
    %c0_i32 = arith.constant 0 : i32
    %c0_i32_0 = arith.constant 0 : i32
    %c0_i32_1 = arith.constant 0 : i32
    return %c0_i32, %c0_i32_0 : i32, i32
  }
  func.func @transform_8(%arg0: i32, %arg1: i32) -> (i32, i32) {
    %c0_i32 = arith.constant 0 : i32
    %c0_i32_0 = arith.constant 0 : i32
    %c0_i32_1 = arith.constant 0 : i32
    return %c0_i32, %c0_i32_0 : i32, i32
  }
  func.func @transform_9(%arg0: i32, %arg1: i32) -> (i32, i32) {
    %c0_i32 = arith.constant 0 : i32
    %c0_i32_0 = arith.constant 0 : i32
    %c0_i32_1 = arith.constant 0 : i32
    return %c0_i32, %c0_i32_0 : i32, i32
  }
  func.func @transform_10(%arg0: i32, %arg1: i32) -> (i32, i32) {
    %c0_i32 = arith.constant 0 : i32
    %c0_i32_0 = arith.constant 0 : i32
    %c0_i32_1 = arith.constant 0 : i32
    return %c0_i32, %c0_i32_0 : i32, i32
  }
  func.func @transform_11(%arg0: i32, %arg1: i32) -> (i32, i32) {
    %c0_i32 = arith.constant 0 : i32
    %c0_i32_0 = arith.constant 0 : i32
    %c0_i32_1 = arith.constant 0 : i32
    return %c0_i32, %c0_i32_0 : i32, i32
  }
  func.func @transform_12(%arg0: i32, %arg1: i32) -> (i32, i32, i32) {
    %c0_i32 = arith.constant 0 : i32
    %c0_i32_0 = arith.constant 0 : i32
    return %arg0, %c0_i32, %arg1 : i32, i32, i32
  }
}

</mosaic_0001>

<llo_original>
// kernel: upsample_forward.1
$region0: #{upsample_forward.1}
  #allocation0 [shape = 'u32[]', space=smem, size = 0x4, offset = 0x4, fixed_abs, tag = 'smem constant byte address 0x4 - core index']
  #allocation1 [shape = 'u32[144,128]{1,0:T(1,128)}', space=vmem, size = 0x12000, scoped, tag = 'internal scratch']
  %s0 = inlined_call_operand.vmem [shape: f32[2,16,4,16], index: 0, kind: input, shape index: {}, may-alias: {0,1,2,3,4}]
  %s1 = inlined_call_operand.vmem [shape: f32[2,16,4,16], index: 1, kind: input, shape index: {}, may-alias: {0,1,2,3,4}]
  %s2 = inlined_call_operand.vmem [shape: f32[2,16,4,16], index: 2, kind: input, shape index: {}, may-alias: {0,1,2,3,4}]
  %s3 = inlined_call_operand.vmem [shape: f32[2,16,4,16], index: 3, kind: input, shape index: {}, may-alias: {0,1,2,3,4}]
  %s4 = inlined_call_operand.vmem [shape: f32[2,16,4,16], index: 4, kind: input, shape index: {}, may-alias: {0,1,2,3,4}]
  %s5 = inlined_call_operand.vmem [shape: f32[16,32], index: 5, kind: input, shape index: {}]
  %s6 = inlined_call_operand.vmem [shape: f32[9,8,4], index: 6, kind: input, shape index: {}]
  %s7 = inlined_call_operand.vmem [shape: f32[8,1], index: 7, kind: input, shape index: {}]
  %s8 = inlined_call_operand.vmem [shape: f32[32,8], index: 8, kind: input, shape index: {}]
  %s9 = inlined_call_operand.vmem [shape: f32[32,1], index: 9, kind: input, shape index: {}]
  %s10 = inlined_call_operand.vmem [shape: f32[8,32], index: 10, kind: input, shape index: {}]
  %s11 = inlined_call_operand.vmem [shape: f32[8,1], index: 11, kind: input, shape index: {}]
  %s12 = inlined_call_operand.vmem [shape: f32[2,8,1024], index: 12, kind: output, shape index: {}]
  %s13 = sld [smem:[#allocation0]]
  $region81: #{upsample_forward.1} parent=0
    _
  %s15 = ssub.s32 1, %s13
  %s16 = scalar_select 0, %s15, %s13
  loop: start=0, step=1, limit=4
  $region2: #{upsample_forward.1} parent=0 // loop_pre_header
    _
  $region3: #{upsample_forward.1} parent=0 // loop_header
    %s18 = sphi 0, %s22
    %p19 = scmp.ge.s32.totalorder %s18, 4
    %s25 = sphi 0, %s37
    %s26 = sphi 0, %s33
    %s27 = sphi 0, %s25
    %s28 = sphi 0, %s26
    %s29 = sphi 0, %s27
    %s30 = sphi 0, %s28
    %s42 = sphi 0, %s44
    %s45 = sphi 0, %s42
    %s46 = sphi 0, %s45
    %s62 = sphi 0, %s46
    %s78 = sphi 0, %s80
    %s81 = sphi 0, %s78
    %s82 = sphi 0, %s81
    %s98 = sphi 0, %s82
    %s114 = sphi 0, %s116
    %s117 = sphi 0, %s114
    %s118 = sphi 0, %s117
    %s134 = sphi 0, %s118
    %s150 = sphi 0, %s152
    %s153 = sphi 0, %s150
    %s154 = sphi 0, %s153
    %s170 = sphi 0, %s154
    %s188 = sphi 0, %s190
    %s191 = sphi 0, %s188
    %s192 = sphi 0, %s191
    %s208 = sphi 0, %s192
    %s212 = sphi 0, %s212
    %s214 = sphi 0, %s212
    %s215 = sphi 0, %s214
    %s229 = sphi 0, %s215
    %s233 = sphi 0, %s233
    %s235 = sphi 0, %s233
    %s236 = sphi 0, %s235
    %s250 = sphi 0, %s236
    %s254 = sphi 0, %s254
    %s256 = sphi 0, %s254
    %s257 = sphi 0, %s256
    %s271 = sphi 0, %s257
    %s275 = sphi 0, %s275
    %s277 = sphi 0, %s275
    %s278 = sphi 0, %s277
    %s292 = sphi 0, %s278
    %s296 = sphi 0, %s296
    %s298 = sphi 0, %s296
    %s299 = sphi 0, %s298
    %s313 = sphi 0, %s299
    %s317 = sphi 0, %s317
    %s319 = sphi 0, %s317
    %s320 = sphi 0, %s319
    %s334 = sphi 0, %s320
    %s338 = sphi 0, %s338
    %s340 = sphi 0, %s338
    %s341 = sphi 0, %s340
    %s355 = sphi 0, %s341
    %s363 = sphi 0, %s365
    %s366 = sphi 0, %s363
    %s367 = sphi 0, %s366
    %s383 = sphi 0, %s367
  $region4: #{upsample_forward.1} parent=0 // loop_header_branch
    %21 = sbr.rel (%p19) target = $region8
  $region5: #{upsample_forward.1} parent=0 // loop_body
    %s23 = ssub.s32 %s18, 1
    %s24 = ssub.s32 %s18, 2
    %s31 = sadd.s32 1, %s26
    %p32 = scmp.ge.s32.totalorder %s31, 1
    %s33 = scalar_select %p32, 0, %s31
    %s34 = sadd.s32 1, %s25
    %s35 = scalar_select %p32, %s34, %s25
    %p36 = scmp.ge.s32.totalorder %s35, 2
    %s37 = scalar_select %p36, 0, %s35
    %s38 = ssub.s32 %s25, %s37
    %s39 = ssub.s32 %s26, %s33
    %s40 = sor.u32 %s38, %s39
    %p41 = scmp.eq.s32.totalorder %s40, 0
    %s43 = sadd.s32 %s42, 1
    %s44 = scalar_select %p41, %s42, %s43
    %p47 = pneg %p41
    %p48 = scmp.eq.s32.totalorder %s18, 1
    %p49 = por %p47, %p48
    %p50 = scmp.ne.s32.totalorder %s42, %s45
    %p51 = scmp.eq.s32.totalorder %s18, 0
    %p52 = por %p50, %p51
    %p53 = scmp.ne.s32.totalorder %s42, %s45
    %p54 = scmp.eq.s32.totalorder %s23, 1
    %p55 = por %p53, %p54
    %p56 = scmp.ne.s32.totalorder %s45, %s46
    %p57 = scmp.eq.s32.totalorder %s23, 0
    %p58 = por %p56, %p57
    %p59 = scmp.ne.s32.totalorder %s45, %s46
    %p60 = scmp.eq.s32.totalorder %s24, 1
    %p61 = por %p59, %p60
    %p63 = scmp.ne.s32.totalorder %s46, %s62
    %p64 = scmp.eq.s32.totalorder %s24, 0
    %p65 = por %p63, %p64
    %s66 = smul.u32 %s26, 16
    %s67 = ssub.s32 %s66, 2
    %p68 = scmp.gt.s32.totalorder %s67, 0
    %s69 = scalar_select %p68, %s67, 0
    %s70 = smul.u32 %s33, 16
    %s71 = ssub.s32 %s70, 2
    %p72 = scmp.gt.s32.totalorder %s71, 0
    %s73 = scalar_select %p72, %s71, 0
    %s74 = ssub.s32 %s25, %s37
    %s75 = ssub.s32 %s69, %s73
    %s76 = sor.u32 %s74, %s75
    %p77 = scmp.eq.s32.totalorder %s76, 0
    %s79 = sadd.s32 %s78, 1
    %s80 = scalar_select %p77, %s78, %s79
    %p83 = pneg %p77
    %p84 = scmp.eq.s32.totalorder %s18, 1
    %p85 = por %p83, %p84
    %p86 = scmp.ne.s32.totalorder %s78, %s81
    %p87 = scmp.eq.s32.totalorder %s18, 0
    %p88 = por %p86, %p87
    %p89 = scmp.ne.s32.totalorder %s78, %s81
    %p90 = scmp.eq.s32.totalorder %s23, 1
    %p91 = por %p89, %p90
    %p92 = scmp.ne.s32.totalorder %s81, %s82
    %p93 = scmp.eq.s32.totalorder %s23, 0
    %p94 = por %p92, %p93
    %p95 = scmp.ne.s32.totalorder %s81, %s82
    %p96 = scmp.eq.s32.totalorder %s24, 1
    %p97 = por %p95, %p96
    %p99 = scmp.ne.s32.totalorder %s82, %s98
    %p100 = scmp.eq.s32.totalorder %s24, 0
    %p101 = por %p99, %p100
    %s102 = smul.u32 %s26, 16
    %s103 = ssub.s32 %s102, 1
    %p104 = scmp.gt.s32.totalorder %s103, 0
    %s105 = scalar_select %p104, %s103, 0
    %s106 = smul.u32 %s33, 16
    %s107 = ssub.s32 %s106, 1
    %p108 = scmp.gt.s32.totalorder %s107, 0
    %s109 = scalar_select %p108, %s107, 0
    %s110 = ssub.s32 %s25, %s37
    %s111 = ssub.s32 %s105, %s109
    %s112 = sor.u32 %s110, %s111
    %p113 = scmp.eq.s32.totalorder %s112, 0
    %s115 = sadd.s32 %s114, 1
    %s116 = scalar_select %p113, %s114, %s115
    %p119 = pneg %p113
    %p120 = scmp.eq.s32.totalorder %s18, 1
    %p121 = por %p119, %p120
    %p122 = scmp.ne.s32.totalorder %s114, %s117
    %p123 = scmp.eq.s32.totalorder %s18, 0
    %p124 = por %p122, %p123
    %p125 = scmp.ne.s32.totalorder %s114, %s117
    %p126 = scmp.eq.s32.totalorder %s23, 1
    %p127 = por %p125, %p126
    %p128 = scmp.ne.s32.totalorder %s117, %s118
    %p129 = scmp.eq.s32.totalorder %s23, 0
    %p130 = por %p128, %p129
    %p131 = scmp.ne.s32.totalorder %s117, %s118
    %p132 = scmp.eq.s32.totalorder %s24, 1
    %p133 = por %p131, %p132
    %p135 = scmp.ne.s32.totalorder %s118, %s134
    %p136 = scmp.eq.s32.totalorder %s24, 0
    %p137 = por %p135, %p136
    %s138 = sadd.s32 %s26, 1
    %s139 = smul.u32 %s138, 16
    %p140 = scmp.lt.s32.totalorder %s139, 15
    %s141 = scalar_select %p140, %s139, 15
    %s142 = sadd.s32 %s33, 1
    %s143 = smul.u32 %s142, 16
    %p144 = scmp.lt.s32.totalorder %s143, 15
    %s145 = scalar_select %p144, %s143, 15
    %s146 = ssub.s32 %s25, %s37
    %s147 = ssub.s32 %s141, %s145
    %s148 = sor.u32 %s146, %s147
    %p149 = scmp.eq.s32.totalorder %s148, 0
    %s151 = sadd.s32 %s150, 1
    %s152 = scalar_select %p149, %s150, %s151
    %p155 = pneg %p149
    %p156 = scmp.eq.s32.totalorder %s18, 1
    %p157 = por %p155, %p156
    %p158 = scmp.ne.s32.totalorder %s150, %s153
    %p159 = scmp.eq.s32.totalorder %s18, 0
    %p160 = por %p158, %p159
    %p161 = scmp.ne.s32.totalorder %s150, %s153
    %p162 = scmp.eq.s32.totalorder %s23, 1
    %p163 = por %p161, %p162
    %p164 = scmp.ne.s32.totalorder %s153, %s154
    %p165 = scmp.eq.s32.totalorder %s23, 0
    %p166 = por %p164, %p165
    %p167 = scmp.ne.s32.totalorder %s153, %s154
    %p168 = scmp.eq.s32.totalorder %s24, 1
    %p169 = por %p167, %p168
    %p171 = scmp.ne.s32.totalorder %s154, %s170
    %p172 = scmp.eq.s32.totalorder %s24, 0
    %p173 = por %p171, %p172
    %s174 = sadd.s32 %s26, 1
    %s175 = smul.u32 %s174, 16
    %s176 = sadd.s32 %s175, 1
    %p177 = scmp.lt.s32.totalorder %s176, 15
    %s178 = scalar_select %p177, %s176, 15
    %s179 = sadd.s32 %s33, 1
    %s180 = smul.u32 %s179, 16
    %s181 = sadd.s32 %s180, 1
    %p182 = scmp.lt.s32.totalorder %s181, 15
    %s183 = scalar_select %p182, %s181, 15
    %s184 = ssub.s32 %s25, %s37
    %s185 = ssub.s32 %s178, %s183
    %s186 = sor.u32 %s184, %s185
    %p187 = scmp.eq.s32.totalorder %s186, 0
    %s189 = sadd.s32 %s188, 1
    %s190 = scalar_select %p187, %s188, %s189
    %p193 = pneg %p187
    %p194 = scmp.eq.s32.totalorder %s18, 1
    %p195 = por %p193, %p194
    %p196 = scmp.ne.s32.totalorder %s188, %s191
    %p197 = scmp.eq.s32.totalorder %s18, 0
    %p198 = por %p196, %p197
    %p199 = scmp.ne.s32.totalorder %s188, %s191
    %p200 = scmp.eq.s32.totalorder %s23, 1
    %p201 = por %p199, %p200
    %p202 = scmp.ne.s32.totalorder %s191, %s192
    %p203 = scmp.eq.s32.totalorder %s23, 0
    %p204 = por %p202, %p203
    %p205 = scmp.ne.s32.totalorder %s191, %s192
    %p206 = scmp.eq.s32.totalorder %s24, 1
    %p207 = por %p205, %p206
    %p209 = scmp.ne.s32.totalorder %s192, %s208
    %p210 = scmp.eq.s32.totalorder %s24, 0
    %p211 = por %p209, %p210
    %s213 = sadd.s32 %s212, 1
    %p216 = scmp.eq.s32.totalorder %s18, 1
    %p217 = scmp.ne.s32.totalorder %s212, %s214
    %p218 = scmp.eq.s32.totalorder %s18, 0
    %p219 = por %p217, %p218
    %p220 = scmp.ne.s32.totalorder %s212, %s214
    %p221 = scmp.eq.s32.totalorder %s23, 1
    %p222 = por %p220, %p221
    %p223 = scmp.ne.s32.totalorder %s214, %s215
    %p224 = scmp.eq.s32.totalorder %s23, 0
    %p225 = por %p223, %p224
    %p226 = scmp.ne.s32.totalorder %s214, %s215
    %p227 = scmp.eq.s32.totalorder %s24, 1
    %p228 = por %p226, %p227
    %p230 = scmp.ne.s32.totalorder %s215, %s229
    %p231 = scmp.eq.s32.totalorder %s24, 0
    %p232 = por %p230, %p231
    %s234 = sadd.s32 %s233, 1
    %p237 = scmp.eq.s32.totalorder %s18, 1
    %p238 = scmp.ne.s32.totalorder %s233, %s235
    %p239 = scmp.eq.s32.totalorder %s18, 0
    %p240 = por %p238, %p239
    %p241 = scmp.ne.s32.totalorder %s233, %s235
    %p242 = scmp.eq.s32.totalorder %s23, 1
    %p243 = por %p241, %p242
    %p244 = scmp.ne.s32.totalorder %s235, %s236
    %p245 = scmp.eq.s32.totalorder %s23, 0
    %p246 = por %p244, %p245
    %p247 = scmp.ne.s32.totalorder %s235, %s236
    %p248 = scmp.eq.s32.totalorder %s24, 1
    %p249 = por %p247, %p248
    %p251 = scmp.ne.s32.totalorder %s236, %s250
    %p252 = scmp.eq.s32.totalorder %s24, 0
    %p253 = por %p251, %p252
    %s255 = sadd.s32 %s254, 1
    %p258 = scmp.eq.s32.totalorder %s18, 1
    %p259 = scmp.ne.s32.totalorder %s254, %s256
    %p260 = scmp.eq.s32.totalorder %s18, 0
    %p261 = por %p259, %p260
    %p262 = scmp.ne.s32.totalorder %s254, %s256
    %p263 = scmp.eq.s32.totalorder %s23, 1
    %p264 = por %p262, %p263
    %p265 = scmp.ne.s32.totalorder %s256, %s257
    %p266 = scmp.eq.s32.totalorder %s23, 0
    %p267 = por %p265, %p266
    %p268 = scmp.ne.s32.totalorder %s256, %s257
    %p269 = scmp.eq.s32.totalorder %s24, 1
    %p270 = por %p268, %p269
    %p272 = scmp.ne.s32.totalorder %s257, %s271
    %p273 = scmp.eq.s32.totalorder %s24, 0
    %p274 = por %p272, %p273
    %s276 = sadd.s32 %s275, 1
    %p279 = scmp.eq.s32.totalorder %s18, 1
    %p280 = scmp.ne.s32.totalorder %s275, %s277
    %p281 = scmp.eq.s32.totalorder %s18, 0
    %p282 = por %p280, %p281
    %p283 = scmp.ne.s32.totalorder %s275, %s277
    %p284 = scmp.eq.s32.totalorder %s23, 1
    %p285 = por %p283, %p284
    %p286 = scmp.ne.s32.totalorder %s277, %s278
    %p287 = scmp.eq.s32.totalorder %s23, 0
    %p288 = por %p286, %p287
    %p289 = scmp.ne.s32.totalorder %s277, %s278
    %p290 = scmp.eq.s32.totalorder %s24, 1
    %p291 = por %p289, %p290
    %p293 = scmp.ne.s32.totalorder %s278, %s292
    %p294 = scmp.eq.s32.totalorder %s24, 0
    %p295 = por %p293, %p294
    %s297 = sadd.s32 %s296, 1
    %p300 = scmp.eq.s32.totalorder %s18, 1
    %p301 = scmp.ne.s32.totalorder %s296, %s298
    %p302 = scmp.eq.s32.totalorder %s18, 0
    %p303 = por %p301, %p302
    %p304 = scmp.ne.s32.totalorder %s296, %s298
    %p305 = scmp.eq.s32.totalorder %s23, 1
    %p306 = por %p304, %p305
    %p307 = scmp.ne.s32.totalorder %s298, %s299
    %p308 = scmp.eq.s32.totalorder %s23, 0
    %p309 = por %p307, %p308
    %p310 = scmp.ne.s32.totalorder %s298, %s299
    %p311 = scmp.eq.s32.totalorder %s24, 1
    %p312 = por %p310, %p311
    %p314 = scmp.ne.s32.totalorder %s299, %s313
    %p315 = scmp.eq.s32.totalorder %s24, 0
    %p316 = por %p314, %p315
    %s318 = sadd.s32 %s317, 1
    %p321 = scmp.eq.s32.totalorder %s18, 1
    %p322 = scmp.ne.s32.totalorder %s317, %s319
    %p323 = scmp.eq.s32.totalorder %s18, 0
    %p324 = por %p322, %p323
    %p325 = scmp.ne.s32.totalorder %s317, %s319
    %p326 = scmp.eq.s32.totalorder %s23, 1
    %p327 = por %p325, %p326
    %p328 = scmp.ne.s32.totalorder %s319, %s320
    %p329 = scmp.eq.s32.totalorder %s23, 0
    %p330 = por %p328, %p329
    %p331 = scmp.ne.s32.totalorder %s319, %s320
    %p332 = scmp.eq.s32.totalorder %s24, 1
    %p333 = por %p331, %p332
    %p335 = scmp.ne.s32.totalorder %s320, %s334
    %p336 = scmp.eq.s32.totalorder %s24, 0
    %p337 = por %p335, %p336
    %s339 = sadd.s32 %s338, 1
    %p342 = scmp.eq.s32.totalorder %s18, 1
    %p343 = scmp.ne.s32.totalorder %s338, %s340
    %p344 = scmp.eq.s32.totalorder %s18, 0
    %p345 = por %p343, %p344
    %p346 = scmp.ne.s32.totalorder %s338, %s340
    %p347 = scmp.eq.s32.totalorder %s23, 1
    %p348 = por %p346, %p347
    %p349 = scmp.ne.s32.totalorder %s340, %s341
    %p350 = scmp.eq.s32.totalorder %s23, 0
    %p351 = por %p349, %p350
    %p352 = scmp.ne.s32.totalorder %s340, %s341
    %p353 = scmp.eq.s32.totalorder %s24, 1
    %p354 = por %p352, %p353
    %p356 = scmp.ne.s32.totalorder %s341, %s355
    %p357 = scmp.eq.s32.totalorder %s24, 0
    %p358 = por %p356, %p357
    %s359 = ssub.s32 %s25, %s37
    %s360 = ssub.s32 %s26, %s33
    %s361 = sor.u32 %s359, %s360
    %p362 = scmp.eq.s32.totalorder %s361, 0
    %s364 = sadd.s32 %s363, 1
    %s365 = scalar_select %p362, %s363, %s364
    %p368 = pneg %p362
    %p369 = scmp.eq.s32.totalorder %s18, 1
    %p370 = por %p368, %p369
    %p371 = scmp.ne.s32.totalorder %s363, %s366
    %p372 = scmp.eq.s32.totalorder %s18, 0
    %p373 = por %p371, %p372
    %p374 = scmp.ne.s32.totalorder %s363, %s366
    %p375 = scmp.eq.s32.totalorder %s23, 1
    %p376 = por %p374, %p375
    %p377 = scmp.ne.s32.totalorder %s366, %s367
    %p378 = scmp.eq.s32.totalorder %s23, 0
    %p379 = por %p377, %p378
    %p380 = scmp.ne.s32.totalorder %s366, %s367
    %p381 = scmp.eq.s32.totalorder %s24, 1
    %p382 = por %p380, %p381
    %p384 = scmp.ne.s32.totalorder %s367, %s383
    %p385 = scmp.eq.s32.totalorder %s24, 0
    %p386 = por %p384, %p385
    %p387 = scmp.le.s32.totalorder 1, %s18
    %p388 = scmp.lt.s32.totalorder %s18, 3
    %p389 = pnand %p387, %p388
    %p390 = pneg %p389
    // Predicated region
    $region9: #{upsample_forward.1} parent=5 // pred_check
      _
    $region10: #{upsample_forward.1} parent=5 // pred_check_branch
      %392 = sbr.rel (%p389) target = $region12
    $region11: #{upsample_forward.1} parent=5 // pred_region
      %s393 = ssub.s32 %s18, 1
      // Predicated region
      $region13: #{upsample_forward.1} parent=11 // pred_check
        %p394 = pneg %p225
      $region14: #{upsample_forward.1} parent=11 // pred_check_branch
        %396 = sbr.rel (%p394) target = $region16
      $region15: #{upsample_forward.1} parent=11 // pred_region
        _
      $region16: #{upsample_forward.1} parent=11 // pred_fallthru
        _
      // Predicated region
      $region17: #{upsample_forward.1} parent=11 // pred_check
        %p397 = pneg %p246
      $region18: #{upsample_forward.1} parent=11 // pred_check_branch
        %399 = sbr.rel (%p397) target = $region20
      $region19: #{upsample_forward.1} parent=11 // pred_region
        _
      $region20: #{upsample_forward.1} parent=11 // pred_fallthru
        _
      // Predicated region
      $region21: #{upsample_forward.1} parent=11 // pred_check
        %p400 = pneg %p267
      $region22: #{upsample_forward.1} parent=11 // pred_check_branch
        %402 = sbr.rel (%p400) target = $region24
      $region23: #{upsample_forward.1} parent=11 // pred_region
        _
      $region24: #{upsample_forward.1} parent=11 // pred_fallthru
        _
      // Predicated region
      $region25: #{upsample_forward.1} parent=11 // pred_check
        %p403 = pneg %p288
      $region26: #{upsample_forward.1} parent=11 // pred_check_branch
        %405 = sbr.rel (%p403) target = $region28
      $region27: #{upsample_forward.1} parent=11 // pred_region
        _
      $region28: #{upsample_forward.1} parent=11 // pred_fallthru
        _
      // Predicated region
      $region29: #{upsample_forward.1} parent=11 // pred_check
        %p406 = pneg %p309
      $region30: #{upsample_forward.1} parent=11 // pred_check_branch
        %408 = sbr.rel (%p406) target = $region32
      $region31: #{upsample_forward.1} parent=11 // pred_region
        _
      $region32: #{upsample_forward.1} parent=11 // pred_fallthru
        _
      // Predicated region
      $region33: #{upsample_forward.1} parent=11 // pred_check
        %p409 = pneg %p330
      $region34: #{upsample_forward.1} parent=11 // pred_check_branch
        %411 = sbr.rel (%p409) target = $region36
      $region35: #{upsample_forward.1} parent=11 // pred_region
        _
      $region36: #{upsample_forward.1} parent=11 // pred_fallthru
        _
      // Predicated region
      $region37: #{upsample_forward.1} parent=11 // pred_check
        %p412 = pneg %p351
      $region38: #{upsample_forward.1} parent=11 // pred_check_branch
        %414 = sbr.rel (%p412) target = $region40
      $region39: #{upsample_forward.1} parent=11 // pred_region
        _
      $region40: #{upsample_forward.1} parent=11 // pred_fallthru
        _
    $region12: #{upsample_forward.1} parent=5 // pred_fallthru
      _
    %p415 = scmp.lt.s32.totalorder %s18, 2
    // Predicated region
    $region41: #{upsample_forward.1} parent=5 // pred_check
      %p416 = pneg %p415
    $region42: #{upsample_forward.1} parent=5 // pred_check_branch
      %418 = sbr.rel (%p416) target = $region44
    $region43: #{upsample_forward.1} parent=5 // pred_region
      // Predicated region
      $region45: #{upsample_forward.1} parent=43 // pred_check
        %p419 = pneg %p52
      $region46: #{upsample_forward.1} parent=43 // pred_check_branch
        %421 = sbr.rel (%p419) target = $region48
      $region47: #{upsample_forward.1} parent=43 // pred_region
        %s422 = smul.u32 16, %s26
        %p423 = scmp.lt.s32.totalorder %s25, 1
        %s424 = scalar_select %p423, %s25, 1
        %p425 = scmp.lt.s32.totalorder %s422, 15
        %s426 = scalar_select %p425, %s422, 15
        %s427 = smul.addr %s424, 16
        %s428 = sadd.s32 %s426, %s427
        %s429 = smul.addr %s428, 4
        %s430 = scalar_lea.vmem %s0, %s429
        %s431 = smul.u32 16, %s26
      $region48: #{upsample_forward.1} parent=43 // pred_fallthru
        _
      // Predicated region
      $region49: #{upsample_forward.1} parent=43 // pred_check
        %p432 = pneg %p88
      $region50: #{upsample_forward.1} parent=43 // pred_check_branch
        %434 = sbr.rel (%p432) target = $region52
      $region51: #{upsample_forward.1} parent=43 // pred_region
        %s435 = smul.u32 %s26, 16
        %s436 = ssub.s32 %s435, 2
        %p437 = scmp.gt.s32.totalorder %s436, 0
        %s438 = scalar_select %p437, %s436, 0
        %p439 = scmp.lt.s32.totalorder %s25, 1
        %s440 = scalar_select %p439, %s25, 1
        %p441 = scmp.lt.s32.totalorder %s438, 15
        %s442 = scalar_select %p441, %s438, 15
        %s443 = smul.addr %s440, 16
        %s444 = sadd.s32 %s442, %s443
        %s445 = smul.addr %s444, 4
        %s446 = scalar_lea.vmem %s1, %s445
        %s447 = smul.u32 %s26, 16
        %s448 = ssub.s32 %s447, 2
        %p449 = scmp.gt.s32.totalorder %s448, 0
        %s450 = scalar_select %p449, %s448, 0
      $region52: #{upsample_forward.1} parent=43 // pred_fallthru
        _
      // Predicated region
      $region53: #{upsample_forward.1} parent=43 // pred_check
        %p451 = pneg %p124
      $region54: #{upsample_forward.1} parent=43 // pred_check_branch
        %453 = sbr.rel (%p451) target = $region56
      $region55: #{upsample_forward.1} parent=43 // pred_region
        %s454 = smul.u32 %s26, 16
        %s455 = ssub.s32 %s454, 1
        %p456 = scmp.gt.s32.totalorder %s455, 0
        %s457 = scalar_select %p456, %s455, 0
        %p458 = scmp.lt.s32.totalorder %s25, 1
        %s459 = scalar_select %p458, %s25, 1
        %p460 = scmp.lt.s32.totalorder %s457, 15
        %s461 = scalar_select %p460, %s457, 15
        %s462 = smul.addr %s459, 16
        %s463 = sadd.s32 %s461, %s462
        %s464 = smul.addr %s463, 4
        %s465 = scalar_lea.vmem %s2, %s464
        %s466 = smul.u32 %s26, 16
        %s467 = ssub.s32 %s466, 1
        %p468 = scmp.gt.s32.totalorder %s467, 0
        %s469 = scalar_select %p468, %s467, 0
      $region56: #{upsample_forward.1} parent=43 // pred_fallthru
        _
      // Predicated region
      $region57: #{upsample_forward.1} parent=43 // pred_check
        %p470 = pneg %p160
      $region58: #{upsample_forward.1} parent=43 // pred_check_branch
        %472 = sbr.rel (%p470) target = $region60
      $region59: #{upsample_forward.1} parent=43 // pred_region
        %s473 = sadd.s32 %s26, 1
        %s474 = smul.u32 %s473, 16
        %p475 = scmp.lt.s32.totalorder %s474, 15
        %s476 = scalar_select %p475, %s474, 15
        %p477 = scmp.lt.s32.totalorder %s25, 1
        %s478 = scalar_select %p477, %s25, 1
        %p479 = scmp.lt.s32.totalorder %s476, 15
        %s480 = scalar_select %p479, %s476, 15
        %s481 = smul.addr %s478, 16
        %s482 = sadd.s32 %s480, %s481
        %s483 = smul.addr %s482, 4
        %s484 = scalar_lea.vmem %s3, %s483
        %s485 = sadd.s32 %s26, 1
        %s486 = smul.u32 %s485, 16
        %p487 = scmp.lt.s32.totalorder %s486, 15
        %s488 = scalar_select %p487, %s486, 15
      $region60: #{upsample_forward.1} parent=43 // pred_fallthru
        _
      // Predicated region
      $region61: #{upsample_forward.1} parent=43 // pred_check
        %p489 = pneg %p198
      $region62: #{upsample_forward.1} parent=43 // pred_check_branch
        %491 = sbr.rel (%p489) target = $region64
      $region63: #{upsample_forward.1} parent=43 // pred_region
        %s492 = sadd.s32 %s26, 1
        %s493 = smul.u32 %s492, 16
        %s494 = sadd.s32 %s493, 1
        %p495 = scmp.lt.s32.totalorder %s494, 15
        %s496 = scalar_select %p495, %s494, 15
        %p497 = scmp.lt.s32.totalorder %s25, 1
        %s498 = scalar_select %p497, %s25, 1
        %p499 = scmp.lt.s32.totalorder %s496, 15
        %s500 = scalar_select %p499, %s496, 15
        %s501 = smul.addr %s498, 16
        %s502 = sadd.s32 %s500, %s501
        %s503 = smul.addr %s502, 4
        %s504 = scalar_lea.vmem %s4, %s503
        %s505 = sadd.s32 %s26, 1
        %s506 = smul.u32 %s505, 16
        %s507 = sadd.s32 %s506, 1
        %p508 = scmp.lt.s32.totalorder %s507, 15
        %s509 = scalar_select %p508, %s507, 15
      $region64: #{upsample_forward.1} parent=43 // pred_fallthru
        _
    $region44: #{upsample_forward.1} parent=5 // pred_fallthru
      _
    %p510 = scmp.le.s32.totalorder 1, %s18
    %p511 = scmp.lt.s32.totalorder %s18, 3
    %p512 = pnand %p510, %p511
    %p513 = pneg %p512
    // Predicated region
    $region65: #{upsample_forward.1} parent=5 // pred_check
      _
    $region66: #{upsample_forward.1} parent=5 // pred_check_branch
      %515 = sbr.rel (%p512) target = $region68
    $region67: #{upsample_forward.1} parent=5 // pred_region
      %s516 = ssub.s32 %s18, 1
      %s517 = smul.u32 16, %s28
      %p518 = scmp.lt.s32.totalorder %s27, 1
      %s519 = scalar_select %p518, %s27, 1
      %p520 = scmp.lt.s32.totalorder %s517, 15
      %s521 = scalar_select %p520, %s517, 15
      %s522 = smul.addr %s519, 16
      %s523 = sadd.s32 %s521, %s522
      %s524 = smul.addr %s523, 4
      %s525 = scalar_lea.vmem %s0, %s524
      %p526 = pneg %p58
      %p527 = pneg %p55
      %s528 = smul.u32 %s28, 16
      %s529 = ssub.s32 %s528, 2
      %p530 = scmp.gt.s32.totalorder %s529, 0
      %s531 = scalar_select %p530, %s529, 0
      %p532 = scmp.lt.s32.totalorder %s27, 1
      %s533 = scalar_select %p532, %s27, 1
      %p534 = scmp.lt.s32.totalorder %s531, 15
      %s535 = scalar_select %p534, %s531, 15
      %s536 = smul.addr %s533, 16
      %s537 = sadd.s32 %s535, %s536
      %s538 = smul.addr %s537, 4
      %s539 = scalar_lea.vmem %s1, %s538
      %p540 = pneg %p94
      %p541 = pneg %p91
      %s542 = smul.u32 %s28, 16
      %s543 = ssub.s32 %s542, 1
      %p544 = scmp.gt.s32.totalorder %s543, 0
      %s545 = scalar_select %p544, %s543, 0
      %p546 = scmp.lt.s32.totalorder %s27, 1
      %s547 = scalar_select %p546, %s27, 1
      %p548 = scmp.lt.s32.totalorder %s545, 15
      %s549 = scalar_select %p548, %s545, 15
      %s550 = smul.addr %s547, 16
      %s551 = sadd.s32 %s549, %s550
      %s552 = smul.addr %s551, 4
      %s553 = scalar_lea.vmem %s2, %s552
      %p554 = pneg %p130
      %p555 = pneg %p127
      %s556 = sadd.s32 %s28, 1
      %s557 = smul.u32 %s556, 16
      %p558 = scmp.lt.s32.totalorder %s557, 15
      %s559 = scalar_select %p558, %s557, 15
      %p560 = scmp.lt.s32.totalorder %s27, 1
      %s561 = scalar_select %p560, %s27, 1
      %p562 = scmp.lt.s32.totalorder %s559, 15
      %s563 = scalar_select %p562, %s559, 15
      %s564 = smul.addr %s561, 16
      %s565 = sadd.s32 %s563, %s564
      %s566 = smul.addr %s565, 4
      %s567 = scalar_lea.vmem %s3, %s566
      %p568 = pneg %p166
      %p569 = pneg %p163
      %s570 = sadd.s32 %s28, 1
      %s571 = smul.u32 %s570, 16
      %s572 = sadd.s32 %s571, 1
      %p573 = scmp.lt.s32.totalorder %s572, 15
      %s574 = scalar_select %p573, %s572, 15
      %p575 = scmp.lt.s32.totalorder %s27, 1
      %s576 = scalar_select %p575, %s27, 1
      %p577 = scmp.lt.s32.totalorder %s574, 15
      %s578 = scalar_select %p577, %s574, 15
      %s579 = smul.addr %s576, 16
      %s580 = sadd.s32 %s578, %s579
      %s581 = smul.addr %s580, 4
      %s582 = scalar_lea.vmem %s4, %s581
      %p583 = pneg %p204
      %p584 = pneg %p201
      %p585 = pneg %p225
      %p586 = pneg %p222
      %p587 = pneg %p246
      %p588 = pneg %p243
      %p589 = pneg %p267
      %p590 = pneg %p264
      %p591 = pneg %p288
      %p592 = pneg %p285
      %p593 = pneg %p309
      %p594 = pneg %p306
      %p595 = pneg %p330
      %p596 = pneg %p327
      %p597 = pneg %p351
      %p598 = pneg %p348
      %p599 = pneg %p379
      %p600 = pneg %p376
      %s601 = smul.u32 8, %s28
      %p602 = scmp.lt.s32.totalorder %s27, 1
      %s603 = scalar_select %p602, %s27, 1
      %p604 = scmp.lt.s32.totalorder %s601, 7
      %s605 = scalar_select %p604, %s601, 7
      %s606 = smul.addr %s603, 8
      %s607 = sadd.s32 %s605, %s606
      %s608 = smul.addr %s607, 8
      %s609 = scalar_lea.vmem %s12, %s608
      %s610 = smul.u32 16, %s28
      %p611 = scmp.lt.s32.totalorder %s27, 1
      %s612 = scalar_select %p611, %s27, 1
      %p613 = scmp.lt.s32.totalorder %s610, 15
      %s614 = scalar_select %p613, %s610, 15
      %s615 = smul.addr %s612, 16
      %s616 = sadd.s32 %s614, %s615
      %s617 = smul.addr %s616, 4
      %s618 = scalar_lea.vmem %s0, %s617
      %s619 = smul.u32 16, %s28
      %s620 = smul.u32 %s28, 16
      %s621 = ssub.s32 %s620, 2
      %p622 = scmp.gt.s32.totalorder %s621, 0
      %s623 = scalar_select %p622, %s621, 0
      %p624 = scmp.lt.s32.totalorder %s27, 1
      %s625 = scalar_select %p624, %s27, 1
      %p626 = scmp.lt.s32.totalorder %s623, 15
      %s627 = scalar_select %p626, %s623, 15
      %s628 = smul.addr %s625, 16
      %s629 = sadd.s32 %s627, %s628
      %s630 = smul.addr %s629, 4
      %s631 = scalar_lea.vmem %s1, %s630
      %s632 = smul.u32 %s28, 16
      %s633 = ssub.s32 %s632, 2
      %p634 = scmp.gt.s32.totalorder %s633, 0
      %s635 = scalar_select %p634, %s633, 0
      %s636 = smul.u32 %s28, 16
      %s637 = ssub.s32 %s636, 1
      %p638 = scmp.gt.s32.totalorder %s637, 0
      %s639 = scalar_select %p638, %s637, 0
      %p640 = scmp.lt.s32.totalorder %s27, 1
      %s641 = scalar_select %p640, %s27, 1
      %p642 = scmp.lt.s32.totalorder %s639, 15
      %s643 = scalar_select %p642, %s639, 15
      %s644 = smul.addr %s641, 16
      %s645 = sadd.s32 %s643, %s644
      %s646 = smul.addr %s645, 4
      %s647 = scalar_lea.vmem %s2, %s646
      %s648 = smul.u32 %s28, 16
      %s649 = ssub.s32 %s648, 1
      %p650 = scmp.gt.s32.totalorder %s649, 0
      %s651 = scalar_select %p650, %s649, 0
      %s652 = sadd.s32 %s28, 1
      %s653 = smul.u32 %s652, 16
      %p654 = scmp.lt.s32.totalorder %s653, 15
      %s655 = scalar_select %p654, %s653, 15
      %p656 = scmp.lt.s32.totalorder %s27, 1
      %s657 = scalar_select %p656, %s27, 1
      %p658 = scmp.lt.s32.totalorder %s655, 15
      %s659 = scalar_select %p658, %s655, 15
      %s660 = smul.addr %s657, 16
      %s661 = sadd.s32 %s659, %s660
      %s662 = smul.addr %s661, 4
      %s663 = scalar_lea.vmem %s3, %s662
      %s664 = sadd.s32 %s28, 1
      %s665 = smul.u32 %s664, 16
      %p666 = scmp.lt.s32.totalorder %s665, 15
      %s667 = scalar_select %p666, %s665, 15
      %s668 = sadd.s32 %s28, 1
      %s669 = smul.u32 %s668, 16
      %s670 = sadd.s32 %s669, 1
      %p671 = scmp.lt.s32.totalorder %s670, 15
      %s672 = scalar_select %p671, %s670, 15
      %p673 = scmp.lt.s32.totalorder %s27, 1
      %s674 = scalar_select %p673, %s27, 1
      %p675 = scmp.lt.s32.totalorder %s672, 15
      %s676 = scalar_select %p675, %s672, 15
      %s677 = smul.addr %s674, 16
      %s678 = sadd.s32 %s676, %s677
      %s679 = smul.addr %s678, 4
      %s680 = scalar_lea.vmem %s4, %s679
      %s681 = sadd.s32 %s28, 1
      %s682 = smul.u32 %s681, 16
      %s683 = sadd.s32 %s682, 1
      %p684 = scmp.lt.s32.totalorder %s683, 15
      %s685 = scalar_select %p684, %s683, 15
      %s686 = smul.u32 8, %s28
      %p687 = scmp.lt.s32.totalorder %s27, 1
      %s688 = scalar_select %p687, %s27, 1
      %p689 = scmp.lt.s32.totalorder %s686, 7
      %s690 = scalar_select %p689, %s686, 7
      %s691 = smul.addr %s688, 8
      %s692 = sadd.s32 %s690, %s691
      %s693 = smul.addr %s692, 8
      %s694 = scalar_lea.vmem %s12, %s693
      %s695 = smul.u32 8, %s28
      %v696 = vld [vmem:[%s631] sm:$0xf]
      %v697 = vld [vmem:[%s647] sm:$0xf]
      %v698 = vld [vmem:[%s618] sm:$0xf]
      %v699 = vld [vmem:[%s618 + $0x4] sm:$0xf]
      %v700 = vld [vmem:[%s618 + $0x8] sm:$0xf]
      %v701 = vld [vmem:[%s618 + $0xc] sm:$0xf]
      %v702 = vld [vmem:[%s618 + $0x10] sm:$0xf]
      %v703 = vld [vmem:[%s618 + $0x14] sm:$0xf]
      %v704 = vld [vmem:[%s618 + $0x18] sm:$0xf]
      %v705 = vld [vmem:[%s618 + $0x1c] sm:$0xf]
      %v706 = vld [vmem:[%s618 + $0x20] sm:$0xf]
      %v707 = vld [vmem:[%s618 + $0x24] sm:$0xf]
      %v708 = vld [vmem:[%s618 + $0x28] sm:$0xf]
      %v709 = vld [vmem:[%s618 + $0x2c] sm:$0xf]
      %v710 = vld [vmem:[%s618 + $0x30] sm:$0xf]
      %v711 = vld [vmem:[%s618 + $0x34] sm:$0xf]
      %v712 = vld [vmem:[%s618 + $0x38] sm:$0xf]
      %v713 = vld [vmem:[%s618 + $0x3c] sm:$0xf]
      %v714 = vld [vmem:[%s663] sm:$0xf]
      %v715 = vld [vmem:[%s680] sm:$0xf]
      %v716 = vmul.f32 %v697, 0.3125
      %v717 = vmul.f32 %v698, 0.3125
      %v718 = vmul.f32 %v699, 0.3125
      %v719 = vmul.f32 %v700, 0.3125
      %v720 = vmul.f32 %v701, 0.3125
      %v721 = vmul.f32 %v702, 0.3125
      %v722 = vmul.f32 %v703, 0.3125
      %v723 = vmul.f32 %v704, 0.3125
      %v724 = vmul.f32 %v705, 0.3125
      %v725 = vmul.f32 %v706, 0.3125
      %v726 = vmul.f32 %v707, 0.3125
      %v727 = vmul.f32 %v708, 0.3125
      %v728 = vmul.f32 %v709, 0.3125
      %v729 = vmul.f32 %v710, 0.3125
      %v730 = vmul.f32 %v711, 0.3125
      %v731 = vmul.f32 %v712, 0.3125
      %v732 = vmul.f32 %v713, 0.3125
      %v733 = vmul.f32 %v698, 0.625
      %v734 = vmul.f32 %v699, 0.625
      %v735 = vmul.f32 %v700, 0.625
      %v736 = vmul.f32 %v701, 0.625
      %v737 = vmul.f32 %v702, 0.625
      %v738 = vmul.f32 %v703, 0.625
      %v739 = vmul.f32 %v704, 0.625
      %v740 = vmul.f32 %v705, 0.625
      %v741 = vmul.f32 %v706, 0.625
      %v742 = vmul.f32 %v707, 0.625
      %v743 = vmul.f32 %v708, 0.625
      %v744 = vmul.f32 %v709, 0.625
      %v745 = vmul.f32 %v710, 0.625
      %v746 = vmul.f32 %v711, 0.625
      %v747 = vmul.f32 %v712, 0.625
      %v748 = vmul.f32 %v713, 0.625
      %v749 = vmul.f32 %v714, 0.625
      %v750 = vadd.f32 %v716, %v733
      %v751 = vadd.f32 %v717, %v734
      %v752 = vadd.f32 %v718, %v735
      %v753 = vadd.f32 %v719, %v736
      %v754 = vadd.f32 %v720, %v737
      %v755 = vadd.f32 %v721, %v738
      %v756 = vadd.f32 %v722, %v739
      %v757 = vadd.f32 %v723, %v740
      %v758 = vadd.f32 %v724, %v741
      %v759 = vadd.f32 %v725, %v742
      %v760 = vadd.f32 %v726, %v743
      %v761 = vadd.f32 %v727, %v744
      %v762 = vadd.f32 %v728, %v745
      %v763 = vadd.f32 %v729, %v746
      %v764 = vadd.f32 %v730, %v747
      %v765 = vadd.f32 %v731, %v748
      %v766 = vadd.f32 %v732, %v749
      %v767 = vmul.f32 %v699, 0.0625
      %v768 = vmul.f32 %v700, 0.0625
      %v769 = vmul.f32 %v701, 0.0625
      %v770 = vmul.f32 %v702, 0.0625
      %v771 = vmul.f32 %v703, 0.0625
      %v772 = vmul.f32 %v704, 0.0625
      %v773 = vmul.f32 %v705, 0.0625
      %v774 = vmul.f32 %v706, 0.0625
      %v775 = vmul.f32 %v707, 0.0625
      %v776 = vmul.f32 %v708, 0.0625
      %v777 = vmul.f32 %v709, 0.0625
      %v778 = vmul.f32 %v710, 0.0625
      %v779 = vmul.f32 %v711, 0.0625
      %v780 = vmul.f32 %v712, 0.0625
      %v781 = vmul.f32 %v713, 0.0625
      %v782 = vmul.f32 %v714, 0.0625
      %v783 = vmul.f32 %v715, 0.0625
      %v784 = vadd.f32 %v750, %v767
      %v785 = vadd.f32 %v751, %v768
      %v786 = vadd.f32 %v752, %v769
      %v787 = vadd.f32 %v753, %v770
      %v788 = vadd.f32 %v754, %v771
      %v789 = vadd.f32 %v755, %v772
      %v790 = vadd.f32 %v756, %v773
      %v791 = vadd.f32 %v757, %v774
      %v792 = vadd.f32 %v758, %v775
      %v793 = vadd.f32 %v759, %v776
      %v794 = vadd.f32 %v760, %v777
      %v795 = vadd.f32 %v761, %v778
      %v796 = vadd.f32 %v762, %v779
      %v797 = vadd.f32 %v763, %v780
      %v798 = vadd.f32 %v764, %v781
      %v799 = vadd.f32 %v765, %v782
      %v800 = vadd.f32 %v766, %v783
      %v801 = vmul.f32 %v696, 0.0625
      %v802 = vmul.f32 %v697, 0.0625
      %v803 = vmul.f32 %v698, 0.0625
      %v804 = vmul.f32 %v697, 0.625
      %v805 = vadd.f32 %v801, %v804
      %v806 = vadd.f32 %v802, %v733
      %v807 = vadd.f32 %v803, %v734
      %v808 = vadd.f32 %v767, %v735
      %v809 = vadd.f32 %v768, %v736
      %v810 = vadd.f32 %v769, %v737
      %v811 = vadd.f32 %v770, %v738
      %v812 = vadd.f32 %v771, %v739
      %v813 = vadd.f32 %v772, %v740
      %v814 = vadd.f32 %v773, %v741
      %v815 = vadd.f32 %v774, %v742
      %v816 = vadd.f32 %v775, %v743
      %v817 = vadd.f32 %v776, %v744
      %v818 = vadd.f32 %v777, %v745
      %v819 = vadd.f32 %v778, %v746
      %v820 = vadd.f32 %v779, %v747
      %v821 = vadd.f32 %v780, %v748
      %v822 = vmul.f32 %v714, 0.3125
      %v823 = vadd.f32 %v805, %v717
      %v824 = vadd.f32 %v806, %v718
      %v825 = vadd.f32 %v807, %v719
      %v826 = vadd.f32 %v808, %v720
      %v827 = vadd.f32 %v809, %v721
      %v828 = vadd.f32 %v810, %v722
      %v829 = vadd.f32 %v811, %v723
      %v830 = vadd.f32 %v812, %v724
      %v831 = vadd.f32 %v813, %v725
      %v832 = vadd.f32 %v814, %v726
      %v833 = vadd.f32 %v815, %v727
      %v834 = vadd.f32 %v816, %v728
      %v835 = vadd.f32 %v817, %v729
      %v836 = vadd.f32 %v818, %v730
      %v837 = vadd.f32 %v819, %v731
      %v838 = vadd.f32 %v820, %v732
      %v839 = vadd.f32 %v821, %v822
      %v840 = vld [vmem:[%s5] sm:$0xff]
      %v841 = vld [vmem:[%s5 + $0x8] sm:$0xff]
      %p842 = scmp.eq.s32.totalorder %s28, 0
      %s843 = scalar_select %p842, 0.0, 1.0
      %v844 = vstv %s843
      %v845 = vmul.f32 %v823, %v844
      %vm846 = vcmask 130048
      %v848 = vsel %vm846, %v845, 0
      %850 = vmatprep.subr.mxu0 0.0
      %851 = vmatpush1.msra.mxu0 %v840
      %852 = vmatprep.subr.mxu0 0.0
      %853 = vmatpush1.msra.mxu0 %v841
      %854 = vmatprep.subr.mxu0 0.0
      %855 = vmatpush1.msra.mxu0 0.0
      %856 = vmatprep.subr.mxu0 0.0
      %857 = vmatpush1.msra.mxu0 0.0
      %858 = vmatprep.subr.mxu0 0.0
      %859 = vmatpush1.msra.mxu0 0.0
      %860 = vmatprep.subr.mxu0 0.0
      %861 = vmatpush1.msra.mxu0 0.0
      %862 = vmatprep.subr.mxu0 0.0
      %863 = vmatpush1.msra.mxu0 0.0
      %864 = vmatprep.subr.mxu0 0.0
      %865 = vmatpush1.msra.mxu0 0.0
      %866 = vmatprep.subr.mxu0 0.0
      %867 = vmatpush1.msra.mxu0 0.0
      %868 = vmatprep.subr.mxu0 0.0
      %869 = vmatpush1.msra.mxu0 0.0
      %870 = vmatprep.subr.mxu0 0.0
      %871 = vmatpush1.msra.mxu0 0.0
      %872 = vmatprep.subr.mxu0 0.0
      %873 = vmatpush1.msra.mxu0 0.0
      %874 = vmatprep.subr.mxu0 0.0
      %875 = vmatpush1.msra.mxu0 0.0
      %876 = vmatprep.subr.mxu0 0.0
      %877 = vmatpush1.msra.mxu0 0.0
      %878 = vmatprep.subr.mxu0 0.0
      %879 = vmatpush1.msra.mxu0 0.0
      %880 = vmatprep.subr.mxu0 0.0
      %881 = vmatpush1.msra.mxu0 0.0
      %882 = vmatprep.subr.mxu0 0.0
      %883 = vmatpush1.msra.mxu0 0.0
      %884 = vmatprep.subr.mxu0 0.0
      %885 = vmatpush1.msra.mxu0 0.0
      %886 = vmatprep.subr.mxu0 0.0
      %887 = vmatpush1.msra.mxu0 0.0
      %888 = vmatprep.subr.mxu0 0.0
      %889 = vmatpush1.msra.mxu0 0.0
      %890 = vmatprep.subr.mxu0 0.0
      %891 = vmatpush1.msra.mxu0 0.0
      %892 = vmatprep.subr.mxu0 0.0
      %893 = vmatpush1.msra.mxu0 0.0
      %894 = vmatprep.subr.mxu0 0.0
      %895 = vmatpush1.msra.mxu0 0.0
      %896 = vmatprep.subr.mxu0 0.0
      %897 = vmatpush1.msra.mxu0 0.0
      %898 = vmatprep.subr.mxu0 0.0
      %899 = vmatpush1.msra.mxu0 0.0
      %900 = vmatprep.subr.mxu0 0.0
      %901 = vmatpush1.msra.mxu0 0.0
      %902 = vmatprep.subr.mxu0 0.0
      %903 = vmatpush1.msra.mxu0 0.0
      %904 = vmatprep.subr.mxu0 0.0
      %905 = vmatpush1.msra.mxu0 0.0
      %906 = vmatprep.subr.mxu0 0.0
      %907 = vmatpush1.msra.mxu0 0.0
      %908 = vmatprep.subr.mxu0 0.0
      %909 = vmatpush1.msra.mxu0 0.0
      %910 = vmatprep.subr.mxu0 0.0
      %911 = vmatpush1.msra.mxu0 0.0
      %912 = vmatprep.subr.mxu0 0.0
      %913 = vmatpush1.msra.mxu0 0.0
      %914 = vmatprep.mubr.f32.mxu0 0.0
      %915 = vmatmul.mubr.f32.gmra.mrb[0].mxu0 %v848
      %v916 = vpop.f32.mrb[0].mxu0
      %v917 = vadd.f32 0.0, %v916
      %v918 = vpop.f32.mrb[0].mxu0
      %919 = vdwg.mxu0
      %v921 = vsel %vm846, %v784, 0
      %923 = vmatprep.subr.mxu0 0.0
      %924 = vmatpush1.msra.mxu0 %v840
      %925 = vmatprep.subr.mxu0 0.0
      %926 = vmatpush1.msra.mxu0 %v841
      %927 = vmatprep.subr.mxu0 0.0
      %928 = vmatpush1.msra.mxu0 0.0
      %929 = vmatprep.subr.mxu0 0.0
      %930 = vmatpush1.msra.mxu0 0.0
      %931 = vmatprep.subr.mxu0 0.0
      %932 = vmatpush1.msra.mxu0 0.0
      %933 = vmatprep.subr.mxu0 0.0
      %934 = vmatpush1.msra.mxu0 0.0
      %935 = vmatprep.subr.mxu0 0.0
      %936 = vmatpush1.msra.mxu0 0.0
      %937 = vmatprep.subr.mxu0 0.0
      %938 = vmatpush1.msra.mxu0 0.0
      %939 = vmatprep.subr.mxu0 0.0
      %940 = vmatpush1.msra.mxu0 0.0
      %941 = vmatprep.subr.mxu0 0.0
      %942 = vmatpush1.msra.mxu0 0.0
      %943 = vmatprep.subr.mxu0 0.0
      %944 = vmatpush1.msra.mxu0 0.0
      %945 = vmatprep.subr.mxu0 0.0
      %946 = vmatpush1.msra.mxu0 0.0
      %947 = vmatprep.subr.mxu0 0.0
      %948 = vmatpush1.msra.mxu0 0.0
      %949 = vmatprep.subr.mxu0 0.0
      %950 = vmatpush1.msra.mxu0 0.0
      %951 = vmatprep.subr.mxu0 0.0
      %952 = vmatpush1.msra.mxu0 0.0
      %953 = vmatprep.subr.mxu0 0.0
      %954 = vmatpush1.msra.mxu0 0.0
      %955 = vmatprep.subr.mxu0 0.0
      %956 = vmatpush1.msra.mxu0 0.0
      %957 = vmatprep.subr.mxu0 0.0
      %958 = vmatpush1.msra.mxu0 0.0
      %959 = vmatprep.subr.mxu0 0.0
      %960 = vmatpush1.msra.mxu0 0.0
      %961 = vmatprep.subr.mxu0 0.0
      %962 = vmatpush1.msra.mxu0 0.0
      %963 = vmatprep.subr.mxu0 0.0
      %964 = vmatpush1.msra.mxu0 0.0
      %965 = vmatprep.subr.mxu0 0.0
      %966 = vmatpush1.msra.mxu0 0.0
      %967 = vmatprep.subr.mxu0 0.0
      %968 = vmatpush1.msra.mxu0 0.0
      %969 = vmatprep.subr.mxu0 0.0
      %970 = vmatpush1.msra.mxu0 0.0
      %971 = vmatprep.subr.mxu0 0.0
      %972 = vmatpush1.msra.mxu0 0.0
      %973 = vmatprep.subr.mxu0 0.0
      %974 = vmatpush1.msra.mxu0 0.0
      %975 = vmatprep.subr.mxu0 0.0
      %976 = vmatpush1.msra.mxu0 0.0
      %977 = vmatprep.subr.mxu0 0.0
      %978 = vmatpush1.msra.mxu0 0.0
      %979 = vmatprep.subr.mxu0 0.0
      %980 = vmatpush1.msra.mxu0 0.0
      %981 = vmatprep.subr.mxu0 0.0
      %982 = vmatpush1.msra.mxu0 0.0
      %983 = vmatprep.subr.mxu0 0.0
      %984 = vmatpush1.msra.mxu0 0.0
      %985 = vmatprep.subr.mxu0 0.0
      %986 = vmatpush1.msra.mxu0 0.0
      %987 = vmatprep.mubr.f32.mxu0 0.0
      %988 = vmatmul.mubr.f32.gmra.mrb[0].mxu0 %v921
      %v989 = vpop.f32.mrb[0].mxu0
      %v990 = vadd.f32 0.0, %v989
      %v991 = vpop.f32.mrb[0].mxu0
      %992 = vdwg.mxu0
      %v994 = vsel %vm846, %v824, 0
      %996 = vmatprep.subr.mxu0 0.0
      %997 = vmatpush1.msra.mxu0 %v840
      %998 = vmatprep.subr.mxu0 0.0
      %999 = vmatpush1.msra.mxu0 %v841
      %1000 = vmatprep.subr.mxu0 0.0
      %1001 = vmatpush1.msra.mxu0 0.0
      %1002 = vmatprep.subr.mxu0 0.0
      %1003 = vmatpush1.msra.mxu0 0.0
      %1004 = vmatprep.subr.mxu0 0.0
      %1005 = vmatpush1.msra.mxu0 0.0
      %1006 = vmatprep.subr.mxu0 0.0
      %1007 = vmatpush1.msra.mxu0 0.0
      %1008 = vmatprep.subr.mxu0 0.0
      %1009 = vmatpush1.msra.mxu0 0.0
      %1010 = vmatprep.subr.mxu0 0.0
      %1011 = vmatpush1.msra.mxu0 0.0
      %1012 = vmatprep.subr.mxu0 0.0
      %1013 = vmatpush1.msra.mxu0 0.0
      %1014 = vmatprep.subr.mxu0 0.0
      %1015 = vmatpush1.msra.mxu0 0.0
      %1016 = vmatprep.subr.mxu0 0.0
      %1017 = vmatpush1.msra.mxu0 0.0
      %1018 = vmatprep.subr.mxu0 0.0
      %1019 = vmatpush1.msra.mxu0 0.0
      %1020 = vmatprep.subr.mxu0 0.0
      %1021 = vmatpush1.msra.mxu0 0.0
      %1022 = vmatprep.subr.mxu0 0.0
      %1023 = vmatpush1.msra.mxu0 0.0
      %1024 = vmatprep.subr.mxu0 0.0
      %1025 = vmatpush1.msra.mxu0 0.0
      %1026 = vmatprep.subr.mxu0 0.0
      %1027 = vmatpush1.msra.mxu0 0.0
      %1028 = vmatprep.subr.mxu0 0.0
      %1029 = vmatpush1.msra.mxu0 0.0
      %1030 = vmatprep.subr.mxu0 0.0
      %1031 = vmatpush1.msra.mxu0 0.0
      %1032 = vmatprep.subr.mxu0 0.0
      %1033 = vmatpush1.msra.mxu0 0.0
      %1034 = vmatprep.subr.mxu0 0.0
      %1035 = vmatpush1.msra.mxu0 0.0
      %1036 = vmatprep.subr.mxu0 0.0
      %1037 = vmatpush1.msra.mxu0 0.0
      %1038 = vmatprep.subr.mxu0 0.0
      %1039 = vmatpush1.msra.mxu0 0.0
      %1040 = vmatprep.subr.mxu0 0.0
      %1041 = vmatpush1.msra.mxu0 0.0
      %1042 = vmatprep.subr.mxu0 0.0
      %1043 = vmatpush1.msra.mxu0 0.0
      %1044 = vmatprep.subr.mxu0 0.0
      %1045 = vmatpush1.msra.mxu0 0.0
      %1046 = vmatprep.subr.mxu0 0.0
      %1047 = vmatpush1.msra.mxu0 0.0
      %1048 = vmatprep.subr.mxu0 0.0
      %1049 = vmatpush1.msra.mxu0 0.0
      %1050 = vmatprep.subr.mxu0 0.0
      %1051 = vmatpush1.msra.mxu0 0.0
      %1052 = vmatprep.subr.mxu0 0.0
      %1053 = vmatpush1.msra.mxu0 0.0
      %1054 = vmatprep.subr.mxu0 0.0
      %1055 = vmatpush1.msra.mxu0 0.0
      %1056 = vmatprep.subr.mxu0 0.0
      %1057 = vmatpush1.msra.mxu0 0.0
      %1058 = vmatprep.subr.mxu0 0.0
      %1059 = vmatpush1.msra.mxu0 0.0
      %1060 = vmatprep.mubr.f32.mxu0 0.0
      %1061 = vmatmul.mubr.f32.gmra.mrb[0].mxu0 %v994
      %v1062 = vpop.f32.mrb[0].mxu0
      %v1063 = vadd.f32 0.0, %v1062
      %v1064 = vpop.f32.mrb[0].mxu0
      %1065 = vdwg.mxu0
      %v1067 = vsel %vm846, %v785, 0
      %1069 = vmatprep.subr.mxu0 0.0
      %1070 = vmatpush1.msra.mxu0 %v840
      %1071 = vmatprep.subr.mxu0 0.0
      %1072 = vmatpush1.msra.mxu0 %v841
      %1073 = vmatprep.subr.mxu0 0.0
      %1074 = vmatpush1.msra.mxu0 0.0
      %1075 = vmatprep.subr.mxu0 0.0
      %1076 = vmatpush1.msra.mxu0 0.0
      %1077 = vmatprep.subr.mxu0 0.0
      %1078 = vmatpush1.msra.mxu0 0.0
      %1079 = vmatprep.subr.mxu0 0.0
      %1080 = vmatpush1.msra.mxu0 0.0
      %1081 = vmatprep.subr.mxu0 0.0
      %1082 = vmatpush1.msra.mxu0 0.0
      %1083 = vmatprep.subr.mxu0 0.0
      %1084 = vmatpush1.msra.mxu0 0.0
      %1085 = vmatprep.subr.mxu0 0.0
      %1086 = vmatpush1.msra.mxu0 0.0
      %1087 = vmatprep.subr.mxu0 0.0
      %1088 = vmatpush1.msra.mxu0 0.0
      %1089 = vmatprep.subr.mxu0 0.0
      %1090 = vmatpush1.msra.mxu0 0.0
      %1091 = vmatprep.subr.mxu0 0.0
      %1092 = vmatpush1.msra.mxu0 0.0
      %1093 = vmatprep.subr.mxu0 0.0
      %1094 = vmatpush1.msra.mxu0 0.0
      %1095 = vmatprep.subr.mxu0 0.0
      %1096 = vmatpush1.msra.mxu0 0.0
      %1097 = vmatprep.subr.mxu0 0.0
      %1098 = vmatpush1.msra.mxu0 0.0
      %1099 = vmatprep.subr.mxu0 0.0
      %1100 = vmatpush1.msra.mxu0 0.0
      %1101 = vmatprep.subr.mxu0 0.0
      %1102 = vmatpush1.msra.mxu0 0.0
      %1103 = vmatprep.subr.mxu0 0.0
      %1104 = vmatpush1.msra.mxu0 0.0
      %1105 = vmatprep.subr.mxu0 0.0
      %1106 = vmatpush1.msra.mxu0 0.0
      %1107 = vmatprep.subr.mxu0 0.0
      %1108 = vmatpush1.msra.mxu0 0.0
      %1109 = vmatprep.subr.mxu0 0.0
      %1110 = vmatpush1.msra.mxu0 0.0
      %1111 = vmatprep.subr.mxu0 0.0
      %1112 = vmatpush1.msra.mxu0 0.0
      %1113 = vmatprep.subr.mxu0 0.0
      %1114 = vmatpush1.msra.mxu0 0.0
      %1115 = vmatprep.subr.mxu0 0.0
      %1116 = vmatpush1.msra.mxu0 0.0
      %1117 = vmatprep.subr.mxu0 0.0
      %1118 = vmatpush1.msra.mxu0 0.0
      %1119 = vmatprep.subr.mxu0 0.0
      %1120 = vmatpush1.msra.mxu0 0.0
      %1121 = vmatprep.subr.mxu0 0.0
      %1122 = vmatpush1.msra.mxu0 0.0
      %1123 = vmatprep.subr.mxu0 0.0
      %1124 = vmatpush1.msra.mxu0 0.0
      %1125 = vmatprep.subr.mxu0 0.0
      %1126 = vmatpush1.msra.mxu0 0.0
      %1127 = vmatprep.subr.mxu0 0.0
      %1128 = vmatpush1.msra.mxu0 0.0
      %1129 = vmatprep.subr.mxu0 0.0
      %1130 = vmatpush1.msra.mxu0 0.0
      %1131 = vmatprep.subr.mxu0 0.0
      %1132 = vmatpush1.msra.mxu0 0.0
      %1133 = vmatprep.mubr.f32.mxu0 0.0
      %1134 = vmatmul.mubr.f32.gmra.mrb[0].mxu0 %v1067
      %v1135 = vpop.f32.mrb[0].mxu0
      %v1136 = vadd.f32 0.0, %v1135
      %v1137 = vpop.f32.mrb[0].mxu0
      %1138 = vdwg.mxu0
      %v1140 = vsel %vm846, %v825, 0
      %1142 = vmatprep.subr.mxu0 0.0
      %1143 = vmatpush1.msra.mxu0 %v840
      %1144 = vmatprep.subr.mxu0 0.0
      %1145 = vmatpush1.msra.mxu0 %v841
      %1146 = vmatprep.subr.mxu0 0.0
      %1147 = vmatpush1.msra.mxu0 0.0
      %1148 = vmatprep.subr.mxu0 0.0
      %1149 = vmatpush1.msra.mxu0 0.0
      %1150 = vmatprep.subr.mxu0 0.0
      %1151 = vmatpush1.msra.mxu0 0.0
      %1152 = vmatprep.subr.mxu0 0.0
      %1153 = vmatpush1.msra.mxu0 0.0
      %1154 = vmatprep.subr.mxu0 0.0
      %1155 = vmatpush1.msra.mxu0 0.0
      %1156 = vmatprep.subr.mxu0 0.0
      %1157 = vmatpush1.msra.mxu0 0.0
      %1158 = vmatprep.subr.mxu0 0.0
      %1159 = vmatpush1.msra.mxu0 0.0
      %1160 = vmatprep.subr.mxu0 0.0
      %1161 = vmatpush1.msra.mxu0 0.0
      %1162 = vmatprep.subr.mxu0 0.0
      %1163 = vmatpush1.msra.mxu0 0.0
      %1164 = vmatprep.subr.mxu0 0.0
      %1165 = vmatpush1.msra.mxu0 0.0
      %1166 = vmatprep.subr.mxu0 0.0
      %1167 = vmatpush1.msra.mxu0 0.0
      %1168 = vmatprep.subr.mxu0 0.0
      %1169 = vmatpush1.msra.mxu0 0.0
      %1170 = vmatprep.subr.mxu0 0.0
      %1171 = vmatpush1.msra.mxu0 0.0
      %1172 = vmatprep.subr.mxu0 0.0
      %1173 = vmatpush1.msra.mxu0 0.0
      %1174 = vmatprep.subr.mxu0 0.0
      %1175 = vmatpush1.msra.mxu0 0.0
      %1176 = vmatprep.subr.mxu0 0.0
      %1177 = vmatpush1.msra.mxu0 0.0
      %1178 = vmatprep.subr.mxu0 0.0
      %1179 = vmatpush1.msra.mxu0 0.0
      %1180 = vmatprep.subr.mxu0 0.0
      %1181 = vmatpush1.msra.mxu0 0.0
      %1182 = vmatprep.subr.mxu0 0.0
      %1183 = vmatpush1.msra.mxu0 0.0
      %1184 = vmatprep.subr.mxu0 0.0
      %1185 = vmatpush1.msra.mxu0 0.0
      %1186 = vmatprep.subr.mxu0 0.0
      %1187 = vmatpush1.msra.mxu0 0.0
      %1188 = vmatprep.subr.mxu0 0.0
      %1189 = vmatpush1.msra.mxu0 0.0
      %1190 = vmatprep.subr.mxu0 0.0
      %1191 = vmatpush1.msra.mxu0 0.0
      %1192 = vmatprep.subr.mxu0 0.0
      %1193 = vmatpush1.msra.mxu0 0.0
      %1194 = vmatprep.subr.mxu0 0.0
      %1195 = vmatpush1.msra.mxu0 0.0
      %1196 = vmatprep.subr.mxu0 0.0
      %1197 = vmatpush1.msra.mxu0 0.0
      %1198 = vmatprep.subr.mxu0 0.0
      %1199 = vmatpush1.msra.mxu0 0.0
      %1200 = vmatprep.subr.mxu0 0.0
      %1201 = vmatpush1.msra.mxu0 0.0
      %1202 = vmatprep.subr.mxu0 0.0
      %1203 = vmatpush1.msra.mxu0 0.0
      %1204 = vmatprep.subr.mxu0 0.0
      %1205 = vmatpush1.msra.mxu0 0.0
      %1206 = vmatprep.mubr.f32.mxu0 0.0
      %1207 = vmatmul.mubr.f32.gmra.mrb[0].mxu0 %v1140
      %v1208 = vpop.f32.mrb[0].mxu0
      %v1209 = vadd.f32 0.0, %v1208
      %v1210 = vpop.f32.mrb[0].mxu0
      %1211 = vdwg.mxu0
      %v1213 = vsel %vm846, %v786, 0
      %1215 = vmatprep.subr.mxu0 0.0
      %1216 = vmatpush1.msra.mxu0 %v840
      %1217 = vmatprep.subr.mxu0 0.0
      %1218 = vmatpush1.msra.mxu0 %v841
      %1219 = vmatprep.subr.mxu0 0.0
      %1220 = vmatpush1.msra.mxu0 0.0
      %1221 = vmatprep.subr.mxu0 0.0
      %1222 = vmatpush1.msra.mxu0 0.0
      %1223 = vmatprep.subr.mxu0 0.0
      %1224 = vmatpush1.msra.mxu0 0.0
      %1225 = vmatprep.subr.mxu0 0.0
      %1226 = vmatpush1.msra.mxu0 0.0
      %1227 = vmatprep.subr.mxu0 0.0
      %1228 = vmatpush1.msra.mxu0 0.0
      %1229 = vmatprep.subr.mxu0 0.0
      %1230 = vmatpush1.msra.mxu0 0.0
      %1231 = vmatprep.subr.mxu0 0.0
      %1232 = vmatpush1.msra.mxu0 0.0
      %1233 = vmatprep.subr.mxu0 0.0
      %1234 = vmatpush1.msra.mxu0 0.0
      %1235 = vmatprep.subr.mxu0 0.0
      %1236 = vmatpush1.msra.mxu0 0.0
      %1237 = vmatprep.subr.mxu0 0.0
      %1238 = vmatpush1.msra.mxu0 0.0
      %1239 = vmatprep.subr.mxu0 0.0
      %1240 = vmatpush1.msra.mxu0 0.0
      %1241 = vmatprep.subr.mxu0 0.0
      %1242 = vmatpush1.msra.mxu0 0.0
      %1243 = vmatprep.subr.mxu0 0.0
      %1244 = vmatpush1.msra.mxu0 0.0
      %1245 = vmatprep.subr.mxu0 0.0
      %1246 = vmatpush1.msra.mxu0 0.0
      %1247 = vmatprep.subr.mxu0 0.0
      %1248 = vmatpush1.msra.mxu0 0.0
      %1249 = vmatprep.subr.mxu0 0.0
      %1250 = vmatpush1.msra.mxu0 0.0
      %1251 = vmatprep.subr.mxu0 0.0
      %1252 = vmatpush1.msra.mxu0 0.0
      %1253 = vmatprep.subr.mxu0 0.0
      %1254 = vmatpush1.msra.mxu0 0.0
      %1255 = vmatprep.subr.mxu0 0.0
      %1256 = vmatpush1.msra.mxu0 0.0
      %1257 = vmatprep.subr.mxu0 0.0
      %1258 = vmatpush1.msra.mxu0 0.0
      %1259 = vmatprep.subr.mxu0 0.0
      %1260 = vmatpush1.msra.mxu0 0.0
      %1261 = vmatprep.subr.mxu0 0.0
      %1262 = vmatpush1.msra.mxu0 0.0
      %1263 = vmatprep.subr.mxu0 0.0
      %1264 = vmatpush1.msra.mxu0 0.0
      %1265 = vmatprep.subr.mxu0 0.0
      %1266 = vmatpush1.msra.mxu0 0.0
      %1267 = vmatprep.subr.mxu0 0.0
      %1268 = vmatpush1.msra.mxu0 0.0
      %1269 = vmatprep.subr.mxu0 0.0
      %1270 = vmatpush1.msra.mxu0 0.0
      %1271 = vmatprep.subr.mxu0 0.0
      %1272 = vmatpush1.msra.mxu0 0.0
      %1273 = vmatprep.subr.mxu0 0.0
      %1274 = vmatpush1.msra.mxu0 0.0
      %1275 = vmatprep.subr.mxu0 0.0
      %1276 = vmatpush1.msra.mxu0 0.0
      %1277 = vmatprep.subr.mxu0 0.0
      %1278 = vmatpush1.msra.mxu0 0.0
      %1279 = vmatprep.mubr.f32.mxu0 0.0
      %1280 = vmatmul.mubr.f32.gmra.mrb[0].mxu0 %v1213
      %v1281 = vpop.f32.mrb[0].mxu0
      %v1282 = vadd.f32 0.0, %v1281
      %v1283 = vpop.f32.mrb[0].mxu0
      %1284 = vdwg.mxu0
      %v1286 = vsel %vm846, %v826, 0
      %1288 = vmatprep.subr.mxu0 0.0
      %1289 = vmatpush1.msra.mxu0 %v840
      %1290 = vmatprep.subr.mxu0 0.0
      %1291 = vmatpush1.msra.mxu0 %v841
      %1292 = vmatprep.subr.mxu0 0.0
      %1293 = vmatpush1.msra.mxu0 0.0
      %1294 = vmatprep.subr.mxu0 0.0
      %1295 = vmatpush1.msra.mxu0 0.0
      %1296 = vmatprep.subr.mxu0 0.0
      %1297 = vmatpush1.msra.mxu0 0.0
      %1298 = vmatprep.subr.mxu0 0.0
      %1299 = vmatpush1.msra.mxu0 0.0
      %1300 = vmatprep.subr.mxu0 0.0
      %1301 = vmatpush1.msra.mxu0 0.0
      %1302 = vmatprep.subr.mxu0 0.0
      %1303 = vmatpush1.msra.mxu0 0.0
      %1304 = vmatprep.subr.mxu0 0.0
      %1305 = vmatpush1.msra.mxu0 0.0
      %1306 = vmatprep.subr.mxu0 0.0
      %1307 = vmatpush1.msra.mxu0 0.0
      %1308 = vmatprep.subr.mxu0 0.0
      %1309 = vmatpush1.msra.mxu0 0.0
      %1310 = vmatprep.subr.mxu0 0.0
      %1311 = vmatpush1.msra.mxu0 0.0
      %1312 = vmatprep.subr.mxu0 0.0
      %1313 = vmatpush1.msra.mxu0 0.0
      %1314 = vmatprep.subr.mxu0 0.0
      %1315 = vmatpush1.msra.mxu0 0.0
      %1316 = vmatprep.subr.mxu0 0.0
      %1317 = vmatpush1.msra.mxu0 0.0
      %1318 = vmatprep.subr.mxu0 0.0
      %1319 = vmatpush1.msra.mxu0 0.0
      %1320 = vmatprep.subr.mxu0 0.0
      %1321 = vmatpush1.msra.mxu0 0.0
      %1322 = vmatprep.subr.mxu0 0.0
      %1323 = vmatpush1.msra.mxu0 0.0
      %1324 = vmatprep.subr.mxu0 0.0
      %1325 = vmatpush1.msra.mxu0 0.0
      %1326 = vmatprep.subr.mxu0 0.0
      %1327 = vmatpush1.msra.mxu0 0.0
      %1328 = vmatprep.subr.mxu0 0.0
      %1329 = vmatpush1.msra.mxu0 0.0
      %1330 = vmatprep.subr.mxu0 0.0
      %1331 = vmatpush1.msra.mxu0 0.0
      %1332 = vmatprep.subr.mxu0 0.0
      %1333 = vmatpush1.msra.mxu0 0.0
      %1334 = vmatprep.subr.mxu0 0.0
      %1335 = vmatpush1.msra.mxu0 0.0
      %1336 = vmatprep.subr.mxu0 0.0
      %1337 = vmatpush1.msra.mxu0 0.0
      %1338 = vmatprep.subr.mxu0 0.0
      %1339 = vmatpush1.msra.mxu0 0.0
      %1340 = vmatprep.subr.mxu0 0.0
      %1341 = vmatpush1.msra.mxu0 0.0
      %1342 = vmatprep.subr.mxu0 0.0
      %1343 = vmatpush1.msra.mxu0 0.0
      %1344 = vmatprep.subr.mxu0 0.0
      %1345 = vmatpush1.msra.mxu0 0.0
      %1346 = vmatprep.subr.mxu0 0.0
      %1347 = vmatpush1.msra.mxu0 0.0
      %1348 = vmatprep.subr.mxu0 0.0
      %1349 = vmatpush1.msra.mxu0 0.0
      %1350 = vmatprep.subr.mxu0 0.0
      %1351 = vmatpush1.msra.mxu0 0.0
      %1352 = vmatprep.mubr.f32.mxu0 0.0
      %1353 = vmatmul.mubr.f32.gmra.mrb[0].mxu0 %v1286
      %v1354 = vpop.f32.mrb[0].mxu0
      %v1355 = vadd.f32 0.0, %v1354
      %v1356 = vpop.f32.mrb[0].mxu0
      %1357 = vdwg.mxu0
      %v1359 = vsel %vm846, %v787, 0
      %1361 = vmatprep.subr.mxu0 0.0
      %1362 = vmatpush1.msra.mxu0 %v840
      %1363 = vmatprep.subr.mxu0 0.0
      %1364 = vmatpush1.msra.mxu0 %v841
      %1365 = vmatprep.subr.mxu0 0.0
      %1366 = vmatpush1.msra.mxu0 0.0
      %1367 = vmatprep.subr.mxu0 0.0
      %1368 = vmatpush1.msra.mxu0 0.0
      %1369 = vmatprep.subr.mxu0 0.0
      %1370 = vmatpush1.msra.mxu0 0.0
      %1371 = vmatprep.subr.mxu0 0.0
      %1372 = vmatpush1.msra.mxu0 0.0
      %1373 = vmatprep.subr.mxu0 0.0
      %1374 = vmatpush1.msra.mxu0 0.0
      %1375 = vmatprep.subr.mxu0 0.0
      %1376 = vmatpush1.msra.mxu0 0.0
      %1377 = vmatprep.subr.mxu0 0.0
      %1378 = vmatpush1.msra.mxu0 0.0
      %1379 = vmatprep.subr.mxu0 0.0
      %1380 = vmatpush1.msra.mxu0 0.0
      %1381 = vmatprep.subr.mxu0 0.0
      %1382 = vmatpush1.msra.mxu0 0.0
      %1383 = vmatprep.subr.mxu0 0.0
      %1384 = vmatpush1.msra.mxu0 0.0
      %1385 = vmatprep.subr.mxu0 0.0
      %1386 = vmatpush1.msra.mxu0 0.0
      %1387 = vmatprep.subr.mxu0 0.0
      %1388 = vmatpush1.msra.mxu0 0.0
      %1389 = vmatprep.subr.mxu0 0.0
      %1390 = vmatpush1.msra.mxu0 0.0
      %1391 = vmatprep.subr.mxu0 0.0
      %1392 = vmatpush1.msra.mxu0 0.0
      %1393 = vmatprep.subr.mxu0 0.0
      %1394 = vmatpush1.msra.mxu0 0.0
      %1395 = vmatprep.subr.mxu0 0.0
      %1396 = vmatpush1.msra.mxu0 0.0
      %1397 = vmatprep.subr.mxu0 0.0
      %1398 = vmatpush1.msra.mxu0 0.0
      %1399 = vmatprep.subr.mxu0 0.0
      %1400 = vmatpush1.msra.mxu0 0.0
      %1401 = vmatprep.subr.mxu0 0.0
      %1402 = vmatpush1.msra.mxu0 0.0
      %1403 = vmatprep.subr.mxu0 0.0
      %1404 = vmatpush1.msra.mxu0 0.0
      %1405 = vmatprep.subr.mxu0 0.0
      %1406 = vmatpush1.msra.mxu0 0.0
      %1407 = vmatprep.subr.mxu0 0.0
      %1408 = vmatpush1.msra.mxu0 0.0
      %1409 = vmatprep.subr.mxu0 0.0
      %1410 = vmatpush1.msra.mxu0 0.0
      %1411 = vmatprep.subr.mxu0 0.0
      %1412 = vmatpush1.msra.mxu0 0.0
      %1413 = vmatprep.subr.mxu0 0.0
      %1414 = vmatpush1.msra.mxu0 0.0
      %1415 = vmatprep.subr.mxu0 0.0
      %1416 = vmatpush1.msra.mxu0 0.0
      %1417 = vmatprep.subr.mxu0 0.0
      %1418 = vmatpush1.msra.mxu0 0.0
      %1419 = vmatprep.subr.mxu0 0.0
      %1420 = vmatpush1.msra.mxu0 0.0
      %1421 = vmatprep.subr.mxu0 0.0
      %1422 = vmatpush1.msra.mxu0 0.0
      %1423 = vmatprep.subr.mxu0 0.0
      %1424 = vmatpush1.msra.mxu0 0.0
      %1425 = vmatprep.mubr.f32.mxu0 0.0
      %1426 = vmatmul.mubr.f32.gmra.mrb[0].mxu0 %v1359
      %v1427 = vpop.f32.mrb[0].mxu0
      %v1428 = vadd.f32 0.0, %v1427
      %v1429 = vpop.f32.mrb[0].mxu0
      %1430 = vdwg.mxu0
      %v1432 = vsel %vm846, %v827, 0
      %1434 = vmatprep.subr.mxu0 0.0
      %1435 = vmatpush1.msra.mxu0 %v840
      %1436 = vmatprep.subr.mxu0 0.0
      %1437 = vmatpush1.msra.mxu0 %v841
      %1438 = vmatprep.subr.mxu0 0.0
      %1439 = vmatpush1.msra.mxu0 0.0
      %1440 = vmatprep.subr.mxu0 0.0
      %1441 = vmatpush1.msra.mxu0 0.0
      %1442 = vmatprep.subr.mxu0 0.0
      %1443 = vmatpush1.msra.mxu0 0.0
      %1444 = vmatprep.subr.mxu0 0.0
      %1445 = vmatpush1.msra.mxu0 0.0
      %1446 = vmatprep.subr.mxu0 0.0
      %1447 = vmatpush1.msra.mxu0 0.0
      %1448 = vmatprep.subr.mxu0 0.0
      %1449 = vmatpush1.msra.mxu0 0.0
      %1450 = vmatprep.subr.mxu0 0.0
      %1451 = vmatpush1.msra.mxu0 0.0
      %1452 = vmatprep.subr.mxu0 0.0
      %1453 = vmatpush1.msra.mxu0 0.0
      %1454 = vmatprep.subr.mxu0 0.0
      %1455 = vmatpush1.msra.mxu0 0.0
      %1456 = vmatprep.subr.mxu0 0.0
      %1457 = vmatpush1.msra.mxu0 0.0
      %1458 = vmatprep.subr.mxu0 0.0
      %1459 = vmatpush1.msra.mxu0 0.0
      %1460 = vmatprep.subr.mxu0 0.0
      %1461 = vmatpush1.msra.mxu0 0.0
      %1462 = vmatprep.subr.mxu0 0.0
      %1463 = vmatpush1.msra.mxu0 0.0
      %1464 = vmatprep.subr.mxu0 0.0
      %1465 = vmatpush1.msra.mxu0 0.0
      %1466 = vmatprep.subr.mxu0 0.0
      %1467 = vmatpush1.msra.mxu0 0.0
      %1468 = vmatprep.subr.mxu0 0.0
      %1469 = vmatpush1.msra.mxu0 0.0
      %1470 = vmatprep.subr.mxu0 0.0
      %1471 = vmatpush1.msra.mxu0 0.0
      %1472 = vmatprep.subr.mxu0 0.0
      %1473 = vmatpush1.msra.mxu0 0.0
      %1474 = vmatprep.subr.mxu0 0.0
      %1475 = vmatpush1.msra.mxu0 0.0
      %1476 = vmatprep.subr.mxu0 0.0
      %1477 = vmatpush1.msra.mxu0 0.0
      %1478 = vmatprep.subr.mxu0 0.0
      %1479 = vmatpush1.msra.mxu0 0.0
      %1480 = vmatprep.subr.mxu0 0.0
      %1481 = vmatpush1.msra.mxu0 0.0
      %1482 = vmatprep.subr.mxu0 0.0
      %1483 = vmatpush1.msra.mxu0 0.0
      %1484 = vmatprep.subr.mxu0 0.0
      %1485 = vmatpush1.msra.mxu0 0.0
      %1486 = vmatprep.subr.mxu0 0.0
      %1487 = vmatpush1.msra.mxu0 0.0
      %1488 = vmatprep.subr.mxu0 0.0
      %1489 = vmatpush1.msra.mxu0 0.0
      %1490 = vmatprep.subr.mxu0 0.0
      %1491 = vmatpush1.msra.mxu0 0.0
      %1492 = vmatprep.subr.mxu0 0.0
      %1493 = vmatpush1.msra.mxu0 0.0
      %1494 = vmatprep.subr.mxu0 0.0
      %1495 = vmatpush1.msra.mxu0 0.0
      %1496 = vmatprep.subr.mxu0 0.0
      %1497 = vmatpush1.msra.mxu0 0.0
      %1498 = vmatprep.mubr.f32.mxu0 0.0
      %1499 = vmatmul.mubr.f32.gmra.mrb[0].mxu0 %v1432
      %v1500 = vpop.f32.mrb[0].mxu0
      %v1501 = vadd.f32 0.0, %v1500
      %v1502 = vpop.f32.mrb[0].mxu0
      %1503 = vdwg.mxu0
      %v1505 = vsel %vm846, %v788, 0
      %1507 = vmatprep.subr.mxu0 0.0
      %1508 = vmatpush1.msra.mxu0 %v840
      %1509 = vmatprep.subr.mxu0 0.0
      %1510 = vmatpush1.msra.mxu0 %v841
      %1511 = vmatprep.subr.mxu0 0.0
      %1512 = vmatpush1.msra.mxu0 0.0
      %1513 = vmatprep.subr.mxu0 0.0
      %1514 = vmatpush1.msra.mxu0 0.0
      %1515 = vmatprep.subr.mxu0 0.0
      %1516 = vmatpush1.msra.mxu0 0.0
      %1517 = vmatprep.subr.mxu0 0.0
      %1518 = vmatpush1.msra.mxu0 0.0
      %1519 = vmatprep.subr.mxu0 0.0
      %1520 = vmatpush1.msra.mxu0 0.0
      %1521 = vmatprep.subr.mxu0 0.0
      %1522 = vmatpush1.msra.mxu0 0.0
      %1523 = vmatprep.subr.mxu0 0.0
      %1524 = vmatpush1.msra.mxu0 0.0
      %1525 = vmatprep.subr.mxu0 0.0
      %1526 = vmatpush1.msra.mxu0 0.0
      %1527 = vmatprep.subr.mxu0 0.0
      %1528 = vmatpush1.msra.mxu0 0.0
      %1529 = vmatprep.subr.mxu0 0.0
      %1530 = vmatpush1.msra.mxu0 0.0
      %1531 = vmatprep.subr.mxu0 0.0
      %1532 = vmatpush1.msra.mxu0 0.0
      %1533 = vmatprep.subr.mxu0 0.0
      %1534 = vmatpush1.msra.mxu0 0.0
      %1535 = vmatprep.subr.mxu0 0.0
      %1536 = vmatpush1.msra.mxu0 0.0
      %1537 = vmatprep.subr.mxu0 0.0
      %1538 = vmatpush1.msra.mxu0 0.0
      %1539 = vmatprep.subr.mxu0 0.0
      %1540 = vmatpush1.msra.mxu0 0.0
      %1541 = vmatprep.subr.mxu0 0.0
      %1542 = vmatpush1.msra.mxu0 0.0
      %1543 = vmatprep.subr.mxu0 0.0
      %1544 = vmatpush1.msra.mxu0 0.0
      %1545 = vmatprep.subr.mxu0 0.0
      %1546 = vmatpush1.msra.mxu0 0.0
      %1547 = vmatprep.subr.mxu0 0.0
      %1548 = vmatpush1.msra.mxu0 0.0
      %1549 = vmatprep.subr.mxu0 0.0
      %1550 = vmatpush1.msra.mxu0 0.0
      %1551 = vmatprep.subr.mxu0 0.0
      %1552 = vmatpush1.msra.mxu0 0.0
      %1553 = vmatprep.subr.mxu0 0.0
      %1554 = vmatpush1.msra.mxu0 0.0
      %1555 = vmatprep.subr.mxu0 0.0
      %1556 = vmatpush1.msra.mxu0 0.0
      %1557 = vmatprep.subr.mxu0 0.0
      %1558 = vmatpush1.msra.mxu0 0.0
      %1559 = vmatprep.subr.mxu0 0.0
      %1560 = vmatpush1.msra.mxu0 0.0
      %1561 = vmatprep.subr.mxu0 0.0
      %1562 = vmatpush1.msra.mxu0 0.0
      %1563 = vmatprep.subr.mxu0 0.0
      %1564 = vmatpush1.msra.mxu0 0.0
      %1565 = vmatprep.subr.mxu0 0.0
      %1566 = vmatpush1.msra.mxu0 0.0
      %1567 = vmatprep.subr.mxu0 0.0
      %1568 = vmatpush1.msra.mxu0 0.0
      %1569 = vmatprep.subr.mxu0 0.0
      %1570 = vmatpush1.msra.mxu0 0.0
      %1571 = vmatprep.mubr.f32.mxu0 0.0
      %1572 = vmatmul.mubr.f32.gmra.mrb[0].mxu0 %v1505
      %v1573 = vpop.f32.mrb[0].mxu0
      %v1574 = vadd.f32 0.0, %v1573
      %v1575 = vpop.f32.mrb[0].mxu0
      %1576 = vdwg.mxu0
      %v1578 = vsel %vm846, %v828, 0
      %1580 = vmatprep.subr.mxu0 0.0
      %1581 = vmatpush1.msra.mxu0 %v840
      %1582 = vmatprep.subr.mxu0 0.0
      %1583 = vmatpush1.msra.mxu0 %v841
      %1584 = vmatprep.subr.mxu0 0.0
      %1585 = vmatpush1.msra.mxu0 0.0
      %1586 = vmatprep.subr.mxu0 0.0
      %1587 = vmatpush1.msra.mxu0 0.0
      %1588 = vmatprep.subr.mxu0 0.0
      %1589 = vmatpush1.msra.mxu0 0.0
      %1590 = vmatprep.subr.mxu0 0.0
      %1591 = vmatpush1.msra.mxu0 0.0
      %1592 = vmatprep.subr.mxu0 0.0
      %1593 = vmatpush1.msra.mxu0 0.0
      %1594 = vmatprep.subr.mxu0 0.0
      %1595 = vmatpush1.msra.mxu0 0.0
      %1596 = vmatprep.subr.mxu0 0.0
      %1597 = vmatpush1.msra.mxu0 0.0
      %1598 = vmatprep.subr.mxu0 0.0
      %1599 = vmatpush1.msra.mxu0 0.0
      %1600 = vmatprep.subr.mxu0 0.0
      %1601 = vmatpush1.msra.mxu0 0.0
      %1602 = vmatprep.subr.mxu0 0.0
      %1603 = vmatpush1.msra.mxu0 0.0
      %1604 = vmatprep.subr.mxu0 0.0
      %1605 = vmatpush1.msra.mxu0 0.0
      %1606 = vmatprep.subr.mxu0 0.0
      %1607 = vmatpush1.msra.mxu0 0.0
      %1608 = vmatprep.subr.mxu0 0.0
      %1609 = vmatpush1.msra.mxu0 0.0
      %1610 = vmatprep.subr.mxu0 0.0
      %1611 = vmatpush1.msra.mxu0 0.0
      %1612 = vmatprep.subr.mxu0 0.0
      %1613 = vmatpush1.msra.mxu0 0.0
      %1614 = vmatprep.subr.mxu0 0.0
      %1615 = vmatpush1.msra.mxu0 0.0
      %1616 = vmatprep.subr.mxu0 0.0
      %1617 = vmatpush1.msra.mxu0 0.0
      %1618 = vmatprep.subr.mxu0 0.0
      %1619 = vmatpush1.msra.mxu0 0.0
      %1620 = vmatprep.subr.mxu0 0.0
      %1621 = vmatpush1.msra.mxu0 0.0
      %1622 = vmatprep.subr.mxu0 0.0
      %1623 = vmatpush1.msra.mxu0 0.0
      %1624 = vmatprep.subr.mxu0 0.0
      %1625 = vmatpush1.msra.mxu0 0.0
      %1626 = vmatprep.subr.mxu0 0.0
      %1627 = vmatpush1.msra.mxu0 0.0
      %1628 = vmatprep.subr.mxu0 0.0
      %1629 = vmatpush1.msra.mxu0 0.0
      %1630 = vmatprep.subr.mxu0 0.0
      %1631 = vmatpush1.msra.mxu0 0.0
      %1632 = vmatprep.subr.mxu0 0.0
      %1633 = vmatpush1.msra.mxu0 0.0
      %1634 = vmatprep.subr.mxu0 0.0
      %1635 = vmatpush1.msra.mxu0 0.0
      %1636 = vmatprep.subr.mxu0 0.0
      %1637 = vmatpush1.msra.mxu0 0.0
      %1638 = vmatprep.subr.mxu0 0.0
      %1639 = vmatpush1.msra.mxu0 0.0
      %1640 = vmatprep.subr.mxu0 0.0
      %1641 = vmatpush1.msra.mxu0 0.0
      %1642 = vmatprep.subr.mxu0 0.0
      %1643 = vmatpush1.msra.mxu0 0.0
      %1644 = vmatprep.mubr.f32.mxu0 0.0
      %1645 = vmatmul.mubr.f32.gmra.mrb[0].mxu0 %v1578
      %v1646 = vpop.f32.mrb[0].mxu0
      %v1647 = vadd.f32 0.0, %v1646
      %v1648 = vpop.f32.mrb[0].mxu0
      %1649 = vdwg.mxu0
      %v1651 = vsel %vm846, %v789, 0
      %1653 = vmatprep.subr.mxu0 0.0
      %1654 = vmatpush1.msra.mxu0 %v840
      %1655 = vmatprep.subr.mxu0 0.0
      %1656 = vmatpush1.msra.mxu0 %v841
      %1657 = vmatprep.subr.mxu0 0.0
      %1658 = vmatpush1.msra.mxu0 0.0
      %1659 = vmatprep.subr.mxu0 0.0
      %1660 = vmatpush1.msra.mxu0 0.0
      %1661 = vmatprep.subr.mxu0 0.0
      %1662 = vmatpush1.msra.mxu0 0.0
      %1663 = vmatprep.subr.mxu0 0.0
      %1664 = vmatpush1.msra.mxu0 0.0
      %1665 = vmatprep.subr.mxu0 0.0
      %1666 = vmatpush1.msra.mxu0 0.0
      %1667 = vmatprep.subr.mxu0 0.0
      %1668 = vmatpush1.msra.mxu0 0.0
      %1669 = vmatprep.subr.mxu0 0.0
      %1670 = vmatpush1.msra.mxu0 0.0
      %1671 = vmatprep.subr.mxu0 0.0
      %1672 = vmatpush1.msra.mxu0 0.0
      %1673 = vmatprep.subr.mxu0 0.0
      %1674 = vmatpush1.msra.mxu0 0.0
      %1675 = vmatprep.subr.mxu0 0.0
      %1676 = vmatpush1.msra.mxu0 0.0
      %1677 = vmatprep.subr.mxu0 0.0
      %1678 = vmatpush1.msra.mxu0 0.0
      %1679 = vmatprep.subr.mxu0 0.0
      %1680 = vmatpush1.msra.mxu0 0.0
      %1681 = vmatprep.subr.mxu0 0.0
      %1682 = vmatpush1.msra.mxu0 0.0
      %1683 = vmatprep.subr.mxu0 0.0
      %1684 = vmatpush1.msra.mxu0 0.0
      %1685 = vmatprep.subr.mxu0 0.0
      %1686 = vmatpush1.msra.mxu0 0.0
      %1687 = vmatprep.subr.mxu0 0.0
      %1688 = vmatpush1.msra.mxu0 0.0
      %1689 = vmatprep.subr.mxu0 0.0
      %1690 = vmatpush1.msra.mxu0 0.0
      %1691 = vmatprep.subr.mxu0 0.0
      %1692 = vmatpush1.msra.mxu0 0.0
      %1693 = vmatprep.subr.mxu0 0.0
      %1694 = vmatpush1.msra.mxu0 0.0
      %1695 = vmatprep.subr.mxu0 0.0
      %1696 = vmatpush1.msra.mxu0 0.0
      %1697 = vmatprep.subr.mxu0 0.0
      %1698 = vmatpush1.msra.mxu0 0.0
      %1699 = vmatprep.subr.mxu0 0.0
      %1700 = vmatpush1.msra.mxu0 0.0
      %1701 = vmatprep.subr.mxu0 0.0
      %1702 = vmatpush1.msra.mxu0 0.0
      %1703 = vmatprep.subr.mxu0 0.0
      %1704 = vmatpush1.msra.mxu0 0.0
      %1705 = vmatprep.subr.mxu0 0.0
      %1706 = vmatpush1.msra.mxu0 0.0
      %1707 = vmatprep.subr.mxu0 0.0
      %1708 = vmatpush1.msra.mxu0 0.0
      %1709 = vmatprep.subr.mxu0 0.0
      %1710 = vmatpush1.msra.mxu0 0.0
      %1711 = vmatprep.subr.mxu0 0.0
      %1712 = vmatpush1.msra.mxu0 0.0
      %1713 = vmatprep.subr.mxu0 0.0
      %1714 = vmatpush1.msra.mxu0 0.0
      %1715 = vmatprep.subr.mxu0 0.0
      %1716 = vmatpush1.msra.mxu0 0.0
      %1717 = vmatprep.mubr.f32.mxu0 0.0
      %1718 = vmatmul.mubr.f32.gmra.mrb[0].mxu0 %v1651
      %v1719 = vpop.f32.mrb[0].mxu0
      %v1720 = vadd.f32 0.0, %v1719
      %v1721 = vpop.f32.mrb[0].mxu0
      %1722 = vdwg.mxu0
      %v1724 = vsel %vm846, %v829, 0
      %1726 = vmatprep.subr.mxu0 0.0
      %1727 = vmatpush1.msra.mxu0 %v840
      %1728 = vmatprep.subr.mxu0 0.0
      %1729 = vmatpush1.msra.mxu0 %v841
      %1730 = vmatprep.subr.mxu0 0.0
      %1731 = vmatpush1.msra.mxu0 0.0
      %1732 = vmatprep.subr.mxu0 0.0
      %1733 = vmatpush1.msra.mxu0 0.0
      %1734 = vmatprep.subr.mxu0 0.0
      %1735 = vmatpush1.msra.mxu0 0.0
      %1736 = vmatprep.subr.mxu0 0.0
      %1737 = vmatpush1.msra.mxu0 0.0
      %1738 = vmatprep.subr.mxu0 0.0
      %1739 = vmatpush1.msra.mxu0 0.0
      %1740 = vmatprep.subr.mxu0 0.0
      %1741 = vmatpush1.msra.mxu0 0.0
      %1742 = vmatprep.subr.mxu0 0.0
      %1743 = vmatpush1.msra.mxu0 0.0
      %1744 = vmatprep.subr.mxu0 0.0
      %1745 = vmatpush1.msra.mxu0 0.0
      %1746 = vmatprep.subr.mxu0 0.0
      %1747 = vmatpush1.msra.mxu0 0.0
      %1748 = vmatprep.subr.mxu0 0.0
      %1749 = vmatpush1.msra.mxu0 0.0
      %1750 = vmatprep.subr.mxu0 0.0
      %1751 = vmatpush1.msra.mxu0 0.0
      %1752 = vmatprep.subr.mxu0 0.0
      %1753 = vmatpush1.msra.mxu0 0.0
      %1754 = vmatprep.subr.mxu0 0.0
      %1755 = vmatpush1.msra.mxu0 0.0
      %1756 = vmatprep.subr.mxu0 0.0
      %1757 = vmatpush1.msra.mxu0 0.0
      %1758 = vmatprep.subr.mxu0 0.0
      %1759 = vmatpush1.msra.mxu0 0.0
      %1760 = vmatprep.subr.mxu0 0.0
      %1761 = vmatpush1.msra.mxu0 0.0
      %1762 = vmatprep.subr.mxu0 0.0
      %1763 = vmatpush1.msra.mxu0 0.0
      %1764 = vmatprep.subr.mxu0 0.0
      %1765 = vmatpush1.msra.mxu0 0.0
      %1766 = vmatprep.subr.mxu0 0.0
      %1767 = vmatpush1.msra.mxu0 0.0
      %1768 = vmatprep.subr.mxu0 0.0
      %1769 = vmatpush1.msra.mxu0 0.0
      %1770 = vmatprep.subr.mxu0 0.0
      %1771 = vmatpush1.msra.mxu0 0.0
      %1772 = vmatprep.subr.mxu0 0.0
      %1773 = vmatpush1.msra.mxu0 0.0
      %1774 = vmatprep.subr.mxu0 0.0
      %1775 = vmatpush1.msra.mxu0 0.0
      %1776 = vmatprep.subr.mxu0 0.0
      %1777 = vmatpush1.msra.mxu0 0.0
      %1778 = vmatprep.subr.mxu0 0.0
      %1779 = vmatpush1.msra.mxu0 0.0
      %1780 = vmatprep.subr.mxu0 0.0
      %1781 = vmatpush1.msra.mxu0 0.0
      %1782 = vmatprep.subr.mxu0 0.0
      %1783 = vmatpush1.msra.mxu0 0.0
      %1784 = vmatprep.subr.mxu0 0.0
      %1785 = vmatpush1.msra.mxu0 0.0
      %1786 = vmatprep.subr.mxu0 0.0
      %1787 = vmatpush1.msra.mxu0 0.0
      %1788 = vmatprep.subr.mxu0 0.0
      %1789 = vmatpush1.msra.mxu0 0.0
      %1790 = vmatprep.mubr.f32.mxu0 0.0
      %1791 = vmatmul.mubr.f32.gmra.mrb[0].mxu0 %v1724
      %v1792 = vpop.f32.mrb[0].mxu0
      %v1793 = vadd.f32 0.0, %v1792
      %v1794 = vpop.f32.mrb[0].mxu0
      %1795 = vdwg.mxu0
      %v1797 = vsel %vm846, %v790, 0
      %1799 = vmatprep.subr.mxu0 0.0
      %1800 = vmatpush1.msra.mxu0 %v840
      %1801 = vmatprep.subr.mxu0 0.0
      %1802 = vmatpush1.msra.mxu0 %v841
      %1803 = vmatprep.subr.mxu0 0.0
      %1804 = vmatpush1.msra.mxu0 0.0
      %1805 = vmatprep.subr.mxu0 0.0
      %1806 = vmatpush1.msra.mxu0 0.0
      %1807 = vmatprep.subr.mxu0 0.0
      %1808 = vmatpush1.msra.mxu0 0.0
      %1809 = vmatprep.subr.mxu0 0.0
      %1810 = vmatpush1.msra.mxu0 0.0
      %1811 = vmatprep.subr.mxu0 0.0
      %1812 = vmatpush1.msra.mxu0 0.0
      %1813 = vmatprep.subr.mxu0 0.0
      %1814 = vmatpush1.msra.mxu0 0.0
      %1815 = vmatprep.subr.mxu0 0.0
      %1816 = vmatpush1.msra.mxu0 0.0
      %1817 = vmatprep.subr.mxu0 0.0
      %1818 = vmatpush1.msra.mxu0 0.0
      %1819 = vmatprep.subr.mxu0 0.0
      %1820 = vmatpush1.msra.mxu0 0.0
      %1821 = vmatprep.subr.mxu0 0.0
      %1822 = vmatpush1.msra.mxu0 0.0
      %1823 = vmatprep.subr.mxu0 0.0
      %1824 = vmatpush1.msra.mxu0 0.0
      %1825 = vmatprep.subr.mxu0 0.0
      %1826 = vmatpush1.msra.mxu0 0.0
      %1827 = vmatprep.subr.mxu0 0.0
      %1828 = vmatpush1.msra.mxu0 0.0
      %1829 = vmatprep.subr.mxu0 0.0
      %1830 = vmatpush1.msra.mxu0 0.0
      %1831 = vmatprep.subr.mxu0 0.0
      %1832 = vmatpush1.msra.mxu0 0.0
      %1833 = vmatprep.subr.mxu0 0.0
      %1834 = vmatpush1.msra.mxu0 0.0
      %1835 = vmatprep.subr.mxu0 0.0
      %1836 = vmatpush1.msra.mxu0 0.0
      %1837 = vmatprep.subr.mxu0 0.0
      %1838 = vmatpush1.msra.mxu0 0.0
      %1839 = vmatprep.subr.mxu0 0.0
      %1840 = vmatpush1.msra.mxu0 0.0
      %1841 = vmatprep.subr.mxu0 0.0
      %1842 = vmatpush1.msra.mxu0 0.0
      %1843 = vmatprep.subr.mxu0 0.0
      %1844 = vmatpush1.msra.mxu0 0.0
      %1845 = vmatprep.subr.mxu0 0.0
      %1846 = vmatpush1.msra.mxu0 0.0
      %1847 = vmatprep.subr.mxu0 0.0
      %1848 = vmatpush1.msra.mxu0 0.0
      %1849 = vmatprep.subr.mxu0 0.0
      %1850 = vmatpush1.msra.mxu0 0.0
      %1851 = vmatprep.subr.mxu0 0.0
      %1852 = vmatpush1.msra.mxu0 0.0
      %1853 = vmatprep.subr.mxu0 0.0
      %1854 = vmatpush1.msra.mxu0 0.0
      %1855 = vmatprep.subr.mxu0 0.0
      %1856 = vmatpush1.msra.mxu0 0.0
      %1857 = vmatprep.subr.mxu0 0.0
      %1858 = vmatpush1.msra.mxu0 0.0
      %1859 = vmatprep.subr.mxu0 0.0
      %1860 = vmatpush1.msra.mxu0 0.0
      %1861 = vmatprep.subr.mxu0 0.0
      %1862 = vmatpush1.msra.mxu0 0.0
      %1863 = vmatprep.mubr.f32.mxu0 0.0
      %1864 = vmatmul.mubr.f32.gmra.mrb[0].mxu0 %v1797
      %v1865 = vpop.f32.mrb[0].mxu0
      %v1866 = vadd.f32 0.0, %v1865
      %v1867 = vpop.f32.mrb[0].mxu0
      %1868 = vdwg.mxu0
      %v1870 = vsel %vm846, %v830, 0
      %1872 = vmatprep.subr.mxu0 0.0
      %1873 = vmatpush1.msra.mxu0 %v840
      %1874 = vmatprep.subr.mxu0 0.0
      %1875 = vmatpush1.msra.mxu0 %v841
      %1876 = vmatprep.subr.mxu0 0.0
      %1877 = vmatpush1.msra.mxu0 0.0
      %1878 = vmatprep.subr.mxu0 0.0
      %1879 = vmatpush1.msra.mxu0 0.0
      %1880 = vmatprep.subr.mxu0 0.0
      %1881 = vmatpush1.msra.mxu0 0.0
      %1882 = vmatprep.subr.mxu0 0.0
      %1883 = vmatpush1.msra.mxu0 0.0
      %1884 = vmatprep.subr.mxu0 0.0
      %1885 = vmatpush1.msra.mxu0 0.0
      %1886 = vmatprep.subr.mxu0 0.0
      %1887 = vmatpush1.msra.mxu0 0.0
      %1888 = vmatprep.subr.mxu0 0.0
      %1889 = vmatpush1.msra.mxu0 0.0
      %1890 = vmatprep.subr.mxu0 0.0
      %1891 = vmatpush1.msra.mxu0 0.0
      %1892 = vmatprep.subr.mxu0 0.0
      %1893 = vmatpush1.msra.mxu0 0.0
      %1894 = vmatprep.subr.mxu0 0.0
      %1895 = vmatpush1.msra.mxu0 0.0
      %1896 = vmatprep.subr.mxu0 0.0
      %1897 = vmatpush1.msra.mxu0 0.0
      %1898 = vmatprep.subr.mxu0 0.0
      %1899 = vmatpush1.msra.mxu0 0.0
      %1900 = vmatprep.subr.mxu0 0.0
      %1901 = vmatpush1.msra.mxu0 0.0
      %1902 = vmatprep.subr.mxu0 0.0
      %1903 = vmatpush1.msra.mxu0 0.0
      %1904 = vmatprep.subr.mxu0 0.0
      %1905 = vmatpush1.msra.mxu0 0.0
      %1906 = vmatprep.subr.mxu0 0.0
      %1907 = vmatpush1.msra.mxu0 0.0
      %1908 = vmatprep.subr.mxu0 0.0
      %1909 = vmatpush1.msra.mxu0 0.0
      %1910 = vmatprep.subr.mxu0 0.0
      %1911 = vmatpush1.msra.mxu0 0.0
      %1912 = vmatprep.subr.mxu0 0.0
      %1913 = vmatpush1.msra.mxu0 0.0
      %1914 = vmatprep.subr.mxu0 0.0
      %1915 = vmatpush1.msra.mxu0 0.0
      %1916 = vmatprep.subr.mxu0 0.0
      %1917 = vmatpush1.msra.mxu0 0.0
      %1918 = vmatprep.subr.mxu0 0.0
      %1919 = vmatpush1.msra.mxu0 0.0
      %1920 = vmatprep.subr.mxu0 0.0
      %1921 = vmatpush1.msra.mxu0 0.0
      %1922 = vmatprep.subr.mxu0 0.0
      %1923 = vmatpush1.msra.mxu0 0.0
      %1924 = vmatprep.subr.mxu0 0.0
      %1925 = vmatpush1.msra.mxu0 0.0
      %1926 = vmatprep.subr.mxu0 0.0
      %1927 = vmatpush1.msra.mxu0 0.0
      %1928 = vmatprep.subr.mxu0 0.0
      %1929 = vmatpush1.msra.mxu0 0.0
      %1930 = vmatprep.subr.mxu0 0.0
      %1931 = vmatpush1.msra.mxu0 0.0
      %1932 = vmatprep.subr.mxu0 0.0
      %1933 = vmatpush1.msra.mxu0 0.0
      %1934 = vmatprep.subr.mxu0 0.0
      %1935 = vmatpush1.msra.mxu0 0.0
      %1936 = vmatprep.mubr.f32.mxu0 0.0
      %1937 = vmatmul.mubr.f32.gmra.mrb[0].mxu0 %v1870
      %v1938 = vpop.f32.mrb[0].mxu0
      %v1939 = vadd.f32 0.0, %v1938
      %v1940 = vpop.f32.mrb[0].mxu0
      %1941 = vdwg.mxu0
      %v1943 = vsel %vm846, %v791, 0
      %1945 = vmatprep.subr.mxu0 0.0
      %1946 = vmatpush1.msra.mxu0 %v840
      %1947 = vmatprep.subr.mxu0 0.0
      %1948 = vmatpush1.msra.mxu0 %v841
      %1949 = vmatprep.subr.mxu0 0.0
      %1950 = vmatpush1.msra.mxu0 0.0
      %1951 = vmatprep.subr.mxu0 0.0
      %1952 = vmatpush1.msra.mxu0 0.0
      %1953 = vmatprep.subr.mxu0 0.0
      %1954 = vmatpush1.msra.mxu0 0.0
      %1955 = vmatprep.subr.mxu0 0.0
      %1956 = vmatpush1.msra.mxu0 0.0
      %1957 = vmatprep.subr.mxu0 0.0
      %1958 = vmatpush1.msra.mxu0 0.0
      %1959 = vmatprep.subr.mxu0 0.0
      %1960 = vmatpush1.msra.mxu0 0.0
      %1961 = vmatprep.subr.mxu0 0.0
      %1962 = vmatpush1.msra.mxu0 0.0
      %1963 = vmatprep.subr.mxu0 0.0
      %1964 = vmatpush1.msra.mxu0 0.0
      %1965 = vmatprep.subr.mxu0 0.0
      %1966 = vmatpush1.msra.mxu0 0.0
      %1967 = vmatprep.subr.mxu0 0.0
      %1968 = vmatpush1.msra.mxu0 0.0
      %1969 = vmatprep.subr.mxu0 0.0
      %1970 = vmatpush1.msra.mxu0 0.0
      %1971 = vmatprep.subr.mxu0 0.0
      %1972 = vmatpush1.msra.mxu0 0.0
      %1973 = vmatprep.subr.mxu0 0.0
      %1974 = vmatpush1.msra.mxu0 0.0
      %1975 = vmatprep.subr.mxu0 0.0
      %1976 = vmatpush1.msra.mxu0 0.0
      %1977 = vmatprep.subr.mxu0 0.0
      %1978 = vmatpush1.msra.mxu0 0.0
      %1979 = vmatprep.subr.mxu0 0.0
      %1980 = vmatpush1.msra.mxu0 0.0
      %1981 = vmatprep.subr.mxu0 0.0
      %1982 = vmatpush1.msra.mxu0 0.0
      %1983 = vmatprep.subr.mxu0 0.0
      %1984 = vmatpush1.msra.mxu0 0.0
      %1985 = vmatprep.subr.mxu0 0.0
      %1986 = vmatpush1.msra.mxu0 0.0
      %1987 = vmatprep.subr.mxu0 0.0
      %1988 = vmatpush1.msra.mxu0 0.0
      %1989 = vmatprep.subr.mxu0 0.0
      %1990 = vmatpush1.msra.mxu0 0.0
      %1991 = vmatprep.subr.mxu0 0.0
      %1992 = vmatpush1.msra.mxu0 0.0
      %1993 = vmatprep.subr.mxu0 0.0
      %1994 = vmatpush1.msra.mxu0 0.0
      %1995 = vmatprep.subr.mxu0 0.0
      %1996 = vmatpush1.msra.mxu0 0.0
      %1997 = vmatprep.subr.mxu0 0.0
      %1998 = vmatpush1.msra.mxu0 0.0
      %1999 = vmatprep.subr.mxu0 0.0
      %2000 = vmatpush1.msra.mxu0 0.0
      %2001 = vmatprep.subr.mxu0 0.0
      %2002 = vmatpush1.msra.mxu0 0.0
      %2003 = vmatprep.subr.mxu0 0.0
      %2004 = vmatpush1.msra.mxu0 0.0
      %2005 = vmatprep.subr.mxu0 0.0
      %2006 = vmatpush1.msra.mxu0 0.0
      %2007 = vmatprep.subr.mxu0 0.0
      %2008 = vmatpush1.msra.mxu0 0.0
      %2009 = vmatprep.mubr.f32.mxu0 0.0
      %2010 = vmatmul.mubr.f32.gmra.mrb[0].mxu0 %v1943
      %v2011 = vpop.f32.mrb[0].mxu0
      %v2012 = vadd.f32 0.0, %v2011
      %v2013 = vpop.f32.mrb[0].mxu0
      %2014 = vdwg.mxu0
      %v2016 = vsel %vm846, %v831, 0
      %2018 = vmatprep.subr.mxu0 0.0
      %2019 = vmatpush1.msra.mxu0 %v840
      %2020 = vmatprep.subr.mxu0 0.0
      %2021 = vmatpush1.msra.mxu0 %v841
      %2022 = vmatprep.subr.mxu0 0.0
      %2023 = vmatpush1.msra.mxu0 0.0
      %2024 = vmatprep.subr.mxu0 0.0
      %2025 = vmatpush1.msra.mxu0 0.0
      %2026 = vmatprep.subr.mxu0 0.0
      %2027 = vmatpush1.msra.mxu0 0.0
      %2028 = vmatprep.subr.mxu0 0.0
      %2029 = vmatpush1.msra.mxu0 0.0
      %2030 = vmatprep.subr.mxu0 0.0
      %2031 = vmatpush1.msra.mxu0 0.0
      %2032 = vmatprep.subr.mxu0 0.0
      %2033 = vmatpush1.msra.mxu0 0.0
      %2034 = vmatprep.subr.mxu0 0.0
      %2035 = vmatpush1.msra.mxu0 0.0
      %2036 = vmatprep.subr.mxu0 0.0
      %2037 = vmatpush1.msra.mxu0 0.0
      %2038 = vmatprep.subr.mxu0 0.0
      %2039 = vmatpush1.msra.mxu0 0.0
      %2040 = vmatprep.subr.mxu0 0.0
      %2041 = vmatpush1.msra.mxu0 0.0
      %2042 = vmatprep.subr.mxu0 0.0
      %2043 = vmatpush1.msra.mxu0 0.0
      %2044 = vmatprep.subr.mxu0 0.0
      %2045 = vmatpush1.msra.mxu0 0.0
      %2046 = vmatprep.subr.mxu0 0.0
      %2047 = vmatpush1.msra.mxu0 0.0
      %2048 = vmatprep.subr.mxu0 0.0
      %2049 = vmatpush1.msra.mxu0 0.0
      %2050 = vmatprep.subr.mxu0 0.0
      %2051 = vmatpush1.msra.mxu0 0.0
      %2052 = vmatprep.subr.mxu0 0.0
      %2053 = vmatpush1.msra.mxu0 0.0
      %2054 = vmatprep.subr.mxu0 0.0
      %2055 = vmatpush1.msra.mxu0 0.0
      %2056 = vmatprep.subr.mxu0 0.0
      %2057 = vmatpush1.msra.mxu0 0.0
      %2058 = vmatprep.subr.mxu0 0.0
      %2059 = vmatpush1.msra.mxu0 0.0
      %2060 = vmatprep.subr.mxu0 0.0
      %2061 = vmatpush1.msra.mxu0 0.0
      %2062 = vmatprep.subr.mxu0 0.0
      %2063 = vmatpush1.msra.mxu0 0.0
      %2064 = vmatprep.subr.mxu0 0.0
      %2065 = vmatpush1.msra.mxu0 0.0
      %2066 = vmatprep.subr.mxu0 0.0
      %2067 = vmatpush1.msra.mxu0 0.0
      %2068 = vmatprep.subr.mxu0 0.0
      %2069 = vmatpush1.msra.mxu0 0.0
      %2070 = vmatprep.subr.mxu0 0.0
      %2071 = vmatpush1.msra.mxu0 0.0
      %2072 = vmatprep.subr.mxu0 0.0
      %2073 = vmatpush1.msra.mxu0 0.0
      %2074 = vmatprep.subr.mxu0 0.0
      %2075 = vmatpush1.msra.mxu0 0.0
      %2076 = vmatprep.subr.mxu0 0.0
      %2077 = vmatpush1.msra.mxu0 0.0
      %2078 = vmatprep.subr.mxu0 0.0
      %2079 = vmatpush1.msra.mxu0 0.0
      %2080 = vmatprep.subr.mxu0 0.0
      %2081 = vmatpush1.msra.mxu0 0.0
      %2082 = vmatprep.mubr.f32.mxu0 0.0
      %2083 = vmatmul.mubr.f32.gmra.mrb[0].mxu0 %v2016
      %v2084 = vpop.f32.mrb[0].mxu0
      %v2085 = vadd.f32 0.0, %v2084
      %v2086 = vpop.f32.mrb[0].mxu0
      %2087 = vdwg.mxu0
      %v2089 = vsel %vm846, %v792, 0
      %2091 = vmatprep.subr.mxu0 0.0
      %2092 = vmatpush1.msra.mxu0 %v840
      %2093 = vmatprep.subr.mxu0 0.0
      %2094 = vmatpush1.msra.mxu0 %v841
      %2095 = vmatprep.subr.mxu0 0.0
      %2096 = vmatpush1.msra.mxu0 0.0
      %2097 = vmatprep.subr.mxu0 0.0
      %2098 = vmatpush1.msra.mxu0 0.0
      %2099 = vmatprep.subr.mxu0 0.0
      %2100 = vmatpush1.msra.mxu0 0.0
      %2101 = vmatprep.subr.mxu0 0.0
      %2102 = vmatpush1.msra.mxu0 0.0
      %2103 = vmatprep.subr.mxu0 0.0
      %2104 = vmatpush1.msra.mxu0 0.0
      %2105 = vmatprep.subr.mxu0 0.0
      %2106 = vmatpush1.msra.mxu0 0.0
      %2107 = vmatprep.subr.mxu0 0.0
      %2108 = vmatpush1.msra.mxu0 0.0
      %2109 = vmatprep.subr.mxu0 0.0
      %2110 = vmatpush1.msra.mxu0 0.0
      %2111 = vmatprep.subr.mxu0 0.0
      %2112 = vmatpush1.msra.mxu0 0.0
      %2113 = vmatprep.subr.mxu0 0.0
      %2114 = vmatpush1.msra.mxu0 0.0
      %2115 = vmatprep.subr.mxu0 0.0
      %2116 = vmatpush1.msra.mxu0 0.0
      %2117 = vmatprep.subr.mxu0 0.0
      %2118 = vmatpush1.msra.mxu0 0.0
      %2119 = vmatprep.subr.mxu0 0.0
      %2120 = vmatpush1.msra.mxu0 0.0
      %2121 = vmatprep.subr.mxu0 0.0
      %2122 = vmatpush1.msra.mxu0 0.0
      %2123 = vmatprep.subr.mxu0 0.0
      %2124 = vmatpush1.msra.mxu0 0.0
      %2125 = vmatprep.subr.mxu0 0.0
      %2126 = vmatpush1.msra.mxu0 0.0
      %2127 = vmatprep.subr.mxu0 0.0
      %2128 = vmatpush1.msra.mxu0 0.0
      %2129 = vmatprep.subr.mxu0 0.0
      %2130 = vmatpush1.msra.mxu0 0.0
      %2131 = vmatprep.subr.mxu0 0.0
      %2132 = vmatpush1.msra.mxu0 0.0
      %2133 = vmatprep.subr.mxu0 0.0
      %2134 = vmatpush1.msra.mxu0 0.0
      %2135 = vmatprep.subr.mxu0 0.0
      %2136 = vmatpush1.msra.mxu0 0.0
      %2137 = vmatprep.subr.mxu0 0.0
      %2138 = vmatpush1.msra.mxu0 0.0
      %2139 = vmatprep.subr.mxu0 0.0
      %2140 = vmatpush1.msra.mxu0 0.0
      %2141 = vmatprep.subr.mxu0 0.0
      %2142 = vmatpush1.msra.mxu0 0.0
      %2143 = vmatprep.subr.mxu0 0.0
      %2144 = vmatpush1.msra.mxu0 0.0
      %2145 = vmatprep.subr.mxu0 0.0
      %2146 = vmatpush1.msra.mxu0 0.0
      %2147 = vmatprep.subr.mxu0 0.0
      %2148 = vmatpush1.msra.mxu0 0.0
      %2149 = vmatprep.subr.mxu0 0.0
      %2150 = vmatpush1.msra.mxu0 0.0
      %2151 = vmatprep.subr.mxu0 0.0
      %2152 = vmatpush1.msra.mxu0 0.0
      %2153 = vmatprep.subr.mxu0 0.0
      %2154 = vmatpush1.msra.mxu0 0.0
      %2155 = vmatprep.mubr.f32.mxu0 0.0
      %2156 = vmatmul.mubr.f32.gmra.mrb[0].mxu0 %v2089
      %v2157 = vpop.f32.mrb[0].mxu0
      %v2158 = vadd.f32 0.0, %v2157
      %v2159 = vpop.f32.mrb[0].mxu0
      %2160 = vdwg.mxu0
      %v2162 = vsel %vm846, %v832, 0
      %2164 = vmatprep.subr.mxu0 0.0
      %2165 = vmatpush1.msra.mxu0 %v840
      %2166 = vmatprep.subr.mxu0 0.0
      %2167 = vmatpush1.msra.mxu0 %v841
      %2168 = vmatprep.subr.mxu0 0.0
      %2169 = vmatpush1.msra.mxu0 0.0
      %2170 = vmatprep.subr.mxu0 0.0
      %2171 = vmatpush1.msra.mxu0 0.0
      %2172 = vmatprep.subr.mxu0 0.0
      %2173 = vmatpush1.msra.mxu0 0.0
      %2174 = vmatprep.subr.mxu0 0.0
      %2175 = vmatpush1.msra.mxu0 0.0
      %2176 = vmatprep.subr.mxu0 0.0
      %2177 = vmatpush1.msra.mxu0 0.0
      %2178 = vmatprep.subr.mxu0 0.0
      %2179 = vmatpush1.msra.mxu0 0.0
      %2180 = vmatprep.subr.mxu0 0.0
      %2181 = vmatpush1.msra.mxu0 0.0
      %2182 = vmatprep.subr.mxu0 0.0
      %2183 = vmatpush1.msra.mxu0 0.0
      %2184 = vmatprep.subr.mxu0 0.0
      %2185 = vmatpush1.msra.mxu0 0.0
      %2186 = vmatprep.subr.mxu0 0.0
      %2187 = vmatpush1.msra.mxu0 0.0
      %2188 = vmatprep.subr.mxu0 0.0
      %2189 = vmatpush1.msra.mxu0 0.0
      %2190 = vmatprep.subr.mxu0 0.0
      %2191 = vmatpush1.msra.mxu0 0.0
      %2192 = vmatprep.subr.mxu0 0.0
      %2193 = vmatpush1.msra.mxu0 0.0
      %2194 = vmatprep.subr.mxu0 0.0
      %2195 = vmatpush1.msra.mxu0 0.0
      %2196 = vmatprep.subr.mxu0 0.0
      %2197 = vmatpush1.msra.mxu0 0.0
      %2198 = vmatprep.subr.mxu0 0.0
      %2199 = vmatpush1.msra.mxu0 0.0
      %2200 = vmatprep.subr.mxu0 0.0
      %2201 = vmatpush1.msra.mxu0 0.0
      %2202 = vmatprep.subr.mxu0 0.0
      %2203 = vmatpush1.msra.mxu0 0.0
      %2204 = vmatprep.subr.mxu0 0.0
      %2205 = vmatpush1.msra.mxu0 0.0
      %2206 = vmatprep.subr.mxu0 0.0
      %2207 = vmatpush1.msra.mxu0 0.0
      %2208 = vmatprep.subr.mxu0 0.0
      %2209 = vmatpush1.msra.mxu0 0.0
      %2210 = vmatprep.subr.mxu0 0.0
      %2211 = vmatpush1.msra.mxu0 0.0
      %2212 = vmatprep.subr.mxu0 0.0
      %2213 = vmatpush1.msra.mxu0 0.0
      %2214 = vmatprep.subr.mxu0 0.0
      %2215 = vmatpush1.msra.mxu0 0.0
      %2216 = vmatprep.subr.mxu0 0.0
      %2217 = vmatpush1.msra.mxu0 0.0
      %2218 = vmatprep.subr.mxu0 0.0
      %2219 = vmatpush1.msra.mxu0 0.0
      %2220 = vmatprep.subr.mxu0 0.0
      %2221 = vmatpush1.msra.mxu0 0.0
      %2222 = vmatprep.subr.mxu0 0.0
      %2223 = vmatpush1.msra.mxu0 0.0
      %2224 = vmatprep.subr.mxu0 0.0
      %2225 = vmatpush1.msra.mxu0 0.0
      %2226 = vmatprep.subr.mxu0 0.0
      %2227 = vmatpush1.msra.mxu0 0.0
      %2228 = vmatprep.mubr.f32.mxu0 0.0
      %2229 = vmatmul.mubr.f32.gmra.mrb[0].mxu0 %v2162
      %v2230 = vpop.f32.mrb[0].mxu0
      %v2231 = vadd.f32 0.0, %v2230
      %v2232 = vpop.f32.mrb[0].mxu0
      %2233 = vdwg.mxu0
      %v2235 = vsel %vm846, %v793, 0
      %2237 = vmatprep.subr.mxu0 0.0
      %2238 = vmatpush1.msra.mxu0 %v840
      %2239 = vmatprep.subr.mxu0 0.0
      %2240 = vmatpush1.msra.mxu0 %v841
      %2241 = vmatprep.subr.mxu0 0.0
      %2242 = vmatpush1.msra.mxu0 0.0
      %2243 = vmatprep.subr.mxu0 0.0
      %2244 = vmatpush1.msra.mxu0 0.0
      %2245 = vmatprep.subr.mxu0 0.0
      %2246 = vmatpush1.msra.mxu0 0.0
      %2247 = vmatprep.subr.mxu0 0.0
      %2248 = vmatpush1.msra.mxu0 0.0
      %2249 = vmatprep.subr.mxu0 0.0
      %2250 = vmatpush1.msra.mxu0 0.0
      %2251 = vmatprep.subr.mxu0 0.0
      %2252 = vmatpush1.msra.mxu0 0.0
      %2253 = vmatprep.subr.mxu0 0.0
      %2254 = vmatpush1.msra.mxu0 0.0
      %2255 = vmatprep.subr.mxu0 0.0
      %2256 = vmatpush1.msra.mxu0 0.0
      %2257 = vmatprep.subr.mxu0 0.0
      %2258 = vmatpush1.msra.mxu0 0.0
      %2259 = vmatprep.subr.mxu0 0.0
      %2260 = vmatpush1.msra.mxu0 0.0
      %2261 = vmatprep.subr.mxu0 0.0
      %2262 = vmatpush1.msra.mxu0 0.0
      %2263 = vmatprep.subr.mxu0 0.0
      %2264 = vmatpush1.msra.mxu0 0.0
      %2265 = vmatprep.subr.mxu0 0.0
      %2266 = vmatpush1.msra.mxu0 0.0
      %2267 = vmatprep.subr.mxu0 0.0
      %2268 = vmatpush1.msra.mxu0 0.0
      %2269 = vmatprep.subr.mxu0 0.0
      %2270 = vmatpush1.msra.mxu0 0.0
      %2271 = vmatprep.subr.mxu0 0.0
      %2272 = vmatpush1.msra.mxu0 0.0
      %2273 = vmatprep.subr.mxu0 0.0
      %2274 = vmatpush1.msra.mxu0 0.0
      %2275 = vmatprep.subr.mxu0 0.0
      %2276 = vmatpush1.msra.mxu0 0.0
      %2277 = vmatprep.subr.mxu0 0.0
      %2278 = vmatpush1.msra.mxu0 0.0
      %2279 = vmatprep.subr.mxu0 0.0
      %2280 = vmatpush1.msra.mxu0 0.0
      %2281 = vmatprep.subr.mxu0 0.0
      %2282 = vmatpush1.msra.mxu0 0.0
      %2283 = vmatprep.subr.mxu0 0.0
      %2284 = vmatpush1.msra.mxu0 0.0
      %2285 = vmatprep.subr.mxu0 0.0
      %2286 = vmatpush1.msra.mxu0 0.0
      %2287 = vmatprep.subr.mxu0 0.0
      %2288 = vmatpush1.msra.mxu0 0.0
      %2289 = vmatprep.subr.mxu0 0.0
      %2290 = vmatpush1.msra.mxu0 0.0
      %2291 = vmatprep.subr.mxu0 0.0
      %2292 = vmatpush1.msra.mxu0 0.0
      %2293 = vmatprep.subr.mxu0 0.0
      %2294 = vmatpush1.msra.mxu0 0.0
      %2295 = vmatprep.subr.mxu0 0.0
      %2296 = vmatpush1.msra.mxu0 0.0
      %2297 = vmatprep.subr.mxu0 0.0
      %2298 = vmatpush1.msra.mxu0 0.0
      %2299 = vmatprep.subr.mxu0 0.0
      %2300 = vmatpush1.msra.mxu0 0.0
      %2301 = vmatprep.mubr.f32.mxu0 0.0
      %2302 = vmatmul.mubr.f32.gmra.mrb[0].mxu0 %v2235
      %v2303 = vpop.f32.mrb[0].mxu0
      %v2304 = vadd.f32 0.0, %v2303
      %v2305 = vpop.f32.mrb[0].mxu0
      %2306 = vdwg.mxu0
      %v2308 = vsel %vm846, %v833, 0
      %2310 = vmatprep.subr.mxu0 0.0
      %2311 = vmatpush1.msra.mxu0 %v840
      %2312 = vmatprep.subr.mxu0 0.0
      %2313 = vmatpush1.msra.mxu0 %v841
      %2314 = vmatprep.subr.mxu0 0.0
      %2315 = vmatpush1.msra.mxu0 0.0
      %2316 = vmatprep.subr.mxu0 0.0
      %2317 = vmatpush1.msra.mxu0 0.0
      %2318 = vmatprep.subr.mxu0 0.0
      %2319 = vmatpush1.msra.mxu0 0.0
      %2320 = vmatprep.subr.mxu0 0.0
      %2321 = vmatpush1.msra.mxu0 0.0
      %2322 = vmatprep.subr.mxu0 0.0
      %2323 = vmatpush1.msra.mxu0 0.0
      %2324 = vmatprep.subr.mxu0 0.0
      %2325 = vmatpush1.msra.mxu0 0.0
      %2326 = vmatprep.subr.mxu0 0.0
      %2327 = vmatpush1.msra.mxu0 0.0
      %2328 = vmatprep.subr.mxu0 0.0
      %2329 = vmatpush1.msra.mxu0 0.0
      %2330 = vmatprep.subr.mxu0 0.0
      %2331 = vmatpush1.msra.mxu0 0.0
      %2332 = vmatprep.subr.mxu0 0.0
      %2333 = vmatpush1.msra.mxu0 0.0
      %2334 = vmatprep.subr.mxu0 0.0
      %2335 = vmatpush1.msra.mxu0 0.0
      %2336 = vmatprep.subr.mxu0 0.0
      %2337 = vmatpush1.msra.mxu0 0.0
      %2338 = vmatprep.subr.mxu0 0.0
      %2339 = vmatpush1.msra.mxu0 0.0
      %2340 = vmatprep.subr.mxu0 0.0
      %2341 = vmatpush1.msra.mxu0 0.0
      %2342 = vmatprep.subr.mxu0 0.0
      %2343 = vmatpush1.msra.mxu0 0.0
      %2344 = vmatprep.subr.mxu0 0.0
      %2345 = vmatpush1.msra.mxu0 0.0
      %2346 = vmatprep.subr.mxu0 0.0
      %2347 = vmatpush1.msra.mxu0 0.0
      %2348 = vmatprep.subr.mxu0 0.0
      %2349 = vmatpush1.msra.mxu0 0.0
      %2350 = vmatprep.subr.mxu0 0.0
      %2351 = vmatpush1.msra.mxu0 0.0
      %2352 = vmatprep.subr.mxu0 0.0
      %2353 = vmatpush1.msra.mxu0 0.0
      %2354 = vmatprep.subr.mxu0 0.0
      %2355 = vmatpush1.msra.mxu0 0.0
      %2356 = vmatprep.subr.mxu0 0.0
      %2357 = vmatpush1.msra.mxu0 0.0
      %2358 = vmatprep.subr.mxu0 0.0
      %2359 = vmatpush1.msra.mxu0 0.0
      %2360 = vmatprep.subr.mxu0 0.0
      %2361 = vmatpush1.msra.mxu0 0.0
      %2362 = vmatprep.subr.mxu0 0.0
      %2363 = vmatpush1.msra.mxu0 0.0
      %2364 = vmatprep.subr.mxu0 0.0
      %2365 = vmatpush1.msra.mxu0 0.0
      %2366 = vmatprep.subr.mxu0 0.0
      %2367 = vmatpush1.msra.mxu0 0.0
      %2368 = vmatprep.subr.mxu0 0.0
      %2369 = vmatpush1.msra.mxu0 0.0
      %2370 = vmatprep.subr.mxu0 0.0
      %2371 = vmatpush1.msra.mxu0 0.0
      %2372 = vmatprep.subr.mxu0 0.0
      %2373 = vmatpush1.msra.mxu0 0.0
      %2374 = vmatprep.mubr.f32.mxu0 0.0
      %2375 = vmatmul.mubr.f32.gmra.mrb[0].mxu0 %v2308
      %v2376 = vpop.f32.mrb[0].mxu0
      %v2377 = vadd.f32 0.0, %v2376
      %v2378 = vpop.f32.mrb[0].mxu0
      %2379 = vdwg.mxu0
      %v2381 = vsel %vm846, %v794, 0
      %2383 = vmatprep.subr.mxu0 0.0
      %2384 = vmatpush1.msra.mxu0 %v840
      %2385 = vmatprep.subr.mxu0 0.0
      %2386 = vmatpush1.msra.mxu0 %v841
      %2387 = vmatprep.subr.mxu0 0.0
      %2388 = vmatpush1.msra.mxu0 0.0
      %2389 = vmatprep.subr.mxu0 0.0
      %2390 = vmatpush1.msra.mxu0 0.0
      %2391 = vmatprep.subr.mxu0 0.0
      %2392 = vmatpush1.msra.mxu0 0.0
      %2393 = vmatprep.subr.mxu0 0.0
      %2394 = vmatpush1.msra.mxu0 0.0
      %2395 = vmatprep.subr.mxu0 0.0
      %2396 = vmatpush1.msra.mxu0 0.0
      %2397 = vmatprep.subr.mxu0 0.0
      %2398 = vmatpush1.msra.mxu0 0.0
      %2399 = vmatprep.subr.mxu0 0.0
      %2400 = vmatpush1.msra.mxu0 0.0
      %2401 = vmatprep.subr.mxu0 0.0
      %2402 = vmatpush1.msra.mxu0 0.0
      %2403 = vmatprep.subr.mxu0 0.0
      %2404 = vmatpush1.msra.mxu0 0.0
      %2405 = vmatprep.subr.mxu0 0.0
      %2406 = vmatpush1.msra.mxu0 0.0
      %2407 = vmatprep.subr.mxu0 0.0
      %2408 = vmatpush1.msra.mxu0 0.0
      %2409 = vmatprep.subr.mxu0 0.0
      %2410 = vmatpush1.msra.mxu0 0.0
      %2411 = vmatprep.subr.mxu0 0.0
      %2412 = vmatpush1.msra.mxu0 0.0
      %2413 = vmatprep.subr.mxu0 0.0
      %2414 = vmatpush1.msra.mxu0 0.0
      %2415 = vmatprep.subr.mxu0 0.0
      %2416 = vmatpush1.msra.mxu0 0.0
      %2417 = vmatprep.subr.mxu0 0.0
      %2418 = vmatpush1.msra.mxu0 0.0
      %2419 = vmatprep.subr.mxu0 0.0
      %2420 = vmatpush1.msra.mxu0 0.0
      %2421 = vmatprep.subr.mxu0 0.0
      %2422 = vmatpush1.msra.mxu0 0.0
      %2423 = vmatprep.subr.mxu0 0.0
      %2424 = vmatpush1.msra.mxu0 0.0
      %2425 = vmatprep.subr.mxu0 0.0
      %2426 = vmatpush1.msra.mxu0 0.0
      %2427 = vmatprep.subr.mxu0 0.0
      %2428 = vmatpush1.msra.mxu0 0.0
      %2429 = vmatprep.subr.mxu0 0.0
      %2430 = vmatpush1.msra.mxu0 0.0
      %2431 = vmatprep.subr.mxu0 0.0
      %2432 = vmatpush1.msra.mxu0 0.0
      %2433 = vmatprep.subr.mxu0 0.0
      %2434 = vmatpush1.msra.mxu0 0.0
      %2435 = vmatprep.subr.mxu0 0.0
      %2436 = vmatpush1.msra.mxu0 0.0
      %2437 = vmatprep.subr.mxu0 0.0
      %2438 = vmatpush1.msra.mxu0 0.0
      %2439 = vmatprep.subr.mxu0 0.0
      %2440 = vmatpush1.msra.mxu0 0.0
      %2441 = vmatprep.subr.mxu0 0.0
      %2442 = vmatpush1.msra.mxu0 0.0
      %2443 = vmatprep.subr.mxu0 0.0
      %2444 = vmatpush1.msra.mxu0 0.0
      %2445 = vmatprep.subr.mxu0 0.0
      %2446 = vmatpush1.msra.mxu0 0.0
      %2447 = vmatprep.mubr.f32.mxu0 0.0
      %2448 = vmatmul.mubr.f32.gmra.mrb[0].mxu0 %v2381
      %v2449 = vpop.f32.mrb[0].mxu0
      %v2450 = vadd.f32 0.0, %v2449
      %v2451 = vpop.f32.mrb[0].mxu0
      %2452 = vdwg.mxu0
      %v2454 = vsel %vm846, %v834, 0
      %2456 = vmatprep.subr.mxu0 0.0
      %2457 = vmatpush1.msra.mxu0 %v840
      %2458 = vmatprep.subr.mxu0 0.0
      %2459 = vmatpush1.msra.mxu0 %v841
      %2460 = vmatprep.subr.mxu0 0.0
      %2461 = vmatpush1.msra.mxu0 0.0
      %2462 = vmatprep.subr.mxu0 0.0
      %2463 = vmatpush1.msra.mxu0 0.0
      %2464 = vmatprep.subr.mxu0 0.0
      %2465 = vmatpush1.msra.mxu0 0.0
      %2466 = vmatprep.subr.mxu0 0.0
      %2467 = vmatpush1.msra.mxu0 0.0
      %2468 = vmatprep.subr.mxu0 0.0
      %2469 = vmatpush1.msra.mxu0 0.0
      %2470 = vmatprep.subr.mxu0 0.0
      %2471 = vmatpush1.msra.mxu0 0.0
      %2472 = vmatprep.subr.mxu0 0.0
      %2473 = vmatpush1.msra.mxu0 0.0
      %2474 = vmatprep.subr.mxu0 0.0
      %2475 = vmatpush1.msra.mxu0 0.0
      %2476 = vmatprep.subr.mxu0 0.0
      %2477 = vmatpush1.msra.mxu0 0.0
      %2478 = vmatprep.subr.mxu0 0.0
      %2479 = vmatpush1.msra.mxu0 0.0
      %2480 = vmatprep.subr.mxu0 0.0
      %2481 = vmatpush1.msra.mxu0 0.0
      %2482 = vmatprep.subr.mxu0 0.0
      %2483 = vmatpush1.msra.mxu0 0.0
      %2484 = vmatprep.subr.mxu0 0.0
      %2485 = vmatpush1.msra.mxu0 0.0
      %2486 = vmatprep.subr.mxu0 0.0
      %2487 = vmatpush1.msra.mxu0 0.0
      %2488 = vmatprep.subr.mxu0 0.0
      %2489 = vmatpush1.msra.mxu0 0.0
      %2490 = vmatprep.subr.mxu0 0.0
      %2491 = vmatpush1.msra.mxu0 0.0
      %2492 = vmatprep.subr.mxu0 0.0
      %2493 = vmatpush1.msra.mxu0 0.0
      %2494 = vmatprep.subr.mxu0 0.0
      %2495 = vmatpush1.msra.mxu0 0.0
      %2496 = vmatprep.subr.mxu0 0.0
      %2497 = vmatpush1.msra.mxu0 0.0
      %2498 = vmatprep.subr.mxu0 0.0
      %2499 = vmatpush1.msra.mxu0 0.0
      %2500 = vmatprep.subr.mxu0 0.0
      %2501 = vmatpush1.msra.mxu0 0.0
      %2502 = vmatprep.subr.mxu0 0.0
      %2503 = vmatpush1.msra.mxu0 0.0
      %2504 = vmatprep.subr.mxu0 0.0
      %2505 = vmatpush1.msra.mxu0 0.0
      %2506 = vmatprep.subr.mxu0 0.0
      %2507 = vmatpush1.msra.mxu0 0.0
      %2508 = vmatprep.subr.mxu0 0.0
      %2509 = vmatpush1.msra.mxu0 0.0
      %2510 = vmatprep.subr.mxu0 0.0
      %2511 = vmatpush1.msra.mxu0 0.0
      %2512 = vmatprep.subr.mxu0 0.0
      %2513 = vmatpush1.msra.mxu0 0.0
      %2514 = vmatprep.subr.mxu0 0.0
      %2515 = vmatpush1.msra.mxu0 0.0
      %2516 = vmatprep.subr.mxu0 0.0
      %2517 = vmatpush1.msra.mxu0 0.0
      %2518 = vmatprep.subr.mxu0 0.0
      %2519 = vmatpush1.msra.mxu0 0.0
      %2520 = vmatprep.mubr.f32.mxu0 0.0
      %2521 = vmatmul.mubr.f32.gmra.mrb[0].mxu0 %v2454
      %v2522 = vpop.f32.mrb[0].mxu0
      %v2523 = vadd.f32 0.0, %v2522
      %v2524 = vpop.f32.mrb[0].mxu0
      %2525 = vdwg.mxu0
      %v2527 = vsel %vm846, %v795, 0
      %2529 = vmatprep.subr.mxu0 0.0
      %2530 = vmatpush1.msra.mxu0 %v840
      %2531 = vmatprep.subr.mxu0 0.0
      %2532 = vmatpush1.msra.mxu0 %v841
      %2533 = vmatprep.subr.mxu0 0.0
      %2534 = vmatpush1.msra.mxu0 0.0
      %2535 = vmatprep.subr.mxu0 0.0
      %2536 = vmatpush1.msra.mxu0 0.0
      %2537 = vmatprep.subr.mxu0 0.0
      %2538 = vmatpush1.msra.mxu0 0.0
      %2539 = vmatprep.subr.mxu0 0.0
      %2540 = vmatpush1.msra.mxu0 0.0
      %2541 = vmatprep.subr.mxu0 0.0
      %2542 = vmatpush1.msra.mxu0 0.0
      %2543 = vmatprep.subr.mxu0 0.0
      %2544 = vmatpush1.msra.mxu0 0.0
      %2545 = vmatprep.subr.mxu0 0.0
      %2546 = vmatpush1.msra.mxu0 0.0
      %2547 = vmatprep.subr.mxu0 0.0
      %2548 = vmatpush1.msra.mxu0 0.0
      %2549 = vmatprep.subr.mxu0 0.0
      %2550 = vmatpush1.msra.mxu0 0.0
      %2551 = vmatprep.subr.mxu0 0.0
      %2552 = vmatpush1.msra.mxu0 0.0
      %2553 = vmatprep.subr.mxu0 0.0
      %2554 = vmatpush1.msra.mxu0 0.0
      %2555 = vmatprep.subr.mxu0 0.0
      %2556 = vmatpush1.msra.mxu0 0.0
      %2557 = vmatprep.subr.mxu0 0.0
      %2558 = vmatpush1.msra.mxu0 0.0
      %2559 = vmatprep.subr.mxu0 0.0
      %2560 = vmatpush1.msra.mxu0 0.0
      %2561 = vmatprep.subr.mxu0 0.0
      %2562 = vmatpush1.msra.mxu0 0.0
      %2563 = vmatprep.subr.mxu0 0.0
      %2564 = vmatpush1.msra.mxu0 0.0
      %2565 = vmatprep.subr.mxu0 0.0
      %2566 = vmatpush1.msra.mxu0 0.0
      %2567 = vmatprep.subr.mxu0 0.0
      %2568 = vmatpush1.msra.mxu0 0.0
      %2569 = vmatprep.subr.mxu0 0.0
      %2570 = vmatpush1.msra.mxu0 0.0
      %2571 = vmatprep.subr.mxu0 0.0
      %2572 = vmatpush1.msra.mxu0 0.0
      %2573 = vmatprep.subr.mxu0 0.0
      %2574 = vmatpush1.msra.mxu0 0.0
      %2575 = vmatprep.subr.mxu0 0.0
      %2576 = vmatpush1.msra.mxu0 0.0
      %2577 = vmatprep.subr.mxu0 0.0
      %2578 = vmatpush1.msra.mxu0 0.0
      %2579 = vmatprep.subr.mxu0 0.0
      %2580 = vmatpush1.msra.mxu0 0.0
      %2581 = vmatprep.subr.mxu0 0.0
      %2582 = vmatpush1.msra.mxu0 0.0
      %2583 = vmatprep.subr.mxu0 0.0
      %2584 = vmatpush1.msra.mxu0 0.0
      %2585 = vmatprep.subr.mxu0 0.0
      %2586 = vmatpush1.msra.mxu0 0.0
      %2587 = vmatprep.subr.mxu0 0.0
      %2588 = vmatpush1.msra.mxu0 0.0
      %2589 = vmatprep.subr.mxu0 0.0
      %2590 = vmatpush1.msra.mxu0 0.0
      %2591 = vmatprep.subr.mxu0 0.0
      %2592 = vmatpush1.msra.mxu0 0.0
      %2593 = vmatprep.mubr.f32.mxu0 0.0
      %2594 = vmatmul.mubr.f32.gmra.mrb[0].mxu0 %v2527
      %v2595 = vpop.f32.mrb[0].mxu0
      %v2596 = vadd.f32 0.0, %v2595
      %v2597 = vpop.f32.mrb[0].mxu0
      %2598 = vdwg.mxu0
      %v2600 = vsel %vm846, %v835, 0
      %2602 = vmatprep.subr.mxu0 0.0
      %2603 = vmatpush1.msra.mxu0 %v840
      %2604 = vmatprep.subr.mxu0 0.0
      %2605 = vmatpush1.msra.mxu0 %v841
      %2606 = vmatprep.subr.mxu0 0.0
      %2607 = vmatpush1.msra.mxu0 0.0
      %2608 = vmatprep.subr.mxu0 0.0
      %2609 = vmatpush1.msra.mxu0 0.0
      %2610 = vmatprep.subr.mxu0 0.0
      %2611 = vmatpush1.msra.mxu0 0.0
      %2612 = vmatprep.subr.mxu0 0.0
      %2613 = vmatpush1.msra.mxu0 0.0
      %2614 = vmatprep.subr.mxu0 0.0
      %2615 = vmatpush1.msra.mxu0 0.0
      %2616 = vmatprep.subr.mxu0 0.0
      %2617 = vmatpush1.msra.mxu0 0.0
      %2618 = vmatprep.subr.mxu0 0.0
      %2619 = vmatpush1.msra.mxu0 0.0
      %2620 = vmatprep.subr.mxu0 0.0
      %2621 = vmatpush1.msra.mxu0 0.0
      %2622 = vmatprep.subr.mxu0 0.0
      %2623 = vmatpush1.msra.mxu0 0.0
      %2624 = vmatprep.subr.mxu0 0.0
      %2625 = vmatpush1.msra.mxu0 0.0
      %2626 = vmatprep.subr.mxu0 0.0
      %2627 = vmatpush1.msra.mxu0 0.0
      %2628 = vmatprep.subr.mxu0 0.0
      %2629 = vmatpush1.msra.mxu0 0.0
      %2630 = vmatprep.subr.mxu0 0.0
      %2631 = vmatpush1.msra.mxu0 0.0
      %2632 = vmatprep.subr.mxu0 0.0
      %2633 = vmatpush1.msra.mxu0 0.0
      %2634 = vmatprep.subr.mxu0 0.0
      %2635 = vmatpush1.msra.mxu0 0.0
      %2636 = vmatprep.subr.mxu0 0.0
      %2637 = vmatpush1.msra.mxu0 0.0
      %2638 = vmatprep.subr.mxu0 0.0
      %2639 = vmatpush1.msra.mxu0 0.0
      %2640 = vmatprep.subr.mxu0 0.0
      %2641 = vmatpush1.msra.mxu0 0.0
      %2642 = vmatprep.subr.mxu0 0.0
      %2643 = vmatpush1.msra.mxu0 0.0
      %2644 = vmatprep.subr.mxu0 0.0
      %2645 = vmatpush1.msra.mxu0 0.0
      %2646 = vmatprep.subr.mxu0 0.0
      %2647 = vmatpush1.msra.mxu0 0.0
      %2648 = vmatprep.subr.mxu0 0.0
      %2649 = vmatpush1.msra.mxu0 0.0
      %2650 = vmatprep.subr.mxu0 0.0
      %2651 = vmatpush1.msra.mxu0 0.0
      %2652 = vmatprep.subr.mxu0 0.0
      %2653 = vmatpush1.msra.mxu0 0.0
      %2654 = vmatprep.subr.mxu0 0.0
      %2655 = vmatpush1.msra.mxu0 0.0
      %2656 = vmatprep.subr.mxu0 0.0
      %2657 = vmatpush1.msra.mxu0 0.0
      %2658 = vmatprep.subr.mxu0 0.0
      %2659 = vmatpush1.msra.mxu0 0.0
      %2660 = vmatprep.subr.mxu0 0.0
      %2661 = vmatpush1.msra.mxu0 0.0
      %2662 = vmatprep.subr.mxu0 0.0
      %2663 = vmatpush1.msra.mxu0 0.0
      %2664 = vmatprep.subr.mxu0 0.0
      %2665 = vmatpush1.msra.mxu0 0.0
      %2666 = vmatprep.mubr.f32.mxu0 0.0
      %2667 = vmatmul.mubr.f32.gmra.mrb[0].mxu0 %v2600
      %v2668 = vpop.f32.mrb[0].mxu0
      %v2669 = vadd.f32 0.0, %v2668
      %v2670 = vpop.f32.mrb[0].mxu0
      %2671 = vdwg.mxu0
      %v2673 = vsel %vm846, %v796, 0
      %2675 = vmatprep.subr.mxu0 0.0
      %2676 = vmatpush1.msra.mxu0 %v840
      %2677 = vmatprep.subr.mxu0 0.0
      %2678 = vmatpush1.msra.mxu0 %v841
      %2679 = vmatprep.subr.mxu0 0.0
      %2680 = vmatpush1.msra.mxu0 0.0
      %2681 = vmatprep.subr.mxu0 0.0
      %2682 = vmatpush1.msra.mxu0 0.0
      %2683 = vmatprep.subr.mxu0 0.0
      %2684 = vmatpush1.msra.mxu0 0.0
      %2685 = vmatprep.subr.mxu0 0.0
      %2686 = vmatpush1.msra.mxu0 0.0
      %2687 = vmatprep.subr.mxu0 0.0
      %2688 = vmatpush1.msra.mxu0 0.0
      %2689 = vmatprep.subr.mxu0 0.0
      %2690 = vmatpush1.msra.mxu0 0.0
      %2691 = vmatprep.subr.mxu0 0.0
      %2692 = vmatpush1.msra.mxu0 0.0
      %2693 = vmatprep.subr.mxu0 0.0
      %2694 = vmatpush1.msra.mxu0 0.0
      %2695 = vmatprep.subr.mxu0 0.0
      %2696 = vmatpush1.msra.mxu0 0.0
      %2697 = vmatprep.subr.mxu0 0.0
      %2698 = vmatpush1.msra.mxu0 0.0
      %2699 = vmatprep.subr.mxu0 0.0
      %2700 = vmatpush1.msra.mxu0 0.0
      %2701 = vmatprep.subr.mxu0 0.0
      %2702 = vmatpush1.msra.mxu0 0.0
      %2703 = vmatprep.subr.mxu0 0.0
      %2704 = vmatpush1.msra.mxu0 0.0
      %2705 = vmatprep.subr.mxu0 0.0
      %2706 = vmatpush1.msra.mxu0 0.0
      %2707 = vmatprep.subr.mxu0 0.0
      %2708 = vmatpush1.msra.mxu0 0.0
      %2709 = vmatprep.subr.mxu0 0.0
      %2710 = vmatpush1.msra.mxu0 0.0
      %2711 = vmatprep.subr.mxu0 0.0
      %2712 = vmatpush1.msra.mxu0 0.0
      %2713 = vmatprep.subr.mxu0 0.0
      %2714 = vmatpush1.msra.mxu0 0.0
      %2715 = vmatprep.subr.mxu0 0.0
      %2716 = vmatpush1.msra.mxu0 0.0
      %2717 = vmatprep.subr.mxu0 0.0
      %2718 = vmatpush1.msra.mxu0 0.0
      %2719 = vmatprep.subr.mxu0 0.0
      %2720 = vmatpush1.msra.mxu0 0.0
      %2721 = vmatprep.subr.mxu0 0.0
      %2722 = vmatpush1.msra.mxu0 0.0
      %2723 = vmatprep.subr.mxu0 0.0
      %2724 = vmatpush1.msra.mxu0 0.0
      %2725 = vmatprep.subr.mxu0 0.0
      %2726 = vmatpush1.msra.mxu0 0.0
      %2727 = vmatprep.subr.mxu0 0.0
      %2728 = vmatpush1.msra.mxu0 0.0
      %2729 = vmatprep.subr.mxu0 0.0
      %2730 = vmatpush1.msra.mxu0 0.0
      %2731 = vmatprep.subr.mxu0 0.0
      %2732 = vmatpush1.msra.mxu0 0.0
      %2733 = vmatprep.subr.mxu0 0.0
      %2734 = vmatpush1.msra.mxu0 0.0
      %2735 = vmatprep.subr.mxu0 0.0
      %2736 = vmatpush1.msra.mxu0 0.0
      %2737 = vmatprep.subr.mxu0 0.0
      %2738 = vmatpush1.msra.mxu0 0.0
      %2739 = vmatprep.mubr.f32.mxu0 0.0
      %2740 = vmatmul.mubr.f32.gmra.mrb[0].mxu0 %v2673
      %v2741 = vpop.f32.mrb[0].mxu0
      %v2742 = vadd.f32 0.0, %v2741
      %v2743 = vpop.f32.mrb[0].mxu0
      %2744 = vdwg.mxu0
      %v2746 = vsel %vm846, %v836, 0
      %2748 = vmatprep.subr.mxu0 0.0
      %2749 = vmatpush1.msra.mxu0 %v840
      %2750 = vmatprep.subr.mxu0 0.0
      %2751 = vmatpush1.msra.mxu0 %v841
      %2752 = vmatprep.subr.mxu0 0.0
      %2753 = vmatpush1.msra.mxu0 0.0
      %2754 = vmatprep.subr.mxu0 0.0
      %2755 = vmatpush1.msra.mxu0 0.0
      %2756 = vmatprep.subr.mxu0 0.0
      %2757 = vmatpush1.msra.mxu0 0.0
      %2758 = vmatprep.subr.mxu0 0.0
      %2759 = vmatpush1.msra.mxu0 0.0
      %2760 = vmatprep.subr.mxu0 0.0
      %2761 = vmatpush1.msra.mxu0 0.0
      %2762 = vmatprep.subr.mxu0 0.0
      %2763 = vmatpush1.msra.mxu0 0.0
      %2764 = vmatprep.subr.mxu0 0.0
      %2765 = vmatpush1.msra.mxu0 0.0
      %2766 = vmatprep.subr.mxu0 0.0
      %2767 = vmatpush1.msra.mxu0 0.0
      %2768 = vmatprep.subr.mxu0 0.0
      %2769 = vmatpush1.msra.mxu0 0.0
      %2770 = vmatprep.subr.mxu0 0.0
      %2771 = vmatpush1.msra.mxu0 0.0
      %2772 = vmatprep.subr.mxu0 0.0
      %2773 = vmatpush1.msra.mxu0 0.0
      %2774 = vmatprep.subr.mxu0 0.0
      %2775 = vmatpush1.msra.mxu0 0.0
      %2776 = vmatprep.subr.mxu0 0.0
      %2777 = vmatpush1.msra.mxu0 0.0
      %2778 = vmatprep.subr.mxu0 0.0
      %2779 = vmatpush1.msra.mxu0 0.0
      %2780 = vmatprep.subr.mxu0 0.0
      %2781 = vmatpush1.msra.mxu0 0.0
      %2782 = vmatprep.subr.mxu0 0.0
      %2783 = vmatpush1.msra.mxu0 0.0
      %2784 = vmatprep.subr.mxu0 0.0
      %2785 = vmatpush1.msra.mxu0 0.0
      %2786 = vmatprep.subr.mxu0 0.0
      %2787 = vmatpush1.msra.mxu0 0.0
      %2788 = vmatprep.subr.mxu0 0.0
      %2789 = vmatpush1.msra.mxu0 0.0
      %2790 = vmatprep.subr.mxu0 0.0
      %2791 = vmatpush1.msra.mxu0 0.0
      %2792 = vmatprep.subr.mxu0 0.0
      %2793 = vmatpush1.msra.mxu0 0.0
      %2794 = vmatprep.subr.mxu0 0.0
      %2795 = vmatpush1.msra.mxu0 0.0
      %2796 = vmatprep.subr.mxu0 0.0
      %2797 = vmatpush1.msra.mxu0 0.0
      %2798 = vmatprep.subr.mxu0 0.0
      %2799 = vmatpush1.msra.mxu0 0.0
      %2800 = vmatprep.subr.mxu0 0.0
      %2801 = vmatpush1.msra.mxu0 0.0
      %2802 = vmatprep.subr.mxu0 0.0
      %2803 = vmatpush1.msra.mxu0 0.0
      %2804 = vmatprep.subr.mxu0 0.0
      %2805 = vmatpush1.msra.mxu0 0.0
      %2806 = vmatprep.subr.mxu0 0.0
      %2807 = vmatpush1.msra.mxu0 0.0
      %2808 = vmatprep.subr.mxu0 0.0
      %2809 = vmatpush1.msra.mxu0 0.0
      %2810 = vmatprep.subr.mxu0 0.0
      %2811 = vmatpush1.msra.mxu0 0.0
      %2812 = vmatprep.mubr.f32.mxu0 0.0
      %2813 = vmatmul.mubr.f32.gmra.mrb[0].mxu0 %v2746
      %v2814 = vpop.f32.mrb[0].mxu0
      %v2815 = vadd.f32 0.0, %v2814
      %v2816 = vpop.f32.mrb[0].mxu0
      %2817 = vdwg.mxu0
      %v2819 = vsel %vm846, %v797, 0
      %2821 = vmatprep.subr.mxu0 0.0
      %2822 = vmatpush1.msra.mxu0 %v840
      %2823 = vmatprep.subr.mxu0 0.0
      %2824 = vmatpush1.msra.mxu0 %v841
      %2825 = vmatprep.subr.mxu0 0.0
      %2826 = vmatpush1.msra.mxu0 0.0
      %2827 = vmatprep.subr.mxu0 0.0
      %2828 = vmatpush1.msra.mxu0 0.0
      %2829 = vmatprep.subr.mxu0 0.0
      %2830 = vmatpush1.msra.mxu0 0.0
      %2831 = vmatprep.subr.mxu0 0.0
      %2832 = vmatpush1.msra.mxu0 0.0
      %2833 = vmatprep.subr.mxu0 0.0
      %2834 = vmatpush1.msra.mxu0 0.0
      %2835 = vmatprep.subr.mxu0 0.0
      %2836 = vmatpush1.msra.mxu0 0.0
      %2837 = vmatprep.subr.mxu0 0.0
      %2838 = vmatpush1.msra.mxu0 0.0
      %2839 = vmatprep.subr.mxu0 0.0
      %2840 = vmatpush1.msra.mxu0 0.0
      %2841 = vmatprep.subr.mxu0 0.0
      %2842 = vmatpush1.msra.mxu0 0.0
      %2843 = vmatprep.subr.mxu0 0.0
      %2844 = vmatpush1.msra.mxu0 0.0
      %2845 = vmatprep.subr.mxu0 0.0
      %2846 = vmatpush1.msra.mxu0 0.0
      %2847 = vmatprep.subr.mxu0 0.0
      %2848 = vmatpush1.msra.mxu0 0.0
      %2849 = vmatprep.subr.mxu0 0.0
      %2850 = vmatpush1.msra.mxu0 0.0
      %2851 = vmatprep.subr.mxu0 0.0
      %2852 = vmatpush1.msra.mxu0 0.0
      %2853 = vmatprep.subr.mxu0 0.0
      %2854 = vmatpush1.msra.mxu0 0.0
      %2855 = vmatprep.subr.mxu0 0.0
      %2856 = vmatpush1.msra.mxu0 0.0
      %2857 = vmatprep.subr.mxu0 0.0
      %2858 = vmatpush1.msra.mxu0 0.0
      %2859 = vmatprep.subr.mxu0 0.0
      %2860 = vmatpush1.msra.mxu0 0.0
      %2861 = vmatprep.subr.mxu0 0.0
      %2862 = vmatpush1.msra.mxu0 0.0
      %2863 = vmatprep.subr.mxu0 0.0
      %2864 = vmatpush1.msra.mxu0 0.0
      %2865 = vmatprep.subr.mxu0 0.0
      %2866 = vmatpush1.msra.mxu0 0.0
      %2867 = vmatprep.subr.mxu0 0.0
      %2868 = vmatpush1.msra.mxu0 0.0
      %2869 = vmatprep.subr.mxu0 0.0
      %2870 = vmatpush1.msra.mxu0 0.0
      %2871 = vmatprep.subr.mxu0 0.0
      %2872 = vmatpush1.msra.mxu0 0.0
      %2873 = vmatprep.subr.mxu0 0.0
      %2874 = vmatpush1.msra.mxu0 0.0
      %2875 = vmatprep.subr.mxu0 0.0
      %2876 = vmatpush1.msra.mxu0 0.0
      %2877 = vmatprep.subr.mxu0 0.0
      %2878 = vmatpush1.msra.mxu0 0.0
      %2879 = vmatprep.subr.mxu0 0.0
      %2880 = vmatpush1.msra.mxu0 0.0
      %2881 = vmatprep.subr.mxu0 0.0
      %2882 = vmatpush1.msra.mxu0 0.0
      %2883 = vmatprep.subr.mxu0 0.0
      %2884 = vmatpush1.msra.mxu0 0.0
      %2885 = vmatprep.mubr.f32.mxu0 0.0
      %2886 = vmatmul.mubr.f32.gmra.mrb[0].mxu0 %v2819
      %v2887 = vpop.f32.mrb[0].mxu0
      %v2888 = vadd.f32 0.0, %v2887
      %v2889 = vpop.f32.mrb[0].mxu0
      %2890 = vdwg.mxu0
      %v2892 = vsel %vm846, %v837, 0
      %2894 = vmatprep.subr.mxu0 0.0
      %2895 = vmatpush1.msra.mxu0 %v840
      %2896 = vmatprep.subr.mxu0 0.0
      %2897 = vmatpush1.msra.mxu0 %v841
      %2898 = vmatprep.subr.mxu0 0.0
      %2899 = vmatpush1.msra.mxu0 0.0
      %2900 = vmatprep.subr.mxu0 0.0
      %2901 = vmatpush1.msra.mxu0 0.0
      %2902 = vmatprep.subr.mxu0 0.0
      %2903 = vmatpush1.msra.mxu0 0.0
      %2904 = vmatprep.subr.mxu0 0.0
      %2905 = vmatpush1.msra.mxu0 0.0
      %2906 = vmatprep.subr.mxu0 0.0
      %2907 = vmatpush1.msra.mxu0 0.0
      %2908 = vmatprep.subr.mxu0 0.0
      %2909 = vmatpush1.msra.mxu0 0.0
      %2910 = vmatprep.subr.mxu0 0.0
      %2911 = vmatpush1.msra.mxu0 0.0
      %2912 = vmatprep.subr.mxu0 0.0
      %2913 = vmatpush1.msra.mxu0 0.0
      %2914 = vmatprep.subr.mxu0 0.0
      %2915 = vmatpush1.msra.mxu0 0.0
      %2916 = vmatprep.subr.mxu0 0.0
      %2917 = vmatpush1.msra.mxu0 0.0
      %2918 = vmatprep.subr.mxu0 0.0
      %2919 = vmatpush1.msra.mxu0 0.0
      %2920 = vmatprep.subr.mxu0 0.0
      %2921 = vmatpush1.msra.mxu0 0.0
      %2922 = vmatprep.subr.mxu0 0.0
      %2923 = vmatpush1.msra.mxu0 0.0
      %2924 = vmatprep.subr.mxu0 0.0
      %2925 = vmatpush1.msra.mxu0 0.0
      %2926 = vmatprep.subr.mxu0 0.0
      %2927 = vmatpush1.msra.mxu0 0.0
      %2928 = vmatprep.subr.mxu0 0.0
      %2929 = vmatpush1.msra.mxu0 0.0
      %2930 = vmatprep.subr.mxu0 0.0
      %2931 = vmatpush1.msra.mxu0 0.0
      %2932 = vmatprep.subr.mxu0 0.0
      %2933 = vmatpush1.msra.mxu0 0.0
      %2934 = vmatprep.subr.mxu0 0.0
      %2935 = vmatpush1.msra.mxu0 0.0
      %2936 = vmatprep.subr.mxu0 0.0
      %2937 = vmatpush1.msra.mxu0 0.0
      %2938 = vmatprep.subr.mxu0 0.0
      %2939 = vmatpush1.msra.mxu0 0.0
      %2940 = vmatprep.subr.mxu0 0.0
      %2941 = vmatpush1.msra.mxu0 0.0
      %2942 = vmatprep.subr.mxu0 0.0
      %2943 = vmatpush1.msra.mxu0 0.0
      %2944 = vmatprep.subr.mxu0 0.0
      %2945 = vmatpush1.msra.mxu0 0.0
      %2946 = vmatprep.subr.mxu0 0.0
      %2947 = vmatpush1.msra.mxu0 0.0
      %2948 = vmatprep.subr.mxu0 0.0
      %2949 = vmatpush1.msra.mxu0 0.0
      %2950 = vmatprep.subr.mxu0 0.0
      %2951 = vmatpush1.msra.mxu0 0.0
      %2952 = vmatprep.subr.mxu0 0.0
      %2953 = vmatpush1.msra.mxu0 0.0
      %2954 = vmatprep.subr.mxu0 0.0
      %2955 = vmatpush1.msra.mxu0 0.0
      %2956 = vmatprep.subr.mxu0 0.0
      %2957 = vmatpush1.msra.mxu0 0.0
      %2958 = vmatprep.mubr.f32.mxu0 0.0
      %2959 = vmatmul.mubr.f32.gmra.mrb[0].mxu0 %v2892
      %v2960 = vpop.f32.mrb[0].mxu0
      %v2961 = vadd.f32 0.0, %v2960
      %v2962 = vpop.f32.mrb[0].mxu0
      %2963 = vdwg.mxu0
      %v2965 = vsel %vm846, %v798, 0
      %2967 = vmatprep.subr.mxu0 0.0
      %2968 = vmatpush1.msra.mxu0 %v840
      %2969 = vmatprep.subr.mxu0 0.0
      %2970 = vmatpush1.msra.mxu0 %v841
      %2971 = vmatprep.subr.mxu0 0.0
      %2972 = vmatpush1.msra.mxu0 0.0
      %2973 = vmatprep.subr.mxu0 0.0
      %2974 = vmatpush1.msra.mxu0 0.0
      %2975 = vmatprep.subr.mxu0 0.0
      %2976 = vmatpush1.msra.mxu0 0.0
      %2977 = vmatprep.subr.mxu0 0.0
      %2978 = vmatpush1.msra.mxu0 0.0
      %2979 = vmatprep.subr.mxu0 0.0
      %2980 = vmatpush1.msra.mxu0 0.0
      %2981 = vmatprep.subr.mxu0 0.0
      %2982 = vmatpush1.msra.mxu0 0.0
      %2983 = vmatprep.subr.mxu0 0.0
      %2984 = vmatpush1.msra.mxu0 0.0
      %2985 = vmatprep.subr.mxu0 0.0
      %2986 = vmatpush1.msra.mxu0 0.0
      %2987 = vmatprep.subr.mxu0 0.0
      %2988 = vmatpush1.msra.mxu0 0.0
      %2989 = vmatprep.subr.mxu0 0.0
      %2990 = vmatpush1.msra.mxu0 0.0
      %2991 = vmatprep.subr.mxu0 0.0
      %2992 = vmatpush1.msra.mxu0 0.0
      %2993 = vmatprep.subr.mxu0 0.0
      %2994 = vmatpush1.msra.mxu0 0.0
      %2995 = vmatprep.subr.mxu0 0.0
      %2996 = vmatpush1.msra.mxu0 0.0
      %2997 = vmatprep.subr.mxu0 0.0
      %2998 = vmatpush1.msra.mxu0 0.0
      %2999 = vmatprep.subr.mxu0 0.0
      %3000 = vmatpush1.msra.mxu0 0.0
      %3001 = vmatprep.subr.mxu0 0.0
      %3002 = vmatpush1.msra.mxu0 0.0
      %3003 = vmatprep.subr.mxu0 0.0
      %3004 = vmatpush1.msra.mxu0 0.0
      %3005 = vmatprep.subr.mxu0 0.0
      %3006 = vmatpush1.msra.mxu0 0.0
      %3007 = vmatprep.subr.mxu0 0.0
      %3008 = vmatpush1.msra.mxu0 0.0
      %3009 = vmatprep.subr.mxu0 0.0
      %3010 = vmatpush1.msra.mxu0 0.0
      %3011 = vmatprep.subr.mxu0 0.0
      %3012 = vmatpush1.msra.mxu0 0.0
      %3013 = vmatprep.subr.mxu0 0.0
      %3014 = vmatpush1.msra.mxu0 0.0
      %3015 = vmatprep.subr.mxu0 0.0
      %3016 = vmatpush1.msra.mxu0 0.0
      %3017 = vmatprep.subr.mxu0 0.0
      %3018 = vmatpush1.msra.mxu0 0.0
      %3019 = vmatprep.subr.mxu0 0.0
      %3020 = vmatpush1.msra.mxu0 0.0
      %3021 = vmatprep.subr.mxu0 0.0
      %3022 = vmatpush1.msra.mxu0 0.0
      %3023 = vmatprep.subr.mxu0 0.0
      %3024 = vmatpush1.msra.mxu0 0.0
      %3025 = vmatprep.subr.mxu0 0.0
      %3026 = vmatpush1.msra.mxu0 0.0
      %3027 = vmatprep.subr.mxu0 0.0
      %3028 = vmatpush1.msra.mxu0 0.0
      %3029 = vmatprep.subr.mxu0 0.0
      %3030 = vmatpush1.msra.mxu0 0.0
      %3031 = vmatprep.mubr.f32.mxu0 0.0
      %3032 = vmatmul.mubr.f32.gmra.mrb[0].mxu0 %v2965
      %v3033 = vpop.f32.mrb[0].mxu0
      %v3034 = vadd.f32 0.0, %v3033
      %v3035 = vpop.f32.mrb[0].mxu0
      %3036 = vdwg.mxu0
      %v3038 = vsel %vm846, %v838, 0
      %3040 = vmatprep.subr.mxu0 0.0
      %3041 = vmatpush1.msra.mxu0 %v840
      %3042 = vmatprep.subr.mxu0 0.0
      %3043 = vmatpush1.msra.mxu0 %v841
      %3044 = vmatprep.subr.mxu0 0.0
      %3045 = vmatpush1.msra.mxu0 0.0
      %3046 = vmatprep.subr.mxu0 0.0
      %3047 = vmatpush1.msra.mxu0 0.0
      %3048 = vmatprep.subr.mxu0 0.0
      %3049 = vmatpush1.msra.mxu0 0.0
      %3050 = vmatprep.subr.mxu0 0.0
      %3051 = vmatpush1.msra.mxu0 0.0
      %3052 = vmatprep.subr.mxu0 0.0
      %3053 = vmatpush1.msra.mxu0 0.0
      %3054 = vmatprep.subr.mxu0 0.0
      %3055 = vmatpush1.msra.mxu0 0.0
      %3056 = vmatprep.subr.mxu0 0.0
      %3057 = vmatpush1.msra.mxu0 0.0
      %3058 = vmatprep.subr.mxu0 0.0
      %3059 = vmatpush1.msra.mxu0 0.0
      %3060 = vmatprep.subr.mxu0 0.0
      %3061 = vmatpush1.msra.mxu0 0.0
      %3062 = vmatprep.subr.mxu0 0.0
      %3063 = vmatpush1.msra.mxu0 0.0
      %3064 = vmatprep.subr.mxu0 0.0
      %3065 = vmatpush1.msra.mxu0 0.0
      %3066 = vmatprep.subr.mxu0 0.0
      %3067 = vmatpush1.msra.mxu0 0.0
      %3068 = vmatprep.subr.mxu0 0.0
      %3069 = vmatpush1.msra.mxu0 0.0
      %3070 = vmatprep.subr.mxu0 0.0
      %3071 = vmatpush1.msra.mxu0 0.0
      %3072 = vmatprep.subr.mxu0 0.0
      %3073 = vmatpush1.msra.mxu0 0.0
      %3074 = vmatprep.subr.mxu0 0.0
      %3075 = vmatpush1.msra.mxu0 0.0
      %3076 = vmatprep.subr.mxu0 0.0
      %3077 = vmatpush1.msra.mxu0 0.0
      %3078 = vmatprep.subr.mxu0 0.0
      %3079 = vmatpush1.msra.mxu0 0.0
      %3080 = vmatprep.subr.mxu0 0.0
      %3081 = vmatpush1.msra.mxu0 0.0
      %3082 = vmatprep.subr.mxu0 0.0
      %3083 = vmatpush1.msra.mxu0 0.0
      %3084 = vmatprep.subr.mxu0 0.0
      %3085 = vmatpush1.msra.mxu0 0.0
      %3086 = vmatprep.subr.mxu0 0.0
      %3087 = vmatpush1.msra.mxu0 0.0
      %3088 = vmatprep.subr.mxu0 0.0
      %3089 = vmatpush1.msra.mxu0 0.0
      %3090 = vmatprep.subr.mxu0 0.0
      %3091 = vmatpush1.msra.mxu0 0.0
      %3092 = vmatprep.subr.mxu0 0.0
      %3093 = vmatpush1.msra.mxu0 0.0
      %3094 = vmatprep.subr.mxu0 0.0
      %3095 = vmatpush1.msra.mxu0 0.0
      %3096 = vmatprep.subr.mxu0 0.0
      %3097 = vmatpush1.msra.mxu0 0.0
      %3098 = vmatprep.subr.mxu0 0.0
      %3099 = vmatpush1.msra.mxu0 0.0
      %3100 = vmatprep.subr.mxu0 0.0
      %3101 = vmatpush1.msra.mxu0 0.0
      %3102 = vmatprep.subr.mxu0 0.0
      %3103 = vmatpush1.msra.mxu0 0.0
      %3104 = vmatprep.mubr.f32.mxu0 0.0
      %3105 = vmatmul.mubr.f32.gmra.mrb[0].mxu0 %v3038
      %v3106 = vpop.f32.mrb[0].mxu0
      %v3107 = vadd.f32 0.0, %v3106
      %v3108 = vpop.f32.mrb[0].mxu0
      %3109 = vdwg.mxu0
      %v3111 = vsel %vm846, %v799, 0
      %3113 = vmatprep.subr.mxu0 0.0
      %3114 = vmatpush1.msra.mxu0 %v840
      %3115 = vmatprep.subr.mxu0 0.0
      %3116 = vmatpush1.msra.mxu0 %v841
      %3117 = vmatprep.subr.mxu0 0.0
      %3118 = vmatpush1.msra.mxu0 0.0
      %3119 = vmatprep.subr.mxu0 0.0
      %3120 = vmatpush1.msra.mxu0 0.0
      %3121 = vmatprep.subr.mxu0 0.0
      %3122 = vmatpush1.msra.mxu0 0.0
      %3123 = vmatprep.subr.mxu0 0.0
      %3124 = vmatpush1.msra.mxu0 0.0
      %3125 = vmatprep.subr.mxu0 0.0
      %3126 = vmatpush1.msra.mxu0 0.0
      %3127 = vmatprep.subr.mxu0 0.0
      %3128 = vmatpush1.msra.mxu0 0.0
      %3129 = vmatprep.subr.mxu0 0.0
      %3130 = vmatpush1.msra.mxu0 0.0
      %3131 = vmatprep.subr.mxu0 0.0
      %3132 = vmatpush1.msra.mxu0 0.0
      %3133 = vmatprep.subr.mxu0 0.0
      %3134 = vmatpush1.msra.mxu0 0.0
      %3135 = vmatprep.subr.mxu0 0.0
      %3136 = vmatpush1.msra.mxu0 0.0
      %3137 = vmatprep.subr.mxu0 0.0
      %3138 = vmatpush1.msra.mxu0 0.0
      %3139 = vmatprep.subr.mxu0 0.0
      %3140 = vmatpush1.msra.mxu0 0.0
      %3141 = vmatprep.subr.mxu0 0.0
      %3142 = vmatpush1.msra.mxu0 0.0
      %3143 = vmatprep.subr.mxu0 0.0
      %3144 = vmatpush1.msra.mxu0 0.0
      %3145 = vmatprep.subr.mxu0 0.0
      %3146 = vmatpush1.msra.mxu0 0.0
      %3147 = vmatprep.subr.mxu0 0.0
      %3148 = vmatpush1.msra.mxu0 0.0
      %3149 = vmatprep.subr.mxu0 0.0
      %3150 = vmatpush1.msra.mxu0 0.0
      %3151 = vmatprep.subr.mxu0 0.0
      %3152 = vmatpush1.msra.mxu0 0.0
      %3153 = vmatprep.subr.mxu0 0.0
      %3154 = vmatpush1.msra.mxu0 0.0
      %3155 = vmatprep.subr.mxu0 0.0
      %3156 = vmatpush1.msra.mxu0 0.0
      %3157 = vmatprep.subr.mxu0 0.0
      %3158 = vmatpush1.msra.mxu0 0.0
      %3159 = vmatprep.subr.mxu0 0.0
      %3160 = vmatpush1.msra.mxu0 0.0
      %3161 = vmatprep.subr.mxu0 0.0
      %3162 = vmatpush1.msra.mxu0 0.0
      %3163 = vmatprep.subr.mxu0 0.0
      %3164 = vmatpush1.msra.mxu0 0.0
      %3165 = vmatprep.subr.mxu0 0.0
      %3166 = vmatpush1.msra.mxu0 0.0
      %3167 = vmatprep.subr.mxu0 0.0
      %3168 = vmatpush1.msra.mxu0 0.0
      %3169 = vmatprep.subr.mxu0 0.0
      %3170 = vmatpush1.msra.mxu0 0.0
      %3171 = vmatprep.subr.mxu0 0.0
      %3172 = vmatpush1.msra.mxu0 0.0
      %3173 = vmatprep.subr.mxu0 0.0
      %3174 = vmatpush1.msra.mxu0 0.0
      %3175 = vmatprep.subr.mxu0 0.0
      %3176 = vmatpush1.msra.mxu0 0.0
      %3177 = vmatprep.mubr.f32.mxu0 0.0
      %3178 = vmatmul.mubr.f32.gmra.mrb[0].mxu0 %v3111
      %v3179 = vpop.f32.mrb[0].mxu0
      %v3180 = vadd.f32 0.0, %v3179
      %v3181 = vpop.f32.mrb[0].mxu0
      %3182 = vdwg.mxu0
      %v3184 = vsel %vm846, %v839, 0
      %3186 = vmatprep.subr.mxu0 0.0
      %3187 = vmatpush1.msra.mxu0 %v840
      %3188 = vmatprep.subr.mxu0 0.0
      %3189 = vmatpush1.msra.mxu0 %v841
      %3190 = vmatprep.subr.mxu0 0.0
      %3191 = vmatpush1.msra.mxu0 0.0
      %3192 = vmatprep.subr.mxu0 0.0
      %3193 = vmatpush1.msra.mxu0 0.0
      %3194 = vmatprep.subr.mxu0 0.0
      %3195 = vmatpush1.msra.mxu0 0.0
      %3196 = vmatprep.subr.mxu0 0.0
      %3197 = vmatpush1.msra.mxu0 0.0
      %3198 = vmatprep.subr.mxu0 0.0
      %3199 = vmatpush1.msra.mxu0 0.0
      %3200 = vmatprep.subr.mxu0 0.0
      %3201 = vmatpush1.msra.mxu0 0.0
      %3202 = vmatprep.subr.mxu0 0.0
      %3203 = vmatpush1.msra.mxu0 0.0
      %3204 = vmatprep.subr.mxu0 0.0
      %3205 = vmatpush1.msra.mxu0 0.0
      %3206 = vmatprep.subr.mxu0 0.0
      %3207 = vmatpush1.msra.mxu0 0.0
      %3208 = vmatprep.subr.mxu0 0.0
      %3209 = vmatpush1.msra.mxu0 0.0
      %3210 = vmatprep.subr.mxu0 0.0
      %3211 = vmatpush1.msra.mxu0 0.0
      %3212 = vmatprep.subr.mxu0 0.0
      %3213 = vmatpush1.msra.mxu0 0.0
      %3214 = vmatprep.subr.mxu0 0.0
      %3215 = vmatpush1.msra.mxu0 0.0
      %3216 = vmatprep.subr.mxu0 0.0
      %3217 = vmatpush1.msra.mxu0 0.0
      %3218 = vmatprep.subr.mxu0 0.0
      %3219 = vmatpush1.msra.mxu0 0.0
      %3220 = vmatprep.subr.mxu0 0.0
      %3221 = vmatpush1.msra.mxu0 0.0
      %3222 = vmatprep.subr.mxu0 0.0
      %3223 = vmatpush1.msra.mxu0 0.0
      %3224 = vmatprep.subr.mxu0 0.0
      %3225 = vmatpush1.msra.mxu0 0.0
      %3226 = vmatprep.subr.mxu0 0.0
      %3227 = vmatpush1.msra.mxu0 0.0
      %3228 = vmatprep.subr.mxu0 0.0
      %3229 = vmatpush1.msra.mxu0 0.0
      %3230 = vmatprep.subr.mxu0 0.0
      %3231 = vmatpush1.msra.mxu0 0.0
      %3232 = vmatprep.subr.mxu0 0.0
      %3233 = vmatpush1.msra.mxu0 0.0
      %3234 = vmatprep.subr.mxu0 0.0
      %3235 = vmatpush1.msra.mxu0 0.0
      %3236 = vmatprep.subr.mxu0 0.0
      %3237 = vmatpush1.msra.mxu0 0.0
      %3238 = vmatprep.subr.mxu0 0.0
      %3239 = vmatpush1.msra.mxu0 0.0
      %3240 = vmatprep.subr.mxu0 0.0
      %3241 = vmatpush1.msra.mxu0 0.0
      %3242 = vmatprep.subr.mxu0 0.0
      %3243 = vmatpush1.msra.mxu0 0.0
      %3244 = vmatprep.subr.mxu0 0.0
      %3245 = vmatpush1.msra.mxu0 0.0
      %3246 = vmatprep.subr.mxu0 0.0
      %3247 = vmatpush1.msra.mxu0 0.0
      %3248 = vmatprep.subr.mxu0 0.0
      %3249 = vmatpush1.msra.mxu0 0.0
      %3250 = vmatprep.mubr.f32.mxu0 0.0
      %3251 = vmatmul.mubr.f32.gmra.mrb[0].mxu0 %v3184
      %v3252 = vpop.f32.mrb[0].mxu0
      %v3253 = vadd.f32 0.0, %v3252
      %v3254 = vpop.f32.mrb[0].mxu0
      %3255 = vdwg.mxu0
      %v3256 = vmul.f32 %v800, %v844
      %v3258 = vsel %vm846, %v3256, 0
      %3260 = vmatprep.subr.mxu0 0.0
      %3261 = vmatpush1.msra.mxu0 %v840
      %3262 = vmatprep.subr.mxu0 0.0
      %3263 = vmatpush1.msra.mxu0 %v841
      %3264 = vmatprep.subr.mxu0 0.0
      %3265 = vmatpush1.msra.mxu0 0.0
      %3266 = vmatprep.subr.mxu0 0.0
      %3267 = vmatpush1.msra.mxu0 0.0
      %3268 = vmatprep.subr.mxu0 0.0
      %3269 = vmatpush1.msra.mxu0 0.0
      %3270 = vmatprep.subr.mxu0 0.0
      %3271 = vmatpush1.msra.mxu0 0.0
      %3272 = vmatprep.subr.mxu0 0.0
      %3273 = vmatpush1.msra.mxu0 0.0
      %3274 = vmatprep.subr.mxu0 0.0
      %3275 = vmatpush1.msra.mxu0 0.0
      %3276 = vmatprep.subr.mxu0 0.0
      %3277 = vmatpush1.msra.mxu0 0.0
      %3278 = vmatprep.subr.mxu0 0.0
      %3279 = vmatpush1.msra.mxu0 0.0
      %3280 = vmatprep.subr.mxu0 0.0
      %3281 = vmatpush1.msra.mxu0 0.0
      %3282 = vmatprep.subr.mxu0 0.0
      %3283 = vmatpush1.msra.mxu0 0.0
      %3284 = vmatprep.subr.mxu0 0.0
      %3285 = vmatpush1.msra.mxu0 0.0
      %3286 = vmatprep.subr.mxu0 0.0
      %3287 = vmatpush1.msra.mxu0 0.0
      %3288 = vmatprep.subr.mxu0 0.0
      %3289 = vmatpush1.msra.mxu0 0.0
      %3290 = vmatprep.subr.mxu0 0.0
      %3291 = vmatpush1.msra.mxu0 0.0
      %3292 = vmatprep.subr.mxu0 0.0
      %3293 = vmatpush1.msra.mxu0 0.0
      %3294 = vmatprep.subr.mxu0 0.0
      %3295 = vmatpush1.msra.mxu0 0.0
      %3296 = vmatprep.subr.mxu0 0.0
      %3297 = vmatpush1.msra.mxu0 0.0
      %3298 = vmatprep.subr.mxu0 0.0
      %3299 = vmatpush1.msra.mxu0 0.0
      %3300 = vmatprep.subr.mxu0 0.0
      %3301 = vmatpush1.msra.mxu0 0.0
      %3302 = vmatprep.subr.mxu0 0.0
      %3303 = vmatpush1.msra.mxu0 0.0
      %3304 = vmatprep.subr.mxu0 0.0
      %3305 = vmatpush1.msra.mxu0 0.0
      %3306 = vmatprep.subr.mxu0 0.0
      %3307 = vmatpush1.msra.mxu0 0.0
      %3308 = vmatprep.subr.mxu0 0.0
      %3309 = vmatpush1.msra.mxu0 0.0
      %3310 = vmatprep.subr.mxu0 0.0
      %3311 = vmatpush1.msra.mxu0 0.0
      %3312 = vmatprep.subr.mxu0 0.0
      %3313 = vmatpush1.msra.mxu0 0.0
      %3314 = vmatprep.subr.mxu0 0.0
      %3315 = vmatpush1.msra.mxu0 0.0
      %3316 = vmatprep.subr.mxu0 0.0
      %3317 = vmatpush1.msra.mxu0 0.0
      %3318 = vmatprep.subr.mxu0 0.0
      %3319 = vmatpush1.msra.mxu0 0.0
      %3320 = vmatprep.subr.mxu0 0.0
      %3321 = vmatpush1.msra.mxu0 0.0
      %3322 = vmatprep.subr.mxu0 0.0
      %3323 = vmatpush1.msra.mxu0 0.0
      %3324 = vmatprep.mubr.f32.mxu0 0.0
      %3325 = vmatmul.mubr.f32.gmra.mrb[0].mxu0 %v3258
      %v3326 = vpop.f32.mrb[0].mxu0
      %v3327 = vadd.f32 0.0, %v3326
      %v3328 = vpop.f32.mrb[0].mxu0
      %3329 = vdwg.mxu0
      %3331 = vrot.lane.b32.xlu0 %v990, 32
      %v3332 = vpop.permute.xlu0 %3331
      %3335 = vrot.lane.b32.xlu0 %v1063, 64
      %v3336 = vpop.permute.xlu0 %3335
      %3339 = vrot.lane.b32.xlu0 %v1136, 96
      %v3340 = vpop.permute.xlu0 %3339
      %3343 = vrot.lane.b32.xlu0 %v1282, 32
      %v3344 = vpop.permute.xlu0 %3343
      %3347 = vrot.lane.b32.xlu0 %v1355, 64
      %v3348 = vpop.permute.xlu0 %3347
      %3351 = vrot.lane.b32.xlu0 %v1428, 96
      %v3352 = vpop.permute.xlu0 %3351
      %3355 = vrot.lane.b32.xlu0 %v1574, 32
      %v3356 = vpop.permute.xlu0 %3355
      %3359 = vrot.lane.b32.xlu0 %v1647, 64
      %v3360 = vpop.permute.xlu0 %3359
      %3363 = vrot.lane.b32.xlu0 %v1720, 96
      %v3364 = vpop.permute.xlu0 %3363
      %3367 = vrot.lane.b32.xlu0 %v1866, 32
      %v3368 = vpop.permute.xlu0 %3367
      %3371 = vrot.lane.b32.xlu0 %v1939, 64
      %v3372 = vpop.permute.xlu0 %3371
      %3375 = vrot.lane.b32.xlu0 %v2012, 96
      %v3376 = vpop.permute.xlu0 %3375
      %vm3378 = vcmask 261120
      %v3379 = vsel %vm3378, %v917, %v3332
      %vm3380 = vcmask 523264
      %v3381 = vsel %vm3380, %v3379, %v3336
      %vm3382 = vcmask 785408
      %v3383 = vsel %vm3382, %v3381, %v3340
      %v3384 = vsel %vm3378, %v1209, %v3344
      %v3385 = vsel %vm3380, %v3384, %v3348
      %v3386 = vsel %vm3382, %v3385, %v3352
      %v3387 = vsel %vm3378, %v1501, %v3356
      %v3388 = vsel %vm3380, %v3387, %v3360
      %v3389 = vsel %vm3382, %v3388, %v3364
      %v3390 = vsel %vm3378, %v1793, %v3368
      %v3391 = vsel %vm3380, %v3390, %v3372
      %v3392 = vsel %vm3382, %v3391, %v3376
      %3394 = vrot.lane.b32.xlu0 %v2158, 32
      %v3395 = vpop.permute.xlu0 %3394
      %3398 = vrot.lane.b32.xlu0 %v2231, 64
      %v3399 = vpop.permute.xlu0 %3398
      %3402 = vrot.lane.b32.xlu0 %v2304, 96
      %v3403 = vpop.permute.xlu0 %3402
      %3406 = vrot.lane.b32.xlu0 %v2450, 32
      %v3407 = vpop.permute.xlu0 %3406
      %3410 = vrot.lane.b32.xlu0 %v2523, 64
      %v3411 = vpop.permute.xlu0 %3410
      %3414 = vrot.lane.b32.xlu0 %v2596, 96
      %v3415 = vpop.permute.xlu0 %3414
      %3418 = vrot.lane.b32.xlu0 %v2742, 32
      %v3419 = vpop.permute.xlu0 %3418
      %3422 = vrot.lane.b32.xlu0 %v2815, 64
      %v3423 = vpop.permute.xlu0 %3422
      %3426 = vrot.lane.b32.xlu0 %v2888, 96
      %v3427 = vpop.permute.xlu0 %3426
      %3430 = vrot.lane.b32.xlu0 %v3034, 32
      %v3431 = vpop.permute.xlu0 %3430
      %3434 = vrot.lane.b32.xlu0 %v3107, 64
      %v3435 = vpop.permute.xlu0 %3434
      %3438 = vrot.lane.b32.xlu0 %v3180, 96
      %v3439 = vpop.permute.xlu0 %3438
      %v3441 = vsel %vm3378, %v2085, %v3395
      %v3442 = vsel %vm3380, %v3441, %v3399
      %v3443 = vsel %vm3382, %v3442, %v3403
      %v3444 = vsel %vm3378, %v2377, %v3407
      %v3445 = vsel %vm3380, %v3444, %v3411
      %v3446 = vsel %vm3382, %v3445, %v3415
      %v3447 = vsel %vm3378, %v2669, %v3419
      %v3448 = vsel %vm3380, %v3447, %v3423
      %v3449 = vsel %vm3382, %v3448, %v3427
      %v3450 = vsel %vm3378, %v2961, %v3431
      %v3451 = vsel %vm3380, %v3450, %v3435
      %v3452 = vsel %vm3382, %v3451, %v3439
      %3454 = vrot.lane.b32.xlu0 %v3327, 32
      %v3455 = vpop.permute.xlu0 %3454
      %v3457 = vsel %vm3378, %v3253, %v3455
      %v3458 = vlaneseq
      %v3459 = vand.u32 %v3458, 127
      %v3460 = vadd.s32 %v3459, 128
      %v3461 = vadd.s32 %v3459, 256
      %v3462 = vadd.s32 %v3459, 384
      %v3463 = vadd.s32 %v3459, 512
      %v3464 = vadd.s32 %v3459, 640
      %v3465 = vadd.s32 %v3459, 768
      %v3466 = vadd.s32 %v3459, 896
      %v3467 = vadd.s32 %v3459, 1024
      %vm3468 = vcmp.lt.s32.totalorder %v3459, 0
      %v3469 = vsub.s32 0, %v3459
      %v3470 = vsel %vm3468, %v3469, %v3459
      %v3471 = vshrl.u32 %v3470, 5
      %v3472 = vand.u32 %v3470, 31
      %v3473 = vsub.s32 0, %v3472
      %v3474 = vsel %vm3468, %v3473, %v3472
      %vm3475 = vcmp.lt.s32.totalorder %v3460, 0
      %v3476 = vsub.s32 0, %v3460
      %v3477 = vsel %vm3475, %v3476, %v3460
      %v3478 = vshrl.u32 %v3477, 5
      %v3479 = vand.u32 %v3477, 31
      %v3480 = vsub.s32 0, %v3479
      %v3481 = vsel %vm3475, %v3480, %v3479
      %vm3482 = vcmp.lt.s32.totalorder %v3461, 0
      %v3483 = vsub.s32 0, %v3461
      %v3484 = vsel %vm3482, %v3483, %v3461
      %v3485 = vshrl.u32 %v3484, 5
      %v3486 = vand.u32 %v3484, 31
      %v3487 = vsub.s32 0, %v3486
      %v3488 = vsel %vm3482, %v3487, %v3486
      %vm3489 = vcmp.lt.s32.totalorder %v3462, 0
      %v3490 = vsub.s32 0, %v3462
      %v3491 = vsel %vm3489, %v3490, %v3462
      %v3492 = vshrl.u32 %v3491, 5
      %v3493 = vand.u32 %v3491, 31
      %v3494 = vsub.s32 0, %v3493
      %v3495 = vsel %vm3489, %v3494, %v3493
      %vm3496 = vcmp.lt.s32.totalorder %v3463, 0
      %v3497 = vsub.s32 0, %v3463
      %v3498 = vsel %vm3496, %v3497, %v3463
      %v3499 = vshrl.u32 %v3498, 5
      %v3500 = vand.u32 %v3498, 31
      %v3501 = vsub.s32 0, %v3500
      %v3502 = vsel %vm3496, %v3501, %v3500
      %vm3503 = vcmp.lt.s32.totalorder %v3464, 0
      %v3504 = vsub.s32 0, %v3464
      %v3505 = vsel %vm3503, %v3504, %v3464
      %v3506 = vshrl.u32 %v3505, 5
      %v3507 = vand.u32 %v3505, 31
      %v3508 = vsub.s32 0, %v3507
      %v3509 = vsel %vm3503, %v3508, %v3507
      %vm3510 = vcmp.lt.s32.totalorder %v3465, 0
      %v3511 = vsub.s32 0, %v3465
      %v3512 = vsel %vm3510, %v3511, %v3465
      %v3513 = vshrl.u32 %v3512, 5
      %v3514 = vand.u32 %v3512, 31
      %v3515 = vsub.s32 0, %v3514
      %v3516 = vsel %vm3510, %v3515, %v3514
      %vm3517 = vcmp.lt.s32.totalorder %v3466, 0
      %v3518 = vsub.s32 0, %v3466
      %v3519 = vsel %vm3517, %v3518, %v3466
      %v3520 = vshrl.u32 %v3519, 5
      %v3521 = vand.u32 %v3519, 31
      %v3522 = vsub.s32 0, %v3521
      %v3523 = vsel %vm3517, %v3522, %v3521
      %vm3524 = vcmp.lt.s32.totalorder %v3467, 0
      %v3525 = vsub.s32 0, %v3467
      %v3526 = vsel %vm3524, %v3525, %v3467
      %v3527 = vshrl.u32 %v3526, 5
      %v3528 = vand.u32 %v3526, 31
      %v3529 = vsub.s32 0, %v3528
      %v3530 = vsel %vm3524, %v3529, %v3528
      %vm3531 = vcmp.ne.s32.totalorder %v3474, 0
      %vm3532 = vcmp.ne.s32.totalorder %v3481, 0
      %vm3533 = vcmp.ne.s32.totalorder %v3488, 0
      %vm3534 = vcmp.ne.s32.totalorder %v3495, 0
      %vm3535 = vcmp.ne.s32.totalorder %v3502, 0
      %vm3536 = vcmp.ne.s32.totalorder %v3509, 0
      %vm3537 = vcmp.ne.s32.totalorder %v3516, 0
      %vm3538 = vcmp.ne.s32.totalorder %v3523, 0
      %vm3539 = vcmp.ne.s32.totalorder %v3530, 0
      %vm3540 = vcmp.lt.s32.totalorder %v3474, 0
      %vm3541 = vcmp.lt.s32.totalorder %v3481, 0
      %vm3542 = vcmp.lt.s32.totalorder %v3488, 0
      %vm3543 = vcmp.lt.s32.totalorder %v3495, 0
      %vm3544 = vcmp.lt.s32.totalorder %v3502, 0
      %vm3545 = vcmp.lt.s32.totalorder %v3509, 0
      %vm3546 = vcmp.lt.s32.totalorder %v3516, 0
      %vm3547 = vcmp.lt.s32.totalorder %v3523, 0
      %vm3548 = vcmp.lt.s32.totalorder %v3530, 0
      %vm3549 = vmand %vm3540, %vm3531
      %vm3550 = vmand %vm3541, %vm3532
      %vm3551 = vmand %vm3542, %vm3533
      %vm3552 = vmand %vm3543, %vm3534
      %vm3553 = vmand %vm3544, %vm3535
      %vm3554 = vmand %vm3545, %vm3536
      %vm3555 = vmand %vm3546, %vm3537
      %vm3556 = vmand %vm3547, %vm3538
      %vm3557 = vmand %vm3548, %vm3539
      %v3558 = vadd.s32 %v3474, 32
      %v3559 = vadd.s32 %v3481, 32
      %v3560 = vadd.s32 %v3488, 32
      %v3561 = vadd.s32 %v3495, 32
      %v3562 = vadd.s32 %v3502, 32
      %v3563 = vadd.s32 %v3509, 32
      %v3564 = vadd.s32 %v3516, 32
      %v3565 = vadd.s32 %v3523, 32
      %v3566 = vadd.s32 %v3530, 32
      %v3567 = vsel %vm3549, %v3558, %v3474
      %v3568 = vsel %vm3550, %v3559, %v3481
      %v3569 = vsel %vm3551, %v3560, %v3488
      %v3570 = vsel %vm3552, %v3561, %v3495
      %v3571 = vsel %vm3553, %v3562, %v3502
      %v3572 = vsel %vm3554, %v3563, %v3509
      %v3573 = vsel %vm3555, %v3564, %v3516
      %v3574 = vsel %vm3556, %v3565, %v3523
      %v3575 = vsel %vm3557, %v3566, %v3530
      %vm3576 = vcmp.eq.s32.totalorder %v3567, 0
      %vm3577 = vcmp.eq.s32.totalorder %v3568, 0
      %vm3578 = vcmp.eq.s32.totalorder %v3569, 0
      %vm3579 = vcmp.eq.s32.totalorder %v3570, 0
      %vm3580 = vcmp.eq.s32.totalorder %v3571, 0
      %vm3581 = vcmp.eq.s32.totalorder %v3572, 0
      %vm3582 = vcmp.eq.s32.totalorder %v3573, 0
      %vm3583 = vcmp.eq.s32.totalorder %v3574, 0
      %vm3584 = vcmp.eq.s32.totalorder %v3575, 0
      %3594 = vrot.lane.b32.xlu0 %v3383, 1
      %v3595 = vpop.permute.xlu0 %3594
      %3596 = vrot.lane.b32.xlu0 %v3386, 1
      %v3597 = vpop.permute.xlu0 %3596
      %3598 = vrot.lane.b32.xlu0 %v3389, 1
      %v3599 = vpop.permute.xlu0 %3598
      %3600 = vrot.lane.b32.xlu0 %v3392, 1
      %v3601 = vpop.permute.xlu0 %3600
      %3602 = vrot.lane.b32.xlu0 %v3443, 1
      %v3603 = vpop.permute.xlu0 %3602
      %3604 = vrot.lane.b32.xlu0 %v3446, 1
      %v3605 = vpop.permute.xlu0 %3604
      %3606 = vrot.lane.b32.xlu0 %v3449, 1
      %v3607 = vpop.permute.xlu0 %3606
      %3608 = vrot.lane.b32.xlu0 %v3452, 1
      %v3609 = vpop.permute.xlu0 %3608
      %3610 = vrot.lane.b32.xlu0 %v3457, 1
      %v3611 = vpop.permute.xlu0 %3610
      %vm3612 = vcmask 7168
      %v3613 = vsel %vm3612, %v3595, %v3597
      %v3614 = vsel %vm3612, %v3597, %v3599
      %v3615 = vsel %vm3612, %v3599, %v3601
      %v3616 = vsel %vm3612, %v3601, %v3603
      %v3617 = vsel %vm3612, %v3603, %v3605
      %v3618 = vsel %vm3612, %v3605, %v3607
      %v3619 = vsel %vm3612, %v3607, %v3609
      %v3620 = vsel %vm3612, %v3609, %v3611
      %v3630 = vsel %vm3612, 0.0, %v3595
      %v3631 = vsel %vm3576, 0.0, %v3630
      %v3632 = vsel %vm3577, 0.0, %v3613
      %v3633 = vsel %vm3578, 0.0, %v3614
      %v3634 = vsel %vm3579, 0.0, %v3615
      %v3635 = vsel %vm3580, 0.0, %v3616
      %v3636 = vsel %vm3581, 0.0, %v3617
      %v3637 = vsel %vm3582, 0.0, %v3618
      %v3638 = vsel %vm3583, 0.0, %v3619
      %v3639 = vsel %vm3584, 0.0, %v3620
      %vm3640 = vcmp.eq.s32.totalorder %v3567, 31
      %vm3641 = vcmp.eq.s32.totalorder %v3568, 31
      %vm3642 = vcmp.eq.s32.totalorder %v3569, 31
      %vm3643 = vcmp.eq.s32.totalorder %v3570, 31
      %vm3644 = vcmp.eq.s32.totalorder %v3571, 31
      %vm3645 = vcmp.eq.s32.totalorder %v3572, 31
      %vm3646 = vcmp.eq.s32.totalorder %v3573, 31
      %vm3647 = vcmp.eq.s32.totalorder %v3574, 31
      %vm3648 = vcmp.eq.s32.totalorder %v3575, 31
      %3649 = vrot.lane.b32.xlu0 %v3383, 127
      %v3650 = vpop.permute.xlu0 %3649
      %3651 = vrot.lane.b32.xlu0 %v3386, 127
      %v3652 = vpop.permute.xlu0 %3651
      %3653 = vrot.lane.b32.xlu0 %v3389, 127
      %v3654 = vpop.permute.xlu0 %3653
      %3655 = vrot.lane.b32.xlu0 %v3392, 127
      %v3656 = vpop.permute.xlu0 %3655
      %3657 = vrot.lane.b32.xlu0 %v3443, 127
      %v3658 = vpop.permute.xlu0 %3657
      %3659 = vrot.lane.b32.xlu0 %v3446, 127
      %v3660 = vpop.permute.xlu0 %3659
      %3661 = vrot.lane.b32.xlu0 %v3449, 127
      %v3662 = vpop.permute.xlu0 %3661
      %3663 = vrot.lane.b32.xlu0 %v3452, 127
      %v3664 = vpop.permute.xlu0 %3663
      %3665 = vrot.lane.b32.xlu0 %v3457, 127
      %v3666 = vpop.permute.xlu0 %3665
      %vm3667 = vcmask 1039360
      %v3668 = vsel %vm3667, %v3650, %v3652
      %v3669 = vsel %vm3667, %v3652, %v3654
      %v3670 = vsel %vm3667, %v3654, %v3656
      %v3671 = vsel %vm3667, %v3656, %v3658
      %v3672 = vsel %vm3667, %v3658, %v3660
      %v3673 = vsel %vm3667, %v3660, %v3662
      %v3674 = vsel %vm3667, %v3662, %v3664
      %v3675 = vsel %vm3667, %v3664, %v3666
      %vm3685 = vcmask 515072
      %v3686 = vsel %vm3685, %v3666, 0.0
      %v3687 = vsel %vm3640, 0.0, %v3668
      %v3688 = vsel %vm3641, 0.0, %v3669
      %v3689 = vsel %vm3642, 0.0, %v3670
      %v3690 = vsel %vm3643, 0.0, %v3671
      %v3691 = vsel %vm3644, 0.0, %v3672
      %v3692 = vsel %vm3645, 0.0, %v3673
      %v3693 = vsel %vm3646, 0.0, %v3674
      %v3694 = vsel %vm3647, 0.0, %v3675
      %v3695 = vsel %vm3648, 0.0, %v3686
      %v3696 = vld [vmem:[%s6] sm:$0xff]
      %v3697 = vld [vmem:[%s6 + $0x8] sm:$0xff]
      %v3698 = vld [vmem:[%s6 + $0x10] sm:$0xff]
      %v3699 = vld [vmem:[%s6 + $0x18] sm:$0xff]
      %v3700 = vld [vmem:[%s6 + $0x20] sm:$0xff]
      %v3701 = vld [vmem:[%s6 + $0x28] sm:$0xff]
      %v3702 = vld [vmem:[%s6 + $0x30] sm:$0xff]
      %v3703 = vld [vmem:[%s6 + $0x38] sm:$0xff]
      %v3704 = vld [vmem:[%s6 + $0x40] sm:$0xff]
      %vm3705 = vcmask 31744
      %v3707 = vsel %vm3705, %v3697, 0
      %vm3709 = vcmask 1043456
      %v3710 = vsel %vm3709, %v3383, 0
      %v3712 = vsel %vm3709, %v3386, 0
      %v3714 = vsel %vm3709, %v3389, 0
      %v3716 = vsel %vm3709, %v3392, 0
      %v3718 = vsel %vm3709, %v3443, 0
      %v3720 = vsel %vm3709, %v3446, 0
      %v3722 = vsel %vm3709, %v3449, 0
      %v3724 = vsel %vm3709, %v3452, 0
      %3726 = vmatprep.subr.mxu0 %v3712
      %3727 = vmatpush1.msra.mxu0 %v3710
      %3728 = vmatprep.subr.mxu0 0.0
      %3729 = vmatpush1.msra.mxu0 0.0
      %3730 = vmatprep.subr.mxu0 0.0
      %3731 = vmatpush1.msra.mxu0 0.0
      %3732 = vmatprep.subr.mxu0 0.0
      %3733 = vmatpush1.msra.mxu0 0.0
      %3734 = vmatprep.subr.mxu0 0.0
      %3735 = vmatpush1.msra.mxu0 0.0
      %3736 = vmatprep.subr.mxu0 0.0
      %3737 = vmatpush1.msra.mxu0 0.0
      %3738 = vmatprep.subr.mxu0 0.0
      %3739 = vmatpush1.msra.mxu0 0.0
      %3740 = vmatprep.subr.mxu0 0.0
      %3741 = vmatpush1.msra.mxu0 0.0
      %3742 = vmatprep.subr.mxu0 0.0
      %3743 = vmatpush1.msra.mxu0 0.0
      %3744 = vmatprep.subr.mxu0 0.0
      %3745 = vmatpush1.msra.mxu0 0.0
      %3746 = vmatprep.subr.mxu0 0.0
      %3747 = vmatpush1.msra.mxu0 0.0
      %3748 = vmatprep.subr.mxu0 0.0
      %3749 = vmatpush1.msra.mxu0 0.0
      %3750 = vmatprep.subr.mxu0 0.0
      %3751 = vmatpush1.msra.mxu0 0.0
      %3752 = vmatprep.subr.mxu0 0.0
      %3753 = vmatpush1.msra.mxu0 0.0
      %3754 = vmatprep.subr.mxu0 0.0
      %3755 = vmatpush1.msra.mxu0 0.0
      %3756 = vmatprep.subr.mxu0 0.0
      %3757 = vmatpush1.msra.mxu0 0.0
      %3758 = vmatprep.subr.mxu0 0.0
      %3759 = vmatpush1.msra.mxu0 0.0
      %3760 = vmatprep.subr.mxu0 0.0
      %3761 = vmatpush1.msra.mxu0 0.0
      %3762 = vmatprep.subr.mxu0 0.0
      %3763 = vmatpush1.msra.mxu0 0.0
      %3764 = vmatprep.subr.mxu0 0.0
      %3765 = vmatpush1.msra.mxu0 0.0
      %3766 = vmatprep.subr.mxu0 0.0
      %3767 = vmatpush1.msra.mxu0 0.0
      %3768 = vmatprep.subr.mxu0 0.0
      %3769 = vmatpush1.msra.mxu0 0.0
      %3770 = vmatprep.subr.mxu0 0.0
      %3771 = vmatpush1.msra.mxu0 0.0
      %3772 = vmatprep.subr.mxu0 0.0
      %3773 = vmatpush1.msra.mxu0 0.0
      %3774 = vmatprep.subr.mxu0 0.0
      %3775 = vmatpush1.msra.mxu0 0.0
      %3776 = vmatprep.subr.mxu0 0.0
      %3777 = vmatpush1.msra.mxu0 0.0
      %3778 = vmatprep.subr.mxu0 0.0
      %3779 = vmatpush1.msra.mxu0 0.0
      %3780 = vmatprep.subr.mxu0 0.0
      %3781 = vmatpush1.msra.mxu0 0.0
      %3782 = vmatprep.subr.mxu0 0.0
      %3783 = vmatpush1.msra.mxu0 0.0
      %3784 = vmatprep.subr.mxu0 0.0
      %3785 = vmatpush1.msra.mxu0 0.0
      %3786 = vmatprep.subr.mxu0 0.0
      %3787 = vmatpush1.msra.mxu0 0.0
      %3788 = vmatprep.subr.mxu0 0.0
      %3789 = vmatpush1.msra.mxu0 0.0
      %3790 = vmatprep.mubr.f32.mxu0 0.0
      %3791 = vmatmul.mubr.f32.gmra.mrb[0].mxu0 %v3707
      %v3792 = vpop.f32.mrb[0].mxu0
      %v3793 = vadd.f32 0.0, %v3792
      %v3794 = vpop.f32.mrb[0].mxu0
      %v3795 = vadd.f32 0.0, %v3794
      %3796 = vdwg.mxu0
      %3797 = vmatprep.subr.mxu0 %v3716
      %3798 = vmatpush1.msra.mxu0 %v3714
      %3799 = vmatprep.subr.mxu0 0.0
      %3800 = vmatpush1.msra.mxu0 0.0
      %3801 = vmatprep.subr.mxu0 0.0
      %3802 = vmatpush1.msra.mxu0 0.0
      %3803 = vmatprep.subr.mxu0 0.0
      %3804 = vmatpush1.msra.mxu0 0.0
      %3805 = vmatprep.subr.mxu0 0.0
      %3806 = vmatpush1.msra.mxu0 0.0
      %3807 = vmatprep.subr.mxu0 0.0
      %3808 = vmatpush1.msra.mxu0 0.0
      %3809 = vmatprep.subr.mxu0 0.0
      %3810 = vmatpush1.msra.mxu0 0.0
      %3811 = vmatprep.subr.mxu0 0.0
      %3812 = vmatpush1.msra.mxu0 0.0
      %3813 = vmatprep.subr.mxu0 0.0
      %3814 = vmatpush1.msra.mxu0 0.0
      %3815 = vmatprep.subr.mxu0 0.0
      %3816 = vmatpush1.msra.mxu0 0.0
      %3817 = vmatprep.subr.mxu0 0.0
      %3818 = vmatpush1.msra.mxu0 0.0
      %3819 = vmatprep.subr.mxu0 0.0
      %3820 = vmatpush1.msra.mxu0 0.0
      %3821 = vmatprep.subr.mxu0 0.0
      %3822 = vmatpush1.msra.mxu0 0.0
      %3823 = vmatprep.subr.mxu0 0.0
      %3824 = vmatpush1.msra.mxu0 0.0
      %3825 = vmatprep.subr.mxu0 0.0
      %3826 = vmatpush1.msra.mxu0 0.0
      %3827 = vmatprep.subr.mxu0 0.0
      %3828 = vmatpush1.msra.mxu0 0.0
      %3829 = vmatprep.subr.mxu0 0.0
      %3830 = vmatpush1.msra.mxu0 0.0
      %3831 = vmatprep.subr.mxu0 0.0
      %3832 = vmatpush1.msra.mxu0 0.0
      %3833 = vmatprep.subr.mxu0 0.0
      %3834 = vmatpush1.msra.mxu0 0.0
      %3835 = vmatprep.subr.mxu0 0.0
      %3836 = vmatpush1.msra.mxu0 0.0
      %3837 = vmatprep.subr.mxu0 0.0
      %3838 = vmatpush1.msra.mxu0 0.0
      %3839 = vmatprep.subr.mxu0 0.0
      %3840 = vmatpush1.msra.mxu0 0.0
      %3841 = vmatprep.subr.mxu0 0.0
      %3842 = vmatpush1.msra.mxu0 0.0
      %3843 = vmatprep.subr.mxu0 0.0
      %3844 = vmatpush1.msra.mxu0 0.0
      %3845 = vmatprep.subr.mxu0 0.0
      %3846 = vmatpush1.msra.mxu0 0.0
      %3847 = vmatprep.subr.mxu0 0.0
      %3848 = vmatpush1.msra.mxu0 0.0
      %3849 = vmatprep.subr.mxu0 0.0
      %3850 = vmatpush1.msra.mxu0 0.0
      %3851 = vmatprep.subr.mxu0 0.0
      %3852 = vmatpush1.msra.mxu0 0.0
      %3853 = vmatprep.subr.mxu0 0.0
      %3854 = vmatpush1.msra.mxu0 0.0
      %3855 = vmatprep.subr.mxu0 0.0
      %3856 = vmatpush1.msra.mxu0 0.0
      %3857 = vmatprep.subr.mxu0 0.0
      %3858 = vmatpush1.msra.mxu0 0.0
      %3859 = vmatprep.subr.mxu0 0.0
      %3860 = vmatpush1.msra.mxu0 0.0
      %3861 = vmatprep.mubr.f32.mxu0 0.0
      %3862 = vmatmul.mubr.f32.gmra.mrb[0].mxu0 %v3707
      %v3863 = vpop.f32.mrb[0].mxu0
      %v3864 = vadd.f32 0.0, %v3863
      %v3865 = vpop.f32.mrb[0].mxu0
      %v3866 = vadd.f32 0.0, %v3865
      %3867 = vdwg.mxu0
      %3868 = vmatprep.subr.mxu0 %v3720
      %3869 = vmatpush1.msra.mxu0 %v3718
      %3870 = vmatprep.subr.mxu0 0.0
      %3871 = vmatpush1.msra.mxu0 0.0
      %3872 = vmatprep.subr.mxu0 0.0
      %3873 = vmatpush1.msra.mxu0 0.0
      %3874 = vmatprep.subr.mxu0 0.0
      %3875 = vmatpush1.msra.mxu0 0.0
      %3876 = vmatprep.subr.mxu0 0.0
      %3877 = vmatpush1.msra.mxu0 0.0
      %3878 = vmatprep.subr.mxu0 0.0
      %3879 = vmatpush1.msra.mxu0 0.0
      %3880 = vmatprep.subr.mxu0 0.0
      %3881 = vmatpush1.msra.mxu0 0.0
      %3882 = vmatprep.subr.mxu0 0.0
      %3883 = vmatpush1.msra.mxu0 0.0
      %3884 = vmatprep.subr.mxu0 0.0
      %3885 = vmatpush1.msra.mxu0 0.0
      %3886 = vmatprep.subr.mxu0 0.0
      %3887 = vmatpush1.msra.mxu0 0.0
      %3888 = vmatprep.subr.mxu0 0.0
      %3889 = vmatpush1.msra.mxu0 0.0
      %3890 = vmatprep.subr.mxu0 0.0
      %3891 = vmatpush1.msra.mxu0 0.0
      %3892 = vmatprep.subr.mxu0 0.0
      %3893 = vmatpush1.msra.mxu0 0.0
      %3894 = vmatprep.subr.mxu0 0.0
      %3895 = vmatpush1.msra.mxu0 0.0
      %3896 = vmatprep.subr.mxu0 0.0
      %3897 = vmatpush1.msra.mxu0 0.0
      %3898 = vmatprep.subr.mxu0 0.0
      %3899 = vmatpush1.msra.mxu0 0.0
      %3900 = vmatprep.subr.mxu0 0.0
      %3901 = vmatpush1.msra.mxu0 0.0
      %3902 = vmatprep.subr.mxu0 0.0
      %3903 = vmatpush1.msra.mxu0 0.0
      %3904 = vmatprep.subr.mxu0 0.0
      %3905 = vmatpush1.msra.mxu0 0.0
      %3906 = vmatprep.subr.mxu0 0.0
      %3907 = vmatpush1.msra.mxu0 0.0
      %3908 = vmatprep.subr.mxu0 0.0
      %3909 = vmatpush1.msra.mxu0 0.0
      %3910 = vmatprep.subr.mxu0 0.0
      %3911 = vmatpush1.msra.mxu0 0.0
      %3912 = vmatprep.subr.mxu0 0.0
      %3913 = vmatpush1.msra.mxu0 0.0
      %3914 = vmatprep.subr.mxu0 0.0
      %3915 = vmatpush1.msra.mxu0 0.0
      %3916 = vmatprep.subr.mxu0 0.0
      %3917 = vmatpush1.msra.mxu0 0.0
      %3918 = vmatprep.subr.mxu0 0.0
      %3919 = vmatpush1.msra.mxu0 0.0
      %3920 = vmatprep.subr.mxu0 0.0
      %3921 = vmatpush1.msra.mxu0 0.0
      %3922 = vmatprep.subr.mxu0 0.0
      %3923 = vmatpush1.msra.mxu0 0.0
      %3924 = vmatprep.subr.mxu0 0.0
      %3925 = vmatpush1.msra.mxu0 0.0
      %3926 = vmatprep.subr.mxu0 0.0
      %3927 = vmatpush1.msra.mxu0 0.0
      %3928 = vmatprep.subr.mxu0 0.0
      %3929 = vmatpush1.msra.mxu0 0.0
      %3930 = vmatprep.subr.mxu0 0.0
      %3931 = vmatpush1.msra.mxu0 0.0
      %3932 = vmatprep.mubr.f32.mxu0 0.0
      %3933 = vmatmul.mubr.f32.gmra.mrb[0].mxu0 %v3707
      %v3934 = vpop.f32.mrb[0].mxu0
      %v3935 = vadd.f32 0.0, %v3934
      %v3936 = vpop.f32.mrb[0].mxu0
      %v3937 = vadd.f32 0.0, %v3936
      %3938 = vdwg.mxu0
      %3939 = vmatprep.subr.mxu0 %v3724
      %3940 = vmatpush1.msra.mxu0 %v3722
      %3941 = vmatprep.subr.mxu0 0.0
      %3942 = vmatpush1.msra.mxu0 0.0
      %3943 = vmatprep.subr.mxu0 0.0
      %3944 = vmatpush1.msra.mxu0 0.0
      %3945 = vmatprep.subr.mxu0 0.0
      %3946 = vmatpush1.msra.mxu0 0.0
      %3947 = vmatprep.subr.mxu0 0.0
      %3948 = vmatpush1.msra.mxu0 0.0
      %3949 = vmatprep.subr.mxu0 0.0
      %3950 = vmatpush1.msra.mxu0 0.0
      %3951 = vmatprep.subr.mxu0 0.0
      %3952 = vmatpush1.msra.mxu0 0.0
      %3953 = vmatprep.subr.mxu0 0.0
      %3954 = vmatpush1.msra.mxu0 0.0
      %3955 = vmatprep.subr.mxu0 0.0
      %3956 = vmatpush1.msra.mxu0 0.0
      %3957 = vmatprep.subr.mxu0 0.0
      %3958 = vmatpush1.msra.mxu0 0.0
      %3959 = vmatprep.subr.mxu0 0.0
      %3960 = vmatpush1.msra.mxu0 0.0
      %3961 = vmatprep.subr.mxu0 0.0
      %3962 = vmatpush1.msra.mxu0 0.0
      %3963 = vmatprep.subr.mxu0 0.0
      %3964 = vmatpush1.msra.mxu0 0.0
      %3965 = vmatprep.subr.mxu0 0.0
      %3966 = vmatpush1.msra.mxu0 0.0
      %3967 = vmatprep.subr.mxu0 0.0
      %3968 = vmatpush1.msra.mxu0 0.0
      %3969 = vmatprep.subr.mxu0 0.0
      %3970 = vmatpush1.msra.mxu0 0.0
      %3971 = vmatprep.subr.mxu0 0.0
      %3972 = vmatpush1.msra.mxu0 0.0
      %3973 = vmatprep.subr.mxu0 0.0
      %3974 = vmatpush1.msra.mxu0 0.0
      %3975 = vmatprep.subr.mxu0 0.0
      %3976 = vmatpush1.msra.mxu0 0.0
      %3977 = vmatprep.subr.mxu0 0.0
      %3978 = vmatpush1.msra.mxu0 0.0
      %3979 = vmatprep.subr.mxu0 0.0
      %3980 = vmatpush1.msra.mxu0 0.0
      %3981 = vmatprep.subr.mxu0 0.0
      %3982 = vmatpush1.msra.mxu0 0.0
      %3983 = vmatprep.subr.mxu0 0.0
      %3984 = vmatpush1.msra.mxu0 0.0
      %3985 = vmatprep.subr.mxu0 0.0
      %3986 = vmatpush1.msra.mxu0 0.0
      %3987 = vmatprep.subr.mxu0 0.0
      %3988 = vmatpush1.msra.mxu0 0.0
      %3989 = vmatprep.subr.mxu0 0.0
      %3990 = vmatpush1.msra.mxu0 0.0
      %3991 = vmatprep.subr.mxu0 0.0
      %3992 = vmatpush1.msra.mxu0 0.0
      %3993 = vmatprep.subr.mxu0 0.0
      %3994 = vmatpush1.msra.mxu0 0.0
      %3995 = vmatprep.subr.mxu0 0.0
      %3996 = vmatpush1.msra.mxu0 0.0
      %3997 = vmatprep.subr.mxu0 0.0
      %3998 = vmatpush1.msra.mxu0 0.0
      %3999 = vmatprep.subr.mxu0 0.0
      %4000 = vmatpush1.msra.mxu0 0.0
      %4001 = vmatprep.subr.mxu0 0.0
      %4002 = vmatpush1.msra.mxu0 0.0
      %4003 = vmatprep.mubr.f32.mxu0 0.0
      %4004 = vmatmul.mubr.f32.gmra.mrb[0].mxu0 %v3707
      %v4005 = vpop.f32.mrb[0].mxu0
      %v4006 = vadd.f32 0.0, %v4005
      %v4007 = vpop.f32.mrb[0].mxu0
      %v4008 = vadd.f32 0.0, %v4007
      %4009 = vdwg.mxu0
      %v4011 = vsel %vm3705, %v3696, 0
      %v4014 = vsel %vm3709, %v3631, 0
      %v4017 = vsel %vm3709, %v3632, 0
      %v4020 = vsel %vm3709, %v3633, 0
      %v4023 = vsel %vm3709, %v3634, 0
      %v4026 = vsel %vm3709, %v3635, 0
      %v4029 = vsel %vm3709, %v3636, 0
      %v4032 = vsel %vm3709, %v3637, 0
      %v4035 = vsel %vm3709, %v3638, 0
      %4037 = vmatprep.subr.mxu0 %v4017
      %4038 = vmatpush1.msra.mxu0 %v4014
      %4039 = vmatprep.subr.mxu0 0.0
      %4040 = vmatpush1.msra.mxu0 0.0
      %4041 = vmatprep.subr.mxu0 0.0
      %4042 = vmatpush1.msra.mxu0 0.0
      %4043 = vmatprep.subr.mxu0 0.0
      %4044 = vmatpush1.msra.mxu0 0.0
      %4045 = vmatprep.subr.mxu0 0.0
      %4046 = vmatpush1.msra.mxu0 0.0
      %4047 = vmatprep.subr.mxu0 0.0
      %4048 = vmatpush1.msra.mxu0 0.0
      %4049 = vmatprep.subr.mxu0 0.0
      %4050 = vmatpush1.msra.mxu0 0.0
      %4051 = vmatprep.subr.mxu0 0.0
      %4052 = vmatpush1.msra.mxu0 0.0
      %4053 = vmatprep.subr.mxu0 0.0
      %4054 = vmatpush1.msra.mxu0 0.0
      %4055 = vmatprep.subr.mxu0 0.0
      %4056 = vmatpush1.msra.mxu0 0.0
      %4057 = vmatprep.subr.mxu0 0.0
      %4058 = vmatpush1.msra.mxu0 0.0
      %4059 = vmatprep.subr.mxu0 0.0
      %4060 = vmatpush1.msra.mxu0 0.0
      %4061 = vmatprep.subr.mxu0 0.0
      %4062 = vmatpush1.msra.mxu0 0.0
      %4063 = vmatprep.subr.mxu0 0.0
      %4064 = vmatpush1.msra.mxu0 0.0
      %4065 = vmatprep.subr.mxu0 0.0
      %4066 = vmatpush1.msra.mxu0 0.0
      %4067 = vmatprep.subr.mxu0 0.0
      %4068 = vmatpush1.msra.mxu0 0.0
      %4069 = vmatprep.subr.mxu0 0.0
      %4070 = vmatpush1.msra.mxu0 0.0
      %4071 = vmatprep.subr.mxu0 0.0
      %4072 = vmatpush1.msra.mxu0 0.0
      %4073 = vmatprep.subr.mxu0 0.0
      %4074 = vmatpush1.msra.mxu0 0.0
      %4075 = vmatprep.subr.mxu0 0.0
      %4076 = vmatpush1.msra.mxu0 0.0
      %4077 = vmatprep.subr.mxu0 0.0
      %4078 = vmatpush1.msra.mxu0 0.0
      %4079 = vmatprep.subr.mxu0 0.0
      %4080 = vmatpush1.msra.mxu0 0.0
      %4081 = vmatprep.subr.mxu0 0.0
      %4082 = vmatpush1.msra.mxu0 0.0
      %4083 = vmatprep.subr.mxu0 0.0
      %4084 = vmatpush1.msra.mxu0 0.0
      %4085 = vmatprep.subr.mxu0 0.0
      %4086 = vmatpush1.msra.mxu0 0.0
      %4087 = vmatprep.subr.mxu0 0.0
      %4088 = vmatpush1.msra.mxu0 0.0
      %4089 = vmatprep.subr.mxu0 0.0
      %4090 = vmatpush1.msra.mxu0 0.0
      %4091 = vmatprep.subr.mxu0 0.0
      %4092 = vmatpush1.msra.mxu0 0.0
      %4093 = vmatprep.subr.mxu0 0.0
      %4094 = vmatpush1.msra.mxu0 0.0
      %4095 = vmatprep.subr.mxu0 0.0
      %4096 = vmatpush1.msra.mxu0 0.0
      %4097 = vmatprep.subr.mxu0 0.0
      %4098 = vmatpush1.msra.mxu0 0.0
      %4099 = vmatprep.subr.mxu0 0.0
      %4100 = vmatpush1.msra.mxu0 0.0
      %4101 = vmatprep.mubr.f32.mxu0 0.0
      %4102 = vmatmul.mubr.f32.gmra.mrb[0].mxu0 %v4011
      %v4103 = vpop.f32.mrb[0].mxu0
      %v4104 = vadd.f32 %v3793, %v4103
      %v4105 = vpop.f32.mrb[0].mxu0
      %v4106 = vadd.f32 %v3795, %v4105
      %4107 = vdwg.mxu0
      %4108 = vmatprep.subr.mxu0 %v4023
      %4109 = vmatpush1.msra.mxu0 %v4020
      %4110 = vmatprep.subr.mxu0 0.0
      %4111 = vmatpush1.msra.mxu0 0.0
      %4112 = vmatprep.subr.mxu0 0.0
      %4113 = vmatpush1.msra.mxu0 0.0
      %4114 = vmatprep.subr.mxu0 0.0
      %4115 = vmatpush1.msra.mxu0 0.0
      %4116 = vmatprep.subr.mxu0 0.0
      %4117 = vmatpush1.msra.mxu0 0.0
      %4118 = vmatprep.subr.mxu0 0.0
      %4119 = vmatpush1.msra.mxu0 0.0
      %4120 = vmatprep.subr.mxu0 0.0
      %4121 = vmatpush1.msra.mxu0 0.0
      %4122 = vmatprep.subr.mxu0 0.0
      %4123 = vmatpush1.msra.mxu0 0.0
      %4124 = vmatprep.subr.mxu0 0.0
      %4125 = vmatpush1.msra.mxu0 0.0
      %4126 = vmatprep.subr.mxu0 0.0
      %4127 = vmatpush1.msra.mxu0 0.0
      %4128 = vmatprep.subr.mxu0 0.0
      %4129 = vmatpush1.msra.mxu0 0.0
      %4130 = vmatprep.subr.mxu0 0.0
      %4131 = vmatpush1.msra.mxu0 0.0
      %4132 = vmatprep.subr.mxu0 0.0
      %4133 = vmatpush1.msra.mxu0 0.0
      %4134 = vmatprep.subr.mxu0 0.0
      %4135 = vmatpush1.msra.mxu0 0.0
      %4136 = vmatprep.subr.mxu0 0.0
      %4137 = vmatpush1.msra.mxu0 0.0
      %4138 = vmatprep.subr.mxu0 0.0
      %4139 = vmatpush1.msra.mxu0 0.0
      %4140 = vmatprep.subr.mxu0 0.0
      %4141 = vmatpush1.msra.mxu0 0.0
      %4142 = vmatprep.subr.mxu0 0.0
      %4143 = vmatpush1.msra.mxu0 0.0
      %4144 = vmatprep.subr.mxu0 0.0
      %4145 = vmatpush1.msra.mxu0 0.0
      %4146 = vmatprep.subr.mxu0 0.0
      %4147 = vmatpush1.msra.mxu0 0.0
      %4148 = vmatprep.subr.mxu0 0.0
      %4149 = vmatpush1.msra.mxu0 0.0
      %4150 = vmatprep.subr.mxu0 0.0
      %4151 = vmatpush1.msra.mxu0 0.0
      %4152 = vmatprep.subr.mxu0 0.0
      %4153 = vmatpush1.msra.mxu0 0.0
      %4154 = vmatprep.subr.mxu0 0.0
      %4155 = vmatpush1.msra.mxu0 0.0
      %4156 = vmatprep.subr.mxu0 0.0
      %4157 = vmatpush1.msra.mxu0 0.0
      %4158 = vmatprep.subr.mxu0 0.0
      %4159 = vmatpush1.msra.mxu0 0.0
      %4160 = vmatprep.subr.mxu0 0.0
      %4161 = vmatpush1.msra.mxu0 0.0
      %4162 = vmatprep.subr.mxu0 0.0
      %4163 = vmatpush1.msra.mxu0 0.0
      %4164 = vmatprep.subr.mxu0 0.0
      %4165 = vmatpush1.msra.mxu0 0.0
      %4166 = vmatprep.subr.mxu0 0.0
      %4167 = vmatpush1.msra.mxu0 0.0
      %4168 = vmatprep.subr.mxu0 0.0
      %4169 = vmatpush1.msra.mxu0 0.0
      %4170 = vmatprep.subr.mxu0 0.0
      %4171 = vmatpush1.msra.mxu0 0.0
      %4172 = vmatprep.mubr.f32.mxu0 0.0
      %4173 = vmatmul.mubr.f32.gmra.mrb[0].mxu0 %v4011
      %v4174 = vpop.f32.mrb[0].mxu0
      %v4175 = vadd.f32 %v3864, %v4174
      %v4176 = vpop.f32.mrb[0].mxu0
      %v4177 = vadd.f32 %v3866, %v4176
      %4178 = vdwg.mxu0
      %4179 = vmatprep.subr.mxu0 %v4029
      %4180 = vmatpush1.msra.mxu0 %v4026
      %4181 = vmatprep.subr.mxu0 0.0
      %4182 = vmatpush1.msra.mxu0 0.0
      %4183 = vmatprep.subr.mxu0 0.0
      %4184 = vmatpush1.msra.mxu0 0.0
      %4185 = vmatprep.subr.mxu0 0.0
      %4186 = vmatpush1.msra.mxu0 0.0
      %4187 = vmatprep.subr.mxu0 0.0
      %4188 = vmatpush1.msra.mxu0 0.0
      %4189 = vmatprep.subr.mxu0 0.0
      %4190 = vmatpush1.msra.mxu0 0.0
      %4191 = vmatprep.subr.mxu0 0.0
      %4192 = vmatpush1.msra.mxu0 0.0
      %4193 = vmatprep.subr.mxu0 0.0
      %4194 = vmatpush1.msra.mxu0 0.0
      %4195 = vmatprep.subr.mxu0 0.0
      %4196 = vmatpush1.msra.mxu0 0.0
      %4197 = vmatprep.subr.mxu0 0.0
      %4198 = vmatpush1.msra.mxu0 0.0
      %4199 = vmatprep.subr.mxu0 0.0
      %4200 = vmatpush1.msra.mxu0 0.0
      %4201 = vmatprep.subr.mxu0 0.0
      %4202 = vmatpush1.msra.mxu0 0.0
      %4203 = vmatprep.subr.mxu0 0.0
      %4204 = vmatpush1.msra.mxu0 0.0
      %4205 = vmatprep.subr.mxu0 0.0
      %4206 = vmatpush1.msra.mxu0 0.0
      %4207 = vmatprep.subr.mxu0 0.0
      %4208 = vmatpush1.msra.mxu0 0.0
      %4209 = vmatprep.subr.mxu0 0.0
      %4210 = vmatpush1.msra.mxu0 0.0
      %4211 = vmatprep.subr.mxu0 0.0
      %4212 = vmatpush1.msra.mxu0 0.0
      %4213 = vmatprep.subr.mxu0 0.0
      %4214 = vmatpush1.msra.mxu0 0.0
      %4215 = vmatprep.subr.mxu0 0.0
      %4216 = vmatpush1.msra.mxu0 0.0
      %4217 = vmatprep.subr.mxu0 0.0
      %4218 = vmatpush1.msra.mxu0 0.0
      %4219 = vmatprep.subr.mxu0 0.0
      %4220 = vmatpush1.msra.mxu0 0.0
      %4221 = vmatprep.subr.mxu0 0.0
      %4222 = vmatpush1.msra.mxu0 0.0
      %4223 = vmatprep.subr.mxu0 0.0
      %4224 = vmatpush1.msra.mxu0 0.0
      %4225 = vmatprep.subr.mxu0 0.0
      %4226 = vmatpush1.msra.mxu0 0.0
      %4227 = vmatprep.subr.mxu0 0.0
      %4228 = vmatpush1.msra.mxu0 0.0
      %4229 = vmatprep.subr.mxu0 0.0
      %4230 = vmatpush1.msra.mxu0 0.0
      %4231 = vmatprep.subr.mxu0 0.0
      %4232 = vmatpush1.msra.mxu0 0.0
      %4233 = vmatprep.subr.mxu0 0.0
      %4234 = vmatpush1.msra.mxu0 0.0
      %4235 = vmatprep.subr.mxu0 0.0
      %4236 = vmatpush1.msra.mxu0 0.0
      %4237 = vmatprep.subr.mxu0 0.0
      %4238 = vmatpush1.msra.mxu0 0.0
      %4239 = vmatprep.subr.mxu0 0.0
      %4240 = vmatpush1.msra.mxu0 0.0
      %4241 = vmatprep.subr.mxu0 0.0
      %4242 = vmatpush1.msra.mxu0 0.0
      %4243 = vmatprep.mubr.f32.mxu0 0.0
      %4244 = vmatmul.mubr.f32.gmra.mrb[0].mxu0 %v4011
      %v4245 = vpop.f32.mrb[0].mxu0
      %v4246 = vadd.f32 %v3935, %v4245
      %v4247 = vpop.f32.mrb[0].mxu0
      %v4248 = vadd.f32 %v3937, %v4247
      %4249 = vdwg.mxu0
      %4250 = vmatprep.subr.mxu0 %v4035
      %4251 = vmatpush1.msra.mxu0 %v4032
      %4252 = vmatprep.subr.mxu0 0.0
      %4253 = vmatpush1.msra.mxu0 0.0
      %4254 = vmatprep.subr.mxu0 0.0
      %4255 = vmatpush1.msra.mxu0 0.0
      %4256 = vmatprep.subr.mxu0 0.0
      %4257 = vmatpush1.msra.mxu0 0.0
      %4258 = vmatprep.subr.mxu0 0.0
      %4259 = vmatpush1.msra.mxu0 0.0
      %4260 = vmatprep.subr.mxu0 0.0
      %4261 = vmatpush1.msra.mxu0 0.0
      %4262 = vmatprep.subr.mxu0 0.0
      %4263 = vmatpush1.msra.mxu0 0.0
      %4264 = vmatprep.subr.mxu0 0.0
      %4265 = vmatpush1.msra.mxu0 0.0
      %4266 = vmatprep.subr.mxu0 0.0
      %4267 = vmatpush1.msra.mxu0 0.0
      %4268 = vmatprep.subr.mxu0 0.0
      %4269 = vmatpush1.msra.mxu0 0.0
      %4270 = vmatprep.subr.mxu0 0.0
      %4271 = vmatpush1.msra.mxu0 0.0
      %4272 = vmatprep.subr.mxu0 0.0
      %4273 = vmatpush1.msra.mxu0 0.0
      %4274 = vmatprep.subr.mxu0 0.0
      %4275 = vmatpush1.msra.mxu0 0.0
      %4276 = vmatprep.subr.mxu0 0.0
      %4277 = vmatpush1.msra.mxu0 0.0
      %4278 = vmatprep.subr.mxu0 0.0
      %4279 = vmatpush1.msra.mxu0 0.0
      %4280 = vmatprep.subr.mxu0 0.0
      %4281 = vmatpush1.msra.mxu0 0.0
      %4282 = vmatprep.subr.mxu0 0.0
      %4283 = vmatpush1.msra.mxu0 0.0
      %4284 = vmatprep.subr.mxu0 0.0
      %4285 = vmatpush1.msra.mxu0 0.0
      %4286 = vmatprep.subr.mxu0 0.0
      %4287 = vmatpush1.msra.mxu0 0.0
      %4288 = vmatprep.subr.mxu0 0.0
      %4289 = vmatpush1.msra.mxu0 0.0
      %4290 = vmatprep.subr.mxu0 0.0
      %4291 = vmatpush1.msra.mxu0 0.0
      %4292 = vmatprep.subr.mxu0 0.0
      %4293 = vmatpush1.msra.mxu0 0.0
      %4294 = vmatprep.subr.mxu0 0.0
      %4295 = vmatpush1.msra.mxu0 0.0
      %4296 = vmatprep.subr.mxu0 0.0
      %4297 = vmatpush1.msra.mxu0 0.0
      %4298 = vmatprep.subr.mxu0 0.0
      %4299 = vmatpush1.msra.mxu0 0.0
      %4300 = vmatprep.subr.mxu0 0.0
      %4301 = vmatpush1.msra.mxu0 0.0
      %4302 = vmatprep.subr.mxu0 0.0
      %4303 = vmatpush1.msra.mxu0 0.0
      %4304 = vmatprep.subr.mxu0 0.0
      %4305 = vmatpush1.msra.mxu0 0.0
      %4306 = vmatprep.subr.mxu0 0.0
      %4307 = vmatpush1.msra.mxu0 0.0
      %4308 = vmatprep.subr.mxu0 0.0
      %4309 = vmatpush1.msra.mxu0 0.0
      %4310 = vmatprep.subr.mxu0 0.0
      %4311 = vmatpush1.msra.mxu0 0.0
      %4312 = vmatprep.subr.mxu0 0.0
      %4313 = vmatpush1.msra.mxu0 0.0
      %4314 = vmatprep.mubr.f32.mxu0 0.0
      %4315 = vmatmul.mubr.f32.gmra.mrb[0].mxu0 %v4011
      %v4316 = vpop.f32.mrb[0].mxu0
      %v4317 = vadd.f32 %v4006, %v4316
      %v4318 = vpop.f32.mrb[0].mxu0
      %v4319 = vadd.f32 %v4008, %v4318
      %4320 = vdwg.mxu0
      %v4322 = vsel %vm3705, %v3698, 0
      %v4325 = vsel %vm3709, %v3687, 0
      %v4328 = vsel %vm3709, %v3688, 0
      %v4331 = vsel %vm3709, %v3689, 0
      %v4334 = vsel %vm3709, %v3690, 0
      %v4337 = vsel %vm3709, %v3691, 0
      %v4340 = vsel %vm3709, %v3692, 0
      %v4343 = vsel %vm3709, %v3693, 0
      %v4346 = vsel %vm3709, %v3694, 0
      %4348 = vmatprep.subr.mxu0 %v4328
      %4349 = vmatpush1.msra.mxu0 %v4325
      %4350 = vmatprep.subr.mxu0 0.0
      %4351 = vmatpush1.msra.mxu0 0.0
      %4352 = vmatprep.subr.mxu0 0.0
      %4353 = vmatpush1.msra.mxu0 0.0
      %4354 = vmatprep.subr.mxu0 0.0
      %4355 = vmatpush1.msra.mxu0 0.0
      %4356 = vmatprep.subr.mxu0 0.0
      %4357 = vmatpush1.msra.mxu0 0.0
      %4358 = vmatprep.subr.mxu0 0.0
      %4359 = vmatpush1.msra.mxu0 0.0
      %4360 = vmatprep.subr.mxu0 0.0
      %4361 = vmatpush1.msra.mxu0 0.0
      %4362 = vmatprep.subr.mxu0 0.0
      %4363 = vmatpush1.msra.mxu0 0.0
      %4364 = vmatprep.subr.mxu0 0.0
      %4365 = vmatpush1.msra.mxu0 0.0
      %4366 = vmatprep.subr.mxu0 0.0
      %4367 = vmatpush1.msra.mxu0 0.0
      %4368 = vmatprep.subr.mxu0 0.0
      %4369 = vmatpush1.msra.mxu0 0.0
      %4370 = vmatprep.subr.mxu0 0.0
      %4371 = vmatpush1.msra.mxu0 0.0
      %4372 = vmatprep.subr.mxu0 0.0
      %4373 = vmatpush1.msra.mxu0 0.0
      %4374 = vmatprep.subr.mxu0 0.0
      %4375 = vmatpush1.msra.mxu0 0.0
      %4376 = vmatprep.subr.mxu0 0.0
      %4377 = vmatpush1.msra.mxu0 0.0
      %4378 = vmatprep.subr.mxu0 0.0
      %4379 = vmatpush1.msra.mxu0 0.0
      %4380 = vmatprep.subr.mxu0 0.0
      %4381 = vmatpush1.msra.mxu0 0.0
      %4382 = vmatprep.subr.mxu0 0.0
      %4383 = vmatpush1.msra.mxu0 0.0
      %4384 = vmatprep.subr.mxu0 0.0
      %4385 = vmatpush1.msra.mxu0 0.0
      %4386 = vmatprep.subr.mxu0 0.0
      %4387 = vmatpush1.msra.mxu0 0.0
      %4388 = vmatprep.subr.mxu0 0.0
      %4389 = vmatpush1.msra.mxu0 0.0
      %4390 = vmatprep.subr.mxu0 0.0
      %4391 = vmatpush1.msra.mxu0 0.0
      %4392 = vmatprep.subr.mxu0 0.0
      %4393 = vmatpush1.msra.mxu0 0.0
      %4394 = vmatprep.subr.mxu0 0.0
      %4395 = vmatpush1.msra.mxu0 0.0
      %4396 = vmatprep.subr.mxu0 0.0
      %4397 = vmatpush1.msra.mxu0 0.0
      %4398 = vmatprep.subr.mxu0 0.0
      %4399 = vmatpush1.msra.mxu0 0.0
      %4400 = vmatprep.subr.mxu0 0.0
      %4401 = vmatpush1.msra.mxu0 0.0
      %4402 = vmatprep.subr.mxu0 0.0
      %4403 = vmatpush1.msra.mxu0 0.0
      %4404 = vmatprep.subr.mxu0 0.0
      %4405 = vmatpush1.msra.mxu0 0.0
      %4406 = vmatprep.subr.mxu0 0.0
      %4407 = vmatpush1.msra.mxu0 0.0
      %4408 = vmatprep.subr.mxu0 0.0
      %4409 = vmatpush1.msra.mxu0 0.0
      %4410 = vmatprep.subr.mxu0 0.0
      %4411 = vmatpush1.msra.mxu0 0.0
      %4412 = vmatprep.mubr.f32.mxu0 0.0
      %4413 = vmatmul.mubr.f32.gmra.mrb[0].mxu0 %v4322
      %v4414 = vpop.f32.mrb[0].mxu0
      %v4415 = vadd.f32 0.0, %v4414
      %v4416 = vpop.f32.mrb[0].mxu0
      %v4417 = vadd.f32 0.0, %v4416
      %4418 = vdwg.mxu0
      %4419 = vmatprep.subr.mxu0 %v4334
      %4420 = vmatpush1.msra.mxu0 %v4331
      %4421 = vmatprep.subr.mxu0 0.0
      %4422 = vmatpush1.msra.mxu0 0.0
      %4423 = vmatprep.subr.mxu0 0.0
      %4424 = vmatpush1.msra.mxu0 0.0
      %4425 = vmatprep.subr.mxu0 0.0
      %4426 = vmatpush1.msra.mxu0 0.0
      %4427 = vmatprep.subr.mxu0 0.0
      %4428 = vmatpush1.msra.mxu0 0.0
      %4429 = vmatprep.subr.mxu0 0.0
      %4430 = vmatpush1.msra.mxu0 0.0
      %4431 = vmatprep.subr.mxu0 0.0
      %4432 = vmatpush1.msra.mxu0 0.0
      %4433 = vmatprep.subr.mxu0 0.0
      %4434 = vmatpush1.msra.mxu0 0.0
      %4435 = vmatprep.subr.mxu0 0.0
      %4436 = vmatpush1.msra.mxu0 0.0
      %4437 = vmatprep.subr.mxu0 0.0
      %4438 = vmatpush1.msra.mxu0 0.0
      %4439 = vmatprep.subr.mxu0 0.0
      %4440 = vmatpush1.msra.mxu0 0.0
      %4441 = vmatprep.subr.mxu0 0.0
      %4442 = vmatpush1.msra.mxu0 0.0
      %4443 = vmatprep.subr.mxu0 0.0
      %4444 = vmatpush1.msra.mxu0 0.0
      %4445 = vmatprep.subr.mxu0 0.0
      %4446 = vmatpush1.msra.mxu0 0.0
      %4447 = vmatprep.subr.mxu0 0.0
      %4448 = vmatpush1.msra.mxu0 0.0
      %4449 = vmatprep.subr.mxu0 0.0
      %4450 = vmatpush1.msra.mxu0 0.0
      %4451 = vmatprep.subr.mxu0 0.0
      %4452 = vmatpush1.msra.mxu0 0.0
      %4453 = vmatprep.subr.mxu0 0.0
      %4454 = vmatpush1.msra.mxu0 0.0
      %4455 = vmatprep.subr.mxu0 0.0
      %4456 = vmatpush1.msra.mxu0 0.0
      %4457 = vmatprep.subr.mxu0 0.0
      %4458 = vmatpush1.msra.mxu0 0.0
      %4459 = vmatprep.subr.mxu0 0.0
      %4460 = vmatpush1.msra.mxu0 0.0
      %4461 = vmatprep.subr.mxu0 0.0
      %4462 = vmatpush1.msra.mxu0 0.0
      %4463 = vmatprep.subr.mxu0 0.0
      %4464 = vmatpush1.msra.mxu0 0.0
      %4465 = vmatprep.subr.mxu0 0.0
      %4466 = vmatpush1.msra.mxu0 0.0
      %4467 = vmatprep.subr.mxu0 0.0
      %4468 = vmatpush1.msra.mxu0 0.0
      %4469 = vmatprep.subr.mxu0 0.0
      %4470 = vmatpush1.msra.mxu0 0.0
      %4471 = vmatprep.subr.mxu0 0.0
      %4472 = vmatpush1.msra.mxu0 0.0
      %4473 = vmatprep.subr.mxu0 0.0
      %4474 = vmatpush1.msra.mxu0 0.0
      %4475 = vmatprep.subr.mxu0 0.0
      %4476 = vmatpush1.msra.mxu0 0.0
      %4477 = vmatprep.subr.mxu0 0.0
      %4478 = vmatpush1.msra.mxu0 0.0
      %4479 = vmatprep.subr.mxu0 0.0
      %4480 = vmatpush1.msra.mxu0 0.0
      %4481 = vmatprep.subr.mxu0 0.0
      %4482 = vmatpush1.msra.mxu0 0.0
      %4483 = vmatprep.mubr.f32.mxu0 0.0
      %4484 = vmatmul.mubr.f32.gmra.mrb[0].mxu0 %v4322
      %v4485 = vpop.f32.mrb[0].mxu0
      %v4486 = vadd.f32 0.0, %v4485
      %v4487 = vpop.f32.mrb[0].mxu0
      %v4488 = vadd.f32 0.0, %v4487
      %4489 = vdwg.mxu0
      %4490 = vmatprep.subr.mxu0 %v4340
      %4491 = vmatpush1.msra.mxu0 %v4337
      %4492 = vmatprep.subr.mxu0 0.0
      %4493 = vmatpush1.msra.mxu0 0.0
      %4494 = vmatprep.subr.mxu0 0.0
      %4495 = vmatpush1.msra.mxu0 0.0
      %4496 = vmatprep.subr.mxu0 0.0
      %4497 = vmatpush1.msra.mxu0 0.0
      %4498 = vmatprep.subr.mxu0 0.0
      %4499 = vmatpush1.msra.mxu0 0.0
      %4500 = vmatprep.subr.mxu0 0.0
      %4501 = vmatpush1.msra.mxu0 0.0
      %4502 = vmatprep.subr.mxu0 0.0
      %4503 = vmatpush1.msra.mxu0 0.0
      %4504 = vmatprep.subr.mxu0 0.0
      %4505 = vmatpush1.msra.mxu0 0.0
      %4506 = vmatprep.subr.mxu0 0.0
      %4507 = vmatpush1.msra.mxu0 0.0
      %4508 = vmatprep.subr.mxu0 0.0
      %4509 = vmatpush1.msra.mxu0 0.0
      %4510 = vmatprep.subr.mxu0 0.0
      %4511 = vmatpush1.msra.mxu0 0.0
      %4512 = vmatprep.subr.mxu0 0.0
      %4513 = vmatpush1.msra.mxu0 0.0
      %4514 = vmatprep.subr.mxu0 0.0
      %4515 = vmatpush1.msra.mxu0 0.0
      %4516 = vmatprep.subr.mxu0 0.0
      %4517 = vmatpush1.msra.mxu0 0.0
      %4518 = vmatprep.subr.mxu0 0.0
      %4519 = vmatpush1.msra.mxu0 0.0
      %4520 = vmatprep.subr.mxu0 0.0
      %4521 = vmatpush1.msra.mxu0 0.0
      %4522 = vmatprep.subr.mxu0 0.0
      %4523 = vmatpush1.msra.mxu0 0.0
      %4524 = vmatprep.subr.mxu0 0.0
      %4525 = vmatpush1.msra.mxu0 0.0
      %4526 = vmatprep.subr.mxu0 0.0
      %4527 = vmatpush1.msra.mxu0 0.0
      %4528 = vmatprep.subr.mxu0 0.0
      %4529 = vmatpush1.msra.mxu0 0.0
      %4530 = vmatprep.subr.mxu0 0.0
      %4531 = vmatpush1.msra.mxu0 0.0
      %4532 = vmatprep.subr.mxu0 0.0
      %4533 = vmatpush1.msra.mxu0 0.0
      %4534 = vmatprep.subr.mxu0 0.0
      %4535 = vmatpush1.msra.mxu0 0.0
      %4536 = vmatprep.subr.mxu0 0.0
      %4537 = vmatpush1.msra.mxu0 0.0
      %4538 = vmatprep.subr.mxu0 0.0
      %4539 = vmatpush1.msra.mxu0 0.0
      %4540 = vmatprep.subr.mxu0 0.0
      %4541 = vmatpush1.msra.mxu0 0.0
      %4542 = vmatprep.subr.mxu0 0.0
      %4543 = vmatpush1.msra.mxu0 0.0
      %4544 = vmatprep.subr.mxu0 0.0
      %4545 = vmatpush1.msra.mxu0 0.0
      %4546 = vmatprep.subr.mxu0 0.0
      %4547 = vmatpush1.msra.mxu0 0.0
      %4548 = vmatprep.subr.mxu0 0.0
      %4549 = vmatpush1.msra.mxu0 0.0
      %4550 = vmatprep.subr.mxu0 0.0
      %4551 = vmatpush1.msra.mxu0 0.0
      %4552 = vmatprep.subr.mxu0 0.0
      %4553 = vmatpush1.msra.mxu0 0.0
      %4554 = vmatprep.mubr.f32.mxu0 0.0
      %4555 = vmatmul.mubr.f32.gmra.mrb[0].mxu0 %v4322
      %v4556 = vpop.f32.mrb[0].mxu0
      %v4557 = vadd.f32 0.0, %v4556
      %v4558 = vpop.f32.mrb[0].mxu0
      %v4559 = vadd.f32 0.0, %v4558
      %4560 = vdwg.mxu0
      %4561 = vmatprep.subr.mxu0 %v4346
      %4562 = vmatpush1.msra.mxu0 %v4343
      %4563 = vmatprep.subr.mxu0 0.0
      %4564 = vmatpush1.msra.mxu0 0.0
      %4565 = vmatprep.subr.mxu0 0.0
      %4566 = vmatpush1.msra.mxu0 0.0
      %4567 = vmatprep.subr.mxu0 0.0
      %4568 = vmatpush1.msra.mxu0 0.0
      %4569 = vmatprep.subr.mxu0 0.0
      %4570 = vmatpush1.msra.mxu0 0.0
      %4571 = vmatprep.subr.mxu0 0.0
      %4572 = vmatpush1.msra.mxu0 0.0
      %4573 = vmatprep.subr.mxu0 0.0
      %4574 = vmatpush1.msra.mxu0 0.0
      %4575 = vmatprep.subr.mxu0 0.0
      %4576 = vmatpush1.msra.mxu0 0.0
      %4577 = vmatprep.subr.mxu0 0.0
      %4578 = vmatpush1.msra.mxu0 0.0
      %4579 = vmatprep.subr.mxu0 0.0
      %4580 = vmatpush1.msra.mxu0 0.0
      %4581 = vmatprep.subr.mxu0 0.0
      %4582 = vmatpush1.msra.mxu0 0.0
      %4583 = vmatprep.subr.mxu0 0.0
      %4584 = vmatpush1.msra.mxu0 0.0
      %4585 = vmatprep.subr.mxu0 0.0
      %4586 = vmatpush1.msra.mxu0 0.0
      %4587 = vmatprep.subr.mxu0 0.0
      %4588 = vmatpush1.msra.mxu0 0.0
      %4589 = vmatprep.subr.mxu0 0.0
      %4590 = vmatpush1.msra.mxu0 0.0
      %4591 = vmatprep.subr.mxu0 0.0
      %4592 = vmatpush1.msra.mxu0 0.0
      %4593 = vmatprep.subr.mxu0 0.0
      %4594 = vmatpush1.msra.mxu0 0.0
      %4595 = vmatprep.subr.mxu0 0.0
      %4596 = vmatpush1.msra.mxu0 0.0
      %4597 = vmatprep.subr.mxu0 0.0
      %4598 = vmatpush1.msra.mxu0 0.0
      %4599 = vmatprep.subr.mxu0 0.0
      %4600 = vmatpush1.msra.mxu0 0.0
      %4601 = vmatprep.subr.mxu0 0.0
      %4602 = vmatpush1.msra.mxu0 0.0
      %4603 = vmatprep.subr.mxu0 0.0
      %4604 = vmatpush1.msra.mxu0 0.0
      %4605 = vmatprep.subr.mxu0 0.0
      %4606 = vmatpush1.msra.mxu0 0.0
      %4607 = vmatprep.subr.mxu0 0.0
      %4608 = vmatpush1.msra.mxu0 0.0
      %4609 = vmatprep.subr.mxu0 0.0
      %4610 = vmatpush1.msra.mxu0 0.0
      %4611 = vmatprep.subr.mxu0 0.0
      %4612 = vmatpush1.msra.mxu0 0.0
      %4613 = vmatprep.subr.mxu0 0.0
      %4614 = vmatpush1.msra.mxu0 0.0
      %4615 = vmatprep.subr.mxu0 0.0
      %4616 = vmatpush1.msra.mxu0 0.0
      %4617 = vmatprep.subr.mxu0 0.0
      %4618 = vmatpush1.msra.mxu0 0.0
      %4619 = vmatprep.subr.mxu0 0.0
      %4620 = vmatpush1.msra.mxu0 0.0
      %4621 = vmatprep.subr.mxu0 0.0
      %4622 = vmatpush1.msra.mxu0 0.0
      %4623 = vmatprep.subr.mxu0 0.0
      %4624 = vmatpush1.msra.mxu0 0.0
      %4625 = vmatprep.mubr.f32.mxu0 0.0
      %4626 = vmatmul.mubr.f32.gmra.mrb[0].mxu0 %v4322
      %v4627 = vpop.f32.mrb[0].mxu0
      %v4628 = vadd.f32 0.0, %v4627
      %v4629 = vpop.f32.mrb[0].mxu0
      %v4630 = vadd.f32 0.0, %v4629
      %4631 = vdwg.mxu0
      %v4632 = vadd.f32 %v4104, %v4415
      %v4633 = vadd.f32 %v4106, %v4417
      %v4634 = vadd.f32 %v4175, %v4486
      %v4635 = vadd.f32 %v4177, %v4488
      %v4636 = vadd.f32 %v4246, %v4557
      %v4637 = vadd.f32 %v4248, %v4559
      %v4638 = vadd.f32 %v4317, %v4628
      %v4639 = vadd.f32 %v4319, %v4630
      %4641 = vrot.lane.b32.xlu0 %v3631, 96
      %v4642 = vpop.permute.xlu0 %4641
      %4643 = vrot.lane.b32.xlu0 %v3632, 96
      %v4644 = vpop.permute.xlu0 %4643
      %4645 = vrot.lane.b32.xlu0 %v3633, 96
      %v4646 = vpop.permute.xlu0 %4645
      %4647 = vrot.lane.b32.xlu0 %v3634, 96
      %v4648 = vpop.permute.xlu0 %4647
      %4649 = vrot.lane.b32.xlu0 %v3635, 96
      %v4650 = vpop.permute.xlu0 %4649
      %4651 = vrot.lane.b32.xlu0 %v3636, 96
      %v4652 = vpop.permute.xlu0 %4651
      %4653 = vrot.lane.b32.xlu0 %v3637, 96
      %v4654 = vpop.permute.xlu0 %4653
      %4655 = vrot.lane.b32.xlu0 %v3638, 96
      %v4656 = vpop.permute.xlu0 %4655
      %4657 = vrot.lane.b32.xlu0 %v3639, 96
      %v4658 = vpop.permute.xlu0 %4657
      %v4659 = vsel %vm3382, %v4642, %v4644
      %v4660 = vsel %vm3382, %v4644, %v4646
      %v4661 = vsel %vm3382, %v4646, %v4648
      %v4662 = vsel %vm3382, %v4648, %v4650
      %v4663 = vsel %vm3382, %v4650, %v4652
      %v4664 = vsel %vm3382, %v4652, %v4654
      %v4665 = vsel %vm3382, %v4654, %v4656
      %v4666 = vsel %vm3382, %v4656, %v4658
      %v4668 = vsel %vm3705, %v3699, 0
      %v4670 = vsel %vm3709, %v4659, 0
      %v4672 = vsel %vm3709, %v4660, 0
      %v4674 = vsel %vm3709, %v4661, 0
      %v4676 = vsel %vm3709, %v4662, 0
      %v4678 = vsel %vm3709, %v4663, 0
      %v4680 = vsel %vm3709, %v4664, 0
      %v4682 = vsel %vm3709, %v4665, 0
      %v4684 = vsel %vm3709, %v4666, 0
      %4686 = vmatprep.subr.mxu0 %v4672
      %4687 = vmatpush1.msra.mxu0 %v4670
      %4688 = vmatprep.subr.mxu0 0.0
      %4689 = vmatpush1.msra.mxu0 0.0
      %4690 = vmatprep.subr.mxu0 0.0
      %4691 = vmatpush1.msra.mxu0 0.0
      %4692 = vmatprep.subr.mxu0 0.0
      %4693 = vmatpush1.msra.mxu0 0.0
      %4694 = vmatprep.subr.mxu0 0.0
      %4695 = vmatpush1.msra.mxu0 0.0
      %4696 = vmatprep.subr.mxu0 0.0
      %4697 = vmatpush1.msra.mxu0 0.0
      %4698 = vmatprep.subr.mxu0 0.0
      %4699 = vmatpush1.msra.mxu0 0.0
      %4700 = vmatprep.subr.mxu0 0.0
      %4701 = vmatpush1.msra.mxu0 0.0
      %4702 = vmatprep.subr.mxu0 0.0
      %4703 = vmatpush1.msra.mxu0 0.0
      %4704 = vmatprep.subr.mxu0 0.0
      %4705 = vmatpush1.msra.mxu0 0.0
      %4706 = vmatprep.subr.mxu0 0.0
      %4707 = vmatpush1.msra.mxu0 0.0
      %4708 = vmatprep.subr.mxu0 0.0
      %4709 = vmatpush1.msra.mxu0 0.0
      %4710 = vmatprep.subr.mxu0 0.0
      %4711 = vmatpush1.msra.mxu0 0.0
      %4712 = vmatprep.subr.mxu0 0.0
      %4713 = vmatpush1.msra.mxu0 0.0
      %4714 = vmatprep.subr.mxu0 0.0
      %4715 = vmatpush1.msra.mxu0 0.0
      %4716 = vmatprep.subr.mxu0 0.0
      %4717 = vmatpush1.msra.mxu0 0.0
      %4718 = vmatprep.subr.mxu0 0.0
      %4719 = vmatpush1.msra.mxu0 0.0
      %4720 = vmatprep.subr.mxu0 0.0
      %4721 = vmatpush1.msra.mxu0 0.0
      %4722 = vmatprep.subr.mxu0 0.0
      %4723 = vmatpush1.msra.mxu0 0.0
      %4724 = vmatprep.subr.mxu0 0.0
      %4725 = vmatpush1.msra.mxu0 0.0
      %4726 = vmatprep.subr.mxu0 0.0
      %4727 = vmatpush1.msra.mxu0 0.0
      %4728 = vmatprep.subr.mxu0 0.0
      %4729 = vmatpush1.msra.mxu0 0.0
      %4730 = vmatprep.subr.mxu0 0.0
      %4731 = vmatpush1.msra.mxu0 0.0
      %4732 = vmatprep.subr.mxu0 0.0
      %4733 = vmatpush1.msra.mxu0 0.0
      %4734 = vmatprep.subr.mxu0 0.0
      %4735 = vmatpush1.msra.mxu0 0.0
      %4736 = vmatprep.subr.mxu0 0.0
      %4737 = vmatpush1.msra.mxu0 0.0
      %4738 = vmatprep.subr.mxu0 0.0
      %4739 = vmatpush1.msra.mxu0 0.0
      %4740 = vmatprep.subr.mxu0 0.0
      %4741 = vmatpush1.msra.mxu0 0.0
      %4742 = vmatprep.subr.mxu0 0.0
      %4743 = vmatpush1.msra.mxu0 0.0
      %4744 = vmatprep.subr.mxu0 0.0
      %4745 = vmatpush1.msra.mxu0 0.0
      %4746 = vmatprep.subr.mxu0 0.0
      %4747 = vmatpush1.msra.mxu0 0.0
      %4748 = vmatprep.subr.mxu0 0.0
      %4749 = vmatpush1.msra.mxu0 0.0
      %4750 = vmatprep.mubr.f32.mxu0 0.0
      %4751 = vmatmul.mubr.f32.gmra.mrb[0].mxu0 %v4668
      %v4752 = vpop.f32.mrb[0].mxu0
      %v4753 = vadd.f32 0.0, %v4752
      %v4754 = vpop.f32.mrb[0].mxu0
      %v4755 = vadd.f32 0.0, %v4754
      %4756 = vdwg.mxu0
      %4757 = vmatprep.subr.mxu0 %v4676
      %4758 = vmatpush1.msra.mxu0 %v4674
      %4759 = vmatprep.subr.mxu0 0.0
      %4760 = vmatpush1.msra.mxu0 0.0
      %4761 = vmatprep.subr.mxu0 0.0
      %4762 = vmatpush1.msra.mxu0 0.0
      %4763 = vmatprep.subr.mxu0 0.0
      %4764 = vmatpush1.msra.mxu0 0.0
      %4765 = vmatprep.subr.mxu0 0.0
      %4766 = vmatpush1.msra.mxu0 0.0
      %4767 = vmatprep.subr.mxu0 0.0
      %4768 = vmatpush1.msra.mxu0 0.0
      %4769 = vmatprep.subr.mxu0 0.0
      %4770 = vmatpush1.msra.mxu0 0.0
      %4771 = vmatprep.subr.mxu0 0.0
      %4772 = vmatpush1.msra.mxu0 0.0
      %4773 = vmatprep.subr.mxu0 0.0
      %4774 = vmatpush1.msra.mxu0 0.0
      %4775 = vmatprep.subr.mxu0 0.0
      %4776 = vmatpush1.msra.mxu0 0.0
      %4777 = vmatprep.subr.mxu0 0.0
      %4778 = vmatpush1.msra.mxu0 0.0
      %4779 = vmatprep.subr.mxu0 0.0
      %4780 = vmatpush1.msra.mxu0 0.0
      %4781 = vmatprep.subr.mxu0 0.0
      %4782 = vmatpush1.msra.mxu0 0.0
      %4783 = vmatprep.subr.mxu0 0.0
      %4784 = vmatpush1.msra.mxu0 0.0
      %4785 = vmatprep.subr.mxu0 0.0
      %4786 = vmatpush1.msra.mxu0 0.0
      %4787 = vmatprep.subr.mxu0 0.0
      %4788 = vmatpush1.msra.mxu0 0.0
      %4789 = vmatprep.subr.mxu0 0.0
      %4790 = vmatpush1.msra.mxu0 0.0
      %4791 = vmatprep.subr.mxu0 0.0
      %4792 = vmatpush1.msra.mxu0 0.0
      %4793 = vmatprep.subr.mxu0 0.0
      %4794 = vmatpush1.msra.mxu0 0.0
      %4795 = vmatprep.subr.mxu0 0.0
      %4796 = vmatpush1.msra.mxu0 0.0
      %4797 = vmatprep.subr.mxu0 0.0
      %4798 = vmatpush1.msra.mxu0 0.0
      %4799 = vmatprep.subr.mxu0 0.0
      %4800 = vmatpush1.msra.mxu0 0.0
      %4801 = vmatprep.subr.mxu0 0.0
      %4802 = vmatpush1.msra.mxu0 0.0
      %4803 = vmatprep.subr.mxu0 0.0
      %4804 = vmatpush1.msra.mxu0 0.0
      %4805 = vmatprep.subr.mxu0 0.0
      %4806 = vmatpush1.msra.mxu0 0.0
      %4807 = vmatprep.subr.mxu0 0.0
      %4808 = vmatpush1.msra.mxu0 0.0
      %4809 = vmatprep.subr.mxu0 0.0
      %4810 = vmatpush1.msra.mxu0 0.0
      %4811 = vmatprep.subr.mxu0 0.0
      %4812 = vmatpush1.msra.mxu0 0.0
      %4813 = vmatprep.subr.mxu0 0.0
      %4814 = vmatpush1.msra.mxu0 0.0
      %4815 = vmatprep.subr.mxu0 0.0
      %4816 = vmatpush1.msra.mxu0 0.0
      %4817 = vmatprep.subr.mxu0 0.0
      %4818 = vmatpush1.msra.mxu0 0.0
      %4819 = vmatprep.subr.mxu0 0.0
      %4820 = vmatpush1.msra.mxu0 0.0
      %4821 = vmatprep.mubr.f32.mxu0 0.0
      %4822 = vmatmul.mubr.f32.gmra.mrb[0].mxu0 %v4668
      %v4823 = vpop.f32.mrb[0].mxu0
      %v4824 = vadd.f32 0.0, %v4823
      %v4825 = vpop.f32.mrb[0].mxu0
      %v4826 = vadd.f32 0.0, %v4825
      %4827 = vdwg.mxu0
      %4828 = vmatprep.subr.mxu0 %v4680
      %4829 = vmatpush1.msra.mxu0 %v4678
      %4830 = vmatprep.subr.mxu0 0.0
      %4831 = vmatpush1.msra.mxu0 0.0
      %4832 = vmatprep.subr.mxu0 0.0
      %4833 = vmatpush1.msra.mxu0 0.0
      %4834 = vmatprep.subr.mxu0 0.0
      %4835 = vmatpush1.msra.mxu0 0.0
      %4836 = vmatprep.subr.mxu0 0.0
      %4837 = vmatpush1.msra.mxu0 0.0
      %4838 = vmatprep.subr.mxu0 0.0
      %4839 = vmatpush1.msra.mxu0 0.0
      %4840 = vmatprep.subr.mxu0 0.0
      %4841 = vmatpush1.msra.mxu0 0.0
      %4842 = vmatprep.subr.mxu0 0.0
      %4843 = vmatpush1.msra.mxu0 0.0
      %4844 = vmatprep.subr.mxu0 0.0
      %4845 = vmatpush1.msra.mxu0 0.0
      %4846 = vmatprep.subr.mxu0 0.0
      %4847 = vmatpush1.msra.mxu0 0.0
      %4848 = vmatprep.subr.mxu0 0.0
      %4849 = vmatpush1.msra.mxu0 0.0
      %4850 = vmatprep.subr.mxu0 0.0
      %4851 = vmatpush1.msra.mxu0 0.0
      %4852 = vmatprep.subr.mxu0 0.0
      %4853 = vmatpush1.msra.mxu0 0.0
      %4854 = vmatprep.subr.mxu0 0.0
      %4855 = vmatpush1.msra.mxu0 0.0
      %4856 = vmatprep.subr.mxu0 0.0
      %4857 = vmatpush1.msra.mxu0 0.0
      %4858 = vmatprep.subr.mxu0 0.0
      %4859 = vmatpush1.msra.mxu0 0.0
      %4860 = vmatprep.subr.mxu0 0.0
      %4861 = vmatpush1.msra.mxu0 0.0
      %4862 = vmatprep.subr.mxu0 0.0
      %4863 = vmatpush1.msra.mxu0 0.0
      %4864 = vmatprep.subr.mxu0 0.0
      %4865 = vmatpush1.msra.mxu0 0.0
      %4866 = vmatprep.subr.mxu0 0.0
      %4867 = vmatpush1.msra.mxu0 0.0
      %4868 = vmatprep.subr.mxu0 0.0
      %4869 = vmatpush1.msra.mxu0 0.0
      %4870 = vmatprep.subr.mxu0 0.0
      %4871 = vmatpush1.msra.mxu0 0.0
      %4872 = vmatprep.subr.mxu0 0.0
      %4873 = vmatpush1.msra.mxu0 0.0
      %4874 = vmatprep.subr.mxu0 0.0
      %4875 = vmatpush1.msra.mxu0 0.0
      %4876 = vmatprep.subr.mxu0 0.0
      %4877 = vmatpush1.msra.mxu0 0.0
      %4878 = vmatprep.subr.mxu0 0.0
      %4879 = vmatpush1.msra.mxu0 0.0
      %4880 = vmatprep.subr.mxu0 0.0
      %4881 = vmatpush1.msra.mxu0 0.0
      %4882 = vmatprep.subr.mxu0 0.0
      %4883 = vmatpush1.msra.mxu0 0.0
      %4884 = vmatprep.subr.mxu0 0.0
      %4885 = vmatpush1.msra.mxu0 0.0
      %4886 = vmatprep.subr.mxu0 0.0
      %4887 = vmatpush1.msra.mxu0 0.0
      %4888 = vmatprep.subr.mxu0 0.0
      %4889 = vmatpush1.msra.mxu0 0.0
      %4890 = vmatprep.subr.mxu0 0.0
      %4891 = vmatpush1.msra.mxu0 0.0
      %4892 = vmatprep.mubr.f32.mxu0 0.0
      %4893 = vmatmul.mubr.f32.gmra.mrb[0].mxu0 %v4668
      %v4894 = vpop.f32.mrb[0].mxu0
      %v4895 = vadd.f32 0.0, %v4894
      %v4896 = vpop.f32.mrb[0].mxu0
      %v4897 = vadd.f32 0.0, %v4896
      %4898 = vdwg.mxu0
      %4899 = vmatprep.subr.mxu0 %v4684
      %4900 = vmatpush1.msra.mxu0 %v4682
      %4901 = vmatprep.subr.mxu0 0.0
      %4902 = vmatpush1.msra.mxu0 0.0
      %4903 = vmatprep.subr.mxu0 0.0
      %4904 = vmatpush1.msra.mxu0 0.0
      %4905 = vmatprep.subr.mxu0 0.0
      %4906 = vmatpush1.msra.mxu0 0.0
      %4907 = vmatprep.subr.mxu0 0.0
      %4908 = vmatpush1.msra.mxu0 0.0
      %4909 = vmatprep.subr.mxu0 0.0
      %4910 = vmatpush1.msra.mxu0 0.0
      %4911 = vmatprep.subr.mxu0 0.0
      %4912 = vmatpush1.msra.mxu0 0.0
      %4913 = vmatprep.subr.mxu0 0.0
      %4914 = vmatpush1.msra.mxu0 0.0
      %4915 = vmatprep.subr.mxu0 0.0
      %4916 = vmatpush1.msra.mxu0 0.0
      %4917 = vmatprep.subr.mxu0 0.0
      %4918 = vmatpush1.msra.mxu0 0.0
      %4919 = vmatprep.subr.mxu0 0.0
      %4920 = vmatpush1.msra.mxu0 0.0
      %4921 = vmatprep.subr.mxu0 0.0
      %4922 = vmatpush1.msra.mxu0 0.0
      %4923 = vmatprep.subr.mxu0 0.0
      %4924 = vmatpush1.msra.mxu0 0.0
      %4925 = vmatprep.subr.mxu0 0.0
      %4926 = vmatpush1.msra.mxu0 0.0
      %4927 = vmatprep.subr.mxu0 0.0
      %4928 = vmatpush1.msra.mxu0 0.0
      %4929 = vmatprep.subr.mxu0 0.0
      %4930 = vmatpush1.msra.mxu0 0.0
      %4931 = vmatprep.subr.mxu0 0.0
      %4932 = vmatpush1.msra.mxu0 0.0
      %4933 = vmatprep.subr.mxu0 0.0
      %4934 = vmatpush1.msra.mxu0 0.0
      %4935 = vmatprep.subr.mxu0 0.0
      %4936 = vmatpush1.msra.mxu0 0.0
      %4937 = vmatprep.subr.mxu0 0.0
      %4938 = vmatpush1.msra.mxu0 0.0
      %4939 = vmatprep.subr.mxu0 0.0
      %4940 = vmatpush1.msra.mxu0 0.0
      %4941 = vmatprep.subr.mxu0 0.0
      %4942 = vmatpush1.msra.mxu0 0.0
      %4943 = vmatprep.subr.mxu0 0.0
      %4944 = vmatpush1.msra.mxu0 0.0
      %4945 = vmatprep.subr.mxu0 0.0
      %4946 = vmatpush1.msra.mxu0 0.0
      %4947 = vmatprep.subr.mxu0 0.0
      %4948 = vmatpush1.msra.mxu0 0.0
      %4949 = vmatprep.subr.mxu0 0.0
      %4950 = vmatpush1.msra.mxu0 0.0
      %4951 = vmatprep.subr.mxu0 0.0
      %4952 = vmatpush1.msra.mxu0 0.0
      %4953 = vmatprep.subr.mxu0 0.0
      %4954 = vmatpush1.msra.mxu0 0.0
      %4955 = vmatprep.subr.mxu0 0.0
      %4956 = vmatpush1.msra.mxu0 0.0
      %4957 = vmatprep.subr.mxu0 0.0
      %4958 = vmatpush1.msra.mxu0 0.0
      %4959 = vmatprep.subr.mxu0 0.0
      %4960 = vmatpush1.msra.mxu0 0.0
      %4961 = vmatprep.subr.mxu0 0.0
      %4962 = vmatpush1.msra.mxu0 0.0
      %4963 = vmatprep.mubr.f32.mxu0 0.0
      %4964 = vmatmul.mubr.f32.gmra.mrb[0].mxu0 %v4668
      %v4965 = vpop.f32.mrb[0].mxu0
      %v4966 = vadd.f32 0.0, %v4965
      %v4967 = vpop.f32.mrb[0].mxu0
      %v4968 = vadd.f32 0.0, %v4967
      %4969 = vdwg.mxu0
      %v4970 = vadd.f32 %v4632, %v4753
      %v4971 = vadd.f32 %v4633, %v4755
      %v4972 = vadd.f32 %v4634, %v4824
      %v4973 = vadd.f32 %v4635, %v4826
      %v4974 = vadd.f32 %v4636, %v4895
      %v4975 = vadd.f32 %v4637, %v4897
      %v4976 = vadd.f32 %v4638, %v4966
      %v4977 = vadd.f32 %v4639, %v4968
      %4978 = vrot.lane.b32.xlu0 %v3383, 96
      %v4979 = vpop.permute.xlu0 %4978
      %4980 = vrot.lane.b32.xlu0 %v3386, 96
      %v4981 = vpop.permute.xlu0 %4980
      %4982 = vrot.lane.b32.xlu0 %v3389, 96
      %v4983 = vpop.permute.xlu0 %4982
      %4984 = vrot.lane.b32.xlu0 %v3392, 96
      %v4985 = vpop.permute.xlu0 %4984
      %4986 = vrot.lane.b32.xlu0 %v3443, 96
      %v4987 = vpop.permute.xlu0 %4986
      %4988 = vrot.lane.b32.xlu0 %v3446, 96
      %v4989 = vpop.permute.xlu0 %4988
      %4990 = vrot.lane.b32.xlu0 %v3449, 96
      %v4991 = vpop.permute.xlu0 %4990
      %4992 = vrot.lane.b32.xlu0 %v3452, 96
      %v4993 = vpop.permute.xlu0 %4992
      %4994 = vrot.lane.b32.xlu0 %v3457, 96
      %v4995 = vpop.permute.xlu0 %4994
      %v4996 = vsel %vm3382, %v4979, %v4981
      %v4997 = vsel %vm3382, %v4981, %v4983
      %v4998 = vsel %vm3382, %v4983, %v4985
      %v4999 = vsel %vm3382, %v4985, %v4987
      %v5000 = vsel %vm3382, %v4987, %v4989
      %v5001 = vsel %vm3382, %v4989, %v4991
      %v5002 = vsel %vm3382, %v4991, %v4993
      %v5003 = vsel %vm3382, %v4993, %v4995
      %v5005 = vsel %vm3705, %v3700, 0
      %v5007 = vsel %vm3709, %v4996, 0
      %v5009 = vsel %vm3709, %v4997, 0
      %v5011 = vsel %vm3709, %v4998, 0
      %v5013 = vsel %vm3709, %v4999, 0
      %v5015 = vsel %vm3709, %v5000, 0
      %v5017 = vsel %vm3709, %v5001, 0
      %v5019 = vsel %vm3709, %v5002, 0
      %v5021 = vsel %vm3709, %v5003, 0
      %5023 = vmatprep.subr.mxu0 %v5009
      %5024 = vmatpush1.msra.mxu0 %v5007
      %5025 = vmatprep.subr.mxu0 0.0
      %5026 = vmatpush1.msra.mxu0 0.0
      %5027 = vmatprep.subr.mxu0 0.0
      %5028 = vmatpush1.msra.mxu0 0.0
      %5029 = vmatprep.subr.mxu0 0.0
      %5030 = vmatpush1.msra.mxu0 0.0
      %5031 = vmatprep.subr.mxu0 0.0
      %5032 = vmatpush1.msra.mxu0 0.0
      %5033 = vmatprep.subr.mxu0 0.0
      %5034 = vmatpush1.msra.mxu0 0.0
      %5035 = vmatprep.subr.mxu0 0.0
      %5036 = vmatpush1.msra.mxu0 0.0
      %5037 = vmatprep.subr.mxu0 0.0
      %5038 = vmatpush1.msra.mxu0 0.0
      %5039 = vmatprep.subr.mxu0 0.0
      %5040 = vmatpush1.msra.mxu0 0.0
      %5041 = vmatprep.subr.mxu0 0.0
      %5042 = vmatpush1.msra.mxu0 0.0
      %5043 = vmatprep.subr.mxu0 0.0
      %5044 = vmatpush1.msra.mxu0 0.0
      %5045 = vmatprep.subr.mxu0 0.0
      %5046 = vmatpush1.msra.mxu0 0.0
      %5047 = vmatprep.subr.mxu0 0.0
      %5048 = vmatpush1.msra.mxu0 0.0
      %5049 = vmatprep.subr.mxu0 0.0
      %5050 = vmatpush1.msra.mxu0 0.0
      %5051 = vmatprep.subr.mxu0 0.0
      %5052 = vmatpush1.msra.mxu0 0.0
      %5053 = vmatprep.subr.mxu0 0.0
      %5054 = vmatpush1.msra.mxu0 0.0
      %5055 = vmatprep.subr.mxu0 0.0
      %5056 = vmatpush1.msra.mxu0 0.0
      %5057 = vmatprep.subr.mxu0 0.0
      %5058 = vmatpush1.msra.mxu0 0.0
      %5059 = vmatprep.subr.mxu0 0.0
      %5060 = vmatpush1.msra.mxu0 0.0
      %5061 = vmatprep.subr.mxu0 0.0
      %5062 = vmatpush1.msra.mxu0 0.0
      %5063 = vmatprep.subr.mxu0 0.0
      %5064 = vmatpush1.msra.mxu0 0.0
      %5065 = vmatprep.subr.mxu0 0.0
      %5066 = vmatpush1.msra.mxu0 0.0
      %5067 = vmatprep.subr.mxu0 0.0
      %5068 = vmatpush1.msra.mxu0 0.0
      %5069 = vmatprep.subr.mxu0 0.0
      %5070 = vmatpush1.msra.mxu0 0.0
      %5071 = vmatprep.subr.mxu0 0.0
      %5072 = vmatpush1.msra.mxu0 0.0
      %5073 = vmatprep.subr.mxu0 0.0
      %5074 = vmatpush1.msra.mxu0 0.0
      %5075 = vmatprep.subr.mxu0 0.0
      %5076 = vmatpush1.msra.mxu0 0.0
      %5077 = vmatprep.subr.mxu0 0.0
      %5078 = vmatpush1.msra.mxu0 0.0
      %5079 = vmatprep.subr.mxu0 0.0
      %5080 = vmatpush1.msra.mxu0 0.0
      %5081 = vmatprep.subr.mxu0 0.0
      %5082 = vmatpush1.msra.mxu0 0.0
      %5083 = vmatprep.subr.mxu0 0.0
      %5084 = vmatpush1.msra.mxu0 0.0
      %5085 = vmatprep.subr.mxu0 0.0
      %5086 = vmatpush1.msra.mxu0 0.0
      %5087 = vmatprep.mubr.f32.mxu0 0.0
      %5088 = vmatmul.mubr.f32.gmra.mrb[0].mxu0 %v5005
      %v5089 = vpop.f32.mrb[0].mxu0
      %v5090 = vadd.f32 0.0, %v5089
      %v5091 = vpop.f32.mrb[0].mxu0
      %v5092 = vadd.f32 0.0, %v5091
      %5093 = vdwg.mxu0
      %5094 = vmatprep.subr.mxu0 %v5013
      %5095 = vmatpush1.msra.mxu0 %v5011
      %5096 = vmatprep.subr.mxu0 0.0
      %5097 = vmatpush1.msra.mxu0 0.0
      %5098 = vmatprep.subr.mxu0 0.0
      %5099 = vmatpush1.msra.mxu0 0.0
      %5100 = vmatprep.subr.mxu0 0.0
      %5101 = vmatpush1.msra.mxu0 0.0
      %5102 = vmatprep.subr.mxu0 0.0
      %5103 = vmatpush1.msra.mxu0 0.0
      %5104 = vmatprep.subr.mxu0 0.0
      %5105 = vmatpush1.msra.mxu0 0.0
      %5106 = vmatprep.subr.mxu0 0.0
      %5107 = vmatpush1.msra.mxu0 0.0
      %5108 = vmatprep.subr.mxu0 0.0
      %5109 = vmatpush1.msra.mxu0 0.0
      %5110 = vmatprep.subr.mxu0 0.0
      %5111 = vmatpush1.msra.mxu0 0.0
      %5112 = vmatprep.subr.mxu0 0.0
      %5113 = vmatpush1.msra.mxu0 0.0
      %5114 = vmatprep.subr.mxu0 0.0
      %5115 = vmatpush1.msra.mxu0 0.0
      %5116 = vmatprep.subr.mxu0 0.0
      %5117 = vmatpush1.msra.mxu0 0.0
      %5118 = vmatprep.subr.mxu0 0.0
      %5119 = vmatpush1.msra.mxu0 0.0
      %5120 = vmatprep.subr.mxu0 0.0
      %5121 = vmatpush1.msra.mxu0 0.0
      %5122 = vmatprep.subr.mxu0 0.0
      %5123 = vmatpush1.msra.mxu0 0.0
      %5124 = vmatprep.subr.mxu0 0.0
      %5125 = vmatpush1.msra.mxu0 0.0
      %5126 = vmatprep.subr.mxu0 0.0
      %5127 = vmatpush1.msra.mxu0 0.0
      %5128 = vmatprep.subr.mxu0 0.0
      %5129 = vmatpush1.msra.mxu0 0.0
      %5130 = vmatprep.subr.mxu0 0.0
      %5131 = vmatpush1.msra.mxu0 0.0
      %5132 = vmatprep.subr.mxu0 0.0
      %5133 = vmatpush1.msra.mxu0 0.0
      %5134 = vmatprep.subr.mxu0 0.0
      %5135 = vmatpush1.msra.mxu0 0.0
      %5136 = vmatprep.subr.mxu0 0.0
      %5137 = vmatpush1.msra.mxu0 0.0
      %5138 = vmatprep.subr.mxu0 0.0
      %5139 = vmatpush1.msra.mxu0 0.0
      %5140 = vmatprep.subr.mxu0 0.0
      %5141 = vmatpush1.msra.mxu0 0.0
      %5142 = vmatprep.subr.mxu0 0.0
      %5143 = vmatpush1.msra.mxu0 0.0
      %5144 = vmatprep.subr.mxu0 0.0
      %5145 = vmatpush1.msra.mxu0 0.0
      %5146 = vmatprep.subr.mxu0 0.0
      %5147 = vmatpush1.msra.mxu0 0.0
      %5148 = vmatprep.subr.mxu0 0.0
      %5149 = vmatpush1.msra.mxu0 0.0
      %5150 = vmatprep.subr.mxu0 0.0
      %5151 = vmatpush1.msra.mxu0 0.0
      %5152 = vmatprep.subr.mxu0 0.0
      %5153 = vmatpush1.msra.mxu0 0.0
      %5154 = vmatprep.subr.mxu0 0.0
      %5155 = vmatpush1.msra.mxu0 0.0
      %5156 = vmatprep.subr.mxu0 0.0
      %5157 = vmatpush1.msra.mxu0 0.0
      %5158 = vmatprep.mubr.f32.mxu0 0.0
      %5159 = vmatmul.mubr.f32.gmra.mrb[0].mxu0 %v5005
      %v5160 = vpop.f32.mrb[0].mxu0
      %v5161 = vadd.f32 0.0, %v5160
      %v5162 = vpop.f32.mrb[0].mxu0
      %v5163 = vadd.f32 0.0, %v5162
      %5164 = vdwg.mxu0
      %5165 = vmatprep.subr.mxu0 %v5017
      %5166 = vmatpush1.msra.mxu0 %v5015
      %5167 = vmatprep.subr.mxu0 0.0
      %5168 = vmatpush1.msra.mxu0 0.0
      %5169 = vmatprep.subr.mxu0 0.0
      %5170 = vmatpush1.msra.mxu0 0.0
      %5171 = vmatprep.subr.mxu0 0.0
      %5172 = vmatpush1.msra.mxu0 0.0
      %5173 = vmatprep.subr.mxu0 0.0
      %5174 = vmatpush1.msra.mxu0 0.0
      %5175 = vmatprep.subr.mxu0 0.0
      %5176 = vmatpush1.msra.mxu0 0.0
      %5177 = vmatprep.subr.mxu0 0.0
      %5178 = vmatpush1.msra.mxu0 0.0
      %5179 = vmatprep.subr.mxu0 0.0
      %5180 = vmatpush1.msra.mxu0 0.0
      %5181 = vmatprep.subr.mxu0 0.0
      %5182 = vmatpush1.msra.mxu0 0.0
      %5183 = vmatprep.subr.mxu0 0.0
      %5184 = vmatpush1.msra.mxu0 0.0
      %5185 = vmatprep.subr.mxu0 0.0
      %5186 = vmatpush1.msra.mxu0 0.0
      %5187 = vmatprep.subr.mxu0 0.0
      %5188 = vmatpush1.msra.mxu0 0.0
      %5189 = vmatprep.subr.mxu0 0.0
      %5190 = vmatpush1.msra.mxu0 0.0
      %5191 = vmatprep.subr.mxu0 0.0
      %5192 = vmatpush1.msra.mxu0 0.0
      %5193 = vmatprep.subr.mxu0 0.0
      %5194 = vmatpush1.msra.mxu0 0.0
      %5195 = vmatprep.subr.mxu0 0.0
      %5196 = vmatpush1.msra.mxu0 0.0
      %5197 = vmatprep.subr.mxu0 0.0
      %5198 = vmatpush1.msra.mxu0 0.0
      %5199 = vmatprep.subr.mxu0 0.0
      %5200 = vmatpush1.msra.mxu0 0.0
      %5201 = vmatprep.subr.mxu0 0.0
      %5202 = vmatpush1.msra.mxu0 0.0
      %5203 = vmatprep.subr.mxu0 0.0
      %5204 = vmatpush1.msra.mxu0 0.0
      %5205 = vmatprep.subr.mxu0 0.0
      %5206 = vmatpush1.msra.mxu0 0.0
      %5207 = vmatprep.subr.mxu0 0.0
      %5208 = vmatpush1.msra.mxu0 0.0
      %5209 = vmatprep.subr.mxu0 0.0
      %5210 = vmatpush1.msra.mxu0 0.0
      %5211 = vmatprep.subr.mxu0 0.0
      %5212 = vmatpush1.msra.mxu0 0.0
      %5213 = vmatprep.subr.mxu0 0.0
      %5214 = vmatpush1.msra.mxu0 0.0
      %5215 = vmatprep.subr.mxu0 0.0
      %5216 = vmatpush1.msra.mxu0 0.0
      %5217 = vmatprep.subr.mxu0 0.0
      %5218 = vmatpush1.msra.mxu0 0.0
      %5219 = vmatprep.subr.mxu0 0.0
      %5220 = vmatpush1.msra.mxu0 0.0
      %5221 = vmatprep.subr.mxu0 0.0
      %5222 = vmatpush1.msra.mxu0 0.0
      %5223 = vmatprep.subr.mxu0 0.0
      %5224 = vmatpush1.msra.mxu0 0.0
      %5225 = vmatprep.subr.mxu0 0.0
      %5226 = vmatpush1.msra.mxu0 0.0
      %5227 = vmatprep.subr.mxu0 0.0
      %5228 = vmatpush1.msra.mxu0 0.0
      %5229 = vmatprep.mubr.f32.mxu0 0.0
      %5230 = vmatmul.mubr.f32.gmra.mrb[0].mxu0 %v5005
      %v5231 = vpop.f32.mrb[0].mxu0
      %v5232 = vadd.f32 0.0, %v5231
      %v5233 = vpop.f32.mrb[0].mxu0
      %v5234 = vadd.f32 0.0, %v5233
      %5235 = vdwg.mxu0
      %5236 = vmatprep.subr.mxu0 %v5021
      %5237 = vmatpush1.msra.mxu0 %v5019
      %5238 = vmatprep.subr.mxu0 0.0
      %5239 = vmatpush1.msra.mxu0 0.0
      %5240 = vmatprep.subr.mxu0 0.0
      %5241 = vmatpush1.msra.mxu0 0.0
      %5242 = vmatprep.subr.mxu0 0.0
      %5243 = vmatpush1.msra.mxu0 0.0
      %5244 = vmatprep.subr.mxu0 0.0
      %5245 = vmatpush1.msra.mxu0 0.0
      %5246 = vmatprep.subr.mxu0 0.0
      %5247 = vmatpush1.msra.mxu0 0.0
      %5248 = vmatprep.subr.mxu0 0.0
      %5249 = vmatpush1.msra.mxu0 0.0
      %5250 = vmatprep.subr.mxu0 0.0
      %5251 = vmatpush1.msra.mxu0 0.0
      %5252 = vmatprep.subr.mxu0 0.0
      %5253 = vmatpush1.msra.mxu0 0.0
      %5254 = vmatprep.subr.mxu0 0.0
      %5255 = vmatpush1.msra.mxu0 0.0
      %5256 = vmatprep.subr.mxu0 0.0
      %5257 = vmatpush1.msra.mxu0 0.0
      %5258 = vmatprep.subr.mxu0 0.0
      %5259 = vmatpush1.msra.mxu0 0.0
      %5260 = vmatprep.subr.mxu0 0.0
      %5261 = vmatpush1.msra.mxu0 0.0
      %5262 = vmatprep.subr.mxu0 0.0
      %5263 = vmatpush1.msra.mxu0 0.0
      %5264 = vmatprep.subr.mxu0 0.0
      %5265 = vmatpush1.msra.mxu0 0.0
      %5266 = vmatprep.subr.mxu0 0.0
      %5267 = vmatpush1.msra.mxu0 0.0
      %5268 = vmatprep.subr.mxu0 0.0
      %5269 = vmatpush1.msra.mxu0 0.0
      %5270 = vmatprep.subr.mxu0 0.0
      %5271 = vmatpush1.msra.mxu0 0.0
      %5272 = vmatprep.subr.mxu0 0.0
      %5273 = vmatpush1.msra.mxu0 0.0
      %5274 = vmatprep.subr.mxu0 0.0
      %5275 = vmatpush1.msra.mxu0 0.0
      %5276 = vmatprep.subr.mxu0 0.0
      %5277 = vmatpush1.msra.mxu0 0.0
      %5278 = vmatprep.subr.mxu0 0.0
      %5279 = vmatpush1.msra.mxu0 0.0
      %5280 = vmatprep.subr.mxu0 0.0
      %5281 = vmatpush1.msra.mxu0 0.0
      %5282 = vmatprep.subr.mxu0 0.0
      %5283 = vmatpush1.msra.mxu0 0.0
      %5284 = vmatprep.subr.mxu0 0.0
      %5285 = vmatpush1.msra.mxu0 0.0
      %5286 = vmatprep.subr.mxu0 0.0
      %5287 = vmatpush1.msra.mxu0 0.0
      %5288 = vmatprep.subr.mxu0 0.0
      %5289 = vmatpush1.msra.mxu0 0.0
      %5290 = vmatprep.subr.mxu0 0.0
      %5291 = vmatpush1.msra.mxu0 0.0
      %5292 = vmatprep.subr.mxu0 0.0
      %5293 = vmatpush1.msra.mxu0 0.0
      %5294 = vmatprep.subr.mxu0 0.0
      %5295 = vmatpush1.msra.mxu0 0.0
      %5296 = vmatprep.subr.mxu0 0.0
      %5297 = vmatpush1.msra.mxu0 0.0
      %5298 = vmatprep.subr.mxu0 0.0
      %5299 = vmatpush1.msra.mxu0 0.0
      %5300 = vmatprep.mubr.f32.mxu0 0.0
      %5301 = vmatmul.mubr.f32.gmra.mrb[0].mxu0 %v5005
      %v5302 = vpop.f32.mrb[0].mxu0
      %v5303 = vadd.f32 0.0, %v5302
      %v5304 = vpop.f32.mrb[0].mxu0
      %v5305 = vadd.f32 0.0, %v5304
      %5306 = vdwg.mxu0
      %v5307 = vadd.f32 %v4970, %v5090
      %v5308 = vadd.f32 %v4971, %v5092
      %v5309 = vadd.f32 %v4972, %v5161
      %v5310 = vadd.f32 %v4973, %v5163
      %v5311 = vadd.f32 %v4974, %v5232
      %v5312 = vadd.f32 %v4975, %v5234
      %v5313 = vadd.f32 %v4976, %v5303
      %v5314 = vadd.f32 %v4977, %v5305
      %5316 = vrot.lane.b32.xlu0 %v3687, 96
      %v5317 = vpop.permute.xlu0 %5316
      %5318 = vrot.lane.b32.xlu0 %v3688, 96
      %v5319 = vpop.permute.xlu0 %5318
      %5320 = vrot.lane.b32.xlu0 %v3689, 96
      %v5321 = vpop.permute.xlu0 %5320
      %5322 = vrot.lane.b32.xlu0 %v3690, 96
      %v5323 = vpop.permute.xlu0 %5322
      %5324 = vrot.lane.b32.xlu0 %v3691, 96
      %v5325 = vpop.permute.xlu0 %5324
      %5326 = vrot.lane.b32.xlu0 %v3692, 96
      %v5327 = vpop.permute.xlu0 %5326
      %5328 = vrot.lane.b32.xlu0 %v3693, 96
      %v5329 = vpop.permute.xlu0 %5328
      %5330 = vrot.lane.b32.xlu0 %v3694, 96
      %v5331 = vpop.permute.xlu0 %5330
      %5332 = vrot.lane.b32.xlu0 %v3695, 96
      %v5333 = vpop.permute.xlu0 %5332
      %v5334 = vsel %vm3382, %v5317, %v5319
      %v5335 = vsel %vm3382, %v5319, %v5321
      %v5336 = vsel %vm3382, %v5321, %v5323
      %v5337 = vsel %vm3382, %v5323, %v5325
      %v5338 = vsel %vm3382, %v5325, %v5327
      %v5339 = vsel %vm3382, %v5327, %v5329
      %v5340 = vsel %vm3382, %v5329, %v5331
      %v5341 = vsel %vm3382, %v5331, %v5333
      %v5343 = vsel %vm3705, %v3701, 0
      %v5345 = vsel %vm3709, %v5334, 0
      %v5347 = vsel %vm3709, %v5335, 0
      %v5349 = vsel %vm3709, %v5336, 0
      %v5351 = vsel %vm3709, %v5337, 0
      %v5353 = vsel %vm3709, %v5338, 0
      %v5355 = vsel %vm3709, %v5339, 0
      %v5357 = vsel %vm3709, %v5340, 0
      %v5359 = vsel %vm3709, %v5341, 0
      %5361 = vmatprep.subr.mxu0 %v5347
      %5362 = vmatpush1.msra.mxu0 %v5345
      %5363 = vmatprep.subr.mxu0 0.0
      %5364 = vmatpush1.msra.mxu0 0.0
      %5365 = vmatprep.subr.mxu0 0.0
      %5366 = vmatpush1.msra.mxu0 0.0
      %5367 = vmatprep.subr.mxu0 0.0
      %5368 = vmatpush1.msra.mxu0 0.0
      %5369 = vmatprep.subr.mxu0 0.0
      %5370 = vmatpush1.msra.mxu0 0.0
      %5371 = vmatprep.subr.mxu0 0.0
      %5372 = vmatpush1.msra.mxu0 0.0
      %5373 = vmatprep.subr.mxu0 0.0
      %5374 = vmatpush1.msra.mxu0 0.0
      %5375 = vmatprep.subr.mxu0 0.0
      %5376 = vmatpush1.msra.mxu0 0.0
      %5377 = vmatprep.subr.mxu0 0.0
      %5378 = vmatpush1.msra.mxu0 0.0
      %5379 = vmatprep.subr.mxu0 0.0
      %5380 = vmatpush1.msra.mxu0 0.0
      %5381 = vmatprep.subr.mxu0 0.0
      %5382 = vmatpush1.msra.mxu0 0.0
      %5383 = vmatprep.subr.mxu0 0.0
      %5384 = vmatpush1.msra.mxu0 0.0
      %5385 = vmatprep.subr.mxu0 0.0
      %5386 = vmatpush1.msra.mxu0 0.0
      %5387 = vmatprep.subr.mxu0 0.0
      %5388 = vmatpush1.msra.mxu0 0.0
      %5389 = vmatprep.subr.mxu0 0.0
      %5390 = vmatpush1.msra.mxu0 0.0
      %5391 = vmatprep.subr.mxu0 0.0
      %5392 = vmatpush1.msra.mxu0 0.0
      %5393 = vmatprep.subr.mxu0 0.0
      %5394 = vmatpush1.msra.mxu0 0.0
      %5395 = vmatprep.subr.mxu0 0.0
      %5396 = vmatpush1.msra.mxu0 0.0
      %5397 = vmatprep.subr.mxu0 0.0
      %5398 = vmatpush1.msra.mxu0 0.0
      %5399 = vmatprep.subr.mxu0 0.0
      %5400 = vmatpush1.msra.mxu0 0.0
      %5401 = vmatprep.subr.mxu0 0.0
      %5402 = vmatpush1.msra.mxu0 0.0
      %5403 = vmatprep.subr.mxu0 0.0
      %5404 = vmatpush1.msra.mxu0 0.0
      %5405 = vmatprep.subr.mxu0 0.0
      %5406 = vmatpush1.msra.mxu0 0.0
      %5407 = vmatprep.subr.mxu0 0.0
      %5408 = vmatpush1.msra.mxu0 0.0
      %5409 = vmatprep.subr.mxu0 0.0
      %5410 = vmatpush1.msra.mxu0 0.0
      %5411 = vmatprep.subr.mxu0 0.0
      %5412 = vmatpush1.msra.mxu0 0.0
      %5413 = vmatprep.subr.mxu0 0.0
      %5414 = vmatpush1.msra.mxu0 0.0
      %5415 = vmatprep.subr.mxu0 0.0
      %5416 = vmatpush1.msra.mxu0 0.0
      %5417 = vmatprep.subr.mxu0 0.0
      %5418 = vmatpush1.msra.mxu0 0.0
      %5419 = vmatprep.subr.mxu0 0.0
      %5420 = vmatpush1.msra.mxu0 0.0
      %5421 = vmatprep.subr.mxu0 0.0
      %5422 = vmatpush1.msra.mxu0 0.0
      %5423 = vmatprep.subr.mxu0 0.0
      %5424 = vmatpush1.msra.mxu0 0.0
      %5425 = vmatprep.mubr.f32.mxu0 0.0
      %5426 = vmatmul.mubr.f32.gmra.mrb[0].mxu0 %v5343
      %v5427 = vpop.f32.mrb[0].mxu0
      %v5428 = vadd.f32 0.0, %v5427
      %v5429 = vpop.f32.mrb[0].mxu0
      %v5430 = vadd.f32 0.0, %v5429
      %5431 = vdwg.mxu0
      %5432 = vmatprep.subr.mxu0 %v5351
      %5433 = vmatpush1.msra.mxu0 %v5349
      %5434 = vmatprep.subr.mxu0 0.0
      %5435 = vmatpush1.msra.mxu0 0.0
      %5436 = vmatprep.subr.mxu0 0.0
      %5437 = vmatpush1.msra.mxu0 0.0
      %5438 = vmatprep.subr.mxu0 0.0
      %5439 = vmatpush1.msra.mxu0 0.0
      %5440 = vmatprep.subr.mxu0 0.0
      %5441 = vmatpush1.msra.mxu0 0.0
      %5442 = vmatprep.subr.mxu0 0.0
      %5443 = vmatpush1.msra.mxu0 0.0
      %5444 = vmatprep.subr.mxu0 0.0
      %5445 = vmatpush1.msra.mxu0 0.0
      %5446 = vmatprep.subr.mxu0 0.0
      %5447 = vmatpush1.msra.mxu0 0.0
      %5448 = vmatprep.subr.mxu0 0.0
      %5449 = vmatpush1.msra.mxu0 0.0
      %5450 = vmatprep.subr.mxu0 0.0
      %5451 = vmatpush1.msra.mxu0 0.0
      %5452 = vmatprep.subr.mxu0 0.0
      %5453 = vmatpush1.msra.mxu0 0.0
      %5454 = vmatprep.subr.mxu0 0.0
      %5455 = vmatpush1.msra.mxu0 0.0
      %5456 = vmatprep.subr.mxu0 0.0
      %5457 = vmatpush1.msra.mxu0 0.0
      %5458 = vmatprep.subr.mxu0 0.0
      %5459 = vmatpush1.msra.mxu0 0.0
      %5460 = vmatprep.subr.mxu0 0.0
      %5461 = vmatpush1.msra.mxu0 0.0
      %5462 = vmatprep.subr.mxu0 0.0
      %5463 = vmatpush1.msra.mxu0 0.0
      %5464 = vmatprep.subr.mxu0 0.0
      %5465 = vmatpush1.msra.mxu0 0.0
      %5466 = vmatprep.subr.mxu0 0.0
      %5467 = vmatpush1.msra.mxu0 0.0
      %5468 = vmatprep.subr.mxu0 0.0
      %5469 = vmatpush1.msra.mxu0 0.0
      %5470 = vmatprep.subr.mxu0 0.0
      %5471 = vmatpush1.msra.mxu0 0.0
      %5472 = vmatprep.subr.mxu0 0.0
      %5473 = vmatpush1.msra.mxu0 0.0
      %5474 = vmatprep.subr.mxu0 0.0
      %5475 = vmatpush1.msra.mxu0 0.0
      %5476 = vmatprep.subr.mxu0 0.0
      %5477 = vmatpush1.msra.mxu0 0.0
      %5478 = vmatprep.subr.mxu0 0.0
      %5479 = vmatpush1.msra.mxu0 0.0
      %5480 = vmatprep.subr.mxu0 0.0
      %5481 = vmatpush1.msra.mxu0 0.0
      %5482 = vmatprep.subr.mxu0 0.0
      %5483 = vmatpush1.msra.mxu0 0.0
      %5484 = vmatprep.subr.mxu0 0.0
      %5485 = vmatpush1.msra.mxu0 0.0
      %5486 = vmatprep.subr.mxu0 0.0
      %5487 = vmatpush1.msra.mxu0 0.0
      %5488 = vmatprep.subr.mxu0 0.0
      %5489 = vmatpush1.msra.mxu0 0.0
      %5490 = vmatprep.subr.mxu0 0.0
      %5491 = vmatpush1.msra.mxu0 0.0
      %5492 = vmatprep.subr.mxu0 0.0
      %5493 = vmatpush1.msra.mxu0 0.0
      %5494 = vmatprep.subr.mxu0 0.0
      %5495 = vmatpush1.msra.mxu0 0.0
      %5496 = vmatprep.mubr.f32.mxu0 0.0
      %5497 = vmatmul.mubr.f32.gmra.mrb[0].mxu0 %v5343
      %v5498 = vpop.f32.mrb[0].mxu0
      %v5499 = vadd.f32 0.0, %v5498
      %v5500 = vpop.f32.mrb[0].mxu0
      %v5501 = vadd.f32 0.0, %v5500
      %5502 = vdwg.mxu0
      %5503 = vmatprep.subr.mxu0 %v5355
      %5504 = vmatpush1.msra.mxu0 %v5353
      %5505 = vmatprep.subr.mxu0 0.0
      %5506 = vmatpush1.msra.mxu0 0.0
      %5507 = vmatprep.subr.mxu0 0.0
      %5508 = vmatpush1.msra.mxu0 0.0
      %5509 = vmatprep.subr.mxu0 0.0
      %5510 = vmatpush1.msra.mxu0 0.0
      %5511 = vmatprep.subr.mxu0 0.0
      %5512 = vmatpush1.msra.mxu0 0.0
      %5513 = vmatprep.subr.mxu0 0.0
      %5514 = vmatpush1.msra.mxu0 0.0
      %5515 = vmatprep.subr.mxu0 0.0
      %5516 = vmatpush1.msra.mxu0 0.0
      %5517 = vmatprep.subr.mxu0 0.0
      %5518 = vmatpush1.msra.mxu0 0.0
      %5519 = vmatprep.subr.mxu0 0.0
      %5520 = vmatpush1.msra.mxu0 0.0
      %5521 = vmatprep.subr.mxu0 0.0
      %5522 = vmatpush1.msra.mxu0 0.0
      %5523 = vmatprep.subr.mxu0 0.0
      %5524 = vmatpush1.msra.mxu0 0.0
      %5525 = vmatprep.subr.mxu0 0.0
      %5526 = vmatpush1.msra.mxu0 0.0
      %5527 = vmatprep.subr.mxu0 0.0
      %5528 = vmatpush1.msra.mxu0 0.0
      %5529 = vmatprep.subr.mxu0 0.0
      %5530 = vmatpush1.msra.mxu0 0.0
      %5531 = vmatprep.subr.mxu0 0.0
      %5532 = vmatpush1.msra.mxu0 0.0
      %5533 = vmatprep.subr.mxu0 0.0
      %5534 = vmatpush1.msra.mxu0 0.0
      %5535 = vmatprep.subr.mxu0 0.0
      %5536 = vmatpush1.msra.mxu0 0.0
      %5537 = vmatprep.subr.mxu0 0.0
      %5538 = vmatpush1.msra.mxu0 0.0
      %5539 = vmatprep.subr.mxu0 0.0
      %5540 = vmatpush1.msra.mxu0 0.0
      %5541 = vmatprep.subr.mxu0 0.0
      %5542 = vmatpush1.msra.mxu0 0.0
      %5543 = vmatprep.subr.mxu0 0.0
      %5544 = vmatpush1.msra.mxu0 0.0
      %5545 = vmatprep.subr.mxu0 0.0
      %5546 = vmatpush1.msra.mxu0 0.0
      %5547 = vmatprep.subr.mxu0 0.0
      %5548 = vmatpush1.msra.mxu0 0.0
      %5549 = vmatprep.subr.mxu0 0.0
      %5550 = vmatpush1.msra.mxu0 0.0
      %5551 = vmatprep.subr.mxu0 0.0
      %5552 = vmatpush1.msra.mxu0 0.0
      %5553 = vmatprep.subr.mxu0 0.0
      %5554 = vmatpush1.msra.mxu0 0.0
      %5555 = vmatprep.subr.mxu0 0.0
      %5556 = vmatpush1.msra.mxu0 0.0
      %5557 = vmatprep.subr.mxu0 0.0
      %5558 = vmatpush1.msra.mxu0 0.0
      %5559 = vmatprep.subr.mxu0 0.0
      %5560 = vmatpush1.msra.mxu0 0.0
      %5561 = vmatprep.subr.mxu0 0.0
      %5562 = vmatpush1.msra.mxu0 0.0
      %5563 = vmatprep.subr.mxu0 0.0
      %5564 = vmatpush1.msra.mxu0 0.0
      %5565 = vmatprep.subr.mxu0 0.0
      %5566 = vmatpush1.msra.mxu0 0.0
      %5567 = vmatprep.mubr.f32.mxu0 0.0
      %5568 = vmatmul.mubr.f32.gmra.mrb[0].mxu0 %v5343
      %v5569 = vpop.f32.mrb[0].mxu0
      %v5570 = vadd.f32 0.0, %v5569
      %v5571 = vpop.f32.mrb[0].mxu0
      %v5572 = vadd.f32 0.0, %v5571
      %5573 = vdwg.mxu0
      %5574 = vmatprep.subr.mxu0 %v5359
      %5575 = vmatpush1.msra.mxu0 %v5357
      %5576 = vmatprep.subr.mxu0 0.0
      %5577 = vmatpush1.msra.mxu0 0.0
      %5578 = vmatprep.subr.mxu0 0.0
      %5579 = vmatpush1.msra.mxu0 0.0
      %5580 = vmatprep.subr.mxu0 0.0
      %5581 = vmatpush1.msra.mxu0 0.0
      %5582 = vmatprep.subr.mxu0 0.0
      %5583 = vmatpush1.msra.mxu0 0.0
      %5584 = vmatprep.subr.mxu0 0.0
      %5585 = vmatpush1.msra.mxu0 0.0
      %5586 = vmatprep.subr.mxu0 0.0
      %5587 = vmatpush1.msra.mxu0 0.0
      %5588 = vmatprep.subr.mxu0 0.0
      %5589 = vmatpush1.msra.mxu0 0.0
      %5590 = vmatprep.subr.mxu0 0.0
      %5591 = vmatpush1.msra.mxu0 0.0
      %5592 = vmatprep.subr.mxu0 0.0
      %5593 = vmatpush1.msra.mxu0 0.0
      %5594 = vmatprep.subr.mxu0 0.0
      %5595 = vmatpush1.msra.mxu0 0.0
      %5596 = vmatprep.subr.mxu0 0.0
      %5597 = vmatpush1.msra.mxu0 0.0
      %5598 = vmatprep.subr.mxu0 0.0
      %5599 = vmatpush1.msra.mxu0 0.0
      %5600 = vmatprep.subr.mxu0 0.0
      %5601 = vmatpush1.msra.mxu0 0.0
      %5602 = vmatprep.subr.mxu0 0.0
      %5603 = vmatpush1.msra.mxu0 0.0
      %5604 = vmatprep.subr.mxu0 0.0
      %5605 = vmatpush1.msra.mxu0 0.0
      %5606 = vmatprep.subr.mxu0 0.0
      %5607 = vmatpush1.msra.mxu0 0.0
      %5608 = vmatprep.subr.mxu0 0.0
      %5609 = vmatpush1.msra.mxu0 0.0
      %5610 = vmatprep.subr.mxu0 0.0
      %5611 = vmatpush1.msra.mxu0 0.0
      %5612 = vmatprep.subr.mxu0 0.0
      %5613 = vmatpush1.msra.mxu0 0.0
      %5614 = vmatprep.subr.mxu0 0.0
      %5615 = vmatpush1.msra.mxu0 0.0
      %5616 = vmatprep.subr.mxu0 0.0
      %5617 = vmatpush1.msra.mxu0 0.0
      %5618 = vmatprep.subr.mxu0 0.0
      %5619 = vmatpush1.msra.mxu0 0.0
      %5620 = vmatprep.subr.mxu0 0.0
      %5621 = vmatpush1.msra.mxu0 0.0
      %5622 = vmatprep.subr.mxu0 0.0
      %5623 = vmatpush1.msra.mxu0 0.0
      %5624 = vmatprep.subr.mxu0 0.0
      %5625 = vmatpush1.msra.mxu0 0.0
      %5626 = vmatprep.subr.mxu0 0.0
      %5627 = vmatpush1.msra.mxu0 0.0
      %5628 = vmatprep.subr.mxu0 0.0
      %5629 = vmatpush1.msra.mxu0 0.0
      %5630 = vmatprep.subr.mxu0 0.0
      %5631 = vmatpush1.msra.mxu0 0.0
      %5632 = vmatprep.subr.mxu0 0.0
      %5633 = vmatpush1.msra.mxu0 0.0
      %5634 = vmatprep.subr.mxu0 0.0
      %5635 = vmatpush1.msra.mxu0 0.0
      %5636 = vmatprep.subr.mxu0 0.0
      %5637 = vmatpush1.msra.mxu0 0.0
      %5638 = vmatprep.mubr.f32.mxu0 0.0
      %5639 = vmatmul.mubr.f32.gmra.mrb[0].mxu0 %v5343
      %v5640 = vpop.f32.mrb[0].mxu0
      %v5641 = vadd.f32 0.0, %v5640
      %v5642 = vpop.f32.mrb[0].mxu0
      %v5643 = vadd.f32 0.0, %v5642
      %5644 = vdwg.mxu0
      %v5645 = vadd.f32 %v5307, %v5428
      %v5646 = vadd.f32 %v5308, %v5430
      %v5647 = vadd.f32 %v5309, %v5499
      %v5648 = vadd.f32 %v5310, %v5501
      %v5649 = vadd.f32 %v5311, %v5570
      %v5650 = vadd.f32 %v5312, %v5572
      %v5651 = vadd.f32 %v5313, %v5641
      %v5652 = vadd.f32 %v5314, %v5643
      %5653 = vrot.lane.b32.xlu0 %v3631, 64
      %v5654 = vpop.permute.xlu0 %5653
      %5655 = vrot.lane.b32.xlu0 %v3632, 64
      %v5656 = vpop.permute.xlu0 %5655
      %5657 = vrot.lane.b32.xlu0 %v3633, 64
      %v5658 = vpop.permute.xlu0 %5657
      %5659 = vrot.lane.b32.xlu0 %v3634, 64
      %v5660 = vpop.permute.xlu0 %5659
      %5661 = vrot.lane.b32.xlu0 %v3635, 64
      %v5662 = vpop.permute.xlu0 %5661
      %5663 = vrot.lane.b32.xlu0 %v3636, 64
      %v5664 = vpop.permute.xlu0 %5663
      %5665 = vrot.lane.b32.xlu0 %v3637, 64
      %v5666 = vpop.permute.xlu0 %5665
      %5667 = vrot.lane.b32.xlu0 %v3638, 64
      %v5668 = vpop.permute.xlu0 %5667
      %5669 = vrot.lane.b32.xlu0 %v3639, 64
      %v5670 = vpop.permute.xlu0 %5669
      %v5671 = vsel %vm3380, %v5654, %v5656
      %v5672 = vsel %vm3380, %v5656, %v5658
      %v5673 = vsel %vm3380, %v5658, %v5660
      %v5674 = vsel %vm3380, %v5660, %v5662
      %v5675 = vsel %vm3380, %v5662, %v5664
      %v5676 = vsel %vm3380, %v5664, %v5666
      %v5677 = vsel %vm3380, %v5666, %v5668
      %v5678 = vsel %vm3380, %v5668, %v5670
      %v5680 = vsel %vm3705, %v3702, 0
      %v5682 = vsel %vm3709, %v5671, 0
      %v5684 = vsel %vm3709, %v5672, 0
      %v5686 = vsel %vm3709, %v5673, 0
      %v5688 = vsel %vm3709, %v5674, 0
      %v5690 = vsel %vm3709, %v5675, 0
      %v5692 = vsel %vm3709, %v5676, 0
      %v5694 = vsel %vm3709, %v5677, 0
      %v5696 = vsel %vm3709, %v5678, 0
      %5698 = vmatprep.subr.mxu0 %v5684
      %5699 = vmatpush1.msra.mxu0 %v5682
      %5700 = vmatprep.subr.mxu0 0.0
      %5701 = vmatpush1.msra.mxu0 0.0
      %5702 = vmatprep.subr.mxu0 0.0
      %5703 = vmatpush1.msra.mxu0 0.0
      %5704 = vmatprep.subr.mxu0 0.0
      %5705 = vmatpush1.msra.mxu0 0.0
      %5706 = vmatprep.subr.mxu0 0.0
      %5707 = vmatpush1.msra.mxu0 0.0
      %5708 = vmatprep.subr.mxu0 0.0
      %5709 = vmatpush1.msra.mxu0 0.0
      %5710 = vmatprep.subr.mxu0 0.0
      %5711 = vmatpush1.msra.mxu0 0.0
      %5712 = vmatprep.subr.mxu0 0.0
      %5713 = vmatpush1.msra.mxu0 0.0
      %5714 = vmatprep.subr.mxu0 0.0
      %5715 = vmatpush1.msra.mxu0 0.0
      %5716 = vmatprep.subr.mxu0 0.0
      %5717 = vmatpush1.msra.mxu0 0.0
      %5718 = vmatprep.subr.mxu0 0.0
      %5719 = vmatpush1.msra.mxu0 0.0
      %5720 = vmatprep.subr.mxu0 0.0
      %5721 = vmatpush1.msra.mxu0 0.0
      %5722 = vmatprep.subr.mxu0 0.0
      %5723 = vmatpush1.msra.mxu0 0.0
      %5724 = vmatprep.subr.mxu0 0.0
      %5725 = vmatpush1.msra.mxu0 0.0
      %5726 = vmatprep.subr.mxu0 0.0
      %5727 = vmatpush1.msra.mxu0 0.0
      %5728 = vmatprep.subr.mxu0 0.0
      %5729 = vmatpush1.msra.mxu0 0.0
      %5730 = vmatprep.subr.mxu0 0.0
      %5731 = vmatpush1.msra.mxu0 0.0
      %5732 = vmatprep.subr.mxu0 0.0
      %5733 = vmatpush1.msra.mxu0 0.0
      %5734 = vmatprep.subr.mxu0 0.0
      %5735 = vmatpush1.msra.mxu0 0.0
      %5736 = vmatprep.subr.mxu0 0.0
      %5737 = vmatpush1.msra.mxu0 0.0
      %5738 = vmatprep.subr.mxu0 0.0
      %5739 = vmatpush1.msra.mxu0 0.0
      %5740 = vmatprep.subr.mxu0 0.0
      %5741 = vmatpush1.msra.mxu0 0.0
      %5742 = vmatprep.subr.mxu0 0.0
      %5743 = vmatpush1.msra.mxu0 0.0
      %5744 = vmatprep.subr.mxu0 0.0
      %5745 = vmatpush1.msra.mxu0 0.0
      %5746 = vmatprep.subr.mxu0 0.0
      %5747 = vmatpush1.msra.mxu0 0.0
      %5748 = vmatprep.subr.mxu0 0.0
      %5749 = vmatpush1.msra.mxu0 0.0
      %5750 = vmatprep.subr.mxu0 0.0
      %5751 = vmatpush1.msra.mxu0 0.0
      %5752 = vmatprep.subr.mxu0 0.0
      %5753 = vmatpush1.msra.mxu0 0.0
      %5754 = vmatprep.subr.mxu0 0.0
      %5755 = vmatpush1.msra.mxu0 0.0
      %5756 = vmatprep.subr.mxu0 0.0
      %5757 = vmatpush1.msra.mxu0 0.0
      %5758 = vmatprep.subr.mxu0 0.0
      %5759 = vmatpush1.msra.mxu0 0.0
      %5760 = vmatprep.subr.mxu0 0.0
      %5761 = vmatpush1.msra.mxu0 0.0
      %5762 = vmatprep.mubr.f32.mxu0 0.0
      %5763 = vmatmul.mubr.f32.gmra.mrb[0].mxu0 %v5680
      %v5764 = vpop.f32.mrb[0].mxu0
      %v5765 = vadd.f32 0.0, %v5764
      %v5766 = vpop.f32.mrb[0].mxu0
      %v5767 = vadd.f32 0.0, %v5766
      %5768 = vdwg.mxu0
      %5769 = vmatprep.subr.mxu0 %v5688
      %5770 = vmatpush1.msra.mxu0 %v5686
      %5771 = vmatprep.subr.mxu0 0.0
      %5772 = vmatpush1.msra.mxu0 0.0
      %5773 = vmatprep.subr.mxu0 0.0
      %5774 = vmatpush1.msra.mxu0 0.0
      %5775 = vmatprep.subr.mxu0 0.0
      %5776 = vmatpush1.msra.mxu0 0.0
      %5777 = vmatprep.subr.mxu0 0.0
      %5778 = vmatpush1.msra.mxu0 0.0
      %5779 = vmatprep.subr.mxu0 0.0
      %5780 = vmatpush1.msra.mxu0 0.0
      %5781 = vmatprep.subr.mxu0 0.0
      %5782 = vmatpush1.msra.mxu0 0.0
      %5783 = vmatprep.subr.mxu0 0.0
      %5784 = vmatpush1.msra.mxu0 0.0
      %5785 = vmatprep.subr.mxu0 0.0
      %5786 = vmatpush1.msra.mxu0 0.0
      %5787 = vmatprep.subr.mxu0 0.0
      %5788 = vmatpush1.msra.mxu0 0.0
      %5789 = vmatprep.subr.mxu0 0.0
      %5790 = vmatpush1.msra.mxu0 0.0
      %5791 = vmatprep.subr.mxu0 0.0
      %5792 = vmatpush1.msra.mxu0 0.0
      %5793 = vmatprep.subr.mxu0 0.0
      %5794 = vmatpush1.msra.mxu0 0.0
      %5795 = vmatprep.subr.mxu0 0.0
      %5796 = vmatpush1.msra.mxu0 0.0
      %5797 = vmatprep.subr.mxu0 0.0
      %5798 = vmatpush1.msra.mxu0 0.0
      %5799 = vmatprep.subr.mxu0 0.0
      %5800 = vmatpush1.msra.mxu0 0.0
      %5801 = vmatprep.subr.mxu0 0.0
      %5802 = vmatpush1.msra.mxu0 0.0
      %5803 = vmatprep.subr.mxu0 0.0
      %5804 = vmatpush1.msra.mxu0 0.0
      %5805 = vmatprep.subr.mxu0 0.0
      %5806 = vmatpush1.msra.mxu0 0.0
      %5807 = vmatprep.subr.mxu0 0.0
      %5808 = vmatpush1.msra.mxu0 0.0
      %5809 = vmatprep.subr.mxu0 0.0
      %5810 = vmatpush1.msra.mxu0 0.0
      %5811 = vmatprep.subr.mxu0 0.0
      %5812 = vmatpush1.msra.mxu0 0.0
      %5813 = vmatprep.subr.mxu0 0.0
      %5814 = vmatpush1.msra.mxu0 0.0
      %5815 = vmatprep.subr.mxu0 0.0
      %5816 = vmatpush1.msra.mxu0 0.0
      %5817 = vmatprep.subr.mxu0 0.0
      %5818 = vmatpush1.msra.mxu0 0.0
      %5819 = vmatprep.subr.mxu0 0.0
      %5820 = vmatpush1.msra.mxu0 0.0
      %5821 = vmatprep.subr.mxu0 0.0
      %5822 = vmatpush1.msra.mxu0 0.0
      %5823 = vmatprep.subr.mxu0 0.0
      %5824 = vmatpush1.msra.mxu0 0.0
      %5825 = vmatprep.subr.mxu0 0.0
      %5826 = vmatpush1.msra.mxu0 0.0
      %5827 = vmatprep.subr.mxu0 0.0
      %5828 = vmatpush1.msra.mxu0 0.0
      %5829 = vmatprep.subr.mxu0 0.0
      %5830 = vmatpush1.msra.mxu0 0.0
      %5831 = vmatprep.subr.mxu0 0.0
      %5832 = vmatpush1.msra.mxu0 0.0
      %5833 = vmatprep.mubr.f32.mxu0 0.0
      %5834 = vmatmul.mubr.f32.gmra.mrb[0].mxu0 %v5680
      %v5835 = vpop.f32.mrb[0].mxu0
      %v5836 = vadd.f32 0.0, %v5835
      %v5837 = vpop.f32.mrb[0].mxu0
      %v5838 = vadd.f32 0.0, %v5837
      %5839 = vdwg.mxu0
      %5840 = vmatprep.subr.mxu0 %v5692
      %5841 = vmatpush1.msra.mxu0 %v5690
      %5842 = vmatprep.subr.mxu0 0.0
      %5843 = vmatpush1.msra.mxu0 0.0
      %5844 = vmatprep.subr.mxu0 0.0
      %5845 = vmatpush1.msra.mxu0 0.0
      %5846 = vmatprep.subr.mxu0 0.0
      %5847 = vmatpush1.msra.mxu0 0.0
      %5848 = vmatprep.subr.mxu0 0.0
      %5849 = vmatpush1.msra.mxu0 0.0
      %5850 = vmatprep.subr.mxu0 0.0
      %5851 = vmatpush1.msra.mxu0 0.0
      %5852 = vmatprep.subr.mxu0 0.0
      %5853 = vmatpush1.msra.mxu0 0.0
      %5854 = vmatprep.subr.mxu0 0.0
      %5855 = vmatpush1.msra.mxu0 0.0
      %5856 = vmatprep.subr.mxu0 0.0
      %5857 = vmatpush1.msra.mxu0 0.0
      %5858 = vmatprep.subr.mxu0 0.0
      %5859 = vmatpush1.msra.mxu0 0.0
      %5860 = vmatprep.subr.mxu0 0.0
      %5861 = vmatpush1.msra.mxu0 0.0
      %5862 = vmatprep.subr.mxu0 0.0
      %5863 = vmatpush1.msra.mxu0 0.0
      %5864 = vmatprep.subr.mxu0 0.0
      %5865 = vmatpush1.msra.mxu0 0.0
      %5866 = vmatprep.subr.mxu0 0.0
      %5867 = vmatpush1.msra.mxu0 0.0
      %5868 = vmatprep.subr.mxu0 0.0
      %5869 = vmatpush1.msra.mxu0 0.0
      %5870 = vmatprep.subr.mxu0 0.0
      %5871 = vmatpush1.msra.mxu0 0.0
      %5872 = vmatprep.subr.mxu0 0.0
      %5873 = vmatpush1.msra.mxu0 0.0
      %5874 = vmatprep.subr.mxu0 0.0
      %5875 = vmatpush1.msra.mxu0 0.0
      %5876 = vmatprep.subr.mxu0 0.0
      %5877 = vmatpush1.msra.mxu0 0.0
      %5878 = vmatprep.subr.mxu0 0.0
      %5879 = vmatpush1.msra.mxu0 0.0
      %5880 = vmatprep.subr.mxu0 0.0
      %5881 = vmatpush1.msra.mxu0 0.0
      %5882 = vmatprep.subr.mxu0 0.0
      %5883 = vmatpush1.msra.mxu0 0.0
      %5884 = vmatprep.subr.mxu0 0.0
      %5885 = vmatpush1.msra.mxu0 0.0
      %5886 = vmatprep.subr.mxu0 0.0
      %5887 = vmatpush1.msra.mxu0 0.0
      %5888 = vmatprep.subr.mxu0 0.0
      %5889 = vmatpush1.msra.mxu0 0.0
      %5890 = vmatprep.subr.mxu0 0.0
      %5891 = vmatpush1.msra.mxu0 0.0
      %5892 = vmatprep.subr.mxu0 0.0
      %5893 = vmatpush1.msra.mxu0 0.0
      %5894 = vmatprep.subr.mxu0 0.0
      %5895 = vmatpush1.msra.mxu0 0.0
      %5896 = vmatprep.subr.mxu0 0.0
      %5897 = vmatpush1.msra.mxu0 0.0
      %5898 = vmatprep.subr.mxu0 0.0
      %5899 = vmatpush1.msra.mxu0 0.0
      %5900 = vmatprep.subr.mxu0 0.0
      %5901 = vmatpush1.msra.mxu0 0.0
      %5902 = vmatprep.subr.mxu0 0.0
      %5903 = vmatpush1.msra.mxu0 0.0
      %5904 = vmatprep.mubr.f32.mxu0 0.0
      %5905 = vmatmul.mubr.f32.gmra.mrb[0].mxu0 %v5680
      %v5906 = vpop.f32.mrb[0].mxu0
      %v5907 = vadd.f32 0.0, %v5906
      %v5908 = vpop.f32.mrb[0].mxu0
      %v5909 = vadd.f32 0.0, %v5908
      %5910 = vdwg.mxu0
      %5911 = vmatprep.subr.mxu0 %v5696
      %5912 = vmatpush1.msra.mxu0 %v5694
      %5913 = vmatprep.subr.mxu0 0.0
      %5914 = vmatpush1.msra.mxu0 0.0
      %5915 = vmatprep.subr.mxu0 0.0
      %5916 = vmatpush1.msra.mxu0 0.0
      %5917 = vmatprep.subr.mxu0 0.0
      %5918 = vmatpush1.msra.mxu0 0.0
      %5919 = vmatprep.subr.mxu0 0.0
      %5920 = vmatpush1.msra.mxu0 0.0
      %5921 = vmatprep.subr.mxu0 0.0
      %5922 = vmatpush1.msra.mxu0 0.0
      %5923 = vmatprep.subr.mxu0 0.0
      %5924 = vmatpush1.msra.mxu0 0.0
      %5925 = vmatprep.subr.mxu0 0.0
      %5926 = vmatpush1.msra.mxu0 0.0
      %5927 = vmatprep.subr.mxu0 0.0
      %5928 = vmatpush1.msra.mxu0 0.0
      %5929 = vmatprep.subr.mxu0 0.0
      %5930 = vmatpush1.msra.mxu0 0.0
      %5931 = vmatprep.subr.mxu0 0.0
      %5932 = vmatpush1.msra.mxu0 0.0
      %5933 = vmatprep.subr.mxu0 0.0
      %5934 = vmatpush1.msra.mxu0 0.0
      %5935 = vmatprep.subr.mxu0 0.0
      %5936 = vmatpush1.msra.mxu0 0.0
      %5937 = vmatprep.subr.mxu0 0.0
      %5938 = vmatpush1.msra.mxu0 0.0
      %5939 = vmatprep.subr.mxu0 0.0
      %5940 = vmatpush1.msra.mxu0 0.0
      %5941 = vmatprep.subr.mxu0 0.0
      %5942 = vmatpush1.msra.mxu0 0.0
      %5943 = vmatprep.subr.mxu0 0.0
      %5944 = vmatpush1.msra.mxu0 0.0
      %5945 = vmatprep.subr.mxu0 0.0
      %5946 = vmatpush1.msra.mxu0 0.0
      %5947 = vmatprep.subr.mxu0 0.0
      %5948 = vmatpush1.msra.mxu0 0.0
      %5949 = vmatprep.subr.mxu0 0.0
      %5950 = vmatpush1.msra.mxu0 0.0
      %5951 = vmatprep.subr.mxu0 0.0
      %5952 = vmatpush1.msra.mxu0 0.0
      %5953 = vmatprep.subr.mxu0 0.0
      %5954 = vmatpush1.msra.mxu0 0.0
      %5955 = vmatprep.subr.mxu0 0.0
      %5956 = vmatpush1.msra.mxu0 0.0
      %5957 = vmatprep.subr.mxu0 0.0
      %5958 = vmatpush1.msra.mxu0 0.0
      %5959 = vmatprep.subr.mxu0 0.0
      %5960 = vmatpush1.msra.mxu0 0.0
      %5961 = vmatprep.subr.mxu0 0.0
      %5962 = vmatpush1.msra.mxu0 0.0
      %5963 = vmatprep.subr.mxu0 0.0
      %5964 = vmatpush1.msra.mxu0 0.0
      %5965 = vmatprep.subr.mxu0 0.0
      %5966 = vmatpush1.msra.mxu0 0.0
      %5967 = vmatprep.subr.mxu0 0.0
      %5968 = vmatpush1.msra.mxu0 0.0
      %5969 = vmatprep.subr.mxu0 0.0
      %5970 = vmatpush1.msra.mxu0 0.0
      %5971 = vmatprep.subr.mxu0 0.0
      %5972 = vmatpush1.msra.mxu0 0.0
      %5973 = vmatprep.subr.mxu0 0.0
      %5974 = vmatpush1.msra.mxu0 0.0
      %5975 = vmatprep.mubr.f32.mxu0 0.0
      %5976 = vmatmul.mubr.f32.gmra.mrb[0].mxu0 %v5680
      %v5977 = vpop.f32.mrb[0].mxu0
      %v5978 = vadd.f32 0.0, %v5977
      %v5979 = vpop.f32.mrb[0].mxu0
      %v5980 = vadd.f32 0.0, %v5979
      %5981 = vdwg.mxu0
      %v5982 = vadd.f32 %v5645, %v5765
      %v5983 = vadd.f32 %v5646, %v5767
      %v5984 = vadd.f32 %v5647, %v5836
      %v5985 = vadd.f32 %v5648, %v5838
      %v5986 = vadd.f32 %v5649, %v5907
      %v5987 = vadd.f32 %v5650, %v5909
      %v5988 = vadd.f32 %v5651, %v5978
      %v5989 = vadd.f32 %v5652, %v5980
      %5990 = vrot.lane.b32.xlu0 %v3383, 64
      %v5991 = vpop.permute.xlu0 %5990
      %5992 = vrot.lane.b32.xlu0 %v3386, 64
      %v5993 = vpop.permute.xlu0 %5992
      %5994 = vrot.lane.b32.xlu0 %v3389, 64
      %v5995 = vpop.permute.xlu0 %5994
      %5996 = vrot.lane.b32.xlu0 %v3392, 64
      %v5997 = vpop.permute.xlu0 %5996
      %5998 = vrot.lane.b32.xlu0 %v3443, 64
      %v5999 = vpop.permute.xlu0 %5998
      %6000 = vrot.lane.b32.xlu0 %v3446, 64
      %v6001 = vpop.permute.xlu0 %6000
      %6002 = vrot.lane.b32.xlu0 %v3449, 64
      %v6003 = vpop.permute.xlu0 %6002
      %6004 = vrot.lane.b32.xlu0 %v3452, 64
      %v6005 = vpop.permute.xlu0 %6004
      %6006 = vrot.lane.b32.xlu0 %v3457, 64
      %v6007 = vpop.permute.xlu0 %6006
      %v6008 = vsel %vm3380, %v5991, %v5993
      %v6009 = vsel %vm3380, %v5993, %v5995
      %v6010 = vsel %vm3380, %v5995, %v5997
      %v6011 = vsel %vm3380, %v5997, %v5999
      %v6012 = vsel %vm3380, %v5999, %v6001
      %v6013 = vsel %vm3380, %v6001, %v6003
      %v6014 = vsel %vm3380, %v6003, %v6005
      %v6015 = vsel %vm3380, %v6005, %v6007
      %v6017 = vsel %vm3705, %v3703, 0
      %v6019 = vsel %vm3709, %v6008, 0
      %v6021 = vsel %vm3709, %v6009, 0
      %v6023 = vsel %vm3709, %v6010, 0
      %v6025 = vsel %vm3709, %v6011, 0
      %v6027 = vsel %vm3709, %v6012, 0
      %v6029 = vsel %vm3709, %v6013, 0
      %v6031 = vsel %vm3709, %v6014, 0
      %v6033 = vsel %vm3709, %v6015, 0
      %6035 = vmatprep.subr.mxu0 %v6021
      %6036 = vmatpush1.msra.mxu0 %v6019
      %6037 = vmatprep.subr.mxu0 0.0
      %6038 = vmatpush1.msra.mxu0 0.0
      %6039 = vmatprep.subr.mxu0 0.0
      %6040 = vmatpush1.msra.mxu0 0.0
      %6041 = vmatprep.subr.mxu0 0.0
      %6042 = vmatpush1.msra.mxu0 0.0
      %6043 = vmatprep.subr.mxu0 0.0
      %6044 = vmatpush1.msra.mxu0 0.0
      %6045 = vmatprep.subr.mxu0 0.0
      %6046 = vmatpush1.msra.mxu0 0.0
      %6047 = vmatprep.subr.mxu0 0.0
      %6048 = vmatpush1.msra.mxu0 0.0
      %6049 = vmatprep.subr.mxu0 0.0
      %6050 = vmatpush1.msra.mxu0 0.0
      %6051 = vmatprep.subr.mxu0 0.0
      %6052 = vmatpush1.msra.mxu0 0.0
      %6053 = vmatprep.subr.mxu0 0.0
      %6054 = vmatpush1.msra.mxu0 0.0
      %6055 = vmatprep.subr.mxu0 0.0
      %6056 = vmatpush1.msra.mxu0 0.0
      %6057 = vmatprep.subr.mxu0 0.0
      %6058 = vmatpush1.msra.mxu0 0.0
      %6059 = vmatprep.subr.mxu0 0.0
      %6060 = vmatpush1.msra.mxu0 0.0
      %6061 = vmatprep.subr.mxu0 0.0
      %6062 = vmatpush1.msra.mxu0 0.0
      %6063 = vmatprep.subr.mxu0 0.0
      %6064 = vmatpush1.msra.mxu0 0.0
      %6065 = vmatprep.subr.mxu0 0.0
      %6066 = vmatpush1.msra.mxu0 0.0
      %6067 = vmatprep.subr.mxu0 0.0
      %6068 = vmatpush1.msra.mxu0 0.0
      %6069 = vmatprep.subr.mxu0 0.0
      %6070 = vmatpush1.msra.mxu0 0.0
      %6071 = vmatprep.subr.mxu0 0.0
      %6072 = vmatpush1.msra.mxu0 0.0
      %6073 = vmatprep.subr.mxu0 0.0
      %6074 = vmatpush1.msra.mxu0 0.0
      %6075 = vmatprep.subr.mxu0 0.0
      %6076 = vmatpush1.msra.mxu0 0.0
      %6077 = vmatprep.subr.mxu0 0.0
      %6078 = vmatpush1.msra.mxu0 0.0
      %6079 = vmatprep.subr.mxu0 0.0
      %6080 = vmatpush1.msra.mxu0 0.0
      %6081 = vmatprep.subr.mxu0 0.0
      %6082 = vmatpush1.msra.mxu0 0.0
      %6083 = vmatprep.subr.mxu0 0.0
      %6084 = vmatpush1.msra.mxu0 0.0
      %6085 = vmatprep.subr.mxu0 0.0
      %6086 = vmatpush1.msra.mxu0 0.0
      %6087 = vmatprep.subr.mxu0 0.0
      %6088 = vmatpush1.msra.mxu0 0.0
      %6089 = vmatprep.subr.mxu0 0.0
      %6090 = vmatpush1.msra.mxu0 0.0
      %6091 = vmatprep.subr.mxu0 0.0
      %6092 = vmatpush1.msra.mxu0 0.0
      %6093 = vmatprep.subr.mxu0 0.0
      %6094 = vmatpush1.msra.mxu0 0.0
      %6095 = vmatprep.subr.mxu0 0.0
      %6096 = vmatpush1.msra.mxu0 0.0
      %6097 = vmatprep.subr.mxu0 0.0
      %6098 = vmatpush1.msra.mxu0 0.0
      %6099 = vmatprep.mubr.f32.mxu0 0.0
      %6100 = vmatmul.mubr.f32.gmra.mrb[0].mxu0 %v6017
      %v6101 = vpop.f32.mrb[0].mxu0
      %v6102 = vadd.f32 0.0, %v6101
      %v6103 = vpop.f32.mrb[0].mxu0
      %v6104 = vadd.f32 0.0, %v6103
      %6105 = vdwg.mxu0
      %6106 = vmatprep.subr.mxu0 %v6025
      %6107 = vmatpush1.msra.mxu0 %v6023
      %6108 = vmatprep.subr.mxu0 0.0
      %6109 = vmatpush1.msra.mxu0 0.0
      %6110 = vmatprep.subr.mxu0 0.0
      %6111 = vmatpush1.msra.mxu0 0.0
      %6112 = vmatprep.subr.mxu0 0.0
      %6113 = vmatpush1.msra.mxu0 0.0
      %6114 = vmatprep.subr.mxu0 0.0
      %6115 = vmatpush1.msra.mxu0 0.0
      %6116 = vmatprep.subr.mxu0 0.0
      %6117 = vmatpush1.msra.mxu0 0.0
      %6118 = vmatprep.subr.mxu0 0.0
      %6119 = vmatpush1.msra.mxu0 0.0
      %6120 = vmatprep.subr.mxu0 0.0
      %6121 = vmatpush1.msra.mxu0 0.0
      %6122 = vmatprep.subr.mxu0 0.0
      %6123 = vmatpush1.msra.mxu0 0.0
      %6124 = vmatprep.subr.mxu0 0.0
      %6125 = vmatpush1.msra.mxu0 0.0
      %6126 = vmatprep.subr.mxu0 0.0
      %6127 = vmatpush1.msra.mxu0 0.0
      %6128 = vmatprep.subr.mxu0 0.0
      %6129 = vmatpush1.msra.mxu0 0.0
      %6130 = vmatprep.subr.mxu0 0.0
      %6131 = vmatpush1.msra.mxu0 0.0
      %6132 = vmatprep.subr.mxu0 0.0
      %6133 = vmatpush1.msra.mxu0 0.0
      %6134 = vmatprep.subr.mxu0 0.0
      %6135 = vmatpush1.msra.mxu0 0.0
      %6136 = vmatprep.subr.mxu0 0.0
      %6137 = vmatpush1.msra.mxu0 0.0
      %6138 = vmatprep.subr.mxu0 0.0
      %6139 = vmatpush1.msra.mxu0 0.0
      %6140 = vmatprep.subr.mxu0 0.0
      %6141 = vmatpush1.msra.mxu0 0.0
      %6142 = vmatprep.subr.mxu0 0.0
      %6143 = vmatpush1.msra.mxu0 0.0
      %6144 = vmatprep.subr.mxu0 0.0
      %6145 = vmatpush1.msra.mxu0 0.0
      %6146 = vmatprep.subr.mxu0 0.0
      %6147 = vmatpush1.msra.mxu0 0.0
      %6148 = vmatprep.subr.mxu0 0.0
      %6149 = vmatpush1.msra.mxu0 0.0
      %6150 = vmatprep.subr.mxu0 0.0
      %6151 = vmatpush1.msra.mxu0 0.0
      %6152 = vmatprep.subr.mxu0 0.0
      %6153 = vmatpush1.msra.mxu0 0.0
      %6154 = vmatprep.subr.mxu0 0.0
      %6155 = vmatpush1.msra.mxu0 0.0
      %6156 = vmatprep.subr.mxu0 0.0
      %6157 = vmatpush1.msra.mxu0 0.0
      %6158 = vmatprep.subr.mxu0 0.0
      %6159 = vmatpush1.msra.mxu0 0.0
      %6160 = vmatprep.subr.mxu0 0.0
      %6161 = vmatpush1.msra.mxu0 0.0
      %6162 = vmatprep.subr.mxu0 0.0
      %6163 = vmatpush1.msra.mxu0 0.0
      %6164 = vmatprep.subr.mxu0 0.0
      %6165 = vmatpush1.msra.mxu0 0.0
      %6166 = vmatprep.subr.mxu0 0.0
      %6167 = vmatpush1.msra.mxu0 0.0
      %6168 = vmatprep.subr.mxu0 0.0
      %6169 = vmatpush1.msra.mxu0 0.0
      %6170 = vmatprep.mubr.f32.mxu0 0.0
      %6171 = vmatmul.mubr.f32.gmra.mrb[0].mxu0 %v6017
      %v6172 = vpop.f32.mrb[0].mxu0
      %v6173 = vadd.f32 0.0, %v6172
      %v6174 = vpop.f32.mrb[0].mxu0
      %v6175 = vadd.f32 0.0, %v6174
      %6176 = vdwg.mxu0
      %6177 = vmatprep.subr.mxu0 %v6029
      %6178 = vmatpush1.msra.mxu0 %v6027
      %6179 = vmatprep.subr.mxu0 0.0
      %6180 = vmatpush1.msra.mxu0 0.0
      %6181 = vmatprep.subr.mxu0 0.0
      %6182 = vmatpush1.msra.mxu0 0.0
      %6183 = vmatprep.subr.mxu0 0.0
      %6184 = vmatpush1.msra.mxu0 0.0
      %6185 = vmatprep.subr.mxu0 0.0
      %6186 = vmatpush1.msra.mxu0 0.0
      %6187 = vmatprep.subr.mxu0 0.0
      %6188 = vmatpush1.msra.mxu0 0.0
      %6189 = vmatprep.subr.mxu0 0.0
      %6190 = vmatpush1.msra.mxu0 0.0
      %6191 = vmatprep.subr.mxu0 0.0
      %6192 = vmatpush1.msra.mxu0 0.0
      %6193 = vmatprep.subr.mxu0 0.0
      %6194 = vmatpush1.msra.mxu0 0.0
      %6195 = vmatprep.subr.mxu0 0.0
      %6196 = vmatpush1.msra.mxu0 0.0
      %6197 = vmatprep.subr.mxu0 0.0
      %6198 = vmatpush1.msra.mxu0 0.0
      %6199 = vmatprep.subr.mxu0 0.0
      %6200 = vmatpush1.msra.mxu0 0.0
      %6201 = vmatprep.subr.mxu0 0.0
      %6202 = vmatpush1.msra.mxu0 0.0
      %6203 = vmatprep.subr.mxu0 0.0
      %6204 = vmatpush1.msra.mxu0 0.0
      %6205 = vmatprep.subr.mxu0 0.0
      %6206 = vmatpush1.msra.mxu0 0.0
      %6207 = vmatprep.subr.mxu0 0.0
      %6208 = vmatpush1.msra.mxu0 0.0
      %6209 = vmatprep.subr.mxu0 0.0
      %6210 = vmatpush1.msra.mxu0 0.0
      %6211 = vmatprep.subr.mxu0 0.0
      %6212 = vmatpush1.msra.mxu0 0.0
      %6213 = vmatprep.subr.mxu0 0.0
      %6214 = vmatpush1.msra.mxu0 0.0
      %6215 = vmatprep.subr.mxu0 0.0
      %6216 = vmatpush1.msra.mxu0 0.0
      %6217 = vmatprep.subr.mxu0 0.0
      %6218 = vmatpush1.msra.mxu0 0.0
      %6219 = vmatprep.subr.mxu0 0.0
      %6220 = vmatpush1.msra.mxu0 0.0
      %6221 = vmatprep.subr.mxu0 0.0
      %6222 = vmatpush1.msra.mxu0 0.0
      %6223 = vmatprep.subr.mxu0 0.0
      %6224 = vmatpush1.msra.mxu0 0.0
      %6225 = vmatprep.subr.mxu0 0.0
      %6226 = vmatpush1.msra.mxu0 0.0
      %6227 = vmatprep.subr.mxu0 0.0
      %6228 = vmatpush1.msra.mxu0 0.0
      %6229 = vmatprep.subr.mxu0 0.0
      %6230 = vmatpush1.msra.mxu0 0.0
      %6231 = vmatprep.subr.mxu0 0.0
      %6232 = vmatpush1.msra.mxu0 0.0
      %6233 = vmatprep.subr.mxu0 0.0
      %6234 = vmatpush1.msra.mxu0 0.0
      %6235 = vmatprep.subr.mxu0 0.0
      %6236 = vmatpush1.msra.mxu0 0.0
      %6237 = vmatprep.subr.mxu0 0.0
      %6238 = vmatpush1.msra.mxu0 0.0
      %6239 = vmatprep.subr.mxu0 0.0
      %6240 = vmatpush1.msra.mxu0 0.0
      %6241 = vmatprep.mubr.f32.mxu0 0.0
      %6242 = vmatmul.mubr.f32.gmra.mrb[0].mxu0 %v6017
      %v6243 = vpop.f32.mrb[0].mxu0
      %v6244 = vadd.f32 0.0, %v6243
      %v6245 = vpop.f32.mrb[0].mxu0
      %v6246 = vadd.f32 0.0, %v6245
      %6247 = vdwg.mxu0
      %6248 = vmatprep.subr.mxu0 %v6033
      %6249 = vmatpush1.msra.mxu0 %v6031
      %6250 = vmatprep.subr.mxu0 0.0
      %6251 = vmatpush1.msra.mxu0 0.0
      %6252 = vmatprep.subr.mxu0 0.0
      %6253 = vmatpush1.msra.mxu0 0.0
      %6254 = vmatprep.subr.mxu0 0.0
      %6255 = vmatpush1.msra.mxu0 0.0
      %6256 = vmatprep.subr.mxu0 0.0
      %6257 = vmatpush1.msra.mxu0 0.0
      %6258 = vmatprep.subr.mxu0 0.0
      %6259 = vmatpush1.msra.mxu0 0.0
      %6260 = vmatprep.subr.mxu0 0.0
      %6261 = vmatpush1.msra.mxu0 0.0
      %6262 = vmatprep.subr.mxu0 0.0
      %6263 = vmatpush1.msra.mxu0 0.0
      %6264 = vmatprep.subr.mxu0 0.0
      %6265 = vmatpush1.msra.mxu0 0.0
      %6266 = vmatprep.subr.mxu0 0.0
      %6267 = vmatpush1.msra.mxu0 0.0
      %6268 = vmatprep.subr.mxu0 0.0
      %6269 = vmatpush1.msra.mxu0 0.0
      %6270 = vmatprep.subr.mxu0 0.0
      %6271 = vmatpush1.msra.mxu0 0.0
      %6272 = vmatprep.subr.mxu0 0.0
      %6273 = vmatpush1.msra.mxu0 0.0
      %6274 = vmatprep.subr.mxu0 0.0
      %6275 = vmatpush1.msra.mxu0 0.0
      %6276 = vmatprep.subr.mxu0 0.0
      %6277 = vmatpush1.msra.mxu0 0.0
      %6278 = vmatprep.subr.mxu0 0.0
      %6279 = vmatpush1.msra.mxu0 0.0
      %6280 = vmatprep.subr.mxu0 0.0
      %6281 = vmatpush1.msra.mxu0 0.0
      %6282 = vmatprep.subr.mxu0 0.0
      %6283 = vmatpush1.msra.mxu0 0.0
      %6284 = vmatprep.subr.mxu0 0.0
      %6285 = vmatpush1.msra.mxu0 0.0
      %6286 = vmatprep.subr.mxu0 0.0
      %6287 = vmatpush1.msra.mxu0 0.0
      %6288 = vmatprep.subr.mxu0 0.0
      %6289 = vmatpush1.msra.mxu0 0.0
      %6290 = vmatprep.subr.mxu0 0.0
      %6291 = vmatpush1.msra.mxu0 0.0
      %6292 = vmatprep.subr.mxu0 0.0
      %6293 = vmatpush1.msra.mxu0 0.0
      %6294 = vmatprep.subr.mxu0 0.0
      %6295 = vmatpush1.msra.mxu0 0.0
      %6296 = vmatprep.subr.mxu0 0.0
      %6297 = vmatpush1.msra.mxu0 0.0
      %6298 = vmatprep.subr.mxu0 0.0
      %6299 = vmatpush1.msra.mxu0 0.0
      %6300 = vmatprep.subr.mxu0 0.0
      %6301 = vmatpush1.msra.mxu0 0.0
      %6302 = vmatprep.subr.mxu0 0.0
      %6303 = vmatpush1.msra.mxu0 0.0
      %6304 = vmatprep.subr.mxu0 0.0
      %6305 = vmatpush1.msra.mxu0 0.0
      %6306 = vmatprep.subr.mxu0 0.0
      %6307 = vmatpush1.msra.mxu0 0.0
      %6308 = vmatprep.subr.mxu0 0.0
      %6309 = vmatpush1.msra.mxu0 0.0
      %6310 = vmatprep.subr.mxu0 0.0
      %6311 = vmatpush1.msra.mxu0 0.0
      %6312 = vmatprep.mubr.f32.mxu0 0.0
      %6313 = vmatmul.mubr.f32.gmra.mrb[0].mxu0 %v6017
      %v6314 = vpop.f32.mrb[0].mxu0
      %v6315 = vadd.f32 0.0, %v6314
      %v6316 = vpop.f32.mrb[0].mxu0
      %v6317 = vadd.f32 0.0, %v6316
      %6318 = vdwg.mxu0
      %v6319 = vadd.f32 %v5982, %v6102
      %v6320 = vadd.f32 %v5983, %v6104
      %v6321 = vadd.f32 %v5984, %v6173
      %v6322 = vadd.f32 %v5985, %v6175
      %v6323 = vadd.f32 %v5986, %v6244
      %v6324 = vadd.f32 %v5987, %v6246
      %v6325 = vadd.f32 %v5988, %v6315
      %v6326 = vadd.f32 %v5989, %v6317
      %6327 = vrot.lane.b32.xlu0 %v3687, 64
      %v6328 = vpop.permute.xlu0 %6327
      %6329 = vrot.lane.b32.xlu0 %v3688, 64
      %v6330 = vpop.permute.xlu0 %6329
      %6331 = vrot.lane.b32.xlu0 %v3689, 64
      %v6332 = vpop.permute.xlu0 %6331
      %6333 = vrot.lane.b32.xlu0 %v3690, 64
      %v6334 = vpop.permute.xlu0 %6333
      %6335 = vrot.lane.b32.xlu0 %v3691, 64
      %v6336 = vpop.permute.xlu0 %6335
      %6337 = vrot.lane.b32.xlu0 %v3692, 64
      %v6338 = vpop.permute.xlu0 %6337
      %6339 = vrot.lane.b32.xlu0 %v3693, 64
      %v6340 = vpop.permute.xlu0 %6339
      %6341 = vrot.lane.b32.xlu0 %v3694, 64
      %v6342 = vpop.permute.xlu0 %6341
      %6343 = vrot.lane.b32.xlu0 %v3695, 64
      %v6344 = vpop.permute.xlu0 %6343
      %v6345 = vsel %vm3380, %v6328, %v6330
      %v6346 = vsel %vm3380, %v6330, %v6332
      %v6347 = vsel %vm3380, %v6332, %v6334
      %v6348 = vsel %vm3380, %v6334, %v6336
      %v6349 = vsel %vm3380, %v6336, %v6338
      %v6350 = vsel %vm3380, %v6338, %v6340
      %v6351 = vsel %vm3380, %v6340, %v6342
      %v6352 = vsel %vm3380, %v6342, %v6344
      %v6354 = vsel %vm3705, %v3704, 0
      %v6356 = vsel %vm3709, %v6345, 0
      %v6358 = vsel %vm3709, %v6346, 0
      %v6360 = vsel %vm3709, %v6347, 0
      %v6362 = vsel %vm3709, %v6348, 0
      %v6364 = vsel %vm3709, %v6349, 0
      %v6366 = vsel %vm3709, %v6350, 0
      %v6368 = vsel %vm3709, %v6351, 0
      %v6370 = vsel %vm3709, %v6352, 0
      %6372 = vmatprep.subr.mxu0 %v6358
      %6373 = vmatpush1.msra.mxu0 %v6356
      %6374 = vmatprep.subr.mxu0 0.0
      %6375 = vmatpush1.msra.mxu0 0.0
      %6376 = vmatprep.subr.mxu0 0.0
      %6377 = vmatpush1.msra.mxu0 0.0
      %6378 = vmatprep.subr.mxu0 0.0
      %6379 = vmatpush1.msra.mxu0 0.0
      %6380 = vmatprep.subr.mxu0 0.0
      %6381 = vmatpush1.msra.mxu0 0.0
      %6382 = vmatprep.subr.mxu0 0.0
      %6383 = vmatpush1.msra.mxu0 0.0
      %6384 = vmatprep.subr.mxu0 0.0
      %6385 = vmatpush1.msra.mxu0 0.0
      %6386 = vmatprep.subr.mxu0 0.0
      %6387 = vmatpush1.msra.mxu0 0.0
      %6388 = vmatprep.subr.mxu0 0.0
      %6389 = vmatpush1.msra.mxu0 0.0
      %6390 = vmatprep.subr.mxu0 0.0
      %6391 = vmatpush1.msra.mxu0 0.0
      %6392 = vmatprep.subr.mxu0 0.0
      %6393 = vmatpush1.msra.mxu0 0.0
      %6394 = vmatprep.subr.mxu0 0.0
      %6395 = vmatpush1.msra.mxu0 0.0
      %6396 = vmatprep.subr.mxu0 0.0
      %6397 = vmatpush1.msra.mxu0 0.0
      %6398 = vmatprep.subr.mxu0 0.0
      %6399 = vmatpush1.msra.mxu0 0.0
      %6400 = vmatprep.subr.mxu0 0.0
      %6401 = vmatpush1.msra.mxu0 0.0
      %6402 = vmatprep.subr.mxu0 0.0
      %6403 = vmatpush1.msra.mxu0 0.0
      %6404 = vmatprep.subr.mxu0 0.0
      %6405 = vmatpush1.msra.mxu0 0.0
      %6406 = vmatprep.subr.mxu0 0.0
      %6407 = vmatpush1.msra.mxu0 0.0
      %6408 = vmatprep.subr.mxu0 0.0
      %6409 = vmatpush1.msra.mxu0 0.0
      %6410 = vmatprep.subr.mxu0 0.0
      %6411 = vmatpush1.msra.mxu0 0.0
      %6412 = vmatprep.subr.mxu0 0.0
      %6413 = vmatpush1.msra.mxu0 0.0
      %6414 = vmatprep.subr.mxu0 0.0
      %6415 = vmatpush1.msra.mxu0 0.0
      %6416 = vmatprep.subr.mxu0 0.0
      %6417 = vmatpush1.msra.mxu0 0.0
      %6418 = vmatprep.subr.mxu0 0.0
      %6419 = vmatpush1.msra.mxu0 0.0
      %6420 = vmatprep.subr.mxu0 0.0
      %6421 = vmatpush1.msra.mxu0 0.0
      %6422 = vmatprep.subr.mxu0 0.0
      %6423 = vmatpush1.msra.mxu0 0.0
      %6424 = vmatprep.subr.mxu0 0.0
      %6425 = vmatpush1.msra.mxu0 0.0
      %6426 = vmatprep.subr.mxu0 0.0
      %6427 = vmatpush1.msra.mxu0 0.0
      %6428 = vmatprep.subr.mxu0 0.0
      %6429 = vmatpush1.msra.mxu0 0.0
      %6430 = vmatprep.subr.mxu0 0.0
      %6431 = vmatpush1.msra.mxu0 0.0
      %6432 = vmatprep.subr.mxu0 0.0
      %6433 = vmatpush1.msra.mxu0 0.0
      %6434 = vmatprep.subr.mxu0 0.0
      %6435 = vmatpush1.msra.mxu0 0.0
      %6436 = vmatprep.mubr.f32.mxu0 0.0
      %6437 = vmatmul.mubr.f32.gmra.mrb[0].mxu0 %v6354
      %v6438 = vpop.f32.mrb[0].mxu0
      %v6439 = vadd.f32 0.0, %v6438
      %v6440 = vpop.f32.mrb[0].mxu0
      %v6441 = vadd.f32 0.0, %v6440
      %6442 = vdwg.mxu0
      %6443 = vmatprep.subr.mxu0 %v6362
      %6444 = vmatpush1.msra.mxu0 %v6360
      %6445 = vmatprep.subr.mxu0 0.0
      %6446 = vmatpush1.msra.mxu0 0.0
      %6447 = vmatprep.subr.mxu0 0.0
      %6448 = vmatpush1.msra.mxu0 0.0
      %6449 = vmatprep.subr.mxu0 0.0
      %6450 = vmatpush1.msra.mxu0 0.0
      %6451 = vmatprep.subr.mxu0 0.0
      %6452 = vmatpush1.msra.mxu0 0.0
      %6453 = vmatprep.subr.mxu0 0.0
      %6454 = vmatpush1.msra.mxu0 0.0
      %6455 = vmatprep.subr.mxu0 0.0
      %6456 = vmatpush1.msra.mxu0 0.0
      %6457 = vmatprep.subr.mxu0 0.0
      %6458 = vmatpush1.msra.mxu0 0.0
      %6459 = vmatprep.subr.mxu0 0.0
      %6460 = vmatpush1.msra.mxu0 0.0
      %6461 = vmatprep.subr.mxu0 0.0
      %6462 = vmatpush1.msra.mxu0 0.0
      %6463 = vmatprep.subr.mxu0 0.0
      %6464 = vmatpush1.msra.mxu0 0.0
      %6465 = vmatprep.subr.mxu0 0.0
      %6466 = vmatpush1.msra.mxu0 0.0
      %6467 = vmatprep.subr.mxu0 0.0
      %6468 = vmatpush1.msra.mxu0 0.0
      %6469 = vmatprep.subr.mxu0 0.0
      %6470 = vmatpush1.msra.mxu0 0.0
      %6471 = vmatprep.subr.mxu0 0.0
      %6472 = vmatpush1.msra.mxu0 0.0
      %6473 = vmatprep.subr.mxu0 0.0
      %6474 = vmatpush1.msra.mxu0 0.0
      %6475 = vmatprep.subr.mxu0 0.0
      %6476 = vmatpush1.msra.mxu0 0.0
      %6477 = vmatprep.subr.mxu0 0.0
      %6478 = vmatpush1.msra.mxu0 0.0
      %6479 = vmatprep.subr.mxu0 0.0
      %6480 = vmatpush1.msra.mxu0 0.0
      %6481 = vmatprep.subr.mxu0 0.0
      %6482 = vmatpush1.msra.mxu0 0.0
      %6483 = vmatprep.subr.mxu0 0.0
      %6484 = vmatpush1.msra.mxu0 0.0
      %6485 = vmatprep.subr.mxu0 0.0
      %6486 = vmatpush1.msra.mxu0 0.0
      %6487 = vmatprep.subr.mxu0 0.0
      %6488 = vmatpush1.msra.mxu0 0.0
      %6489 = vmatprep.subr.mxu0 0.0
      %6490 = vmatpush1.msra.mxu0 0.0
      %6491 = vmatprep.subr.mxu0 0.0
      %6492 = vmatpush1.msra.mxu0 0.0
      %6493 = vmatprep.subr.mxu0 0.0
      %6494 = vmatpush1.msra.mxu0 0.0
      %6495 = vmatprep.subr.mxu0 0.0
      %6496 = vmatpush1.msra.mxu0 0.0
      %6497 = vmatprep.subr.mxu0 0.0
      %6498 = vmatpush1.msra.mxu0 0.0
      %6499 = vmatprep.subr.mxu0 0.0
      %6500 = vmatpush1.msra.mxu0 0.0
      %6501 = vmatprep.subr.mxu0 0.0
      %6502 = vmatpush1.msra.mxu0 0.0
      %6503 = vmatprep.subr.mxu0 0.0
      %6504 = vmatpush1.msra.mxu0 0.0
      %6505 = vmatprep.subr.mxu0 0.0
      %6506 = vmatpush1.msra.mxu0 0.0
      %6507 = vmatprep.mubr.f32.mxu0 0.0
      %6508 = vmatmul.mubr.f32.gmra.mrb[0].mxu0 %v6354
      %v6509 = vpop.f32.mrb[0].mxu0
      %v6510 = vadd.f32 0.0, %v6509
      %v6511 = vpop.f32.mrb[0].mxu0
      %v6512 = vadd.f32 0.0, %v6511
      %6513 = vdwg.mxu0
      %6514 = vmatprep.subr.mxu0 %v6366
      %6515 = vmatpush1.msra.mxu0 %v6364
      %6516 = vmatprep.subr.mxu0 0.0
      %6517 = vmatpush1.msra.mxu0 0.0
      %6518 = vmatprep.subr.mxu0 0.0
      %6519 = vmatpush1.msra.mxu0 0.0
      %6520 = vmatprep.subr.mxu0 0.0
      %6521 = vmatpush1.msra.mxu0 0.0
      %6522 = vmatprep.subr.mxu0 0.0
      %6523 = vmatpush1.msra.mxu0 0.0
      %6524 = vmatprep.subr.mxu0 0.0
      %6525 = vmatpush1.msra.mxu0 0.0
      %6526 = vmatprep.subr.mxu0 0.0
      %6527 = vmatpush1.msra.mxu0 0.0
      %6528 = vmatprep.subr.mxu0 0.0
      %6529 = vmatpush1.msra.mxu0 0.0
      %6530 = vmatprep.subr.mxu0 0.0
      %6531 = vmatpush1.msra.mxu0 0.0
      %6532 = vmatprep.subr.mxu0 0.0
      %6533 = vmatpush1.msra.mxu0 0.0
      %6534 = vmatprep.subr.mxu0 0.0
      %6535 = vmatpush1.msra.mxu0 0.0
      %6536 = vmatprep.subr.mxu0 0.0
      %6537 = vmatpush1.msra.mxu0 0.0
      %6538 = vmatprep.subr.mxu0 0.0
      %6539 = vmatpush1.msra.mxu0 0.0
      %6540 = vmatprep.subr.mxu0 0.0
      %6541 = vmatpush1.msra.mxu0 0.0
      %6542 = vmatprep.subr.mxu0 0.0
      %6543 = vmatpush1.msra.mxu0 0.0
      %6544 = vmatprep.subr.mxu0 0.0
      %6545 = vmatpush1.msra.mxu0 0.0
      %6546 = vmatprep.subr.mxu0 0.0
      %6547 = vmatpush1.msra.mxu0 0.0
      %6548 = vmatprep.subr.mxu0 0.0
      %6549 = vmatpush1.msra.mxu0 0.0
      %6550 = vmatprep.subr.mxu0 0.0
      %6551 = vmatpush1.msra.mxu0 0.0
      %6552 = vmatprep.subr.mxu0 0.0
      %6553 = vmatpush1.msra.mxu0 0.0
      %6554 = vmatprep.subr.mxu0 0.0
      %6555 = vmatpush1.msra.mxu0 0.0
      %6556 = vmatprep.subr.mxu0 0.0
      %6557 = vmatpush1.msra.mxu0 0.0
      %6558 = vmatprep.subr.mxu0 0.0
      %6559 = vmatpush1.msra.mxu0 0.0
      %6560 = vmatprep.subr.mxu0 0.0
      %6561 = vmatpush1.msra.mxu0 0.0
      %6562 = vmatprep.subr.mxu0 0.0
      %6563 = vmatpush1.msra.mxu0 0.0
      %6564 = vmatprep.subr.mxu0 0.0
      %6565 = vmatpush1.msra.mxu0 0.0
      %6566 = vmatprep.subr.mxu0 0.0
      %6567 = vmatpush1.msra.mxu0 0.0
      %6568 = vmatprep.subr.mxu0 0.0
      %6569 = vmatpush1.msra.mxu0 0.0
      %6570 = vmatprep.subr.mxu0 0.0
      %6571 = vmatpush1.msra.mxu0 0.0
      %6572 = vmatprep.subr.mxu0 0.0
      %6573 = vmatpush1.msra.mxu0 0.0
      %6574 = vmatprep.subr.mxu0 0.0
      %6575 = vmatpush1.msra.mxu0 0.0
      %6576 = vmatprep.subr.mxu0 0.0
      %6577 = vmatpush1.msra.mxu0 0.0
      %6578 = vmatprep.mubr.f32.mxu0 0.0
      %6579 = vmatmul.mubr.f32.gmra.mrb[0].mxu0 %v6354
      %v6580 = vpop.f32.mrb[0].mxu0
      %v6581 = vadd.f32 0.0, %v6580
      %v6582 = vpop.f32.mrb[0].mxu0
      %v6583 = vadd.f32 0.0, %v6582
      %6584 = vdwg.mxu0
      %6585 = vmatprep.subr.mxu0 %v6370
      %6586 = vmatpush1.msra.mxu0 %v6368
      %6587 = vmatprep.subr.mxu0 0.0
      %6588 = vmatpush1.msra.mxu0 0.0
      %6589 = vmatprep.subr.mxu0 0.0
      %6590 = vmatpush1.msra.mxu0 0.0
      %6591 = vmatprep.subr.mxu0 0.0
      %6592 = vmatpush1.msra.mxu0 0.0
      %6593 = vmatprep.subr.mxu0 0.0
      %6594 = vmatpush1.msra.mxu0 0.0
      %6595 = vmatprep.subr.mxu0 0.0
      %6596 = vmatpush1.msra.mxu0 0.0
      %6597 = vmatprep.subr.mxu0 0.0
      %6598 = vmatpush1.msra.mxu0 0.0
      %6599 = vmatprep.subr.mxu0 0.0
      %6600 = vmatpush1.msra.mxu0 0.0
      %6601 = vmatprep.subr.mxu0 0.0
      %6602 = vmatpush1.msra.mxu0 0.0
      %6603 = vmatprep.subr.mxu0 0.0
      %6604 = vmatpush1.msra.mxu0 0.0
      %6605 = vmatprep.subr.mxu0 0.0
      %6606 = vmatpush1.msra.mxu0 0.0
      %6607 = vmatprep.subr.mxu0 0.0
      %6608 = vmatpush1.msra.mxu0 0.0
      %6609 = vmatprep.subr.mxu0 0.0
      %6610 = vmatpush1.msra.mxu0 0.0
      %6611 = vmatprep.subr.mxu0 0.0
      %6612 = vmatpush1.msra.mxu0 0.0
      %6613 = vmatprep.subr.mxu0 0.0
      %6614 = vmatpush1.msra.mxu0 0.0
      %6615 = vmatprep.subr.mxu0 0.0
      %6616 = vmatpush1.msra.mxu0 0.0
      %6617 = vmatprep.subr.mxu0 0.0
      %6618 = vmatpush1.msra.mxu0 0.0
      %6619 = vmatprep.subr.mxu0 0.0
      %6620 = vmatpush1.msra.mxu0 0.0
      %6621 = vmatprep.subr.mxu0 0.0
      %6622 = vmatpush1.msra.mxu0 0.0
      %6623 = vmatprep.subr.mxu0 0.0
      %6624 = vmatpush1.msra.mxu0 0.0
      %6625 = vmatprep.subr.mxu0 0.0
      %6626 = vmatpush1.msra.mxu0 0.0
      %6627 = vmatprep.subr.mxu0 0.0
      %6628 = vmatpush1.msra.mxu0 0.0
      %6629 = vmatprep.subr.mxu0 0.0
      %6630 = vmatpush1.msra.mxu0 0.0
      %6631 = vmatprep.subr.mxu0 0.0
      %6632 = vmatpush1.msra.mxu0 0.0
      %6633 = vmatprep.subr.mxu0 0.0
      %6634 = vmatpush1.msra.mxu0 0.0
      %6635 = vmatprep.subr.mxu0 0.0
      %6636 = vmatpush1.msra.mxu0 0.0
      %6637 = vmatprep.subr.mxu0 0.0
      %6638 = vmatpush1.msra.mxu0 0.0
      %6639 = vmatprep.subr.mxu0 0.0
      %6640 = vmatpush1.msra.mxu0 0.0
      %6641 = vmatprep.subr.mxu0 0.0
      %6642 = vmatpush1.msra.mxu0 0.0
      %6643 = vmatprep.subr.mxu0 0.0
      %6644 = vmatpush1.msra.mxu0 0.0
      %6645 = vmatprep.subr.mxu0 0.0
      %6646 = vmatpush1.msra.mxu0 0.0
      %6647 = vmatprep.subr.mxu0 0.0
      %6648 = vmatpush1.msra.mxu0 0.0
      %6649 = vmatprep.mubr.f32.mxu0 0.0
      %6650 = vmatmul.mubr.f32.gmra.mrb[0].mxu0 %v6354
      %v6651 = vpop.f32.mrb[0].mxu0
      %v6652 = vadd.f32 0.0, %v6651
      %v6653 = vpop.f32.mrb[0].mxu0
      %v6654 = vadd.f32 0.0, %v6653
      %6655 = vdwg.mxu0
      %v6656 = vadd.f32 %v6319, %v6439
      %v6657 = vadd.f32 %v6320, %v6441
      %v6658 = vadd.f32 %v6321, %v6510
      %v6659 = vadd.f32 %v6322, %v6512
      %v6660 = vadd.f32 %v6323, %v6581
      %v6661 = vadd.f32 %v6324, %v6583
      %v6662 = vadd.f32 %v6325, %v6652
      %v6663 = vadd.f32 %v6326, %v6654
      %v6664 = vld [vmem:[%s7] sm:$0xff]
      %6666 = vset.pattern.permute.xlu0 0
      %6667 = vperm.xlu0 %6666, %v6664
      %v6668 = vpop.permute.xlu0 %6667
      %v6670 = vadd.f32 %v6656, %v6668
      %v6671 = vadd.f32 %v6657, %v6668
      %v6672 = vadd.f32 %v6658, %v6668
      %v6673 = vadd.f32 %v6659, %v6668
      %v6674 = vadd.f32 %v6660, %v6668
      %v6675 = vadd.f32 %v6661, %v6668
      %v6676 = vadd.f32 %v6662, %v6668
      %v6677 = vadd.f32 %v6663, %v6668
      %v6678 = vld [vmem:[%s8] sm:$0xff]
      %v6679 = vld [vmem:[%s8 + $0x8] sm:$0xff]
      %v6680 = vld [vmem:[%s8 + $0x10] sm:$0xff]
      %v6681 = vld [vmem:[%s8 + $0x18] sm:$0xff]
      %v6682 = vld [vmem:[%s9] sm:$0xff]
      %v6683 = vld [vmem:[%s9 + $0x8] sm:$0xff]
      %v6684 = vld [vmem:[%s9 + $0x10] sm:$0xff]
      %v6685 = vld [vmem:[%s9 + $0x18] sm:$0xff]
      %6687 = vset.pattern.permute.xlu0 0
      %6688 = vperm.xlu0 %6687, %v6682
      %v6689 = vpop.permute.xlu0 %6688
      %6692 = vset.pattern.permute.xlu0 0
      %6693 = vperm.xlu0 %6692, %v6683
      %v6694 = vpop.permute.xlu0 %6693
      %6697 = vset.pattern.permute.xlu0 0
      %6698 = vperm.xlu0 %6697, %v6684
      %v6699 = vpop.permute.xlu0 %6698
      %6702 = vset.pattern.permute.xlu0 0
      %6703 = vperm.xlu0 %6702, %v6685
      %v6704 = vpop.permute.xlu0 %6703
      %vm6706 = vcmask 64512
      %v6708 = vsel %vm6706, %v6678, 0
      %v6711 = vsel %vm6706, %v6679, 0
      %v6714 = vsel %vm6706, %v6680, 0
      %v6717 = vsel %vm6706, %v6681, 0
      %6719 = vmatprep.subr.mxu0 %v6671
      %6720 = vmatpush1.msra.mxu0 %v6670
      %6721 = vmatprep.subr.mxu0 0.0
      %6722 = vmatpush1.msra.mxu0 0.0
      %6723 = vmatprep.subr.mxu0 0.0
      %6724 = vmatpush1.msra.mxu0 0.0
      %6725 = vmatprep.subr.mxu0 0.0
      %6726 = vmatpush1.msra.mxu0 0.0
      %6727 = vmatprep.subr.mxu0 0.0
      %6728 = vmatpush1.msra.mxu0 0.0
      %6729 = vmatprep.subr.mxu0 0.0
      %6730 = vmatpush1.msra.mxu0 0.0
      %6731 = vmatprep.subr.mxu0 0.0
      %6732 = vmatpush1.msra.mxu0 0.0
      %6733 = vmatprep.subr.mxu0 0.0
      %6734 = vmatpush1.msra.mxu0 0.0
      %6735 = vmatprep.subr.mxu0 0.0
      %6736 = vmatpush1.msra.mxu0 0.0
      %6737 = vmatprep.subr.mxu0 0.0
      %6738 = vmatpush1.msra.mxu0 0.0
      %6739 = vmatprep.subr.mxu0 0.0
      %6740 = vmatpush1.msra.mxu0 0.0
      %6741 = vmatprep.subr.mxu0 0.0
      %6742 = vmatpush1.msra.mxu0 0.0
      %6743 = vmatprep.subr.mxu0 0.0
      %6744 = vmatpush1.msra.mxu0 0.0
      %6745 = vmatprep.subr.mxu0 0.0
      %6746 = vmatpush1.msra.mxu0 0.0
      %6747 = vmatprep.subr.mxu0 0.0
      %6748 = vmatpush1.msra.mxu0 0.0
      %6749 = vmatprep.subr.mxu0 0.0
      %6750 = vmatpush1.msra.mxu0 0.0
      %6751 = vmatprep.subr.mxu0 0.0
      %6752 = vmatpush1.msra.mxu0 0.0
      %6753 = vmatprep.subr.mxu0 0.0
      %6754 = vmatpush1.msra.mxu0 0.0
      %6755 = vmatprep.subr.mxu0 0.0
      %6756 = vmatpush1.msra.mxu0 0.0
      %6757 = vmatprep.subr.mxu0 0.0
      %6758 = vmatpush1.msra.mxu0 0.0
      %6759 = vmatprep.subr.mxu0 0.0
      %6760 = vmatpush1.msra.mxu0 0.0
      %6761 = vmatprep.subr.mxu0 0.0
      %6762 = vmatpush1.msra.mxu0 0.0
      %6763 = vmatprep.subr.mxu0 0.0
      %6764 = vmatpush1.msra.mxu0 0.0
      %6765 = vmatprep.subr.mxu0 0.0
      %6766 = vmatpush1.msra.mxu0 0.0
      %6767 = vmatprep.subr.mxu0 0.0
      %6768 = vmatpush1.msra.mxu0 0.0
      %6769 = vmatprep.subr.mxu0 0.0
      %6770 = vmatpush1.msra.mxu0 0.0
      %6771 = vmatprep.subr.mxu0 0.0
      %6772 = vmatpush1.msra.mxu0 0.0
      %6773 = vmatprep.subr.mxu0 0.0
      %6774 = vmatpush1.msra.mxu0 0.0
      %6775 = vmatprep.subr.mxu0 0.0
      %6776 = vmatpush1.msra.mxu0 0.0
      %6777 = vmatprep.subr.mxu0 0.0
      %6778 = vmatpush1.msra.mxu0 0.0
      %6779 = vmatprep.subr.mxu0 0.0
      %6780 = vmatpush1.msra.mxu0 0.0
      %6781 = vmatprep.subr.mxu0 0.0
      %6782 = vmatpush1.msra.mxu0 0.0
      %6783 = vmatprep.mubr.f32.mxu0 0.0
      %6784 = vmatmul.mubr.f32.gmra.mrb[0].mxu0 %v6708
      %v6785 = vpop.f32.mrb[0].mxu0
      %v6786 = vadd.f32 %v6689, %v6785
      %v6787 = vpop.f32.mrb[0].mxu0
      %v6788 = vadd.f32 %v6689, %v6787
      %6789 = vmatprep.mubr.f32.mxu0 0.0
      %6790 = vmatmul.mubr.f32.gmra.mrb[0].mxu0 %v6711
      %v6791 = vpop.f32.mrb[0].mxu0
      %v6792 = vadd.f32 %v6694, %v6791
      %v6793 = vpop.f32.mrb[0].mxu0
      %v6794 = vadd.f32 %v6694, %v6793
      %6795 = vmatprep.mubr.f32.mxu0 0.0
      %6796 = vmatmul.mubr.f32.gmra.mrb[0].mxu0 %v6714
      %v6797 = vpop.f32.mrb[0].mxu0
      %v6798 = vadd.f32 %v6699, %v6797
      %v6799 = vpop.f32.mrb[0].mxu0
      %v6800 = vadd.f32 %v6699, %v6799
      %6801 = vmatprep.mubr.f32.mxu0 0.0
      %6802 = vmatmul.mubr.f32.gmra.mrb[0].mxu0 %v6717
      %v6803 = vpop.f32.mrb[0].mxu0
      %v6804 = vadd.f32 %v6704, %v6803
      %v6805 = vpop.f32.mrb[0].mxu0
      %v6806 = vadd.f32 %v6704, %v6805
      %6807 = vdwg.mxu0
      %6808 = vmatprep.subr.mxu0 %v6673
      %6809 = vmatpush1.msra.mxu0 %v6672
      %6810 = vmatprep.subr.mxu0 0.0
      %6811 = vmatpush1.msra.mxu0 0.0
      %6812 = vmatprep.subr.mxu0 0.0
      %6813 = vmatpush1.msra.mxu0 0.0
      %6814 = vmatprep.subr.mxu0 0.0
      %6815 = vmatpush1.msra.mxu0 0.0
      %6816 = vmatprep.subr.mxu0 0.0
      %6817 = vmatpush1.msra.mxu0 0.0
      %6818 = vmatprep.subr.mxu0 0.0
      %6819 = vmatpush1.msra.mxu0 0.0
      %6820 = vmatprep.subr.mxu0 0.0
      %6821 = vmatpush1.msra.mxu0 0.0
      %6822 = vmatprep.subr.mxu0 0.0
      %6823 = vmatpush1.msra.mxu0 0.0
      %6824 = vmatprep.subr.mxu0 0.0
      %6825 = vmatpush1.msra.mxu0 0.0
      %6826 = vmatprep.subr.mxu0 0.0
      %6827 = vmatpush1.msra.mxu0 0.0
      %6828 = vmatprep.subr.mxu0 0.0
      %6829 = vmatpush1.msra.mxu0 0.0
      %6830 = vmatprep.subr.mxu0 0.0
      %6831 = vmatpush1.msra.mxu0 0.0
      %6832 = vmatprep.subr.mxu0 0.0
      %6833 = vmatpush1.msra.mxu0 0.0
      %6834 = vmatprep.subr.mxu0 0.0
      %6835 = vmatpush1.msra.mxu0 0.0
      %6836 = vmatprep.subr.mxu0 0.0
      %6837 = vmatpush1.msra.mxu0 0.0
      %6838 = vmatprep.subr.mxu0 0.0
      %6839 = vmatpush1.msra.mxu0 0.0
      %6840 = vmatprep.subr.mxu0 0.0
      %6841 = vmatpush1.msra.mxu0 0.0
      %6842 = vmatprep.subr.mxu0 0.0
      %6843 = vmatpush1.msra.mxu0 0.0
      %6844 = vmatprep.subr.mxu0 0.0
      %6845 = vmatpush1.msra.mxu0 0.0
      %6846 = vmatprep.subr.mxu0 0.0
      %6847 = vmatpush1.msra.mxu0 0.0
      %6848 = vmatprep.subr.mxu0 0.0
      %6849 = vmatpush1.msra.mxu0 0.0
      %6850 = vmatprep.subr.mxu0 0.0
      %6851 = vmatpush1.msra.mxu0 0.0
      %6852 = vmatprep.subr.mxu0 0.0
      %6853 = vmatpush1.msra.mxu0 0.0
      %6854 = vmatprep.subr.mxu0 0.0
      %6855 = vmatpush1.msra.mxu0 0.0
      %6856 = vmatprep.subr.mxu0 0.0
      %6857 = vmatpush1.msra.mxu0 0.0
      %6858 = vmatprep.subr.mxu0 0.0
      %6859 = vmatpush1.msra.mxu0 0.0
      %6860 = vmatprep.subr.mxu0 0.0
      %6861 = vmatpush1.msra.mxu0 0.0
      %6862 = vmatprep.subr.mxu0 0.0
      %6863 = vmatpush1.msra.mxu0 0.0
      %6864 = vmatprep.subr.mxu0 0.0
      %6865 = vmatpush1.msra.mxu0 0.0
      %6866 = vmatprep.subr.mxu0 0.0
      %6867 = vmatpush1.msra.mxu0 0.0
      %6868 = vmatprep.subr.mxu0 0.0
      %6869 = vmatpush1.msra.mxu0 0.0
      %6870 = vmatprep.subr.mxu0 0.0
      %6871 = vmatpush1.msra.mxu0 0.0
      %6872 = vmatprep.mubr.f32.mxu0 0.0
      %6873 = vmatmul.mubr.f32.gmra.mrb[0].mxu0 %v6708
      %v6874 = vpop.f32.mrb[0].mxu0
      %v6875 = vadd.f32 %v6689, %v6874
      %v6876 = vpop.f32.mrb[0].mxu0
      %v6877 = vadd.f32 %v6689, %v6876
      %6878 = vmatprep.mubr.f32.mxu0 0.0
      %6879 = vmatmul.mubr.f32.gmra.mrb[0].mxu0 %v6711
      %v6880 = vpop.f32.mrb[0].mxu0
      %v6881 = vadd.f32 %v6694, %v6880
      %v6882 = vpop.f32.mrb[0].mxu0
      %v6883 = vadd.f32 %v6694, %v6882
      %6884 = vmatprep.mubr.f32.mxu0 0.0
      %6885 = vmatmul.mubr.f32.gmra.mrb[0].mxu0 %v6714
      %v6886 = vpop.f32.mrb[0].mxu0
      %v6887 = vadd.f32 %v6699, %v6886
      %v6888 = vpop.f32.mrb[0].mxu0
      %v6889 = vadd.f32 %v6699, %v6888
      %6890 = vmatprep.mubr.f32.mxu0 0.0
      %6891 = vmatmul.mubr.f32.gmra.mrb[0].mxu0 %v6717
      %v6892 = vpop.f32.mrb[0].mxu0
      %v6893 = vadd.f32 %v6704, %v6892
      %v6894 = vpop.f32.mrb[0].mxu0
      %v6895 = vadd.f32 %v6704, %v6894
      %6896 = vdwg.mxu0
      %6897 = vmatprep.subr.mxu0 %v6675
      %6898 = vmatpush1.msra.mxu0 %v6674
      %6899 = vmatprep.subr.mxu0 0.0
      %6900 = vmatpush1.msra.mxu0 0.0
      %6901 = vmatprep.subr.mxu0 0.0
      %6902 = vmatpush1.msra.mxu0 0.0
      %6903 = vmatprep.subr.mxu0 0.0
      %6904 = vmatpush1.msra.mxu0 0.0
      %6905 = vmatprep.subr.mxu0 0.0
      %6906 = vmatpush1.msra.mxu0 0.0
      %6907 = vmatprep.subr.mxu0 0.0
      %6908 = vmatpush1.msra.mxu0 0.0
      %6909 = vmatprep.subr.mxu0 0.0
      %6910 = vmatpush1.msra.mxu0 0.0
      %6911 = vmatprep.subr.mxu0 0.0
      %6912 = vmatpush1.msra.mxu0 0.0
      %6913 = vmatprep.subr.mxu0 0.0
      %6914 = vmatpush1.msra.mxu0 0.0
      %6915 = vmatprep.subr.mxu0 0.0
      %6916 = vmatpush1.msra.mxu0 0.0
      %6917 = vmatprep.subr.mxu0 0.0
      %6918 = vmatpush1.msra.mxu0 0.0
      %6919 = vmatprep.subr.mxu0 0.0
      %6920 = vmatpush1.msra.mxu0 0.0
      %6921 = vmatprep.subr.mxu0 0.0
      %6922 = vmatpush1.msra.mxu0 0.0
      %6923 = vmatprep.subr.mxu0 0.0
      %6924 = vmatpush1.msra.mxu0 0.0
      %6925 = vmatprep.subr.mxu0 0.0
      %6926 = vmatpush1.msra.mxu0 0.0
      %6927 = vmatprep.subr.mxu0 0.0
      %6928 = vmatpush1.msra.mxu0 0.0
      %6929 = vmatprep.subr.mxu0 0.0
      %6930 = vmatpush1.msra.mxu0 0.0
      %6931 = vmatprep.subr.mxu0 0.0
      %6932 = vmatpush1.msra.mxu0 0.0
      %6933 = vmatprep.subr.mxu0 0.0
      %6934 = vmatpush1.msra.mxu0 0.0
      %6935 = vmatprep.subr.mxu0 0.0
      %6936 = vmatpush1.msra.mxu0 0.0
      %6937 = vmatprep.subr.mxu0 0.0
      %6938 = vmatpush1.msra.mxu0 0.0
      %6939 = vmatprep.subr.mxu0 0.0
      %6940 = vmatpush1.msra.mxu0 0.0
      %6941 = vmatprep.subr.mxu0 0.0
      %6942 = vmatpush1.msra.mxu0 0.0
      %6943 = vmatprep.subr.mxu0 0.0
      %6944 = vmatpush1.msra.mxu0 0.0
      %6945 = vmatprep.subr.mxu0 0.0
      %6946 = vmatpush1.msra.mxu0 0.0
      %6947 = vmatprep.subr.mxu0 0.0
      %6948 = vmatpush1.msra.mxu0 0.0
      %6949 = vmatprep.subr.mxu0 0.0
      %6950 = vmatpush1.msra.mxu0 0.0
      %6951 = vmatprep.subr.mxu0 0.0
      %6952 = vmatpush1.msra.mxu0 0.0
      %6953 = vmatprep.subr.mxu0 0.0
      %6954 = vmatpush1.msra.mxu0 0.0
      %6955 = vmatprep.subr.mxu0 0.0
      %6956 = vmatpush1.msra.mxu0 0.0
      %6957 = vmatprep.subr.mxu0 0.0
      %6958 = vmatpush1.msra.mxu0 0.0
      %6959 = vmatprep.subr.mxu0 0.0
      %6960 = vmatpush1.msra.mxu0 0.0
      %6961 = vmatprep.mubr.f32.mxu0 0.0
      %6962 = vmatmul.mubr.f32.gmra.mrb[0].mxu0 %v6708
      %v6963 = vpop.f32.mrb[0].mxu0
      %v6964 = vadd.f32 %v6689, %v6963
      %v6965 = vpop.f32.mrb[0].mxu0
      %v6966 = vadd.f32 %v6689, %v6965
      %6967 = vmatprep.mubr.f32.mxu0 0.0
      %6968 = vmatmul.mubr.f32.gmra.mrb[0].mxu0 %v6711
      %v6969 = vpop.f32.mrb[0].mxu0
      %v6970 = vadd.f32 %v6694, %v6969
      %v6971 = vpop.f32.mrb[0].mxu0
      %v6972 = vadd.f32 %v6694, %v6971
      %6973 = vmatprep.mubr.f32.mxu0 0.0
      %6974 = vmatmul.mubr.f32.gmra.mrb[0].mxu0 %v6714
      %v6975 = vpop.f32.mrb[0].mxu0
      %v6976 = vadd.f32 %v6699, %v6975
      %v6977 = vpop.f32.mrb[0].mxu0
      %v6978 = vadd.f32 %v6699, %v6977
      %6979 = vmatprep.mubr.f32.mxu0 0.0
      %6980 = vmatmul.mubr.f32.gmra.mrb[0].mxu0 %v6717
      %v6981 = vpop.f32.mrb[0].mxu0
      %v6982 = vadd.f32 %v6704, %v6981
      %v6983 = vpop.f32.mrb[0].mxu0
      %v6984 = vadd.f32 %v6704, %v6983
      %6985 = vdwg.mxu0
      %6986 = vmatprep.subr.mxu0 %v6677
      %6987 = vmatpush1.msra.mxu0 %v6676
      %6988 = vmatprep.subr.mxu0 0.0
      %6989 = vmatpush1.msra.mxu0 0.0
      %6990 = vmatprep.subr.mxu0 0.0
      %6991 = vmatpush1.msra.mxu0 0.0
      %6992 = vmatprep.subr.mxu0 0.0
      %6993 = vmatpush1.msra.mxu0 0.0
      %6994 = vmatprep.subr.mxu0 0.0
      %6995 = vmatpush1.msra.mxu0 0.0
      %6996 = vmatprep.subr.mxu0 0.0
      %6997 = vmatpush1.msra.mxu0 0.0
      %6998 = vmatprep.subr.mxu0 0.0
      %6999 = vmatpush1.msra.mxu0 0.0
      %7000 = vmatprep.subr.mxu0 0.0
      %7001 = vmatpush1.msra.mxu0 0.0
      %7002 = vmatprep.subr.mxu0 0.0
      %7003 = vmatpush1.msra.mxu0 0.0
      %7004 = vmatprep.subr.mxu0 0.0
      %7005 = vmatpush1.msra.mxu0 0.0
      %7006 = vmatprep.subr.mxu0 0.0
      %7007 = vmatpush1.msra.mxu0 0.0
      %7008 = vmatprep.subr.mxu0 0.0
      %7009 = vmatpush1.msra.mxu0 0.0
      %7010 = vmatprep.subr.mxu0 0.0
      %7011 = vmatpush1.msra.mxu0 0.0
      %7012 = vmatprep.subr.mxu0 0.0
      %7013 = vmatpush1.msra.mxu0 0.0
      %7014 = vmatprep.subr.mxu0 0.0
      %7015 = vmatpush1.msra.mxu0 0.0
      %7016 = vmatprep.subr.mxu0 0.0
      %7017 = vmatpush1.msra.mxu0 0.0
      %7018 = vmatprep.subr.mxu0 0.0
      %7019 = vmatpush1.msra.mxu0 0.0
      %7020 = vmatprep.subr.mxu0 0.0
      %7021 = vmatpush1.msra.mxu0 0.0
      %7022 = vmatprep.subr.mxu0 0.0
      %7023 = vmatpush1.msra.mxu0 0.0
      %7024 = vmatprep.subr.mxu0 0.0
      %7025 = vmatpush1.msra.mxu0 0.0
      %7026 = vmatprep.subr.mxu0 0.0
      %7027 = vmatpush1.msra.mxu0 0.0
      %7028 = vmatprep.subr.mxu0 0.0
      %7029 = vmatpush1.msra.mxu0 0.0
      %7030 = vmatprep.subr.mxu0 0.0
      %7031 = vmatpush1.msra.mxu0 0.0
      %7032 = vmatprep.subr.mxu0 0.0
      %7033 = vmatpush1.msra.mxu0 0.0
      %7034 = vmatprep.subr.mxu0 0.0
      %7035 = vmatpush1.msra.mxu0 0.0
      %7036 = vmatprep.subr.mxu0 0.0
      %7037 = vmatpush1.msra.mxu0 0.0
      %7038 = vmatprep.subr.mxu0 0.0
      %7039 = vmatpush1.msra.mxu0 0.0
      %7040 = vmatprep.subr.mxu0 0.0
      %7041 = vmatpush1.msra.mxu0 0.0
      %7042 = vmatprep.subr.mxu0 0.0
      %7043 = vmatpush1.msra.mxu0 0.0
      %7044 = vmatprep.subr.mxu0 0.0
      %7045 = vmatpush1.msra.mxu0 0.0
      %7046 = vmatprep.subr.mxu0 0.0
      %7047 = vmatpush1.msra.mxu0 0.0
      %7048 = vmatprep.subr.mxu0 0.0
      %7049 = vmatpush1.msra.mxu0 0.0
      %7050 = vmatprep.mubr.f32.mxu0 0.0
      %7051 = vmatmul.mubr.f32.gmra.mrb[0].mxu0 %v6708
      %v7052 = vpop.f32.mrb[0].mxu0
      %v7053 = vadd.f32 %v6689, %v7052
      %v7054 = vpop.f32.mrb[0].mxu0
      %v7055 = vadd.f32 %v6689, %v7054
      %7056 = vmatprep.mubr.f32.mxu0 0.0
      %7057 = vmatmul.mubr.f32.gmra.mrb[0].mxu0 %v6711
      %v7058 = vpop.f32.mrb[0].mxu0
      %v7059 = vadd.f32 %v6694, %v7058
      %v7060 = vpop.f32.mrb[0].mxu0
      %v7061 = vadd.f32 %v6694, %v7060
      %7062 = vmatprep.mubr.f32.mxu0 0.0
      %7063 = vmatmul.mubr.f32.gmra.mrb[0].mxu0 %v6714
      %v7064 = vpop.f32.mrb[0].mxu0
      %v7065 = vadd.f32 %v6699, %v7064
      %v7066 = vpop.f32.mrb[0].mxu0
      %v7067 = vadd.f32 %v6699, %v7066
      %7068 = vmatprep.mubr.f32.mxu0 0.0
      %7069 = vmatmul.mubr.f32.gmra.mrb[0].mxu0 %v6717
      %v7070 = vpop.f32.mrb[0].mxu0
      %v7071 = vadd.f32 %v6704, %v7070
      %v7072 = vpop.f32.mrb[0].mxu0
      %v7073 = vadd.f32 %v6704, %v7072
      %7074 = vdwg.mxu0
      %vm7075 = vcmp.lt.f32.partialorder %v6786, 0.0
      %vm7076 = vcmp.lt.f32.partialorder %v6788, 0.0
      %vm7077 = vcmp.lt.f32.partialorder %v6875, 0.0
      %vm7078 = vcmp.lt.f32.partialorder %v6877, 0.0
      %vm7079 = vcmp.lt.f32.partialorder %v6964, 0.0
      %vm7080 = vcmp.lt.f32.partialorder %v6966, 0.0
      %vm7081 = vcmp.lt.f32.partialorder %v7053, 0.0
      %vm7082 = vcmp.lt.f32.partialorder %v7055, 0.0
      %vm7083 = vcmp.lt.f32.partialorder %v6792, 0.0
      %vm7084 = vcmp.lt.f32.partialorder %v6794, 0.0
      %vm7085 = vcmp.lt.f32.partialorder %v6881, 0.0
      %vm7086 = vcmp.lt.f32.partialorder %v6883, 0.0
      %vm7087 = vcmp.lt.f32.partialorder %v6970, 0.0
      %vm7088 = vcmp.lt.f32.partialorder %v6972, 0.0
      %vm7089 = vcmp.lt.f32.partialorder %v7059, 0.0
      %vm7090 = vcmp.lt.f32.partialorder %v7061, 0.0
      %vm7091 = vcmp.lt.f32.partialorder %v6798, 0.0
      %vm7092 = vcmp.lt.f32.partialorder %v6800, 0.0
      %vm7093 = vcmp.lt.f32.partialorder %v6887, 0.0
      %vm7094 = vcmp.lt.f32.partialorder %v6889, 0.0
      %vm7095 = vcmp.lt.f32.partialorder %v6976, 0.0
      %vm7096 = vcmp.lt.f32.partialorder %v6978, 0.0
      %vm7097 = vcmp.lt.f32.partialorder %v7065, 0.0
      %vm7098 = vcmp.lt.f32.partialorder %v7067, 0.0
      %vm7099 = vcmp.lt.f32.partialorder %v6804, 0.0
      %vm7100 = vcmp.lt.f32.partialorder %v6806, 0.0
      %vm7101 = vcmp.lt.f32.partialorder %v6893, 0.0
      %vm7102 = vcmp.lt.f32.partialorder %v6895, 0.0
      %vm7103 = vcmp.lt.f32.partialorder %v6982, 0.0
      %vm7104 = vcmp.lt.f32.partialorder %v6984, 0.0
      %vm7105 = vcmp.lt.f32.partialorder %v7071, 0.0
      %vm7106 = vcmp.lt.f32.partialorder %v7073, 0.0
      %v7107 = vsel %vm7075, -1.0, 1.0
      %v7108 = vsel %vm7076, -1.0, 1.0
      %v7109 = vsel %vm7077, -1.0, 1.0
      %v7110 = vsel %vm7078, -1.0, 1.0
      %v7111 = vsel %vm7079, -1.0, 1.0
      %v7112 = vsel %vm7080, -1.0, 1.0
      %v7113 = vsel %vm7081, -1.0, 1.0
      %v7114 = vsel %vm7082, -1.0, 1.0
      %v7115 = vsel %vm7083, -1.0, 1.0
      %v7116 = vsel %vm7084, -1.0, 1.0
      %v7117 = vsel %vm7085, -1.0, 1.0
      %v7118 = vsel %vm7086, -1.0, 1.0
      %v7119 = vsel %vm7087, -1.0, 1.0
      %v7120 = vsel %vm7088, -1.0, 1.0
      %v7121 = vsel %vm7089, -1.0, 1.0
      %v7122 = vsel %vm7090, -1.0, 1.0
      %v7123 = vsel %vm7091, -1.0, 1.0
      %v7124 = vsel %vm7092, -1.0, 1.0
      %v7125 = vsel %vm7093, -1.0, 1.0
      %v7126 = vsel %vm7094, -1.0, 1.0
      %v7127 = vsel %vm7095, -1.0, 1.0
      %v7128 = vsel %vm7096, -1.0, 1.0
      %v7129 = vsel %vm7097, -1.0, 1.0
      %v7130 = vsel %vm7098, -1.0, 1.0
      %v7131 = vsel %vm7099, -1.0, 1.0
      %v7132 = vsel %vm7100, -1.0, 1.0
      %v7133 = vsel %vm7101, -1.0, 1.0
      %v7134 = vsel %vm7102, -1.0, 1.0
      %v7135 = vsel %vm7103, -1.0, 1.0
      %v7136 = vsel %vm7104, -1.0, 1.0
      %v7137 = vsel %vm7105, -1.0, 1.0
      %v7138 = vsel %vm7106, -1.0, 1.0
      %v7139 = vand.u32 2147483647, %v6786
      %v7140 = vand.u32 2147483647, %v6788
      %v7141 = vand.u32 2147483647, %v6875
      %v7142 = vand.u32 2147483647, %v6877
      %v7143 = vand.u32 2147483647, %v6964
      %v7144 = vand.u32 2147483647, %v6966
      %v7145 = vand.u32 2147483647, %v7053
      %v7146 = vand.u32 2147483647, %v7055
      %v7147 = vand.u32 2147483647, %v6792
      %v7148 = vand.u32 2147483647, %v6794
      %v7149 = vand.u32 2147483647, %v6881
      %v7150 = vand.u32 2147483647, %v6883
      %v7151 = vand.u32 2147483647, %v6970
      %v7152 = vand.u32 2147483647, %v6972
      %v7153 = vand.u32 2147483647, %v7059
      %v7154 = vand.u32 2147483647, %v7061
      %v7155 = vand.u32 2147483647, %v6798
      %v7156 = vand.u32 2147483647, %v6800
      %v7157 = vand.u32 2147483647, %v6887
      %v7158 = vand.u32 2147483647, %v6889
      %v7159 = vand.u32 2147483647, %v6976
      %v7160 = vand.u32 2147483647, %v6978
      %v7161 = vand.u32 2147483647, %v7065
      %v7162 = vand.u32 2147483647, %v7067
      %v7163 = vand.u32 2147483647, %v6804
      %v7164 = vand.u32 2147483647, %v6806
      %v7165 = vand.u32 2147483647, %v6893
      %v7166 = vand.u32 2147483647, %v6895
      %v7167 = vand.u32 2147483647, %v6982
      %v7168 = vand.u32 2147483647, %v6984
      %v7169 = vand.u32 2147483647, %v7071
      %v7170 = vand.u32 2147483647, %v7073
      %v7171 = vmul.f32 %v7139, 0.3275911
      %v7172 = vmul.f32 %v7140, 0.3275911
      %v7173 = vmul.f32 %v7141, 0.3275911
      %v7174 = vmul.f32 %v7142, 0.3275911
      %v7175 = vmul.f32 %v7143, 0.3275911
      %v7176 = vmul.f32 %v7144, 0.3275911
      %v7177 = vmul.f32 %v7145, 0.3275911
      %v7178 = vmul.f32 %v7146, 0.3275911
      %v7179 = vmul.f32 %v7147, 0.3275911
      %v7180 = vmul.f32 %v7148, 0.3275911
      %v7181 = vmul.f32 %v7149, 0.3275911
      %v7182 = vmul.f32 %v7150, 0.3275911
      %v7183 = vmul.f32 %v7151, 0.3275911
      %v7184 = vmul.f32 %v7152, 0.3275911
      %v7185 = vmul.f32 %v7153, 0.3275911
      %v7186 = vmul.f32 %v7154, 0.3275911
      %v7187 = vmul.f32 %v7155, 0.3275911
      %v7188 = vmul.f32 %v7156, 0.3275911
      %v7189 = vmul.f32 %v7157, 0.3275911
      %v7190 = vmul.f32 %v7158, 0.3275911
      %v7191 = vmul.f32 %v7159, 0.3275911
      %v7192 = vmul.f32 %v7160, 0.3275911
      %v7193 = vmul.f32 %v7161, 0.3275911
      %v7194 = vmul.f32 %v7162, 0.3275911
      %v7195 = vmul.f32 %v7163, 0.3275911
      %v7196 = vmul.f32 %v7164, 0.3275911
      %v7197 = vmul.f32 %v7165, 0.3275911
      %v7198 = vmul.f32 %v7166, 0.3275911
      %v7199 = vmul.f32 %v7167, 0.3275911
      %v7200 = vmul.f32 %v7168, 0.3275911
      %v7201 = vmul.f32 %v7169, 0.3275911
      %v7202 = vmul.f32 %v7170, 0.3275911
      %v7203 = vadd.f32 %v7171, 1.0
      %v7204 = vadd.f32 %v7172, 1.0
      %v7205 = vadd.f32 %v7173, 1.0
      %v7206 = vadd.f32 %v7174, 1.0
      %v7207 = vadd.f32 %v7175, 1.0
      %v7208 = vadd.f32 %v7176, 1.0
      %v7209 = vadd.f32 %v7177, 1.0
      %v7210 = vadd.f32 %v7178, 1.0
      %v7211 = vadd.f32 %v7179, 1.0
      %v7212 = vadd.f32 %v7180, 1.0
      %v7213 = vadd.f32 %v7181, 1.0
      %v7214 = vadd.f32 %v7182, 1.0
      %v7215 = vadd.f32 %v7183, 1.0
      %v7216 = vadd.f32 %v7184, 1.0
      %v7217 = vadd.f32 %v7185, 1.0
      %v7218 = vadd.f32 %v7186, 1.0
      %v7219 = vadd.f32 %v7187, 1.0
      %v7220 = vadd.f32 %v7188, 1.0
      %v7221 = vadd.f32 %v7189, 1.0
      %v7222 = vadd.f32 %v7190, 1.0
      %v7223 = vadd.f32 %v7191, 1.0
      %v7224 = vadd.f32 %v7192, 1.0
      %v7225 = vadd.f32 %v7193, 1.0
      %v7226 = vadd.f32 %v7194, 1.0
      %v7227 = vadd.f32 %v7195, 1.0
      %v7228 = vadd.f32 %v7196, 1.0
      %v7229 = vadd.f32 %v7197, 1.0
      %v7230 = vadd.f32 %v7198, 1.0
      %v7231 = vadd.f32 %v7199, 1.0
      %v7232 = vadd.f32 %v7200, 1.0
      %v7233 = vadd.f32 %v7201, 1.0
      %v7234 = vadd.f32 %v7202, 1.0
      %v7235 = vrcp.pop %v7203
      %v7236 = vmul.f32 1.0, %v7235
      %v7237 = vrcp.pop %v7204
      %v7238 = vmul.f32 1.0, %v7237
      %v7239 = vrcp.pop %v7205
      %v7240 = vmul.f32 1.0, %v7239
      %v7241 = vrcp.pop %v7206
      %v7242 = vmul.f32 1.0, %v7241
      %v7243 = vrcp.pop %v7207
      %v7244 = vmul.f32 1.0, %v7243
      %v7245 = vrcp.pop %v7208
      %v7246 = vmul.f32 1.0, %v7245
      %v7247 = vrcp.pop %v7209
      %v7248 = vmul.f32 1.0, %v7247
      %v7249 = vrcp.pop %v7210
      %v7250 = vmul.f32 1.0, %v7249
      %v7251 = vrcp.pop %v7211
      %v7252 = vmul.f32 1.0, %v7251
      %v7253 = vrcp.pop %v7212
      %v7254 = vmul.f32 1.0, %v7253
      %v7255 = vrcp.pop %v7213
      %v7256 = vmul.f32 1.0, %v7255
      %v7257 = vrcp.pop %v7214
      %v7258 = vmul.f32 1.0, %v7257
      %v7259 = vrcp.pop %v7215
      %v7260 = vmul.f32 1.0, %v7259
      %v7261 = vrcp.pop %v7216
      %v7262 = vmul.f32 1.0, %v7261
      %v7263 = vrcp.pop %v7217
      %v7264 = vmul.f32 1.0, %v7263
      %v7265 = vrcp.pop %v7218
      %v7266 = vmul.f32 1.0, %v7265
      %v7267 = vrcp.pop %v7219
      %v7268 = vmul.f32 1.0, %v7267
      %v7269 = vrcp.pop %v7220
      %v7270 = vmul.f32 1.0, %v7269
      %v7271 = vrcp.pop %v7221
      %v7272 = vmul.f32 1.0, %v7271
      %v7273 = vrcp.pop %v7222
      %v7274 = vmul.f32 1.0, %v7273
      %v7275 = vrcp.pop %v7223
      %v7276 = vmul.f32 1.0, %v7275
      %v7277 = vrcp.pop %v7224
      %v7278 = vmul.f32 1.0, %v7277
      %v7279 = vrcp.pop %v7225
      %v7280 = vmul.f32 1.0, %v7279
      %v7281 = vrcp.pop %v7226
      %v7282 = vmul.f32 1.0, %v7281
      %v7283 = vrcp.pop %v7227
      %v7284 = vmul.f32 1.0, %v7283
      %v7285 = vrcp.pop %v7228
      %v7286 = vmul.f32 1.0, %v7285
      %v7287 = vrcp.pop %v7229
      %v7288 = vmul.f32 1.0, %v7287
      %v7289 = vrcp.pop %v7230
      %v7290 = vmul.f32 1.0, %v7289
      %v7291 = vrcp.pop %v7231
      %v7292 = vmul.f32 1.0, %v7291
      %v7293 = vrcp.pop %v7232
      %v7294 = vmul.f32 1.0, %v7293
      %v7295 = vrcp.pop %v7233
      %v7296 = vmul.f32 1.0, %v7295
      %v7297 = vrcp.pop %v7234
      %v7298 = vmul.f32 1.0, %v7297
      %v7299 = vmul.f32 %v7236, 1.0614054
      %v7300 = vmul.f32 %v7238, 1.0614054
      %v7301 = vmul.f32 %v7240, 1.0614054
      %v7302 = vmul.f32 %v7242, 1.0614054
      %v7303 = vmul.f32 %v7244, 1.0614054
      %v7304 = vmul.f32 %v7246, 1.0614054
      %v7305 = vmul.f32 %v7248, 1.0614054
      %v7306 = vmul.f32 %v7250, 1.0614054
      %v7307 = vmul.f32 %v7252, 1.0614054
      %v7308 = vmul.f32 %v7254, 1.0614054
      %v7309 = vmul.f32 %v7256, 1.0614054
      %v7310 = vmul.f32 %v7258, 1.0614054
      %v7311 = vmul.f32 %v7260, 1.0614054
      %v7312 = vmul.f32 %v7262, 1.0614054
      %v7313 = vmul.f32 %v7264, 1.0614054
      %v7314 = vmul.f32 %v7266, 1.0614054
      %v7315 = vmul.f32 %v7268, 1.0614054
      %v7316 = vmul.f32 %v7270, 1.0614054
      %v7317 = vmul.f32 %v7272, 1.0614054
      %v7318 = vmul.f32 %v7274, 1.0614054
      %v7319 = vmul.f32 %v7276, 1.0614054
      %v7320 = vmul.f32 %v7278, 1.0614054
      %v7321 = vmul.f32 %v7280, 1.0614054
      %v7322 = vmul.f32 %v7282, 1.0614054
      %v7323 = vmul.f32 %v7284, 1.0614054
      %v7324 = vmul.f32 %v7286, 1.0614054
      %v7325 = vmul.f32 %v7288, 1.0614054
      %v7326 = vmul.f32 %v7290, 1.0614054
      %v7327 = vmul.f32 %v7292, 1.0614054
      %v7328 = vmul.f32 %v7294, 1.0614054
      %v7329 = vmul.f32 %v7296, 1.0614054
      %v7330 = vmul.f32 %v7298, 1.0614054
      %v7331 = vadd.f32 %v7299, -1.4531521
      %v7332 = vadd.f32 %v7300, -1.4531521
      %v7333 = vadd.f32 %v7301, -1.4531521
      %v7334 = vadd.f32 %v7302, -1.4531521
      %v7335 = vadd.f32 %v7303, -1.4531521
      %v7336 = vadd.f32 %v7304, -1.4531521
      %v7337 = vadd.f32 %v7305, -1.4531521
      %v7338 = vadd.f32 %v7306, -1.4531521
      %v7339 = vadd.f32 %v7307, -1.4531521
      %v7340 = vadd.f32 %v7308, -1.4531521
      %v7341 = vadd.f32 %v7309, -1.4531521
      %v7342 = vadd.f32 %v7310, -1.4531521
      %v7343 = vadd.f32 %v7311, -1.4531521
      %v7344 = vadd.f32 %v7312, -1.4531521
      %v7345 = vadd.f32 %v7313, -1.4531521
      %v7346 = vadd.f32 %v7314, -1.4531521
      %v7347 = vadd.f32 %v7315, -1.4531521
      %v7348 = vadd.f32 %v7316, -1.4531521
      %v7349 = vadd.f32 %v7317, -1.4531521
      %v7350 = vadd.f32 %v7318, -1.4531521
      %v7351 = vadd.f32 %v7319, -1.4531521
      %v7352 = vadd.f32 %v7320, -1.4531521
      %v7353 = vadd.f32 %v7321, -1.4531521
      %v7354 = vadd.f32 %v7322, -1.4531521
      %v7355 = vadd.f32 %v7323, -1.4531521
      %v7356 = vadd.f32 %v7324, -1.4531521
      %v7357 = vadd.f32 %v7325, -1.4531521
      %v7358 = vadd.f32 %v7326, -1.4531521
      %v7359 = vadd.f32 %v7327, -1.4531521
      %v7360 = vadd.f32 %v7328, -1.4531521
      %v7361 = vadd.f32 %v7329, -1.4531521
      %v7362 = vadd.f32 %v7330, -1.4531521
      %v7363 = vmul.f32 %v7331, %v7236
      %v7364 = vmul.f32 %v7332, %v7238
      %v7365 = vmul.f32 %v7333, %v7240
      %v7366 = vmul.f32 %v7334, %v7242
      %v7367 = vmul.f32 %v7335, %v7244
      %v7368 = vmul.f32 %v7336, %v7246
      %v7369 = vmul.f32 %v7337, %v7248
      %v7370 = vmul.f32 %v7338, %v7250
      %v7371 = vmul.f32 %v7339, %v7252
      %v7372 = vmul.f32 %v7340, %v7254
      %v7373 = vmul.f32 %v7341, %v7256
      %v7374 = vmul.f32 %v7342, %v7258
      %v7375 = vmul.f32 %v7343, %v7260
      %v7376 = vmul.f32 %v7344, %v7262
      %v7377 = vmul.f32 %v7345, %v7264
      %v7378 = vmul.f32 %v7346, %v7266
      %v7379 = vmul.f32 %v7347, %v7268
      %v7380 = vmul.f32 %v7348, %v7270
      %v7381 = vmul.f32 %v7349, %v7272
      %v7382 = vmul.f32 %v7350, %v7274
      %v7383 = vmul.f32 %v7351, %v7276
      %v7384 = vmul.f32 %v7352, %v7278
      %v7385 = vmul.f32 %v7353, %v7280
      %v7386 = vmul.f32 %v7354, %v7282
      %v7387 = vmul.f32 %v7355, %v7284
      %v7388 = vmul.f32 %v7356, %v7286
      %v7389 = vmul.f32 %v7357, %v7288
      %v7390 = vmul.f32 %v7358, %v7290
      %v7391 = vmul.f32 %v7359, %v7292
      %v7392 = vmul.f32 %v7360, %v7294
      %v7393 = vmul.f32 %v7361, %v7296
      %v7394 = vmul.f32 %v7362, %v7298
      %v7395 = vadd.f32 %v7363, 1.4214138
      %v7396 = vadd.f32 %v7364, 1.4214138
      %v7397 = vadd.f32 %v7365, 1.4214138
      %v7398 = vadd.f32 %v7366, 1.4214138
      %v7399 = vadd.f32 %v7367, 1.4214138
      %v7400 = vadd.f32 %v7368, 1.4214138
      %v7401 = vadd.f32 %v7369, 1.4214138
      %v7402 = vadd.f32 %v7370, 1.4214138
      %v7403 = vadd.f32 %v7371, 1.4214138
      %v7404 = vadd.f32 %v7372, 1.4214138
      %v7405 = vadd.f32 %v7373, 1.4214138
      %v7406 = vadd.f32 %v7374, 1.4214138
      %v7407 = vadd.f32 %v7375, 1.4214138
      %v7408 = vadd.f32 %v7376, 1.4214138
      %v7409 = vadd.f32 %v7377, 1.4214138
      %v7410 = vadd.f32 %v7378, 1.4214138
      %v7411 = vadd.f32 %v7379, 1.4214138
      %v7412 = vadd.f32 %v7380, 1.4214138
      %v7413 = vadd.f32 %v7381, 1.4214138
      %v7414 = vadd.f32 %v7382, 1.4214138
      %v7415 = vadd.f32 %v7383, 1.4214138
      %v7416 = vadd.f32 %v7384, 1.4214138
      %v7417 = vadd.f32 %v7385, 1.4214138
      %v7418 = vadd.f32 %v7386, 1.4214138
      %v7419 = vadd.f32 %v7387, 1.4214138
      %v7420 = vadd.f32 %v7388, 1.4214138
      %v7421 = vadd.f32 %v7389, 1.4214138
      %v7422 = vadd.f32 %v7390, 1.4214138
      %v7423 = vadd.f32 %v7391, 1.4214138
      %v7424 = vadd.f32 %v7392, 1.4214138
      %v7425 = vadd.f32 %v7393, 1.4214138
      %v7426 = vadd.f32 %v7394, 1.4214138
      %v7427 = vmul.f32 %v7395, %v7236
      %v7428 = vmul.f32 %v7396, %v7238
      %v7429 = vmul.f32 %v7397, %v7240
      %v7430 = vmul.f32 %v7398, %v7242
      %v7431 = vmul.f32 %v7399, %v7244
      %v7432 = vmul.f32 %v7400, %v7246
      %v7433 = vmul.f32 %v7401, %v7248
      %v7434 = vmul.f32 %v7402, %v7250
      %v7435 = vmul.f32 %v7403, %v7252
      %v7436 = vmul.f32 %v7404, %v7254
      %v7437 = vmul.f32 %v7405, %v7256
      %v7438 = vmul.f32 %v7406, %v7258
      %v7439 = vmul.f32 %v7407, %v7260
      %v7440 = vmul.f32 %v7408, %v7262
      %v7441 = vmul.f32 %v7409, %v7264
      %v7442 = vmul.f32 %v7410, %v7266
      %v7443 = vmul.f32 %v7411, %v7268
      %v7444 = vmul.f32 %v7412, %v7270
      %v7445 = vmul.f32 %v7413, %v7272
      %v7446 = vmul.f32 %v7414, %v7274
      %v7447 = vmul.f32 %v7415, %v7276
      %v7448 = vmul.f32 %v7416, %v7278
      %v7449 = vmul.f32 %v7417, %v7280
      %v7450 = vmul.f32 %v7418, %v7282
      %v7451 = vmul.f32 %v7419, %v7284
      %v7452 = vmul.f32 %v7420, %v7286
      %v7453 = vmul.f32 %v7421, %v7288
      %v7454 = vmul.f32 %v7422, %v7290
      %v7455 = vmul.f32 %v7423, %v7292
      %v7456 = vmul.f32 %v7424, %v7294
      %v7457 = vmul.f32 %v7425, %v7296
      %v7458 = vmul.f32 %v7426, %v7298
      %v7459 = vadd.f32 %v7427, -0.28449672
      %v7460 = vadd.f32 %v7428, -0.28449672
      %v7461 = vadd.f32 %v7429, -0.28449672
      %v7462 = vadd.f32 %v7430, -0.28449672
      %v7463 = vadd.f32 %v7431, -0.28449672
      %v7464 = vadd.f32 %v7432, -0.28449672
      %v7465 = vadd.f32 %v7433, -0.28449672
      %v7466 = vadd.f32 %v7434, -0.28449672
      %v7467 = vadd.f32 %v7435, -0.28449672
      %v7468 = vadd.f32 %v7436, -0.28449672
      %v7469 = vadd.f32 %v7437, -0.28449672
      %v7470 = vadd.f32 %v7438, -0.28449672
      %v7471 = vadd.f32 %v7439, -0.28449672
      %v7472 = vadd.f32 %v7440, -0.28449672
      %v7473 = vadd.f32 %v7441, -0.28449672
      %v7474 = vadd.f32 %v7442, -0.28449672
      %v7475 = vadd.f32 %v7443, -0.28449672
      %v7476 = vadd.f32 %v7444, -0.28449672
      %v7477 = vadd.f32 %v7445, -0.28449672
      %v7478 = vadd.f32 %v7446, -0.28449672
      %v7479 = vadd.f32 %v7447, -0.28449672
      %v7480 = vadd.f32 %v7448, -0.28449672
      %v7481 = vadd.f32 %v7449, -0.28449672
      %v7482 = vadd.f32 %v7450, -0.28449672
      %v7483 = vadd.f32 %v7451, -0.28449672
      %v7484 = vadd.f32 %v7452, -0.28449672
      %v7485 = vadd.f32 %v7453, -0.28449672
      %v7486 = vadd.f32 %v7454, -0.28449672
      %v7487 = vadd.f32 %v7455, -0.28449672
      %v7488 = vadd.f32 %v7456, -0.28449672
      %v7489 = vadd.f32 %v7457, -0.28449672
      %v7490 = vadd.f32 %v7458, -0.28449672
      %v7491 = vmul.f32 %v7459, %v7236
      %v7492 = vmul.f32 %v7460, %v7238
      %v7493 = vmul.f32 %v7461, %v7240
      %v7494 = vmul.f32 %v7462, %v7242
      %v7495 = vmul.f32 %v7463, %v7244
      %v7496 = vmul.f32 %v7464, %v7246
      %v7497 = vmul.f32 %v7465, %v7248
      %v7498 = vmul.f32 %v7466, %v7250
      %v7499 = vmul.f32 %v7467, %v7252
      %v7500 = vmul.f32 %v7468, %v7254
      %v7501 = vmul.f32 %v7469, %v7256
      %v7502 = vmul.f32 %v7470, %v7258
      %v7503 = vmul.f32 %v7471, %v7260
      %v7504 = vmul.f32 %v7472, %v7262
      %v7505 = vmul.f32 %v7473, %v7264
      %v7506 = vmul.f32 %v7474, %v7266
      %v7507 = vmul.f32 %v7475, %v7268
      %v7508 = vmul.f32 %v7476, %v7270
      %v7509 = vmul.f32 %v7477, %v7272
      %v7510 = vmul.f32 %v7478, %v7274
      %v7511 = vmul.f32 %v7479, %v7276
      %v7512 = vmul.f32 %v7480, %v7278
      %v7513 = vmul.f32 %v7481, %v7280
      %v7514 = vmul.f32 %v7482, %v7282
      %v7515 = vmul.f32 %v7483, %v7284
      %v7516 = vmul.f32 %v7484, %v7286
      %v7517 = vmul.f32 %v7485, %v7288
      %v7518 = vmul.f32 %v7486, %v7290
      %v7519 = vmul.f32 %v7487, %v7292
      %v7520 = vmul.f32 %v7488, %v7294
      %v7521 = vmul.f32 %v7489, %v7296
      %v7522 = vmul.f32 %v7490, %v7298
      %v7523 = vadd.f32 %v7491, 0.2548296
      %v7524 = vadd.f32 %v7492, 0.2548296
      %v7525 = vadd.f32 %v7493, 0.2548296
      %v7526 = vadd.f32 %v7494, 0.2548296
      %v7527 = vadd.f32 %v7495, 0.2548296
      %v7528 = vadd.f32 %v7496, 0.2548296
      %v7529 = vadd.f32 %v7497, 0.2548296
      %v7530 = vadd.f32 %v7498, 0.2548296
      %v7531 = vadd.f32 %v7499, 0.2548296
      %v7532 = vadd.f32 %v7500, 0.2548296
      %v7533 = vadd.f32 %v7501, 0.2548296
      %v7534 = vadd.f32 %v7502, 0.2548296
      %v7535 = vadd.f32 %v7503, 0.2548296
      %v7536 = vadd.f32 %v7504, 0.2548296
      %v7537 = vadd.f32 %v7505, 0.2548296
      %v7538 = vadd.f32 %v7506, 0.2548296
      %v7539 = vadd.f32 %v7507, 0.2548296
      %v7540 = vadd.f32 %v7508, 0.2548296
      %v7541 = vadd.f32 %v7509, 0.2548296
      %v7542 = vadd.f32 %v7510, 0.2548296
      %v7543 = vadd.f32 %v7511, 0.2548296
      %v7544 = vadd.f32 %v7512, 0.2548296
      %v7545 = vadd.f32 %v7513, 0.2548296
      %v7546 = vadd.f32 %v7514, 0.2548296
      %v7547 = vadd.f32 %v7515, 0.2548296
      %v7548 = vadd.f32 %v7516, 0.2548296
      %v7549 = vadd.f32 %v7517, 0.2548296
      %v7550 = vadd.f32 %v7518, 0.2548296
      %v7551 = vadd.f32 %v7519, 0.2548296
      %v7552 = vadd.f32 %v7520, 0.2548296
      %v7553 = vadd.f32 %v7521, 0.2548296
      %v7554 = vadd.f32 %v7522, 0.2548296
      %v7555 = vmul.f32 %v7523, %v7236
      %v7556 = vmul.f32 %v7524, %v7238
      %v7557 = vmul.f32 %v7525, %v7240
      %v7558 = vmul.f32 %v7526, %v7242
      %v7559 = vmul.f32 %v7527, %v7244
      %v7560 = vmul.f32 %v7528, %v7246
      %v7561 = vmul.f32 %v7529, %v7248
      %v7562 = vmul.f32 %v7530, %v7250
      %v7563 = vmul.f32 %v7531, %v7252
      %v7564 = vmul.f32 %v7532, %v7254
      %v7565 = vmul.f32 %v7533, %v7256
      %v7566 = vmul.f32 %v7534, %v7258
      %v7567 = vmul.f32 %v7535, %v7260
      %v7568 = vmul.f32 %v7536, %v7262
      %v7569 = vmul.f32 %v7537, %v7264
      %v7570 = vmul.f32 %v7538, %v7266
      %v7571 = vmul.f32 %v7539, %v7268
      %v7572 = vmul.f32 %v7540, %v7270
      %v7573 = vmul.f32 %v7541, %v7272
      %v7574 = vmul.f32 %v7542, %v7274
      %v7575 = vmul.f32 %v7543, %v7276
      %v7576 = vmul.f32 %v7544, %v7278
      %v7577 = vmul.f32 %v7545, %v7280
      %v7578 = vmul.f32 %v7546, %v7282
      %v7579 = vmul.f32 %v7547, %v7284
      %v7580 = vmul.f32 %v7548, %v7286
      %v7581 = vmul.f32 %v7549, %v7288
      %v7582 = vmul.f32 %v7550, %v7290
      %v7583 = vmul.f32 %v7551, %v7292
      %v7584 = vmul.f32 %v7552, %v7294
      %v7585 = vmul.f32 %v7553, %v7296
      %v7586 = vmul.f32 %v7554, %v7298
      %v7587 = vsub.f32 0.0, %v7139
      %v7588 = vsub.f32 0.0, %v7140
      %v7589 = vsub.f32 0.0, %v7141
      %v7590 = vsub.f32 0.0, %v7142
      %v7591 = vsub.f32 0.0, %v7143
      %v7592 = vsub.f32 0.0, %v7144
      %v7593 = vsub.f32 0.0, %v7145
      %v7594 = vsub.f32 0.0, %v7146
      %v7595 = vsub.f32 0.0, %v7147
      %v7596 = vsub.f32 0.0, %v7148
      %v7597 = vsub.f32 0.0, %v7149
      %v7598 = vsub.f32 0.0, %v7150
      %v7599 = vsub.f32 0.0, %v7151
      %v7600 = vsub.f32 0.0, %v7152
      %v7601 = vsub.f32 0.0, %v7153
      %v7602 = vsub.f32 0.0, %v7154
      %v7603 = vsub.f32 0.0, %v7155
      %v7604 = vsub.f32 0.0, %v7156
      %v7605 = vsub.f32 0.0, %v7157
      %v7606 = vsub.f32 0.0, %v7158
      %v7607 = vsub.f32 0.0, %v7159
      %v7608 = vsub.f32 0.0, %v7160
      %v7609 = vsub.f32 0.0, %v7161
      %v7610 = vsub.f32 0.0, %v7162
      %v7611 = vsub.f32 0.0, %v7163
      %v7612 = vsub.f32 0.0, %v7164
      %v7613 = vsub.f32 0.0, %v7165
      %v7614 = vsub.f32 0.0, %v7166
      %v7615 = vsub.f32 0.0, %v7167
      %v7616 = vsub.f32 0.0, %v7168
      %v7617 = vsub.f32 0.0, %v7169
      %v7618 = vsub.f32 0.0, %v7170
      %v7619 = vmul.f32 %v7587, %v7139
      %v7620 = vmul.f32 %v7588, %v7140
      %v7621 = vmul.f32 %v7589, %v7141
      %v7622 = vmul.f32 %v7590, %v7142
      %v7623 = vmul.f32 %v7591, %v7143
      %v7624 = vmul.f32 %v7592, %v7144
      %v7625 = vmul.f32 %v7593, %v7145
      %v7626 = vmul.f32 %v7594, %v7146
      %v7627 = vmul.f32 %v7595, %v7147
      %v7628 = vmul.f32 %v7596, %v7148
      %v7629 = vmul.f32 %v7597, %v7149
      %v7630 = vmul.f32 %v7598, %v7150
      %v7631 = vmul.f32 %v7599, %v7151
      %v7632 = vmul.f32 %v7600, %v7152
      %v7633 = vmul.f32 %v7601, %v7153
      %v7634 = vmul.f32 %v7602, %v7154
      %v7635 = vmul.f32 %v7603, %v7155
      %v7636 = vmul.f32 %v7604, %v7156
      %v7637 = vmul.f32 %v7605, %v7157
      %v7638 = vmul.f32 %v7606, %v7158
      %v7639 = vmul.f32 %v7607, %v7159
      %v7640 = vmul.f32 %v7608, %v7160
      %v7641 = vmul.f32 %v7609, %v7161
      %v7642 = vmul.f32 %v7610, %v7162
      %v7643 = vmul.f32 %v7611, %v7163
      %v7644 = vmul.f32 %v7612, %v7164
      %v7645 = vmul.f32 %v7613, %v7165
      %v7646 = vmul.f32 %v7614, %v7166
      %v7647 = vmul.f32 %v7615, %v7167
      %v7648 = vmul.f32 %v7616, %v7168
      %v7649 = vmul.f32 %v7617, %v7169
      %v7650 = vmul.f32 %v7618, %v7170
      %v7651 = vmul.f32 %v7619, 1.442695
      %v7652 = vpow.pop %v7651
      %v7653 = vmul.f32 %v7620, 1.442695
      %v7654 = vpow.pop %v7653
      %v7655 = vmul.f32 %v7621, 1.442695
      %v7656 = vpow.pop %v7655
      %v7657 = vmul.f32 %v7622, 1.442695
      %v7658 = vpow.pop %v7657
      %v7659 = vmul.f32 %v7623, 1.442695
      %v7660 = vpow.pop %v7659
      %v7661 = vmul.f32 %v7624, 1.442695
      %v7662 = vpow.pop %v7661
      %v7663 = vmul.f32 %v7625, 1.442695
      %v7664 = vpow.pop %v7663
      %v7665 = vmul.f32 %v7626, 1.442695
      %v7666 = vpow.pop %v7665
      %v7667 = vmul.f32 %v7627, 1.442695
      %v7668 = vpow.pop %v7667
      %v7669 = vmul.f32 %v7628, 1.442695
      %v7670 = vpow.pop %v7669
      %v7671 = vmul.f32 %v7629, 1.442695
      %v7672 = vpow.pop %v7671
      %v7673 = vmul.f32 %v7630, 1.442695
      %v7674 = vpow.pop %v7673
      %v7675 = vmul.f32 %v7631, 1.442695
      %v7676 = vpow.pop %v7675
      %v7677 = vmul.f32 %v7632, 1.442695
      %v7678 = vpow.pop %v7677
      %v7679 = vmul.f32 %v7633, 1.442695
      %v7680 = vpow.pop %v7679
      %v7681 = vmul.f32 %v7634, 1.442695
      %v7682 = vpow.pop %v7681
      %v7683 = vmul.f32 %v7635, 1.442695
      %v7684 = vpow.pop %v7683
      %v7685 = vmul.f32 %v7636, 1.442695
      %v7686 = vpow.pop %v7685
      %v7687 = vmul.f32 %v7637, 1.442695
      %v7688 = vpow.pop %v7687
      %v7689 = vmul.f32 %v7638, 1.442695
      %v7690 = vpow.pop %v7689
      %v7691 = vmul.f32 %v7639, 1.442695
      %v7692 = vpow.pop %v7691
      %v7693 = vmul.f32 %v7640, 1.442695
      %v7694 = vpow.pop %v7693
      %v7695 = vmul.f32 %v7641, 1.442695
      %v7696 = vpow.pop %v7695
      %v7697 = vmul.f32 %v7642, 1.442695
      %v7698 = vpow.pop %v7697
      %v7699 = vmul.f32 %v7643, 1.442695
      %v7700 = vpow.pop %v7699
      %v7701 = vmul.f32 %v7644, 1.442695
      %v7702 = vpow.pop %v7701
      %v7703 = vmul.f32 %v7645, 1.442695
      %v7704 = vpow.pop %v7703
      %v7705 = vmul.f32 %v7646, 1.442695
      %v7706 = vpow.pop %v7705
      %v7707 = vmul.f32 %v7647, 1.442695
      %v7708 = vpow.pop %v7707
      %v7709 = vmul.f32 %v7648, 1.442695
      %v7710 = vpow.pop %v7709
      %v7711 = vmul.f32 %v7649, 1.442695
      %v7712 = vpow.pop %v7711
      %v7713 = vmul.f32 %v7650, 1.442695
      %v7714 = vpow.pop %v7713
      %v7715 = vmul.f32 %v7555, %v7652
      %v7716 = vmul.f32 %v7556, %v7654
      %v7717 = vmul.f32 %v7557, %v7656
      %v7718 = vmul.f32 %v7558, %v7658
      %v7719 = vmul.f32 %v7559, %v7660
      %v7720 = vmul.f32 %v7560, %v7662
      %v7721 = vmul.f32 %v7561, %v7664
      %v7722 = vmul.f32 %v7562, %v7666
      %v7723 = vmul.f32 %v7563, %v7668
      %v7724 = vmul.f32 %v7564, %v7670
      %v7725 = vmul.f32 %v7565, %v7672
      %v7726 = vmul.f32 %v7566, %v7674
      %v7727 = vmul.f32 %v7567, %v7676
      %v7728 = vmul.f32 %v7568, %v7678
      %v7729 = vmul.f32 %v7569, %v7680
      %v7730 = vmul.f32 %v7570, %v7682
      %v7731 = vmul.f32 %v7571, %v7684
      %v7732 = vmul.f32 %v7572, %v7686
      %v7733 = vmul.f32 %v7573, %v7688
      %v7734 = vmul.f32 %v7574, %v7690
      %v7735 = vmul.f32 %v7575, %v7692
      %v7736 = vmul.f32 %v7576, %v7694
      %v7737 = vmul.f32 %v7577, %v7696
      %v7738 = vmul.f32 %v7578, %v7698
      %v7739 = vmul.f32 %v7579, %v7700
      %v7740 = vmul.f32 %v7580, %v7702
      %v7741 = vmul.f32 %v7581, %v7704
      %v7742 = vmul.f32 %v7582, %v7706
      %v7743 = vmul.f32 %v7583, %v7708
      %v7744 = vmul.f32 %v7584, %v7710
      %v7745 = vmul.f32 %v7585, %v7712
      %v7746 = vmul.f32 %v7586, %v7714
      %v7747 = vsub.f32 1.0, %v7715
      %v7748 = vsub.f32 1.0, %v7716
      %v7749 = vsub.f32 1.0, %v7717
      %v7750 = vsub.f32 1.0, %v7718
      %v7751 = vsub.f32 1.0, %v7719
      %v7752 = vsub.f32 1.0, %v7720
      %v7753 = vsub.f32 1.0, %v7721
      %v7754 = vsub.f32 1.0, %v7722
      %v7755 = vsub.f32 1.0, %v7723
      %v7756 = vsub.f32 1.0, %v7724
      %v7757 = vsub.f32 1.0, %v7725
      %v7758 = vsub.f32 1.0, %v7726
      %v7759 = vsub.f32 1.0, %v7727
      %v7760 = vsub.f32 1.0, %v7728
      %v7761 = vsub.f32 1.0, %v7729
      %v7762 = vsub.f32 1.0, %v7730
      %v7763 = vsub.f32 1.0, %v7731
      %v7764 = vsub.f32 1.0, %v7732
      %v7765 = vsub.f32 1.0, %v7733
      %v7766 = vsub.f32 1.0, %v7734
      %v7767 = vsub.f32 1.0, %v7735
      %v7768 = vsub.f32 1.0, %v7736
      %v7769 = vsub.f32 1.0, %v7737
      %v7770 = vsub.f32 1.0, %v7738
      %v7771 = vsub.f32 1.0, %v7739
      %v7772 = vsub.f32 1.0, %v7740
      %v7773 = vsub.f32 1.0, %v7741
      %v7774 = vsub.f32 1.0, %v7742
      %v7775 = vsub.f32 1.0, %v7743
      %v7776 = vsub.f32 1.0, %v7744
      %v7777 = vsub.f32 1.0, %v7745
      %v7778 = vsub.f32 1.0, %v7746
      %v7779 = vmul.f32 %v7107, %v7747
      %v7780 = vmul.f32 %v7108, %v7748
      %v7781 = vmul.f32 %v7109, %v7749
      %v7782 = vmul.f32 %v7110, %v7750
      %v7783 = vmul.f32 %v7111, %v7751
      %v7784 = vmul.f32 %v7112, %v7752
      %v7785 = vmul.f32 %v7113, %v7753
      %v7786 = vmul.f32 %v7114, %v7754
      %v7787 = vmul.f32 %v7115, %v7755
      %v7788 = vmul.f32 %v7116, %v7756
      %v7789 = vmul.f32 %v7117, %v7757
      %v7790 = vmul.f32 %v7118, %v7758
      %v7791 = vmul.f32 %v7119, %v7759
      %v7792 = vmul.f32 %v7120, %v7760
      %v7793 = vmul.f32 %v7121, %v7761
      %v7794 = vmul.f32 %v7122, %v7762
      %v7795 = vmul.f32 %v7123, %v7763
      %v7796 = vmul.f32 %v7124, %v7764
      %v7797 = vmul.f32 %v7125, %v7765
      %v7798 = vmul.f32 %v7126, %v7766
      %v7799 = vmul.f32 %v7127, %v7767
      %v7800 = vmul.f32 %v7128, %v7768
      %v7801 = vmul.f32 %v7129, %v7769
      %v7802 = vmul.f32 %v7130, %v7770
      %v7803 = vmul.f32 %v7131, %v7771
      %v7804 = vmul.f32 %v7132, %v7772
      %v7805 = vmul.f32 %v7133, %v7773
      %v7806 = vmul.f32 %v7134, %v7774
      %v7807 = vmul.f32 %v7135, %v7775
      %v7808 = vmul.f32 %v7136, %v7776
      %v7809 = vmul.f32 %v7137, %v7777
      %v7810 = vmul.f32 %v7138, %v7778
      %v7811 = vadd.f32 %v7779, 1.0
      %v7812 = vadd.f32 %v7780, 1.0
      %v7813 = vadd.f32 %v7781, 1.0
      %v7814 = vadd.f32 %v7782, 1.0
      %v7815 = vadd.f32 %v7783, 1.0
      %v7816 = vadd.f32 %v7784, 1.0
      %v7817 = vadd.f32 %v7785, 1.0
      %v7818 = vadd.f32 %v7786, 1.0
      %v7819 = vadd.f32 %v7787, 1.0
      %v7820 = vadd.f32 %v7788, 1.0
      %v7821 = vadd.f32 %v7789, 1.0
      %v7822 = vadd.f32 %v7790, 1.0
      %v7823 = vadd.f32 %v7791, 1.0
      %v7824 = vadd.f32 %v7792, 1.0
      %v7825 = vadd.f32 %v7793, 1.0
      %v7826 = vadd.f32 %v7794, 1.0
      %v7827 = vadd.f32 %v7795, 1.0
      %v7828 = vadd.f32 %v7796, 1.0
      %v7829 = vadd.f32 %v7797, 1.0
      %v7830 = vadd.f32 %v7798, 1.0
      %v7831 = vadd.f32 %v7799, 1.0
      %v7832 = vadd.f32 %v7800, 1.0
      %v7833 = vadd.f32 %v7801, 1.0
      %v7834 = vadd.f32 %v7802, 1.0
      %v7835 = vadd.f32 %v7803, 1.0
      %v7836 = vadd.f32 %v7804, 1.0
      %v7837 = vadd.f32 %v7805, 1.0
      %v7838 = vadd.f32 %v7806, 1.0
      %v7839 = vadd.f32 %v7807, 1.0
      %v7840 = vadd.f32 %v7808, 1.0
      %v7841 = vadd.f32 %v7809, 1.0
      %v7842 = vadd.f32 %v7810, 1.0
      %v7843 = vmul.f32 %v6786, %v7811
      %v7844 = vmul.f32 %v6788, %v7812
      %v7845 = vmul.f32 %v6875, %v7813
      %v7846 = vmul.f32 %v6877, %v7814
      %v7847 = vmul.f32 %v6964, %v7815
      %v7848 = vmul.f32 %v6966, %v7816
      %v7849 = vmul.f32 %v7053, %v7817
      %v7850 = vmul.f32 %v7055, %v7818
      %v7851 = vmul.f32 %v6792, %v7819
      %v7852 = vmul.f32 %v6794, %v7820
      %v7853 = vmul.f32 %v6881, %v7821
      %v7854 = vmul.f32 %v6883, %v7822
      %v7855 = vmul.f32 %v6970, %v7823
      %v7856 = vmul.f32 %v6972, %v7824
      %v7857 = vmul.f32 %v7059, %v7825
      %v7858 = vmul.f32 %v7061, %v7826
      %v7859 = vmul.f32 %v6798, %v7827
      %v7860 = vmul.f32 %v6800, %v7828
      %v7861 = vmul.f32 %v6887, %v7829
      %v7862 = vmul.f32 %v6889, %v7830
      %v7863 = vmul.f32 %v6976, %v7831
      %v7864 = vmul.f32 %v6978, %v7832
      %v7865 = vmul.f32 %v7065, %v7833
      %v7866 = vmul.f32 %v7067, %v7834
      %v7867 = vmul.f32 %v6804, %v7835
      %v7868 = vmul.f32 %v6806, %v7836
      %v7869 = vmul.f32 %v6893, %v7837
      %v7870 = vmul.f32 %v6895, %v7838
      %v7871 = vmul.f32 %v6982, %v7839
      %v7872 = vmul.f32 %v6984, %v7840
      %v7873 = vmul.f32 %v7071, %v7841
      %v7874 = vmul.f32 %v7073, %v7842
      %v7875 = vld [vmem:[%s10] sm:$0xff]
      %v7876 = vld [vmem:[%s11] sm:$0xff]
      %7878 = vset.pattern.permute.xlu0 0
      %7879 = vperm.xlu0 %7878, %v7876
      %v7880 = vpop.permute.xlu0 %7879
      %v7883 = vsel %vm3378, %v7875, 0
      %7885 = vmatprep.subr.mxu0 %v7844
      %7886 = vmatpush1.msra.mxu0 %v7843
      %7887 = vmatprep.subr.mxu0 %v7852
      %7888 = vmatpush1.msra.mxu0 %v7851
      %7889 = vmatprep.subr.mxu0 %v7860
      %7890 = vmatpush1.msra.mxu0 %v7859
      %7891 = vmatprep.subr.mxu0 %v7868
      %7892 = vmatpush1.msra.mxu0 %v7867
      %7893 = vmatprep.subr.mxu0 0.0
      %7894 = vmatpush1.msra.mxu0 0.0
      %7895 = vmatprep.subr.mxu0 0.0
      %7896 = vmatpush1.msra.mxu0 0.0
      %7897 = vmatprep.subr.mxu0 0.0
      %7898 = vmatpush1.msra.mxu0 0.0
      %7899 = vmatprep.subr.mxu0 0.0
      %7900 = vmatpush1.msra.mxu0 0.0
      %7901 = vmatprep.subr.mxu0 0.0
      %7902 = vmatpush1.msra.mxu0 0.0
      %7903 = vmatprep.subr.mxu0 0.0
      %7904 = vmatpush1.msra.mxu0 0.0
      %7905 = vmatprep.subr.mxu0 0.0
      %7906 = vmatpush1.msra.mxu0 0.0
      %7907 = vmatprep.subr.mxu0 0.0
      %7908 = vmatpush1.msra.mxu0 0.0
      %7909 = vmatprep.subr.mxu0 0.0
      %7910 = vmatpush1.msra.mxu0 0.0
      %7911 = vmatprep.subr.mxu0 0.0
      %7912 = vmatpush1.msra.mxu0 0.0
      %7913 = vmatprep.subr.mxu0 0.0
      %7914 = vmatpush1.msra.mxu0 0.0
      %7915 = vmatprep.subr.mxu0 0.0
      %7916 = vmatpush1.msra.mxu0 0.0
      %7917 = vmatprep.subr.mxu0 0.0
      %7918 = vmatpush1.msra.mxu0 0.0
      %7919 = vmatprep.subr.mxu0 0.0
      %7920 = vmatpush1.msra.mxu0 0.0
      %7921 = vmatprep.subr.mxu0 0.0
      %7922 = vmatpush1.msra.mxu0 0.0
      %7923 = vmatprep.subr.mxu0 0.0
      %7924 = vmatpush1.msra.mxu0 0.0
      %7925 = vmatprep.subr.mxu0 0.0
      %7926 = vmatpush1.msra.mxu0 0.0
      %7927 = vmatprep.subr.mxu0 0.0
      %7928 = vmatpush1.msra.mxu0 0.0
      %7929 = vmatprep.subr.mxu0 0.0
      %7930 = vmatpush1.msra.mxu0 0.0
      %7931 = vmatprep.subr.mxu0 0.0
      %7932 = vmatpush1.msra.mxu0 0.0
      %7933 = vmatprep.subr.mxu0 0.0
      %7934 = vmatpush1.msra.mxu0 0.0
      %7935 = vmatprep.subr.mxu0 0.0
      %7936 = vmatpush1.msra.mxu0 0.0
      %7937 = vmatprep.subr.mxu0 0.0
      %7938 = vmatpush1.msra.mxu0 0.0
      %7939 = vmatprep.subr.mxu0 0.0
      %7940 = vmatpush1.msra.mxu0 0.0
      %7941 = vmatprep.subr.mxu0 0.0
      %7942 = vmatpush1.msra.mxu0 0.0
      %7943 = vmatprep.subr.mxu0 0.0
      %7944 = vmatpush1.msra.mxu0 0.0
      %7945 = vmatprep.subr.mxu0 0.0
      %7946 = vmatpush1.msra.mxu0 0.0
      %7947 = vmatprep.subr.mxu0 0.0
      %7948 = vmatpush1.msra.mxu0 0.0
      %7949 = vmatprep.mubr.f32.mxu0 0.0
      %7950 = vmatmul.mubr.f32.gmra.mrb[0].mxu0 %v7883
      %v7951 = vpop.f32.mrb[0].mxu0
      %v7952 = vadd.f32 %v7880, %v7951
      %v7953 = vpop.f32.mrb[0].mxu0
      %v7954 = vadd.f32 %v7880, %v7953
      %7955 = vdwg.mxu0
      %7956 = vmatprep.subr.mxu0 %v7846
      %7957 = vmatpush1.msra.mxu0 %v7845
      %7958 = vmatprep.subr.mxu0 %v7854
      %7959 = vmatpush1.msra.mxu0 %v7853
      %7960 = vmatprep.subr.mxu0 %v7862
      %7961 = vmatpush1.msra.mxu0 %v7861
      %7962 = vmatprep.subr.mxu0 %v7870
      %7963 = vmatpush1.msra.mxu0 %v7869
      %7964 = vmatprep.subr.mxu0 0.0
      %7965 = vmatpush1.msra.mxu0 0.0
      %7966 = vmatprep.subr.mxu0 0.0
      %7967 = vmatpush1.msra.mxu0 0.0
      %7968 = vmatprep.subr.mxu0 0.0
      %7969 = vmatpush1.msra.mxu0 0.0
      %7970 = vmatprep.subr.mxu0 0.0
      %7971 = vmatpush1.msra.mxu0 0.0
      %7972 = vmatprep.subr.mxu0 0.0
      %7973 = vmatpush1.msra.mxu0 0.0
      %7974 = vmatprep.subr.mxu0 0.0
      %7975 = vmatpush1.msra.mxu0 0.0
      %7976 = vmatprep.subr.mxu0 0.0
      %7977 = vmatpush1.msra.mxu0 0.0
      %7978 = vmatprep.subr.mxu0 0.0
      %7979 = vmatpush1.msra.mxu0 0.0
      %7980 = vmatprep.subr.mxu0 0.0
      %7981 = vmatpush1.msra.mxu0 0.0
      %7982 = vmatprep.subr.mxu0 0.0
      %7983 = vmatpush1.msra.mxu0 0.0
      %7984 = vmatprep.subr.mxu0 0.0
      %7985 = vmatpush1.msra.mxu0 0.0
      %7986 = vmatprep.subr.mxu0 0.0
      %7987 = vmatpush1.msra.mxu0 0.0
      %7988 = vmatprep.subr.mxu0 0.0
      %7989 = vmatpush1.msra.mxu0 0.0
      %7990 = vmatprep.subr.mxu0 0.0
      %7991 = vmatpush1.msra.mxu0 0.0
      %7992 = vmatprep.subr.mxu0 0.0
      %7993 = vmatpush1.msra.mxu0 0.0
      %7994 = vmatprep.subr.mxu0 0.0
      %7995 = vmatpush1.msra.mxu0 0.0
      %7996 = vmatprep.subr.mxu0 0.0
      %7997 = vmatpush1.msra.mxu0 0.0
      %7998 = vmatprep.subr.mxu0 0.0
      %7999 = vmatpush1.msra.mxu0 0.0
      %8000 = vmatprep.subr.mxu0 0.0
      %8001 = vmatpush1.msra.mxu0 0.0
      %8002 = vmatprep.subr.mxu0 0.0
      %8003 = vmatpush1.msra.mxu0 0.0
      %8004 = vmatprep.subr.mxu0 0.0
      %8005 = vmatpush1.msra.mxu0 0.0
      %8006 = vmatprep.subr.mxu0 0.0
      %8007 = vmatpush1.msra.mxu0 0.0
      %8008 = vmatprep.subr.mxu0 0.0
      %8009 = vmatpush1.msra.mxu0 0.0
      %8010 = vmatprep.subr.mxu0 0.0
      %8011 = vmatpush1.msra.mxu0 0.0
      %8012 = vmatprep.subr.mxu0 0.0
      %8013 = vmatpush1.msra.mxu0 0.0
      %8014 = vmatprep.subr.mxu0 0.0
      %8015 = vmatpush1.msra.mxu0 0.0
      %8016 = vmatprep.subr.mxu0 0.0
      %8017 = vmatpush1.msra.mxu0 0.0
      %8018 = vmatprep.subr.mxu0 0.0
      %8019 = vmatpush1.msra.mxu0 0.0
      %8020 = vmatprep.mubr.f32.mxu0 0.0
      %8021 = vmatmul.mubr.f32.gmra.mrb[0].mxu0 %v7883
      %v8022 = vpop.f32.mrb[0].mxu0
      %v8023 = vadd.f32 %v7880, %v8022
      %v8024 = vpop.f32.mrb[0].mxu0
      %v8025 = vadd.f32 %v7880, %v8024
      %8026 = vdwg.mxu0
      %8027 = vmatprep.subr.mxu0 %v7848
      %8028 = vmatpush1.msra.mxu0 %v7847
      %8029 = vmatprep.subr.mxu0 %v7856
      %8030 = vmatpush1.msra.mxu0 %v7855
      %8031 = vmatprep.subr.mxu0 %v7864
      %8032 = vmatpush1.msra.mxu0 %v7863
      %8033 = vmatprep.subr.mxu0 %v7872
      %8034 = vmatpush1.msra.mxu0 %v7871
      %8035 = vmatprep.subr.mxu0 0.0
      %8036 = vmatpush1.msra.mxu0 0.0
      %8037 = vmatprep.subr.mxu0 0.0
      %8038 = vmatpush1.msra.mxu0 0.0
      %8039 = vmatprep.subr.mxu0 0.0
      %8040 = vmatpush1.msra.mxu0 0.0
      %8041 = vmatprep.subr.mxu0 0.0
      %8042 = vmatpush1.msra.mxu0 0.0
      %8043 = vmatprep.subr.mxu0 0.0
      %8044 = vmatpush1.msra.mxu0 0.0
      %8045 = vmatprep.subr.mxu0 0.0
      %8046 = vmatpush1.msra.mxu0 0.0
      %8047 = vmatprep.subr.mxu0 0.0
      %8048 = vmatpush1.msra.mxu0 0.0
      %8049 = vmatprep.subr.mxu0 0.0
      %8050 = vmatpush1.msra.mxu0 0.0
      %8051 = vmatprep.subr.mxu0 0.0
      %8052 = vmatpush1.msra.mxu0 0.0
      %8053 = vmatprep.subr.mxu0 0.0
      %8054 = vmatpush1.msra.mxu0 0.0
      %8055 = vmatprep.subr.mxu0 0.0
      %8056 = vmatpush1.msra.mxu0 0.0
      %8057 = vmatprep.subr.mxu0 0.0
      %8058 = vmatpush1.msra.mxu0 0.0
      %8059 = vmatprep.subr.mxu0 0.0
      %8060 = vmatpush1.msra.mxu0 0.0
      %8061 = vmatprep.subr.mxu0 0.0
      %8062 = vmatpush1.msra.mxu0 0.0
      %8063 = vmatprep.subr.mxu0 0.0
      %8064 = vmatpush1.msra.mxu0 0.0
      %8065 = vmatprep.subr.mxu0 0.0
      %8066 = vmatpush1.msra.mxu0 0.0
      %8067 = vmatprep.subr.mxu0 0.0
      %8068 = vmatpush1.msra.mxu0 0.0
      %8069 = vmatprep.subr.mxu0 0.0
      %8070 = vmatpush1.msra.mxu0 0.0
      %8071 = vmatprep.subr.mxu0 0.0
      %8072 = vmatpush1.msra.mxu0 0.0
      %8073 = vmatprep.subr.mxu0 0.0
      %8074 = vmatpush1.msra.mxu0 0.0
      %8075 = vmatprep.subr.mxu0 0.0
      %8076 = vmatpush1.msra.mxu0 0.0
      %8077 = vmatprep.subr.mxu0 0.0
      %8078 = vmatpush1.msra.mxu0 0.0
      %8079 = vmatprep.subr.mxu0 0.0
      %8080 = vmatpush1.msra.mxu0 0.0
      %8081 = vmatprep.subr.mxu0 0.0
      %8082 = vmatpush1.msra.mxu0 0.0
      %8083 = vmatprep.subr.mxu0 0.0
      %8084 = vmatpush1.msra.mxu0 0.0
      %8085 = vmatprep.subr.mxu0 0.0
      %8086 = vmatpush1.msra.mxu0 0.0
      %8087 = vmatprep.subr.mxu0 0.0
      %8088 = vmatpush1.msra.mxu0 0.0
      %8089 = vmatprep.subr.mxu0 0.0
      %8090 = vmatpush1.msra.mxu0 0.0
      %8091 = vmatprep.mubr.f32.mxu0 0.0
      %8092 = vmatmul.mubr.f32.gmra.mrb[0].mxu0 %v7883
      %v8093 = vpop.f32.mrb[0].mxu0
      %v8094 = vadd.f32 %v7880, %v8093
      %v8095 = vpop.f32.mrb[0].mxu0
      %v8096 = vadd.f32 %v7880, %v8095
      %8097 = vdwg.mxu0
      %8098 = vmatprep.subr.mxu0 %v7850
      %8099 = vmatpush1.msra.mxu0 %v7849
      %8100 = vmatprep.subr.mxu0 %v7858
      %8101 = vmatpush1.msra.mxu0 %v7857
      %8102 = vmatprep.subr.mxu0 %v7866
      %8103 = vmatpush1.msra.mxu0 %v7865
      %8104 = vmatprep.subr.mxu0 %v7874
      %8105 = vmatpush1.msra.mxu0 %v7873
      %8106 = vmatprep.subr.mxu0 0.0
      %8107 = vmatpush1.msra.mxu0 0.0
      %8108 = vmatprep.subr.mxu0 0.0
      %8109 = vmatpush1.msra.mxu0 0.0
      %8110 = vmatprep.subr.mxu0 0.0
      %8111 = vmatpush1.msra.mxu0 0.0
      %8112 = vmatprep.subr.mxu0 0.0
      %8113 = vmatpush1.msra.mxu0 0.0
      %8114 = vmatprep.subr.mxu0 0.0
      %8115 = vmatpush1.msra.mxu0 0.0
      %8116 = vmatprep.subr.mxu0 0.0
      %8117 = vmatpush1.msra.mxu0 0.0
      %8118 = vmatprep.subr.mxu0 0.0
      %8119 = vmatpush1.msra.mxu0 0.0
      %8120 = vmatprep.subr.mxu0 0.0
      %8121 = vmatpush1.msra.mxu0 0.0
      %8122 = vmatprep.subr.mxu0 0.0
      %8123 = vmatpush1.msra.mxu0 0.0
      %8124 = vmatprep.subr.mxu0 0.0
      %8125 = vmatpush1.msra.mxu0 0.0
      %8126 = vmatprep.subr.mxu0 0.0
      %8127 = vmatpush1.msra.mxu0 0.0
      %8128 = vmatprep.subr.mxu0 0.0
      %8129 = vmatpush1.msra.mxu0 0.0
      %8130 = vmatprep.subr.mxu0 0.0
      %8131 = vmatpush1.msra.mxu0 0.0
      %8132 = vmatprep.subr.mxu0 0.0
      %8133 = vmatpush1.msra.mxu0 0.0
      %8134 = vmatprep.subr.mxu0 0.0
      %8135 = vmatpush1.msra.mxu0 0.0
      %8136 = vmatprep.subr.mxu0 0.0
      %8137 = vmatpush1.msra.mxu0 0.0
      %8138 = vmatprep.subr.mxu0 0.0
      %8139 = vmatpush1.msra.mxu0 0.0
      %8140 = vmatprep.subr.mxu0 0.0
      %8141 = vmatpush1.msra.mxu0 0.0
      %8142 = vmatprep.subr.mxu0 0.0
      %8143 = vmatpush1.msra.mxu0 0.0
      %8144 = vmatprep.subr.mxu0 0.0
      %8145 = vmatpush1.msra.mxu0 0.0
      %8146 = vmatprep.subr.mxu0 0.0
      %8147 = vmatpush1.msra.mxu0 0.0
      %8148 = vmatprep.subr.mxu0 0.0
      %8149 = vmatpush1.msra.mxu0 0.0
      %8150 = vmatprep.subr.mxu0 0.0
      %8151 = vmatpush1.msra.mxu0 0.0
      %8152 = vmatprep.subr.mxu0 0.0
      %8153 = vmatpush1.msra.mxu0 0.0
      %8154 = vmatprep.subr.mxu0 0.0
      %8155 = vmatpush1.msra.mxu0 0.0
      %8156 = vmatprep.subr.mxu0 0.0
      %8157 = vmatpush1.msra.mxu0 0.0
      %8158 = vmatprep.subr.mxu0 0.0
      %8159 = vmatpush1.msra.mxu0 0.0
      %8160 = vmatprep.subr.mxu0 0.0
      %8161 = vmatpush1.msra.mxu0 0.0
      %8162 = vmatprep.mubr.f32.mxu0 0.0
      %8163 = vmatmul.mubr.f32.gmra.mrb[0].mxu0 %v7883
      %v8164 = vpop.f32.mrb[0].mxu0
      %v8165 = vadd.f32 %v7880, %v8164
      %v8166 = vpop.f32.mrb[0].mxu0
      %v8167 = vadd.f32 %v7880, %v8166
      %8168 = vdwg.mxu0
      %v8169 = vadd.f32 %v7952, %v6670
      %v8170 = vadd.f32 %v7954, %v6671
      %v8171 = vadd.f32 %v8023, %v6672
      %v8172 = vadd.f32 %v8025, %v6673
      %v8173 = vadd.f32 %v8094, %v6674
      %v8174 = vadd.f32 %v8096, %v6675
      %v8175 = vadd.f32 %v8165, %v6676
      %v8176 = vadd.f32 %v8167, %v6677
      %8177 = vst [vmem:[%s694] sm:$0xff] %v8169
      %8178 = vst [vmem:[%s694 + $0x8] sm:$0xff] %v8170
      %8179 = vst [vmem:[%s694 + $0x10] sm:$0xff] %v8171
      %8180 = vst [vmem:[%s694 + $0x18] sm:$0xff] %v8172
      %8181 = vst [vmem:[%s694 + $0x20] sm:$0xff] %v8173
      %8182 = vst [vmem:[%s694 + $0x28] sm:$0xff] %v8174
      %8183 = vst [vmem:[%s694 + $0x30] sm:$0xff] %v8175
      %8184 = vst [vmem:[%s694 + $0x38] sm:$0xff] %v8176
      %s8185 = smul.u32 8, %s28
      %p8186 = scmp.lt.s32.totalorder %s27, 1
      %s8187 = scalar_select %p8186, %s27, 1
      %p8188 = scmp.lt.s32.totalorder %s8185, 7
      %s8189 = scalar_select %p8188, %s8185, 7
      %s8190 = smul.addr %s8187, 8
      %s8191 = sadd.s32 %s8189, %s8190
      %s8192 = smul.addr %s8191, 8
      %s8193 = scalar_lea.vmem %s12, %s8192
      // Predicated region
      $region69: #{upsample_forward.1} parent=67 // pred_check
        %p8194 = pneg %p376
      $region70: #{upsample_forward.1} parent=67 // pred_check_branch
        %8196 = sbr.rel (%p8194) target = $region72
      $region71: #{upsample_forward.1} parent=67 // pred_region
        %s8197 = smul.u32 8, %s28
      $region72: #{upsample_forward.1} parent=67 // pred_fallthru
        _
    $region68: #{upsample_forward.1} parent=5 // pred_fallthru
      _
    %p8198 = scmp.le.s32.totalorder 2, %s18
    // Predicated region
    $region73: #{upsample_forward.1} parent=5 // pred_check
      %p8199 = pneg %p8198
    $region74: #{upsample_forward.1} parent=5 // pred_check_branch
      %8201 = sbr.rel (%p8199) target = $region76
    $region75: #{upsample_forward.1} parent=5 // pred_region
      %s8202 = ssub.s32 %s18, 2
      // Predicated region
      $region77: #{upsample_forward.1} parent=75 // pred_check
        %p8203 = pneg %p382
      $region78: #{upsample_forward.1} parent=75 // pred_check_branch
        %8205 = sbr.rel (%p8203) target = $region80
      $region79: #{upsample_forward.1} parent=75 // pred_region
        %s8206 = smul.u32 8, %s30
        %p8207 = scmp.lt.s32.totalorder %s29, 1
        %s8208 = scalar_select %p8207, %s29, 1
        %p8209 = scmp.lt.s32.totalorder %s8206, 7
        %s8210 = scalar_select %p8209, %s8206, 7
        %s8211 = smul.addr %s8208, 8
        %s8212 = sadd.s32 %s8210, %s8211
        %s8213 = smul.addr %s8212, 8
        %s8214 = scalar_lea.vmem %s12, %s8213
      $region80: #{upsample_forward.1} parent=75 // pred_fallthru
        _
    $region76: #{upsample_forward.1} parent=5 // pred_fallthru
      _
  $region6: #{upsample_forward.1} parent=0 // loop_footer
    %s22 = sadd.s32 1, %s18
  $region7: #{upsample_forward.1} parent=0 // loop_footer_branch
    %17 = sbr.rel target = $region3
  $region8: #{upsample_forward.1} parent=0 // loop_exit
    _

</llo_original>
